<compile_context>
chip_gen: v7x
topology: tpu7x:2x2x1
jax: 0.10.0
libtpu: 0.0.40
codegen_flags: <defaults>
</compile_context>

<pallas_src>
import functools

import jax
import jax.numpy as jnp
from jax.experimental import pallas as pl
from jax.experimental.pallas import tpu as pltpu


# ----------------------------------------------------------------------------
# Fused kernel (one batch element per grid step, everything stays in VMEM).
# ----------------------------------------------------------------------------
def _up_fused_kernel(x_ref, skip_ref, um_ref, mask_ref,
                     hw_ref, hb_ref, ha_ref,
                     dwh_ref, dws_ref, db_ref, da_ref,
                     mw_ref, mb_ref, ma_ref,
                     sc_ref, o_ref, *, W2, L2):
    # x_ref:    (1, Cin_p, L1)  bf16 flattened input (channels padded to 8k)
    # skip_ref: (1, Cout, L2)   bf16 flattened skip connection (L2 = 2H*2W)
    # um_ref:   (L1, L2)        bf16 bilinear-x2 interpolation matrix
    # mask_ref: (9, L2)         f32 0/1 validity mask per 3x3 tap (zero pad)
    # hw/dwh/dws/mw: (9, Cout, C) bf16 conv weights, one (Cout, C) slab / tap
    # hb/ha/db/...: (Cout, 1)   f32 bias / PReLU slope per output channel
    # sc_ref:   (Cout, 1)       f32 channel-split scale (t on first p chans)
    # o_ref:    (1, Cout, L2)   f32
    Cout = o_ref.shape[1]
    m9 = mask_ref[...]                                    # (9, L2) f32

    def conv_acc(acc, xf, w_ref):
        # acc (Cout, L2) f32 += conv3x3(xf) with 'same' zero padding.
        # xf: (C, L2) f32.  Each tap is one lane-roll of the flattened map;
        # the border mask kills the wrap-around (= zero padding) in f32 on
        # the VPU, and the tap is narrowed to bf16 only at the MXU dot
        # (bf16 x bf16 -> f32 accumulate).  No (9C, L2) patch buffer is ever
        # materialised or concatenated.
        k = 0
        for dy in (-1, 0, 1):
            for dx in (-1, 0, 1):
                off = dy * W2 + dx
                if off == 0:
                    tap = xf
                else:
                    tap = pltpu.roll(xf, (-off) % L2, axis=1) * m9[k:k + 1, :]
                acc = acc + jnp.dot(w_ref[k], tap.astype(jnp.bfloat16),
                                    preferred_element_type=jnp.float32)
                k += 1
        return acc

    def conv_prelu(parts, b_ref, a_ref):
        acc = jnp.zeros((Cout, L2), jnp.float32)
        for xf, w_ref in parts:
            acc = conv_acc(acc, xf, w_ref)
        y = acc + b_ref[...]
        return jnp.where(y >= 0.0, y, y * a_ref[...])     # per-channel PReLU

    # head: bilinear x2 upsample as ONE lane-dense bf16 MXU matmul (f32 out),
    # then conv3x3 + PReLU.
    xu = jnp.dot(x_ref[0], um_ref[...], preferred_element_type=jnp.float32)
    h = conv_prelu([(xu, hw_ref)], hb_ref, ha_ref)                    # (Cout, L2)

    # decouple: conv3x3 on cat(head, skip) == two accumulating convs (weight
    # split on the host), no concatenate copy.
    d = conv_prelu([(h, dwh_ref),
                    (skip_ref[0].astype(jnp.float32), dws_ref)], db_ref, da_ref)

    # channel-split * t as a per-sublane f32 scale, then merge conv + PReLU.
    o_ref[0] = conv_prelu([(d * sc_ref[...], mw_ref)], mb_ref, ma_ref)


# ----------------------------------------------------------------------------
# One-time (parameter-load-time) constants: interpolation matrix, tap masks,
# weight re-layouts.  Kept OUT of the per-call jitted forward.
# ----------------------------------------------------------------------------
def _up1d_matrix(n):
    """(2n, n) bilinear x2 matrix, align_corners=False (matches F.interpolate).
    Entries are small dyadic rationals, exact in bf16."""
    i = jnp.arange(2 * n, dtype=jnp.float32)
    src = jnp.maximum((i + 0.5) * 0.5 - 0.5, 0.0)
    i0 = jnp.clip(jnp.floor(src).astype(jnp.int32), 0, n - 1)
    i1 = jnp.clip(i0 + 1, 0, n - 1)
    w1 = src - i0.astype(jnp.float32)
    rows = jnp.arange(2 * n)
    U = jnp.zeros((2 * n, n), jnp.float32)
    U = U.at[rows, i0].add(1.0 - w1)
    U = U.at[rows, i1].add(w1)
    return U


def _w9(w):
    """Torch layout (Cout, C, 3, 3) -> (9, Cout, C); slab k = ky*3 + kx
    matches the kernel's (dy, dx) tap order."""
    cout, c = w.shape[0], w.shape[1]
    return jnp.transpose(w, (2, 3, 0, 1)).reshape(9, cout, c)


def _tap_masks(H2, W2):
    """(9, H2*W2) 0/1 masks: tap k is valid where its 3x3 neighbour lies
    inside the image ('same' zero padding; also blocks roll wrap-around)."""
    L2 = H2 * W2
    h = jnp.arange(L2) // W2
    w = jnp.arange(L2) % W2
    masks = []
    for dy in (-1, 0, 1):
        for dx in (-1, 0, 1):
            ok = jnp.ones((L2,), jnp.bool_)
            if dy == -1:
                ok = ok & (h >= 1)
            if dy == 1:
                ok = ok & (h <= H2 - 2)
            if dx == -1:
                ok = ok & (w >= 1)
            if dx == 1:
                ok = ok & (w <= W2 - 2)
            masks.append(ok)
    return jnp.stack(masks).astype(jnp.float32)


def precompute(params, num_in_ch, num_out_ch, H, W, split):
    """Build all static kernel constants once (call outside the jitted fwd)."""
    Cin, Cout = num_in_ch, num_out_ch
    H2, W2 = 2 * H, 2 * W
    L1, L2 = H * W, H2 * W2

    # The whole-image bilinear matrix is O((H*W)^2); gate it so it cannot
    # blow past VMEM (v7x has only 64 MiB physical).
    if 2 * L1 * L2 > 8 * 1024 * 1024:
        # TODO(synk): separable (row/col) upsample + row-tiled grid with halos
        # for feature maps larger than ~32x32.
        raise NotImplementedError("feature map too large for the whole-image "
                                  "bilinear-matrix upsample path")

    Cin_p = -(-Cin // 8) * 8
    head_w = jnp.zeros((Cout, Cin_p, 3, 3), jnp.float32)
    head_w = head_w.at[:, :Cin].set(params["head_w"].astype(jnp.float32))
    dec_w = params["dec_w"].astype(jnp.float32)                 # (Cout, 2Cout, 3, 3)

    U_h, U_w = _up1d_matrix(H), _up1d_matrix(W)
    up_mat = jnp.einsum("oh,vw->ovhw", U_h, U_w).reshape(L2, L1).T   # (L1, L2)

    col = lambda v: v.astype(jnp.float32).reshape(-1, 1)
    bf = lambda a: a.astype(jnp.bfloat16)
    p_split = int(Cout * split)
    split_ind = (jnp.arange(Cout) < p_split).astype(jnp.float32).reshape(Cout, 1)

    return {
        "up_mat": bf(up_mat),                                    # (L1, L2)
        "tap_mask": _tap_masks(H2, W2),                          # (9, L2) f32
        "head_w": bf(_w9(head_w)),                               # (9, Cout, Cin_p)
        "head_b": col(params["head_b"]), "head_a": col(params["head_a"]),
        "dec_wh": bf(_w9(dec_w[:, :Cout])),                      # (9, Cout, Cout)
        "dec_ws": bf(_w9(dec_w[:, Cout:])),                      # (9, Cout, Cout)
        "dec_b": col(params["dec_b"]), "dec_a": col(params["dec_a"]),
        "mrg_w": bf(_w9(params["mrg_w"].astype(jnp.float32))),   # (9, Cout, Cout)
        "mrg_b": col(params["mrg_b"]), "mrg_a": col(params["mrg_a"]),
        "split_ind": split_ind,                                  # (Cout, 1) 0/1
    }


# ----------------------------------------------------------------------------
# Jittable forward.
# ----------------------------------------------------------------------------
def up_forward(consts, x, skip, t):
    """Fused Pallas forward of `up`.  x: (B, Cin, H, W), skip: (B, Cout, 2H, 2W),
    t: scalar.  Returns (B, Cout, 2H, 2W) f32."""
    B, Cin, H, W = x.shape
    H2, W2 = 2 * H, 2 * W
    L1, L2 = H * W, H2 * W2
    Cout, Cin_p = consts["head_w"].shape[1], consts["head_w"].shape[2]
    assert consts["up_mat"].shape == (L1, L2), "precompute/input shape mismatch"
    # NOTE: L1/L2 are multiples of 128 for even W >= 8 (lane-dense stores);
    # odd widths would fall back to masked partial stores.

    # Channel-pad to a sublane multiple, flatten HW onto lanes, cast the
    # activations to bf16 once (halves input DMA; MXU operands are bf16).
    x_f = jnp.zeros((B, Cin_p, L1), jnp.bfloat16)
    x_f = x_f.at[:, :Cin].set(x.reshape(B, Cin, L1).astype(jnp.bfloat16))
    skip_f = skip.reshape(B, Cout, L2).astype(jnp.bfloat16)

    ind = consts["split_ind"]
    scale = (ind * t + (1.0 - ind)).astype(jnp.float32)          # (Cout, 1)

    args = (x_f, skip_f, consts["up_mat"], consts["tap_mask"],
            consts["head_w"], consts["head_b"], consts["head_a"],
            consts["dec_wh"], consts["dec_ws"], consts["dec_b"], consts["dec_a"],
            consts["mrg_w"], consts["mrg_b"], consts["mrg_a"], scale)

    full = lambda a: pl.BlockSpec(a.shape, lambda b: (0,) * a.ndim)  # resident
    kernel = functools.partial(_up_fused_kernel, W2=W2, L2=L2)

    flops = 2 * B * L2 * (Cin_p * L1 + 9 * Cout * (Cin_p + 2 * Cout + Cout))
    bytes_accessed = (sum(int(a.size) * a.dtype.itemsize for a in args)
                      + B * Cout * L2 * 4)

    # TODO(synk): when B == 1 on v7x, add a second "parallel" grid axis over
    # output row-blocks (with halos) so both TensorCores get work.
    out = pl.pallas_call(
        kernel,
        out_shape=jax.ShapeDtypeStruct((B, Cout, L2), jnp.float32),
        grid=(B,),
        in_specs=[
            pl.BlockSpec((1, Cin_p, L1), lambda b: (b, 0, 0)),
            pl.BlockSpec((1, Cout, L2), lambda b: (b, 0, 0)),
        ] + [full(a) for a in args[2:]],
        out_specs=pl.BlockSpec((1, Cout, L2), lambda b: (b, 0, 0)),
        compiler_params=pltpu.CompilerParams(
            dimension_semantics=("parallel",),
            vmem_limit_bytes=48 * 1024 * 1024),
        cost_estimate=pl.CostEstimate(flops=flops, transcendentals=0,
                                      bytes_accessed=bytes_accessed),
    )(*args)

    return out.reshape(B, Cout, H2, W2)


# ----------------------------------------------------------------------------
# Parameter init (deterministic) and a pure-JAX reference for the check.
# ----------------------------------------------------------------------------
def init_params(key, num_in_ch, num_out_ch):
    ks = jax.random.split(key, 6)

    def conv_w(k, cout, cin):
        return (jax.random.normal(k, (cout, cin, 3, 3), jnp.float32)
                / jnp.sqrt(9.0 * cin))

    return {
        "head_w": conv_w(ks[0], num_out_ch, num_in_ch),
        "head_b": 0.1 * jax.random.normal(ks[1], (num_out_ch,), jnp.float32),
        "head_a": jnp.full((num_out_ch,), 0.25, jnp.float32),   # PReLU default
        "dec_w": conv_w(ks[2], num_out_ch, 2 * num_out_ch),
        "dec_b": 0.1 * jax.random.normal(ks[3], (num_out_ch,), jnp.float32),
        "dec_a": jnp.full((num_out_ch,), 0.25, jnp.float32),
        "mrg_w": conv_w(ks[4], num_out_ch, num_out_ch),
        "mrg_b": 0.1 * jax.random.normal(ks[5], (num_out_ch,), jnp.float32),
        "mrg_a": jnp.full((num_out_ch,), 0.25, jnp.float32),
    }


def _ref_upsample_x2(x):  # NCHW, matches F.interpolate(align_corners=False)
    B, C, H, W = x.shape

    def idx(n):
        i = jnp.arange(2 * n, dtype=jnp.float32)
        src = jnp.maximum((i + 0.5) * 0.5 - 0.5, 0.0)
        i0 = jnp.clip(jnp.floor(src).astype(jnp.int32), 0, n - 1)
        i1 = jnp.clip(i0 + 1, 0, n - 1)
        w1 = src - i0.astype(jnp.float32)
        return i0, i1, 1.0 - w1, w1

    h0, h1, a0, a1 = idx(H)
    w0, w1, b0, b1 = idx(W)
    xr = (x[:, :, h0, :] * a0[None, None, :, None]
          + x[:, :, h1, :] * a1[None, None, :, None])
    return (xr[:, :, :, w0] * b0[None, None, None, :]
            + xr[:, :, :, w1] * b1[None, None, None, :])


def _ref_conv_prelu(x, w, b, a):
    y = jax.lax.conv_general_dilated(
        x, w, window_strides=(1, 1), padding="SAME",
        dimension_numbers=("NCHW", "OIHW", "NCHW"))
    y = y + b[None, :, None, None]
    return jnp.where(y >= 0.0, y, a[None, :, None, None] * y)


def ref_forward(params, x, skip, t, split):
    xu = _ref_upsample_x2(x)
    h = _ref_conv_prelu(xu, params["head_w"], params["head_b"], params["head_a"])
    d = _ref_conv_prelu(jnp.concatenate([h, skip], axis=1),
                        params["dec_w"], params["dec_b"], params["dec_a"])
    c = d.shape[1]
    p = int(c * split)
    d = jnp.concatenate([d[:, :p] * t, d[:, p:]], axis=1)
    return _ref_conv_prelu(d, params["mrg_w"], params["mrg_b"], params["mrg_a"])


if __name__ == "__main__":
    key = jax.random.PRNGKey(0)
    kx, ksk, kp = jax.random.split(key, 3)

    num_in_ch, num_out_ch, split = 4, 8, 0.5
    B, H, W = 2, 16, 16

    x = jax.random.normal(kx, (B, num_in_ch, H, W), jnp.float32)           # NCHW
    skip_ch = jax.random.normal(ksk, (B, num_out_ch, 2 * H, 2 * W), jnp.float32)
    t = jnp.float32(0.7)                                                   # scalar gate

    params = init_params(kp, num_in_ch, num_out_ch)
    consts = precompute(params, num_in_ch, num_out_ch, H, W, split)        # once

    fwd = jax.jit(up_forward)
    out = jax.block_until_ready(fwd(consts, x, skip_ch, t))
    assert out.shape == (B, num_out_ch, 2 * H, 2 * W), out.shape

    ref = ref_forward(params, x, skip_ch, t, split)
    max_err = float(jnp.max(jnp.abs(out - ref)))
    # bf16 MXU operands (f32 accumulation, f32 VPU math) leave ~1e-2-level
    # absolute error on O(1) activations through the 4 chained matmul stages.
    assert max_err < 5e-2, f"max abs error vs reference: {max_err}"

    print("KERNEL_OK")
</pallas_src>

<mosaic_0001>
module attributes {stable_mosaic.version = 11 : i64} {
  func.func @_up_fused_kernel(%arg0: i32, %arg1: memref<1x8x256xbf16, #tpu.memory_space<vmem>>, %arg2: memref<1x8x1024xbf16, #tpu.memory_space<vmem>>, %arg3: memref<256x1024xbf16, #tpu.memory_space<vmem>>, %arg4: memref<9x1024xf32, #tpu.memory_space<vmem>>, %arg5: memref<9x8x8xbf16, #tpu.memory_space<vmem>>, %arg6: memref<8x1xf32, #tpu.memory_space<vmem>>, %arg7: memref<8x1xf32, #tpu.memory_space<vmem>>, %arg8: memref<9x8x8xbf16, #tpu.memory_space<vmem>>, %arg9: memref<9x8x8xbf16, #tpu.memory_space<vmem>>, %arg10: memref<8x1xf32, #tpu.memory_space<vmem>>, %arg11: memref<8x1xf32, #tpu.memory_space<vmem>>, %arg12: memref<9x8x8xbf16, #tpu.memory_space<vmem>>, %arg13: memref<8x1xf32, #tpu.memory_space<vmem>>, %arg14: memref<8x1xf32, #tpu.memory_space<vmem>>, %arg15: memref<8x1xf32, #tpu.memory_space<vmem>>, %arg16: memref<1x8x1024xf32, #tpu.memory_space<vmem>>) attributes {dimension_semantics = [#tpu.dimension_semantics<parallel>], iteration_bounds = array<i64: 2>, scalar_prefetch = 0 : i64, scratch_operands = 0 : i64, tpu.core_type = #tpu.core_type<tc>, window_params = [{transform_indices = @transform_0, window_bounds = array<i64: 1, 8, 256>}, {transform_indices = @transform_1, window_bounds = array<i64: 1, 8, 1024>}, {pipeline_mode = #tpu.pipeline_mode<synchronous>, transform_indices = @transform_2, window_bounds = array<i64: 256, 1024>}, {pipeline_mode = #tpu.pipeline_mode<synchronous>, transform_indices = @transform_3, window_bounds = array<i64: 9, 1024>}, {pipeline_mode = #tpu.pipeline_mode<synchronous>, transform_indices = @transform_4, window_bounds = array<i64: 9, 8, 8>}, {pipeline_mode = #tpu.pipeline_mode<synchronous>, transform_indices = @transform_5, window_bounds = array<i64: 8, 1>}, {pipeline_mode = #tpu.pipeline_mode<synchronous>, transform_indices = @transform_6, window_bounds = array<i64: 8, 1>}, {pipeline_mode = #tpu.pipeline_mode<synchronous>, transform_indices = @transform_7, window_bounds = array<i64: 9, 8, 8>}, {pipeline_mode = #tpu.pipeline_mode<synchronous>, transform_indices = @transform_8, window_bounds = array<i64: 9, 8, 8>}, {pipeline_mode = #tpu.pipeline_mode<synchronous>, transform_indices = @transform_9, window_bounds = array<i64: 8, 1>}, {pipeline_mode = #tpu.pipeline_mode<synchronous>, transform_indices = @transform_10, window_bounds = array<i64: 8, 1>}, {pipeline_mode = #tpu.pipeline_mode<synchronous>, transform_indices = @transform_11, window_bounds = array<i64: 9, 8, 8>}, {pipeline_mode = #tpu.pipeline_mode<synchronous>, transform_indices = @transform_12, window_bounds = array<i64: 8, 1>}, {pipeline_mode = #tpu.pipeline_mode<synchronous>, transform_indices = @transform_13, window_bounds = array<i64: 8, 1>}, {pipeline_mode = #tpu.pipeline_mode<synchronous>, transform_indices = @transform_14, window_bounds = array<i64: 8, 1>}, {transform_indices = @transform_15, window_bounds = array<i64: 1, 8, 1024>}]} {
    %c0 = arith.constant 0 : index
    %c0_0 = arith.constant 0 : index
    %0 = vector.load %arg4[%c0, %c0_0] : memref<9x1024xf32, #tpu.memory_space<vmem>>, vector<9x1024xf32>
    %c0_1 = arith.constant 0 : index
    %c0_2 = arith.constant 0 : index
    %c0_3 = arith.constant 0 : index
    %1 = vector.load %arg1[%c0_1, %c0_2, %c0_3] : memref<1x8x256xbf16, #tpu.memory_space<vmem>>, vector<1x8x256xbf16>
    %2 = vector.shape_cast %1 : vector<1x8x256xbf16> to vector<8x256xbf16>
    %c0_4 = arith.constant 0 : index
    %c0_5 = arith.constant 0 : index
    %3 = vector.load %arg3[%c0_4, %c0_5] : memref<256x1024xbf16, #tpu.memory_space<vmem>>, vector<256x1024xbf16>
    %cst = arith.constant dense<0.000000e+00> : vector<8x1024xf32>
    %4 = tpu.matmul %2, %3, %cst {dimension_numbers = #tpu.dot_dimension_numbers<[1], [0], [0], [1], [0, 0, 1, 1], [], []>} : vector<8x256xbf16>, vector<256x1024xbf16>, vector<8x1024xf32> -> vector<8x1024xf32>
    %cst_6 = arith.constant 0.000000e+00 : f32
    %5 = vector.broadcast %cst_6 : f32 to vector<8x1024xf32>
    %c33_i32 = arith.constant 33 : i32
    %6 = tpu.dynamic_rotate %4 by %c33_i32 dim 1 : vector<8x1024xf32>, i32 -> vector<8x1024xf32>
    %7 = vector.extract_strided_slice %0 {offsets = [0, 0], sizes = [1, 1024], strides = [1, 1]} : vector<9x1024xf32> to vector<1x1024xf32>
    %8 = vector.broadcast %7 : vector<1x1024xf32> to vector<8x1024xf32>
    %9 = arith.mulf %6, %8 : vector<8x1024xf32>
    %c0_7 = arith.constant 0 : index
    %c0_8 = arith.constant 0 : index
    %c0_9 = arith.constant 0 : index
    %10 = vector.load %arg5[%c0_7, %c0_8, %c0_9] : memref<9x8x8xbf16, #tpu.memory_space<vmem>>, vector<1x8x8xbf16>
    %11 = vector.shape_cast %10 : vector<1x8x8xbf16> to vector<8x8xbf16>
    %12 = arith.truncf %9 : vector<8x1024xf32> to vector<8x1024xbf16>
    %cst_10 = arith.constant dense<0.000000e+00> : vector<8x1024xf32>
    %13 = tpu.matmul %11, %12, %cst_10 {dimension_numbers = #tpu.dot_dimension_numbers<[1], [0], [0], [1], [0, 0, 1, 1], [], []>} : vector<8x8xbf16>, vector<8x1024xbf16>, vector<8x1024xf32> -> vector<8x1024xf32>
    %14 = arith.addf %5, %13 : vector<8x1024xf32>
    %c32_i32 = arith.constant 32 : i32
    %15 = tpu.dynamic_rotate %4 by %c32_i32 dim 1 : vector<8x1024xf32>, i32 -> vector<8x1024xf32>
    %16 = vector.extract_strided_slice %0 {offsets = [1, 0], sizes = [1, 1024], strides = [1, 1]} : vector<9x1024xf32> to vector<1x1024xf32>
    %17 = vector.broadcast %16 : vector<1x1024xf32> to vector<8x1024xf32>
    %18 = arith.mulf %15, %17 : vector<8x1024xf32>
    %c1 = arith.constant 1 : index
    %c0_11 = arith.constant 0 : index
    %c0_12 = arith.constant 0 : index
    %19 = vector.load %arg5[%c1, %c0_11, %c0_12] : memref<9x8x8xbf16, #tpu.memory_space<vmem>>, vector<1x8x8xbf16>
    %20 = vector.shape_cast %19 : vector<1x8x8xbf16> to vector<8x8xbf16>
    %21 = arith.truncf %18 : vector<8x1024xf32> to vector<8x1024xbf16>
    %cst_13 = arith.constant dense<0.000000e+00> : vector<8x1024xf32>
    %22 = tpu.matmul %20, %21, %cst_13 {dimension_numbers = #tpu.dot_dimension_numbers<[1], [0], [0], [1], [0, 0, 1, 1], [], []>} : vector<8x8xbf16>, vector<8x1024xbf16>, vector<8x1024xf32> -> vector<8x1024xf32>
    %23 = arith.addf %14, %22 : vector<8x1024xf32>
    %c31_i32 = arith.constant 31 : i32
    %24 = tpu.dynamic_rotate %4 by %c31_i32 dim 1 : vector<8x1024xf32>, i32 -> vector<8x1024xf32>
    %25 = vector.extract_strided_slice %0 {offsets = [2, 0], sizes = [1, 1024], strides = [1, 1]} : vector<9x1024xf32> to vector<1x1024xf32>
    %26 = vector.broadcast %25 : vector<1x1024xf32> to vector<8x1024xf32>
    %27 = arith.mulf %24, %26 : vector<8x1024xf32>
    %c2 = arith.constant 2 : index
    %c0_14 = arith.constant 0 : index
    %c0_15 = arith.constant 0 : index
    %28 = vector.load %arg5[%c2, %c0_14, %c0_15] : memref<9x8x8xbf16, #tpu.memory_space<vmem>>, vector<1x8x8xbf16>
    %29 = vector.shape_cast %28 : vector<1x8x8xbf16> to vector<8x8xbf16>
    %30 = arith.truncf %27 : vector<8x1024xf32> to vector<8x1024xbf16>
    %cst_16 = arith.constant dense<0.000000e+00> : vector<8x1024xf32>
    %31 = tpu.matmul %29, %30, %cst_16 {dimension_numbers = #tpu.dot_dimension_numbers<[1], [0], [0], [1], [0, 0, 1, 1], [], []>} : vector<8x8xbf16>, vector<8x1024xbf16>, vector<8x1024xf32> -> vector<8x1024xf32>
    %32 = arith.addf %23, %31 : vector<8x1024xf32>
    %c1_i32 = arith.constant 1 : i32
    %33 = tpu.dynamic_rotate %4 by %c1_i32 dim 1 : vector<8x1024xf32>, i32 -> vector<8x1024xf32>
    %34 = vector.extract_strided_slice %0 {offsets = [3, 0], sizes = [1, 1024], strides = [1, 1]} : vector<9x1024xf32> to vector<1x1024xf32>
    %35 = vector.broadcast %34 : vector<1x1024xf32> to vector<8x1024xf32>
    %36 = arith.mulf %33, %35 : vector<8x1024xf32>
    %c3 = arith.constant 3 : index
    %c0_17 = arith.constant 0 : index
    %c0_18 = arith.constant 0 : index
    %37 = vector.load %arg5[%c3, %c0_17, %c0_18] : memref<9x8x8xbf16, #tpu.memory_space<vmem>>, vector<1x8x8xbf16>
    %38 = vector.shape_cast %37 : vector<1x8x8xbf16> to vector<8x8xbf16>
    %39 = arith.truncf %36 : vector<8x1024xf32> to vector<8x1024xbf16>
    %cst_19 = arith.constant dense<0.000000e+00> : vector<8x1024xf32>
    %40 = tpu.matmul %38, %39, %cst_19 {dimension_numbers = #tpu.dot_dimension_numbers<[1], [0], [0], [1], [0, 0, 1, 1], [], []>} : vector<8x8xbf16>, vector<8x1024xbf16>, vector<8x1024xf32> -> vector<8x1024xf32>
    %41 = arith.addf %32, %40 : vector<8x1024xf32>
    %c4 = arith.constant 4 : index
    %c0_20 = arith.constant 0 : index
    %c0_21 = arith.constant 0 : index
    %42 = vector.load %arg5[%c4, %c0_20, %c0_21] : memref<9x8x8xbf16, #tpu.memory_space<vmem>>, vector<1x8x8xbf16>
    %43 = vector.shape_cast %42 : vector<1x8x8xbf16> to vector<8x8xbf16>
    %44 = arith.truncf %4 : vector<8x1024xf32> to vector<8x1024xbf16>
    %cst_22 = arith.constant dense<0.000000e+00> : vector<8x1024xf32>
    %45 = tpu.matmul %43, %44, %cst_22 {dimension_numbers = #tpu.dot_dimension_numbers<[1], [0], [0], [1], [0, 0, 1, 1], [], []>} : vector<8x8xbf16>, vector<8x1024xbf16>, vector<8x1024xf32> -> vector<8x1024xf32>
    %46 = arith.addf %41, %45 : vector<8x1024xf32>
    %c1023_i32 = arith.constant 1023 : i32
    %47 = tpu.dynamic_rotate %4 by %c1023_i32 dim 1 : vector<8x1024xf32>, i32 -> vector<8x1024xf32>
    %48 = vector.extract_strided_slice %0 {offsets = [5, 0], sizes = [1, 1024], strides = [1, 1]} : vector<9x1024xf32> to vector<1x1024xf32>
    %49 = vector.broadcast %48 : vector<1x1024xf32> to vector<8x1024xf32>
    %50 = arith.mulf %47, %49 : vector<8x1024xf32>
    %c5 = arith.constant 5 : index
    %c0_23 = arith.constant 0 : index
    %c0_24 = arith.constant 0 : index
    %51 = vector.load %arg5[%c5, %c0_23, %c0_24] : memref<9x8x8xbf16, #tpu.memory_space<vmem>>, vector<1x8x8xbf16>
    %52 = vector.shape_cast %51 : vector<1x8x8xbf16> to vector<8x8xbf16>
    %53 = arith.truncf %50 : vector<8x1024xf32> to vector<8x1024xbf16>
    %cst_25 = arith.constant dense<0.000000e+00> : vector<8x1024xf32>
    %54 = tpu.matmul %52, %53, %cst_25 {dimension_numbers = #tpu.dot_dimension_numbers<[1], [0], [0], [1], [0, 0, 1, 1], [], []>} : vector<8x8xbf16>, vector<8x1024xbf16>, vector<8x1024xf32> -> vector<8x1024xf32>
    %55 = arith.addf %46, %54 : vector<8x1024xf32>
    %c993_i32 = arith.constant 993 : i32
    %56 = tpu.dynamic_rotate %4 by %c993_i32 dim 1 : vector<8x1024xf32>, i32 -> vector<8x1024xf32>
    %57 = vector.extract_strided_slice %0 {offsets = [6, 0], sizes = [1, 1024], strides = [1, 1]} : vector<9x1024xf32> to vector<1x1024xf32>
    %58 = vector.broadcast %57 : vector<1x1024xf32> to vector<8x1024xf32>
    %59 = arith.mulf %56, %58 : vector<8x1024xf32>
    %c6 = arith.constant 6 : index
    %c0_26 = arith.constant 0 : index
    %c0_27 = arith.constant 0 : index
    %60 = vector.load %arg5[%c6, %c0_26, %c0_27] : memref<9x8x8xbf16, #tpu.memory_space<vmem>>, vector<1x8x8xbf16>
    %61 = vector.shape_cast %60 : vector<1x8x8xbf16> to vector<8x8xbf16>
    %62 = arith.truncf %59 : vector<8x1024xf32> to vector<8x1024xbf16>
    %cst_28 = arith.constant dense<0.000000e+00> : vector<8x1024xf32>
    %63 = tpu.matmul %61, %62, %cst_28 {dimension_numbers = #tpu.dot_dimension_numbers<[1], [0], [0], [1], [0, 0, 1, 1], [], []>} : vector<8x8xbf16>, vector<8x1024xbf16>, vector<8x1024xf32> -> vector<8x1024xf32>
    %64 = arith.addf %55, %63 : vector<8x1024xf32>
    %c992_i32 = arith.constant 992 : i32
    %65 = tpu.dynamic_rotate %4 by %c992_i32 dim 1 : vector<8x1024xf32>, i32 -> vector<8x1024xf32>
    %66 = vector.extract_strided_slice %0 {offsets = [7, 0], sizes = [1, 1024], strides = [1, 1]} : vector<9x1024xf32> to vector<1x1024xf32>
    %67 = vector.broadcast %66 : vector<1x1024xf32> to vector<8x1024xf32>
    %68 = arith.mulf %65, %67 : vector<8x1024xf32>
    %c7 = arith.constant 7 : index
    %c0_29 = arith.constant 0 : index
    %c0_30 = arith.constant 0 : index
    %69 = vector.load %arg5[%c7, %c0_29, %c0_30] : memref<9x8x8xbf16, #tpu.memory_space<vmem>>, vector<1x8x8xbf16>
    %70 = vector.shape_cast %69 : vector<1x8x8xbf16> to vector<8x8xbf16>
    %71 = arith.truncf %68 : vector<8x1024xf32> to vector<8x1024xbf16>
    %cst_31 = arith.constant dense<0.000000e+00> : vector<8x1024xf32>
    %72 = tpu.matmul %70, %71, %cst_31 {dimension_numbers = #tpu.dot_dimension_numbers<[1], [0], [0], [1], [0, 0, 1, 1], [], []>} : vector<8x8xbf16>, vector<8x1024xbf16>, vector<8x1024xf32> -> vector<8x1024xf32>
    %73 = arith.addf %64, %72 : vector<8x1024xf32>
    %c991_i32 = arith.constant 991 : i32
    %74 = tpu.dynamic_rotate %4 by %c991_i32 dim 1 : vector<8x1024xf32>, i32 -> vector<8x1024xf32>
    %75 = vector.extract_strided_slice %0 {offsets = [8, 0], sizes = [1, 1024], strides = [1, 1]} : vector<9x1024xf32> to vector<1x1024xf32>
    %76 = vector.broadcast %75 : vector<1x1024xf32> to vector<8x1024xf32>
    %77 = arith.mulf %74, %76 : vector<8x1024xf32>
    %c8 = arith.constant 8 : index
    %c0_32 = arith.constant 0 : index
    %c0_33 = arith.constant 0 : index
    %78 = vector.load %arg5[%c8, %c0_32, %c0_33] : memref<9x8x8xbf16, #tpu.memory_space<vmem>>, vector<1x8x8xbf16>
    %79 = vector.shape_cast %78 : vector<1x8x8xbf16> to vector<8x8xbf16>
    %80 = arith.truncf %77 : vector<8x1024xf32> to vector<8x1024xbf16>
    %cst_34 = arith.constant dense<0.000000e+00> : vector<8x1024xf32>
    %81 = tpu.matmul %79, %80, %cst_34 {dimension_numbers = #tpu.dot_dimension_numbers<[1], [0], [0], [1], [0, 0, 1, 1], [], []>} : vector<8x8xbf16>, vector<8x1024xbf16>, vector<8x1024xf32> -> vector<8x1024xf32>
    %82 = arith.addf %73, %81 : vector<8x1024xf32>
    %c0_35 = arith.constant 0 : index
    %c0_36 = arith.constant 0 : index
    %83 = vector.load %arg6[%c0_35, %c0_36] : memref<8x1xf32, #tpu.memory_space<vmem>>, vector<8x1xf32>
    %84 = vector.broadcast %83 : vector<8x1xf32> to vector<8x1024xf32>
    %85 = arith.addf %82, %84 : vector<8x1024xf32>
    %cst_37 = arith.constant 0.000000e+00 : f32
    %86 = vector.broadcast %cst_37 : f32 to vector<8x1024xf32>
    %87 = arith.cmpf oge, %85, %86 : vector<8x1024xf32>
    %c0_38 = arith.constant 0 : index
    %c0_39 = arith.constant 0 : index
    %88 = vector.load %arg7[%c0_38, %c0_39] : memref<8x1xf32, #tpu.memory_space<vmem>>, vector<8x1xf32>
    %89 = vector.broadcast %88 : vector<8x1xf32> to vector<8x1024xf32>
    %90 = arith.mulf %85, %89 : vector<8x1024xf32>
    %91 = arith.select %87, %85, %90 : vector<8x1024xi1>, vector<8x1024xf32>
    %c0_40 = arith.constant 0 : index
    %c0_41 = arith.constant 0 : index
    %c0_42 = arith.constant 0 : index
    %92 = vector.load %arg2[%c0_40, %c0_41, %c0_42] : memref<1x8x1024xbf16, #tpu.memory_space<vmem>>, vector<1x8x1024xbf16>
    %93 = vector.shape_cast %92 : vector<1x8x1024xbf16> to vector<8x1024xbf16>
    %94 = arith.extf %93 : vector<8x1024xbf16> to vector<8x1024xf32>
    %cst_43 = arith.constant 0.000000e+00 : f32
    %95 = vector.broadcast %cst_43 : f32 to vector<8x1024xf32>
    %c33_i32_44 = arith.constant 33 : i32
    %96 = tpu.dynamic_rotate %91 by %c33_i32_44 dim 1 : vector<8x1024xf32>, i32 -> vector<8x1024xf32>
    %97 = vector.extract_strided_slice %0 {offsets = [0, 0], sizes = [1, 1024], strides = [1, 1]} : vector<9x1024xf32> to vector<1x1024xf32>
    %98 = vector.broadcast %97 : vector<1x1024xf32> to vector<8x1024xf32>
    %99 = arith.mulf %96, %98 : vector<8x1024xf32>
    %c0_45 = arith.constant 0 : index
    %c0_46 = arith.constant 0 : index
    %c0_47 = arith.constant 0 : index
    %100 = vector.load %arg8[%c0_45, %c0_46, %c0_47] : memref<9x8x8xbf16, #tpu.memory_space<vmem>>, vector<1x8x8xbf16>
    %101 = vector.shape_cast %100 : vector<1x8x8xbf16> to vector<8x8xbf16>
    %102 = arith.truncf %99 : vector<8x1024xf32> to vector<8x1024xbf16>
    %cst_48 = arith.constant dense<0.000000e+00> : vector<8x1024xf32>
    %103 = tpu.matmul %101, %102, %cst_48 {dimension_numbers = #tpu.dot_dimension_numbers<[1], [0], [0], [1], [0, 0, 1, 1], [], []>} : vector<8x8xbf16>, vector<8x1024xbf16>, vector<8x1024xf32> -> vector<8x1024xf32>
    %104 = arith.addf %95, %103 : vector<8x1024xf32>
    %c32_i32_49 = arith.constant 32 : i32
    %105 = tpu.dynamic_rotate %91 by %c32_i32_49 dim 1 : vector<8x1024xf32>, i32 -> vector<8x1024xf32>
    %106 = vector.extract_strided_slice %0 {offsets = [1, 0], sizes = [1, 1024], strides = [1, 1]} : vector<9x1024xf32> to vector<1x1024xf32>
    %107 = vector.broadcast %106 : vector<1x1024xf32> to vector<8x1024xf32>
    %108 = arith.mulf %105, %107 : vector<8x1024xf32>
    %c1_50 = arith.constant 1 : index
    %c0_51 = arith.constant 0 : index
    %c0_52 = arith.constant 0 : index
    %109 = vector.load %arg8[%c1_50, %c0_51, %c0_52] : memref<9x8x8xbf16, #tpu.memory_space<vmem>>, vector<1x8x8xbf16>
    %110 = vector.shape_cast %109 : vector<1x8x8xbf16> to vector<8x8xbf16>
    %111 = arith.truncf %108 : vector<8x1024xf32> to vector<8x1024xbf16>
    %cst_53 = arith.constant dense<0.000000e+00> : vector<8x1024xf32>
    %112 = tpu.matmul %110, %111, %cst_53 {dimension_numbers = #tpu.dot_dimension_numbers<[1], [0], [0], [1], [0, 0, 1, 1], [], []>} : vector<8x8xbf16>, vector<8x1024xbf16>, vector<8x1024xf32> -> vector<8x1024xf32>
    %113 = arith.addf %104, %112 : vector<8x1024xf32>
    %c31_i32_54 = arith.constant 31 : i32
    %114 = tpu.dynamic_rotate %91 by %c31_i32_54 dim 1 : vector<8x1024xf32>, i32 -> vector<8x1024xf32>
    %115 = vector.extract_strided_slice %0 {offsets = [2, 0], sizes = [1, 1024], strides = [1, 1]} : vector<9x1024xf32> to vector<1x1024xf32>
    %116 = vector.broadcast %115 : vector<1x1024xf32> to vector<8x1024xf32>
    %117 = arith.mulf %114, %116 : vector<8x1024xf32>
    %c2_55 = arith.constant 2 : index
    %c0_56 = arith.constant 0 : index
    %c0_57 = arith.constant 0 : index
    %118 = vector.load %arg8[%c2_55, %c0_56, %c0_57] : memref<9x8x8xbf16, #tpu.memory_space<vmem>>, vector<1x8x8xbf16>
    %119 = vector.shape_cast %118 : vector<1x8x8xbf16> to vector<8x8xbf16>
    %120 = arith.truncf %117 : vector<8x1024xf32> to vector<8x1024xbf16>
    %cst_58 = arith.constant dense<0.000000e+00> : vector<8x1024xf32>
    %121 = tpu.matmul %119, %120, %cst_58 {dimension_numbers = #tpu.dot_dimension_numbers<[1], [0], [0], [1], [0, 0, 1, 1], [], []>} : vector<8x8xbf16>, vector<8x1024xbf16>, vector<8x1024xf32> -> vector<8x1024xf32>
    %122 = arith.addf %113, %121 : vector<8x1024xf32>
    %c1_i32_59 = arith.constant 1 : i32
    %123 = tpu.dynamic_rotate %91 by %c1_i32_59 dim 1 : vector<8x1024xf32>, i32 -> vector<8x1024xf32>
    %124 = vector.extract_strided_slice %0 {offsets = [3, 0], sizes = [1, 1024], strides = [1, 1]} : vector<9x1024xf32> to vector<1x1024xf32>
    %125 = vector.broadcast %124 : vector<1x1024xf32> to vector<8x1024xf32>
    %126 = arith.mulf %123, %125 : vector<8x1024xf32>
    %c3_60 = arith.constant 3 : index
    %c0_61 = arith.constant 0 : index
    %c0_62 = arith.constant 0 : index
    %127 = vector.load %arg8[%c3_60, %c0_61, %c0_62] : memref<9x8x8xbf16, #tpu.memory_space<vmem>>, vector<1x8x8xbf16>
    %128 = vector.shape_cast %127 : vector<1x8x8xbf16> to vector<8x8xbf16>
    %129 = arith.truncf %126 : vector<8x1024xf32> to vector<8x1024xbf16>
    %cst_63 = arith.constant dense<0.000000e+00> : vector<8x1024xf32>
    %130 = tpu.matmul %128, %129, %cst_63 {dimension_numbers = #tpu.dot_dimension_numbers<[1], [0], [0], [1], [0, 0, 1, 1], [], []>} : vector<8x8xbf16>, vector<8x1024xbf16>, vector<8x1024xf32> -> vector<8x1024xf32>
    %131 = arith.addf %122, %130 : vector<8x1024xf32>
    %c4_64 = arith.constant 4 : index
    %c0_65 = arith.constant 0 : index
    %c0_66 = arith.constant 0 : index
    %132 = vector.load %arg8[%c4_64, %c0_65, %c0_66] : memref<9x8x8xbf16, #tpu.memory_space<vmem>>, vector<1x8x8xbf16>
    %133 = vector.shape_cast %132 : vector<1x8x8xbf16> to vector<8x8xbf16>
    %134 = arith.truncf %91 : vector<8x1024xf32> to vector<8x1024xbf16>
    %cst_67 = arith.constant dense<0.000000e+00> : vector<8x1024xf32>
    %135 = tpu.matmul %133, %134, %cst_67 {dimension_numbers = #tpu.dot_dimension_numbers<[1], [0], [0], [1], [0, 0, 1, 1], [], []>} : vector<8x8xbf16>, vector<8x1024xbf16>, vector<8x1024xf32> -> vector<8x1024xf32>
    %136 = arith.addf %131, %135 : vector<8x1024xf32>
    %c1023_i32_68 = arith.constant 1023 : i32
    %137 = tpu.dynamic_rotate %91 by %c1023_i32_68 dim 1 : vector<8x1024xf32>, i32 -> vector<8x1024xf32>
    %138 = vector.extract_strided_slice %0 {offsets = [5, 0], sizes = [1, 1024], strides = [1, 1]} : vector<9x1024xf32> to vector<1x1024xf32>
    %139 = vector.broadcast %138 : vector<1x1024xf32> to vector<8x1024xf32>
    %140 = arith.mulf %137, %139 : vector<8x1024xf32>
    %c5_69 = arith.constant 5 : index
    %c0_70 = arith.constant 0 : index
    %c0_71 = arith.constant 0 : index
    %141 = vector.load %arg8[%c5_69, %c0_70, %c0_71] : memref<9x8x8xbf16, #tpu.memory_space<vmem>>, vector<1x8x8xbf16>
    %142 = vector.shape_cast %141 : vector<1x8x8xbf16> to vector<8x8xbf16>
    %143 = arith.truncf %140 : vector<8x1024xf32> to vector<8x1024xbf16>
    %cst_72 = arith.constant dense<0.000000e+00> : vector<8x1024xf32>
    %144 = tpu.matmul %142, %143, %cst_72 {dimension_numbers = #tpu.dot_dimension_numbers<[1], [0], [0], [1], [0, 0, 1, 1], [], []>} : vector<8x8xbf16>, vector<8x1024xbf16>, vector<8x1024xf32> -> vector<8x1024xf32>
    %145 = arith.addf %136, %144 : vector<8x1024xf32>
    %c993_i32_73 = arith.constant 993 : i32
    %146 = tpu.dynamic_rotate %91 by %c993_i32_73 dim 1 : vector<8x1024xf32>, i32 -> vector<8x1024xf32>
    %147 = vector.extract_strided_slice %0 {offsets = [6, 0], sizes = [1, 1024], strides = [1, 1]} : vector<9x1024xf32> to vector<1x1024xf32>
    %148 = vector.broadcast %147 : vector<1x1024xf32> to vector<8x1024xf32>
    %149 = arith.mulf %146, %148 : vector<8x1024xf32>
    %c6_74 = arith.constant 6 : index
    %c0_75 = arith.constant 0 : index
    %c0_76 = arith.constant 0 : index
    %150 = vector.load %arg8[%c6_74, %c0_75, %c0_76] : memref<9x8x8xbf16, #tpu.memory_space<vmem>>, vector<1x8x8xbf16>
    %151 = vector.shape_cast %150 : vector<1x8x8xbf16> to vector<8x8xbf16>
    %152 = arith.truncf %149 : vector<8x1024xf32> to vector<8x1024xbf16>
    %cst_77 = arith.constant dense<0.000000e+00> : vector<8x1024xf32>
    %153 = tpu.matmul %151, %152, %cst_77 {dimension_numbers = #tpu.dot_dimension_numbers<[1], [0], [0], [1], [0, 0, 1, 1], [], []>} : vector<8x8xbf16>, vector<8x1024xbf16>, vector<8x1024xf32> -> vector<8x1024xf32>
    %154 = arith.addf %145, %153 : vector<8x1024xf32>
    %c992_i32_78 = arith.constant 992 : i32
    %155 = tpu.dynamic_rotate %91 by %c992_i32_78 dim 1 : vector<8x1024xf32>, i32 -> vector<8x1024xf32>
    %156 = vector.extract_strided_slice %0 {offsets = [7, 0], sizes = [1, 1024], strides = [1, 1]} : vector<9x1024xf32> to vector<1x1024xf32>
    %157 = vector.broadcast %156 : vector<1x1024xf32> to vector<8x1024xf32>
    %158 = arith.mulf %155, %157 : vector<8x1024xf32>
    %c7_79 = arith.constant 7 : index
    %c0_80 = arith.constant 0 : index
    %c0_81 = arith.constant 0 : index
    %159 = vector.load %arg8[%c7_79, %c0_80, %c0_81] : memref<9x8x8xbf16, #tpu.memory_space<vmem>>, vector<1x8x8xbf16>
    %160 = vector.shape_cast %159 : vector<1x8x8xbf16> to vector<8x8xbf16>
    %161 = arith.truncf %158 : vector<8x1024xf32> to vector<8x1024xbf16>
    %cst_82 = arith.constant dense<0.000000e+00> : vector<8x1024xf32>
    %162 = tpu.matmul %160, %161, %cst_82 {dimension_numbers = #tpu.dot_dimension_numbers<[1], [0], [0], [1], [0, 0, 1, 1], [], []>} : vector<8x8xbf16>, vector<8x1024xbf16>, vector<8x1024xf32> -> vector<8x1024xf32>
    %163 = arith.addf %154, %162 : vector<8x1024xf32>
    %c991_i32_83 = arith.constant 991 : i32
    %164 = tpu.dynamic_rotate %91 by %c991_i32_83 dim 1 : vector<8x1024xf32>, i32 -> vector<8x1024xf32>
    %165 = vector.extract_strided_slice %0 {offsets = [8, 0], sizes = [1, 1024], strides = [1, 1]} : vector<9x1024xf32> to vector<1x1024xf32>
    %166 = vector.broadcast %165 : vector<1x1024xf32> to vector<8x1024xf32>
    %167 = arith.mulf %164, %166 : vector<8x1024xf32>
    %c8_84 = arith.constant 8 : index
    %c0_85 = arith.constant 0 : index
    %c0_86 = arith.constant 0 : index
    %168 = vector.load %arg8[%c8_84, %c0_85, %c0_86] : memref<9x8x8xbf16, #tpu.memory_space<vmem>>, vector<1x8x8xbf16>
    %169 = vector.shape_cast %168 : vector<1x8x8xbf16> to vector<8x8xbf16>
    %170 = arith.truncf %167 : vector<8x1024xf32> to vector<8x1024xbf16>
    %cst_87 = arith.constant dense<0.000000e+00> : vector<8x1024xf32>
    %171 = tpu.matmul %169, %170, %cst_87 {dimension_numbers = #tpu.dot_dimension_numbers<[1], [0], [0], [1], [0, 0, 1, 1], [], []>} : vector<8x8xbf16>, vector<8x1024xbf16>, vector<8x1024xf32> -> vector<8x1024xf32>
    %172 = arith.addf %163, %171 : vector<8x1024xf32>
    %c33_i32_88 = arith.constant 33 : i32
    %173 = tpu.dynamic_rotate %94 by %c33_i32_88 dim 1 : vector<8x1024xf32>, i32 -> vector<8x1024xf32>
    %174 = vector.extract_strided_slice %0 {offsets = [0, 0], sizes = [1, 1024], strides = [1, 1]} : vector<9x1024xf32> to vector<1x1024xf32>
    %175 = vector.broadcast %174 : vector<1x1024xf32> to vector<8x1024xf32>
    %176 = arith.mulf %173, %175 : vector<8x1024xf32>
    %c0_89 = arith.constant 0 : index
    %c0_90 = arith.constant 0 : index
    %c0_91 = arith.constant 0 : index
    %177 = vector.load %arg9[%c0_89, %c0_90, %c0_91] : memref<9x8x8xbf16, #tpu.memory_space<vmem>>, vector<1x8x8xbf16>
    %178 = vector.shape_cast %177 : vector<1x8x8xbf16> to vector<8x8xbf16>
    %179 = arith.truncf %176 : vector<8x1024xf32> to vector<8x1024xbf16>
    %cst_92 = arith.constant dense<0.000000e+00> : vector<8x1024xf32>
    %180 = tpu.matmul %178, %179, %cst_92 {dimension_numbers = #tpu.dot_dimension_numbers<[1], [0], [0], [1], [0, 0, 1, 1], [], []>} : vector<8x8xbf16>, vector<8x1024xbf16>, vector<8x1024xf32> -> vector<8x1024xf32>
    %181 = arith.addf %172, %180 : vector<8x1024xf32>
    %c32_i32_93 = arith.constant 32 : i32
    %182 = tpu.dynamic_rotate %94 by %c32_i32_93 dim 1 : vector<8x1024xf32>, i32 -> vector<8x1024xf32>
    %183 = vector.extract_strided_slice %0 {offsets = [1, 0], sizes = [1, 1024], strides = [1, 1]} : vector<9x1024xf32> to vector<1x1024xf32>
    %184 = vector.broadcast %183 : vector<1x1024xf32> to vector<8x1024xf32>
    %185 = arith.mulf %182, %184 : vector<8x1024xf32>
    %c1_94 = arith.constant 1 : index
    %c0_95 = arith.constant 0 : index
    %c0_96 = arith.constant 0 : index
    %186 = vector.load %arg9[%c1_94, %c0_95, %c0_96] : memref<9x8x8xbf16, #tpu.memory_space<vmem>>, vector<1x8x8xbf16>
    %187 = vector.shape_cast %186 : vector<1x8x8xbf16> to vector<8x8xbf16>
    %188 = arith.truncf %185 : vector<8x1024xf32> to vector<8x1024xbf16>
    %cst_97 = arith.constant dense<0.000000e+00> : vector<8x1024xf32>
    %189 = tpu.matmul %187, %188, %cst_97 {dimension_numbers = #tpu.dot_dimension_numbers<[1], [0], [0], [1], [0, 0, 1, 1], [], []>} : vector<8x8xbf16>, vector<8x1024xbf16>, vector<8x1024xf32> -> vector<8x1024xf32>
    %190 = arith.addf %181, %189 : vector<8x1024xf32>
    %c31_i32_98 = arith.constant 31 : i32
    %191 = tpu.dynamic_rotate %94 by %c31_i32_98 dim 1 : vector<8x1024xf32>, i32 -> vector<8x1024xf32>
    %192 = vector.extract_strided_slice %0 {offsets = [2, 0], sizes = [1, 1024], strides = [1, 1]} : vector<9x1024xf32> to vector<1x1024xf32>
    %193 = vector.broadcast %192 : vector<1x1024xf32> to vector<8x1024xf32>
    %194 = arith.mulf %191, %193 : vector<8x1024xf32>
    %c2_99 = arith.constant 2 : index
    %c0_100 = arith.constant 0 : index
    %c0_101 = arith.constant 0 : index
    %195 = vector.load %arg9[%c2_99, %c0_100, %c0_101] : memref<9x8x8xbf16, #tpu.memory_space<vmem>>, vector<1x8x8xbf16>
    %196 = vector.shape_cast %195 : vector<1x8x8xbf16> to vector<8x8xbf16>
    %197 = arith.truncf %194 : vector<8x1024xf32> to vector<8x1024xbf16>
    %cst_102 = arith.constant dense<0.000000e+00> : vector<8x1024xf32>
    %198 = tpu.matmul %196, %197, %cst_102 {dimension_numbers = #tpu.dot_dimension_numbers<[1], [0], [0], [1], [0, 0, 1, 1], [], []>} : vector<8x8xbf16>, vector<8x1024xbf16>, vector<8x1024xf32> -> vector<8x1024xf32>
    %199 = arith.addf %190, %198 : vector<8x1024xf32>
    %c1_i32_103 = arith.constant 1 : i32
    %200 = tpu.dynamic_rotate %94 by %c1_i32_103 dim 1 : vector<8x1024xf32>, i32 -> vector<8x1024xf32>
    %201 = vector.extract_strided_slice %0 {offsets = [3, 0], sizes = [1, 1024], strides = [1, 1]} : vector<9x1024xf32> to vector<1x1024xf32>
    %202 = vector.broadcast %201 : vector<1x1024xf32> to vector<8x1024xf32>
    %203 = arith.mulf %200, %202 : vector<8x1024xf32>
    %c3_104 = arith.constant 3 : index
    %c0_105 = arith.constant 0 : index
    %c0_106 = arith.constant 0 : index
    %204 = vector.load %arg9[%c3_104, %c0_105, %c0_106] : memref<9x8x8xbf16, #tpu.memory_space<vmem>>, vector<1x8x8xbf16>
    %205 = vector.shape_cast %204 : vector<1x8x8xbf16> to vector<8x8xbf16>
    %206 = arith.truncf %203 : vector<8x1024xf32> to vector<8x1024xbf16>
    %cst_107 = arith.constant dense<0.000000e+00> : vector<8x1024xf32>
    %207 = tpu.matmul %205, %206, %cst_107 {dimension_numbers = #tpu.dot_dimension_numbers<[1], [0], [0], [1], [0, 0, 1, 1], [], []>} : vector<8x8xbf16>, vector<8x1024xbf16>, vector<8x1024xf32> -> vector<8x1024xf32>
    %208 = arith.addf %199, %207 : vector<8x1024xf32>
    %c4_108 = arith.constant 4 : index
    %c0_109 = arith.constant 0 : index
    %c0_110 = arith.constant 0 : index
    %209 = vector.load %arg9[%c4_108, %c0_109, %c0_110] : memref<9x8x8xbf16, #tpu.memory_space<vmem>>, vector<1x8x8xbf16>
    %210 = vector.shape_cast %209 : vector<1x8x8xbf16> to vector<8x8xbf16>
    %211 = arith.truncf %94 : vector<8x1024xf32> to vector<8x1024xbf16>
    %cst_111 = arith.constant dense<0.000000e+00> : vector<8x1024xf32>
    %212 = tpu.matmul %210, %211, %cst_111 {dimension_numbers = #tpu.dot_dimension_numbers<[1], [0], [0], [1], [0, 0, 1, 1], [], []>} : vector<8x8xbf16>, vector<8x1024xbf16>, vector<8x1024xf32> -> vector<8x1024xf32>
    %213 = arith.addf %208, %212 : vector<8x1024xf32>
    %c1023_i32_112 = arith.constant 1023 : i32
    %214 = tpu.dynamic_rotate %94 by %c1023_i32_112 dim 1 : vector<8x1024xf32>, i32 -> vector<8x1024xf32>
    %215 = vector.extract_strided_slice %0 {offsets = [5, 0], sizes = [1, 1024], strides = [1, 1]} : vector<9x1024xf32> to vector<1x1024xf32>
    %216 = vector.broadcast %215 : vector<1x1024xf32> to vector<8x1024xf32>
    %217 = arith.mulf %214, %216 : vector<8x1024xf32>
    %c5_113 = arith.constant 5 : index
    %c0_114 = arith.constant 0 : index
    %c0_115 = arith.constant 0 : index
    %218 = vector.load %arg9[%c5_113, %c0_114, %c0_115] : memref<9x8x8xbf16, #tpu.memory_space<vmem>>, vector<1x8x8xbf16>
    %219 = vector.shape_cast %218 : vector<1x8x8xbf16> to vector<8x8xbf16>
    %220 = arith.truncf %217 : vector<8x1024xf32> to vector<8x1024xbf16>
    %cst_116 = arith.constant dense<0.000000e+00> : vector<8x1024xf32>
    %221 = tpu.matmul %219, %220, %cst_116 {dimension_numbers = #tpu.dot_dimension_numbers<[1], [0], [0], [1], [0, 0, 1, 1], [], []>} : vector<8x8xbf16>, vector<8x1024xbf16>, vector<8x1024xf32> -> vector<8x1024xf32>
    %222 = arith.addf %213, %221 : vector<8x1024xf32>
    %c993_i32_117 = arith.constant 993 : i32
    %223 = tpu.dynamic_rotate %94 by %c993_i32_117 dim 1 : vector<8x1024xf32>, i32 -> vector<8x1024xf32>
    %224 = vector.extract_strided_slice %0 {offsets = [6, 0], sizes = [1, 1024], strides = [1, 1]} : vector<9x1024xf32> to vector<1x1024xf32>
    %225 = vector.broadcast %224 : vector<1x1024xf32> to vector<8x1024xf32>
    %226 = arith.mulf %223, %225 : vector<8x1024xf32>
    %c6_118 = arith.constant 6 : index
    %c0_119 = arith.constant 0 : index
    %c0_120 = arith.constant 0 : index
    %227 = vector.load %arg9[%c6_118, %c0_119, %c0_120] : memref<9x8x8xbf16, #tpu.memory_space<vmem>>, vector<1x8x8xbf16>
    %228 = vector.shape_cast %227 : vector<1x8x8xbf16> to vector<8x8xbf16>
    %229 = arith.truncf %226 : vector<8x1024xf32> to vector<8x1024xbf16>
    %cst_121 = arith.constant dense<0.000000e+00> : vector<8x1024xf32>
    %230 = tpu.matmul %228, %229, %cst_121 {dimension_numbers = #tpu.dot_dimension_numbers<[1], [0], [0], [1], [0, 0, 1, 1], [], []>} : vector<8x8xbf16>, vector<8x1024xbf16>, vector<8x1024xf32> -> vector<8x1024xf32>
    %231 = arith.addf %222, %230 : vector<8x1024xf32>
    %c992_i32_122 = arith.constant 992 : i32
    %232 = tpu.dynamic_rotate %94 by %c992_i32_122 dim 1 : vector<8x1024xf32>, i32 -> vector<8x1024xf32>
    %233 = vector.extract_strided_slice %0 {offsets = [7, 0], sizes = [1, 1024], strides = [1, 1]} : vector<9x1024xf32> to vector<1x1024xf32>
    %234 = vector.broadcast %233 : vector<1x1024xf32> to vector<8x1024xf32>
    %235 = arith.mulf %232, %234 : vector<8x1024xf32>
    %c7_123 = arith.constant 7 : index
    %c0_124 = arith.constant 0 : index
    %c0_125 = arith.constant 0 : index
    %236 = vector.load %arg9[%c7_123, %c0_124, %c0_125] : memref<9x8x8xbf16, #tpu.memory_space<vmem>>, vector<1x8x8xbf16>
    %237 = vector.shape_cast %236 : vector<1x8x8xbf16> to vector<8x8xbf16>
    %238 = arith.truncf %235 : vector<8x1024xf32> to vector<8x1024xbf16>
    %cst_126 = arith.constant dense<0.000000e+00> : vector<8x1024xf32>
    %239 = tpu.matmul %237, %238, %cst_126 {dimension_numbers = #tpu.dot_dimension_numbers<[1], [0], [0], [1], [0, 0, 1, 1], [], []>} : vector<8x8xbf16>, vector<8x1024xbf16>, vector<8x1024xf32> -> vector<8x1024xf32>
    %240 = arith.addf %231, %239 : vector<8x1024xf32>
    %c991_i32_127 = arith.constant 991 : i32
    %241 = tpu.dynamic_rotate %94 by %c991_i32_127 dim 1 : vector<8x1024xf32>, i32 -> vector<8x1024xf32>
    %242 = vector.extract_strided_slice %0 {offsets = [8, 0], sizes = [1, 1024], strides = [1, 1]} : vector<9x1024xf32> to vector<1x1024xf32>
    %243 = vector.broadcast %242 : vector<1x1024xf32> to vector<8x1024xf32>
    %244 = arith.mulf %241, %243 : vector<8x1024xf32>
    %c8_128 = arith.constant 8 : index
    %c0_129 = arith.constant 0 : index
    %c0_130 = arith.constant 0 : index
    %245 = vector.load %arg9[%c8_128, %c0_129, %c0_130] : memref<9x8x8xbf16, #tpu.memory_space<vmem>>, vector<1x8x8xbf16>
    %246 = vector.shape_cast %245 : vector<1x8x8xbf16> to vector<8x8xbf16>
    %247 = arith.truncf %244 : vector<8x1024xf32> to vector<8x1024xbf16>
    %cst_131 = arith.constant dense<0.000000e+00> : vector<8x1024xf32>
    %248 = tpu.matmul %246, %247, %cst_131 {dimension_numbers = #tpu.dot_dimension_numbers<[1], [0], [0], [1], [0, 0, 1, 1], [], []>} : vector<8x8xbf16>, vector<8x1024xbf16>, vector<8x1024xf32> -> vector<8x1024xf32>
    %249 = arith.addf %240, %248 : vector<8x1024xf32>
    %c0_132 = arith.constant 0 : index
    %c0_133 = arith.constant 0 : index
    %250 = vector.load %arg10[%c0_132, %c0_133] : memref<8x1xf32, #tpu.memory_space<vmem>>, vector<8x1xf32>
    %251 = vector.broadcast %250 : vector<8x1xf32> to vector<8x1024xf32>
    %252 = arith.addf %249, %251 : vector<8x1024xf32>
    %cst_134 = arith.constant 0.000000e+00 : f32
    %253 = vector.broadcast %cst_134 : f32 to vector<8x1024xf32>
    %254 = arith.cmpf oge, %252, %253 : vector<8x1024xf32>
    %c0_135 = arith.constant 0 : index
    %c0_136 = arith.constant 0 : index
    %255 = vector.load %arg11[%c0_135, %c0_136] : memref<8x1xf32, #tpu.memory_space<vmem>>, vector<8x1xf32>
    %256 = vector.broadcast %255 : vector<8x1xf32> to vector<8x1024xf32>
    %257 = arith.mulf %252, %256 : vector<8x1024xf32>
    %258 = arith.select %254, %252, %257 : vector<8x1024xi1>, vector<8x1024xf32>
    %c0_137 = arith.constant 0 : index
    %c0_138 = arith.constant 0 : index
    %259 = vector.load %arg15[%c0_137, %c0_138] : memref<8x1xf32, #tpu.memory_space<vmem>>, vector<8x1xf32>
    %260 = vector.broadcast %259 : vector<8x1xf32> to vector<8x1024xf32>
    %261 = arith.mulf %258, %260 : vector<8x1024xf32>
    %cst_139 = arith.constant 0.000000e+00 : f32
    %262 = vector.broadcast %cst_139 : f32 to vector<8x1024xf32>
    %c33_i32_140 = arith.constant 33 : i32
    %263 = tpu.dynamic_rotate %261 by %c33_i32_140 dim 1 : vector<8x1024xf32>, i32 -> vector<8x1024xf32>
    %264 = vector.extract_strided_slice %0 {offsets = [0, 0], sizes = [1, 1024], strides = [1, 1]} : vector<9x1024xf32> to vector<1x1024xf32>
    %265 = vector.broadcast %264 : vector<1x1024xf32> to vector<8x1024xf32>
    %266 = arith.mulf %263, %265 : vector<8x1024xf32>
    %c0_141 = arith.constant 0 : index
    %c0_142 = arith.constant 0 : index
    %c0_143 = arith.constant 0 : index
    %267 = vector.load %arg12[%c0_141, %c0_142, %c0_143] : memref<9x8x8xbf16, #tpu.memory_space<vmem>>, vector<1x8x8xbf16>
    %268 = vector.shape_cast %267 : vector<1x8x8xbf16> to vector<8x8xbf16>
    %269 = arith.truncf %266 : vector<8x1024xf32> to vector<8x1024xbf16>
    %cst_144 = arith.constant dense<0.000000e+00> : vector<8x1024xf32>
    %270 = tpu.matmul %268, %269, %cst_144 {dimension_numbers = #tpu.dot_dimension_numbers<[1], [0], [0], [1], [0, 0, 1, 1], [], []>} : vector<8x8xbf16>, vector<8x1024xbf16>, vector<8x1024xf32> -> vector<8x1024xf32>
    %271 = arith.addf %262, %270 : vector<8x1024xf32>
    %c32_i32_145 = arith.constant 32 : i32
    %272 = tpu.dynamic_rotate %261 by %c32_i32_145 dim 1 : vector<8x1024xf32>, i32 -> vector<8x1024xf32>
    %273 = vector.extract_strided_slice %0 {offsets = [1, 0], sizes = [1, 1024], strides = [1, 1]} : vector<9x1024xf32> to vector<1x1024xf32>
    %274 = vector.broadcast %273 : vector<1x1024xf32> to vector<8x1024xf32>
    %275 = arith.mulf %272, %274 : vector<8x1024xf32>
    %c1_146 = arith.constant 1 : index
    %c0_147 = arith.constant 0 : index
    %c0_148 = arith.constant 0 : index
    %276 = vector.load %arg12[%c1_146, %c0_147, %c0_148] : memref<9x8x8xbf16, #tpu.memory_space<vmem>>, vector<1x8x8xbf16>
    %277 = vector.shape_cast %276 : vector<1x8x8xbf16> to vector<8x8xbf16>
    %278 = arith.truncf %275 : vector<8x1024xf32> to vector<8x1024xbf16>
    %cst_149 = arith.constant dense<0.000000e+00> : vector<8x1024xf32>
    %279 = tpu.matmul %277, %278, %cst_149 {dimension_numbers = #tpu.dot_dimension_numbers<[1], [0], [0], [1], [0, 0, 1, 1], [], []>} : vector<8x8xbf16>, vector<8x1024xbf16>, vector<8x1024xf32> -> vector<8x1024xf32>
    %280 = arith.addf %271, %279 : vector<8x1024xf32>
    %c31_i32_150 = arith.constant 31 : i32
    %281 = tpu.dynamic_rotate %261 by %c31_i32_150 dim 1 : vector<8x1024xf32>, i32 -> vector<8x1024xf32>
    %282 = vector.extract_strided_slice %0 {offsets = [2, 0], sizes = [1, 1024], strides = [1, 1]} : vector<9x1024xf32> to vector<1x1024xf32>
    %283 = vector.broadcast %282 : vector<1x1024xf32> to vector<8x1024xf32>
    %284 = arith.mulf %281, %283 : vector<8x1024xf32>
    %c2_151 = arith.constant 2 : index
    %c0_152 = arith.constant 0 : index
    %c0_153 = arith.constant 0 : index
    %285 = vector.load %arg12[%c2_151, %c0_152, %c0_153] : memref<9x8x8xbf16, #tpu.memory_space<vmem>>, vector<1x8x8xbf16>
    %286 = vector.shape_cast %285 : vector<1x8x8xbf16> to vector<8x8xbf16>
    %287 = arith.truncf %284 : vector<8x1024xf32> to vector<8x1024xbf16>
    %cst_154 = arith.constant dense<0.000000e+00> : vector<8x1024xf32>
    %288 = tpu.matmul %286, %287, %cst_154 {dimension_numbers = #tpu.dot_dimension_numbers<[1], [0], [0], [1], [0, 0, 1, 1], [], []>} : vector<8x8xbf16>, vector<8x1024xbf16>, vector<8x1024xf32> -> vector<8x1024xf32>
    %289 = arith.addf %280, %288 : vector<8x1024xf32>
    %c1_i32_155 = arith.constant 1 : i32
    %290 = tpu.dynamic_rotate %261 by %c1_i32_155 dim 1 : vector<8x1024xf32>, i32 -> vector<8x1024xf32>
    %291 = vector.extract_strided_slice %0 {offsets = [3, 0], sizes = [1, 1024], strides = [1, 1]} : vector<9x1024xf32> to vector<1x1024xf32>
    %292 = vector.broadcast %291 : vector<1x1024xf32> to vector<8x1024xf32>
    %293 = arith.mulf %290, %292 : vector<8x1024xf32>
    %c3_156 = arith.constant 3 : index
    %c0_157 = arith.constant 0 : index
    %c0_158 = arith.constant 0 : index
    %294 = vector.load %arg12[%c3_156, %c0_157, %c0_158] : memref<9x8x8xbf16, #tpu.memory_space<vmem>>, vector<1x8x8xbf16>
    %295 = vector.shape_cast %294 : vector<1x8x8xbf16> to vector<8x8xbf16>
    %296 = arith.truncf %293 : vector<8x1024xf32> to vector<8x1024xbf16>
    %cst_159 = arith.constant dense<0.000000e+00> : vector<8x1024xf32>
    %297 = tpu.matmul %295, %296, %cst_159 {dimension_numbers = #tpu.dot_dimension_numbers<[1], [0], [0], [1], [0, 0, 1, 1], [], []>} : vector<8x8xbf16>, vector<8x1024xbf16>, vector<8x1024xf32> -> vector<8x1024xf32>
    %298 = arith.addf %289, %297 : vector<8x1024xf32>
    %c4_160 = arith.constant 4 : index
    %c0_161 = arith.constant 0 : index
    %c0_162 = arith.constant 0 : index
    %299 = vector.load %arg12[%c4_160, %c0_161, %c0_162] : memref<9x8x8xbf16, #tpu.memory_space<vmem>>, vector<1x8x8xbf16>
    %300 = vector.shape_cast %299 : vector<1x8x8xbf16> to vector<8x8xbf16>
    %301 = arith.truncf %261 : vector<8x1024xf32> to vector<8x1024xbf16>
    %cst_163 = arith.constant dense<0.000000e+00> : vector<8x1024xf32>
    %302 = tpu.matmul %300, %301, %cst_163 {dimension_numbers = #tpu.dot_dimension_numbers<[1], [0], [0], [1], [0, 0, 1, 1], [], []>} : vector<8x8xbf16>, vector<8x1024xbf16>, vector<8x1024xf32> -> vector<8x1024xf32>
    %303 = arith.addf %298, %302 : vector<8x1024xf32>
    %c1023_i32_164 = arith.constant 1023 : i32
    %304 = tpu.dynamic_rotate %261 by %c1023_i32_164 dim 1 : vector<8x1024xf32>, i32 -> vector<8x1024xf32>
    %305 = vector.extract_strided_slice %0 {offsets = [5, 0], sizes = [1, 1024], strides = [1, 1]} : vector<9x1024xf32> to vector<1x1024xf32>
    %306 = vector.broadcast %305 : vector<1x1024xf32> to vector<8x1024xf32>
    %307 = arith.mulf %304, %306 : vector<8x1024xf32>
    %c5_165 = arith.constant 5 : index
    %c0_166 = arith.constant 0 : index
    %c0_167 = arith.constant 0 : index
    %308 = vector.load %arg12[%c5_165, %c0_166, %c0_167] : memref<9x8x8xbf16, #tpu.memory_space<vmem>>, vector<1x8x8xbf16>
    %309 = vector.shape_cast %308 : vector<1x8x8xbf16> to vector<8x8xbf16>
    %310 = arith.truncf %307 : vector<8x1024xf32> to vector<8x1024xbf16>
    %cst_168 = arith.constant dense<0.000000e+00> : vector<8x1024xf32>
    %311 = tpu.matmul %309, %310, %cst_168 {dimension_numbers = #tpu.dot_dimension_numbers<[1], [0], [0], [1], [0, 0, 1, 1], [], []>} : vector<8x8xbf16>, vector<8x1024xbf16>, vector<8x1024xf32> -> vector<8x1024xf32>
    %312 = arith.addf %303, %311 : vector<8x1024xf32>
    %c993_i32_169 = arith.constant 993 : i32
    %313 = tpu.dynamic_rotate %261 by %c993_i32_169 dim 1 : vector<8x1024xf32>, i32 -> vector<8x1024xf32>
    %314 = vector.extract_strided_slice %0 {offsets = [6, 0], sizes = [1, 1024], strides = [1, 1]} : vector<9x1024xf32> to vector<1x1024xf32>
    %315 = vector.broadcast %314 : vector<1x1024xf32> to vector<8x1024xf32>
    %316 = arith.mulf %313, %315 : vector<8x1024xf32>
    %c6_170 = arith.constant 6 : index
    %c0_171 = arith.constant 0 : index
    %c0_172 = arith.constant 0 : index
    %317 = vector.load %arg12[%c6_170, %c0_171, %c0_172] : memref<9x8x8xbf16, #tpu.memory_space<vmem>>, vector<1x8x8xbf16>
    %318 = vector.shape_cast %317 : vector<1x8x8xbf16> to vector<8x8xbf16>
    %319 = arith.truncf %316 : vector<8x1024xf32> to vector<8x1024xbf16>
    %cst_173 = arith.constant dense<0.000000e+00> : vector<8x1024xf32>
    %320 = tpu.matmul %318, %319, %cst_173 {dimension_numbers = #tpu.dot_dimension_numbers<[1], [0], [0], [1], [0, 0, 1, 1], [], []>} : vector<8x8xbf16>, vector<8x1024xbf16>, vector<8x1024xf32> -> vector<8x1024xf32>
    %321 = arith.addf %312, %320 : vector<8x1024xf32>
    %c992_i32_174 = arith.constant 992 : i32
    %322 = tpu.dynamic_rotate %261 by %c992_i32_174 dim 1 : vector<8x1024xf32>, i32 -> vector<8x1024xf32>
    %323 = vector.extract_strided_slice %0 {offsets = [7, 0], sizes = [1, 1024], strides = [1, 1]} : vector<9x1024xf32> to vector<1x1024xf32>
    %324 = vector.broadcast %323 : vector<1x1024xf32> to vector<8x1024xf32>
    %325 = arith.mulf %322, %324 : vector<8x1024xf32>
    %c7_175 = arith.constant 7 : index
    %c0_176 = arith.constant 0 : index
    %c0_177 = arith.constant 0 : index
    %326 = vector.load %arg12[%c7_175, %c0_176, %c0_177] : memref<9x8x8xbf16, #tpu.memory_space<vmem>>, vector<1x8x8xbf16>
    %327 = vector.shape_cast %326 : vector<1x8x8xbf16> to vector<8x8xbf16>
    %328 = arith.truncf %325 : vector<8x1024xf32> to vector<8x1024xbf16>
    %cst_178 = arith.constant dense<0.000000e+00> : vector<8x1024xf32>
    %329 = tpu.matmul %327, %328, %cst_178 {dimension_numbers = #tpu.dot_dimension_numbers<[1], [0], [0], [1], [0, 0, 1, 1], [], []>} : vector<8x8xbf16>, vector<8x1024xbf16>, vector<8x1024xf32> -> vector<8x1024xf32>
    %330 = arith.addf %321, %329 : vector<8x1024xf32>
    %c991_i32_179 = arith.constant 991 : i32
    %331 = tpu.dynamic_rotate %261 by %c991_i32_179 dim 1 : vector<8x1024xf32>, i32 -> vector<8x1024xf32>
    %332 = vector.extract_strided_slice %0 {offsets = [8, 0], sizes = [1, 1024], strides = [1, 1]} : vector<9x1024xf32> to vector<1x1024xf32>
    %333 = vector.broadcast %332 : vector<1x1024xf32> to vector<8x1024xf32>
    %334 = arith.mulf %331, %333 : vector<8x1024xf32>
    %c8_180 = arith.constant 8 : index
    %c0_181 = arith.constant 0 : index
    %c0_182 = arith.constant 0 : index
    %335 = vector.load %arg12[%c8_180, %c0_181, %c0_182] : memref<9x8x8xbf16, #tpu.memory_space<vmem>>, vector<1x8x8xbf16>
    %336 = vector.shape_cast %335 : vector<1x8x8xbf16> to vector<8x8xbf16>
    %337 = arith.truncf %334 : vector<8x1024xf32> to vector<8x1024xbf16>
    %cst_183 = arith.constant dense<0.000000e+00> : vector<8x1024xf32>
    %338 = tpu.matmul %336, %337, %cst_183 {dimension_numbers = #tpu.dot_dimension_numbers<[1], [0], [0], [1], [0, 0, 1, 1], [], []>} : vector<8x8xbf16>, vector<8x1024xbf16>, vector<8x1024xf32> -> vector<8x1024xf32>
    %339 = arith.addf %330, %338 : vector<8x1024xf32>
    %c0_184 = arith.constant 0 : index
    %c0_185 = arith.constant 0 : index
    %340 = vector.load %arg13[%c0_184, %c0_185] : memref<8x1xf32, #tpu.memory_space<vmem>>, vector<8x1xf32>
    %341 = vector.broadcast %340 : vector<8x1xf32> to vector<8x1024xf32>
    %342 = arith.addf %339, %341 : vector<8x1024xf32>
    %cst_186 = arith.constant 0.000000e+00 : f32
    %343 = vector.broadcast %cst_186 : f32 to vector<8x1024xf32>
    %344 = arith.cmpf oge, %342, %343 : vector<8x1024xf32>
    %c0_187 = arith.constant 0 : index
    %c0_188 = arith.constant 0 : index
    %345 = vector.load %arg14[%c0_187, %c0_188] : memref<8x1xf32, #tpu.memory_space<vmem>>, vector<8x1xf32>
    %346 = vector.broadcast %345 : vector<8x1xf32> to vector<8x1024xf32>
    %347 = arith.mulf %342, %346 : vector<8x1024xf32>
    %348 = arith.select %344, %342, %347 : vector<8x1024xi1>, vector<8x1024xf32>
    %c0_189 = arith.constant 0 : index
    %c0_190 = arith.constant 0 : index
    %c0_191 = arith.constant 0 : index
    %349 = vector.load %arg16[%c0_189, %c0_190, %c0_191] : memref<1x8x1024xf32, #tpu.memory_space<vmem>>, vector<1x8x1024xf32>
    %350 = vector.shape_cast %349 : vector<1x8x1024xf32> to vector<8x1024xf32>
    %351 = vector.shape_cast %348 : vector<8x1024xf32> to vector<1x8x1024xf32>
    tpu.vector_store %arg16[%c0_189, %c0_190, %c0_191], %351 {strides = array<i32>} : memref<1x8x1024xf32, #tpu.memory_space<vmem>>, vector<1x8x1024xf32>,
    return
  }
  func.func @transform_0(%arg0: i32) -> (i32, i32, i32) {
    %c0_i32 = arith.constant 0 : i32
    %c0_i32_0 = arith.constant 0 : i32
    %c0_i32_1 = arith.constant 0 : i32
    return %arg0, %c0_i32, %c0_i32_0 : i32, i32, i32
  }
  func.func @transform_1(%arg0: i32) -> (i32, i32, i32) {
    %c0_i32 = arith.constant 0 : i32
    %c0_i32_0 = arith.constant 0 : i32
    %c0_i32_1 = arith.constant 0 : i32
    return %arg0, %c0_i32, %c0_i32_0 : i32, i32, i32
  }
  func.func @transform_2(%arg0: i32) -> (i32, i32) {
    %c0_i32 = arith.constant 0 : i32
    %c0_i32_0 = arith.constant 0 : i32
    %c0_i32_1 = arith.constant 0 : i32
    return %c0_i32, %c0_i32_0 : i32, i32
  }
  func.func @transform_3(%arg0: i32) -> (i32, i32) {
    %c0_i32 = arith.constant 0 : i32
    %c0_i32_0 = arith.constant 0 : i32
    %c0_i32_1 = arith.constant 0 : i32
    return %c0_i32, %c0_i32_0 : i32, i32
  }
  func.func @transform_4(%arg0: i32) -> (i32, i32, i32) {
    %c0_i32 = arith.constant 0 : i32
    %c0_i32_0 = arith.constant 0 : i32
    %c0_i32_1 = arith.constant 0 : i32
    %c0_i32_2 = arith.constant 0 : i32
    return %c0_i32, %c0_i32_0, %c0_i32_1 : i32, i32, i32
  }
  func.func @transform_5(%arg0: i32) -> (i32, i32) {
    %c0_i32 = arith.constant 0 : i32
    %c0_i32_0 = arith.constant 0 : i32
    %c0_i32_1 = arith.constant 0 : i32
    return %c0_i32, %c0_i32_0 : i32, i32
  }
  func.func @transform_6(%arg0: i32) -> (i32, i32) {
    %c0_i32 = arith.constant 0 : i32
    %c0_i32_0 = arith.constant 0 : i32
    %c0_i32_1 = arith.constant 0 : i32
    return %c0_i32, %c0_i32_0 : i32, i32
  }
  func.func @transform_7(%arg0: i32) -> (i32, i32, i32) {
    %c0_i32 = arith.constant 0 : i32
    %c0_i32_0 = arith.constant 0 : i32
    %c0_i32_1 = arith.constant 0 : i32
    %c0_i32_2 = arith.constant 0 : i32
    return %c0_i32, %c0_i32_0, %c0_i32_1 : i32, i32, i32
  }
  func.func @transform_8(%arg0: i32) -> (i32, i32, i32) {
    %c0_i32 = arith.constant 0 : i32
    %c0_i32_0 = arith.constant 0 : i32
    %c0_i32_1 = arith.constant 0 : i32
    %c0_i32_2 = arith.constant 0 : i32
    return %c0_i32, %c0_i32_0, %c0_i32_1 : i32, i32, i32
  }
  func.func @transform_9(%arg0: i32) -> (i32, i32) {
    %c0_i32 = arith.constant 0 : i32
    %c0_i32_0 = arith.constant 0 : i32
    %c0_i32_1 = arith.constant 0 : i32
    return %c0_i32, %c0_i32_0 : i32, i32
  }
  func.func @transform_10(%arg0: i32) -> (i32, i32) {
    %c0_i32 = arith.constant 0 : i32
    %c0_i32_0 = arith.constant 0 : i32
    %c0_i32_1 = arith.constant 0 : i32
    return %c0_i32, %c0_i32_0 : i32, i32
  }
  func.func @transform_11(%arg0: i32) -> (i32, i32, i32) {
    %c0_i32 = arith.constant 0 : i32
    %c0_i32_0 = arith.constant 0 : i32
    %c0_i32_1 = arith.constant 0 : i32
    %c0_i32_2 = arith.constant 0 : i32
    return %c0_i32, %c0_i32_0, %c0_i32_1 : i32, i32, i32
  }
  func.func @transform_12(%arg0: i32) -> (i32, i32) {
    %c0_i32 = arith.constant 0 : i32
    %c0_i32_0 = arith.constant 0 : i32
    %c0_i32_1 = arith.constant 0 : i32
    return %c0_i32, %c0_i32_0 : i32, i32
  }
  func.func @transform_13(%arg0: i32) -> (i32, i32) {
    %c0_i32 = arith.constant 0 : i32
    %c0_i32_0 = arith.constant 0 : i32
    %c0_i32_1 = arith.constant 0 : i32
    return %c0_i32, %c0_i32_0 : i32, i32
  }
  func.func @transform_14(%arg0: i32) -> (i32, i32) {
    %c0_i32 = arith.constant 0 : i32
    %c0_i32_0 = arith.constant 0 : i32
    %c0_i32_1 = arith.constant 0 : i32
    return %c0_i32, %c0_i32_0 : i32, i32
  }
  func.func @transform_15(%arg0: i32) -> (i32, i32, i32) {
    %c0_i32 = arith.constant 0 : i32
    %c0_i32_0 = arith.constant 0 : i32
    %c0_i32_1 = arith.constant 0 : i32
    return %arg0, %c0_i32, %c0_i32_0 : i32, i32, i32
  }
}

</mosaic_0001>

<llo_original>
// kernel: up_forward.1
$region0: #{up_forward.1}
  #allocation0 [shape = 'u32[]', space=smem, size = 0x4, offset = 0x4, fixed_abs, tag = 'smem constant byte address 0x4 - core index']
  #allocation1 [shape = 'u32[144,128]{1,0:T(1,128)}', space=vmem, size = 0x12000, scoped, tag = 'internal scratch']
  %s0 = inlined_call_operand.vmem [shape: bf16[2,8,256], index: 0, kind: input, shape index: {}]
  %s1 = inlined_call_operand.vmem [shape: bf16[2,8,1024], index: 1, kind: input, shape index: {}]
  %s2 = inlined_call_operand.vmem [shape: bf16[256,1024], index: 2, kind: input, shape index: {}]
  %s3 = inlined_call_operand.vmem [shape: f32[9,1024], index: 3, kind: input, shape index: {}]
  %s4 = inlined_call_operand.vmem [shape: bf16[9,8,8], index: 4, kind: input, shape index: {}]
  %s5 = inlined_call_operand.vmem [shape: f32[8,1], index: 5, kind: input, shape index: {}]
  %s6 = inlined_call_operand.vmem [shape: f32[8,1], index: 6, kind: input, shape index: {}]
  %s7 = inlined_call_operand.vmem [shape: bf16[9,8,8], index: 7, kind: input, shape index: {}]
  %s8 = inlined_call_operand.vmem [shape: bf16[9,8,8], index: 8, kind: input, shape index: {}]
  %s9 = inlined_call_operand.vmem [shape: f32[8,1], index: 9, kind: input, shape index: {}]
  %s10 = inlined_call_operand.vmem [shape: f32[8,1], index: 10, kind: input, shape index: {}]
  %s11 = inlined_call_operand.vmem [shape: bf16[9,8,8], index: 11, kind: input, shape index: {}]
  %s12 = inlined_call_operand.vmem [shape: f32[8,1], index: 12, kind: input, shape index: {}]
  %s13 = inlined_call_operand.vmem [shape: f32[8,1], index: 13, kind: input, shape index: {}]
  %s14 = inlined_call_operand.vmem [shape: f32[8,1], index: 14, kind: input, shape index: {}]
  %s15 = inlined_call_operand.vmem [shape: f32[2,8,1024], index: 15, kind: output, shape index: {}]
  %s16 = sld [smem:[#allocation0]]
  $region93: #{up_forward.1} parent=0
    _
  %s18 = ssub.s32 1, %s16
  %s19 = scalar_select 0, %s18, %s16
  loop: start=0, step=1, limit=4
  $region2: #{up_forward.1} parent=0 // loop_pre_header
    _
  $region3: #{up_forward.1} parent=0 // loop_header
    %s21 = sphi 0, %s25
    %p22 = scmp.ge.s32.totalorder %s21, 4
    %s31 = sphi 0, %s33
    %s34 = sphi 0, %s31
    %s35 = sphi 0, %s34
    %s51 = sphi 0, %s35
    %s57 = sphi 0, %s59
    %s60 = sphi 0, %s57
    %s61 = sphi 0, %s60
    %s77 = sphi 0, %s61
    %s81 = sphi 0, %s81
    %s83 = sphi 0, %s81
    %s84 = sphi 0, %s83
    %s98 = sphi 0, %s84
    %s102 = sphi 0, %s102
    %s104 = sphi 0, %s102
    %s105 = sphi 0, %s104
    %s119 = sphi 0, %s105
    %s123 = sphi 0, %s123
    %s125 = sphi 0, %s123
    %s126 = sphi 0, %s125
    %s140 = sphi 0, %s126
    %s144 = sphi 0, %s144
    %s146 = sphi 0, %s144
    %s147 = sphi 0, %s146
    %s161 = sphi 0, %s147
    %s165 = sphi 0, %s165
    %s167 = sphi 0, %s165
    %s168 = sphi 0, %s167
    %s182 = sphi 0, %s168
    %s186 = sphi 0, %s186
    %s188 = sphi 0, %s186
    %s189 = sphi 0, %s188
    %s203 = sphi 0, %s189
    %s207 = sphi 0, %s207
    %s209 = sphi 0, %s207
    %s210 = sphi 0, %s209
    %s224 = sphi 0, %s210
    %s228 = sphi 0, %s228
    %s230 = sphi 0, %s228
    %s231 = sphi 0, %s230
    %s245 = sphi 0, %s231
    %s249 = sphi 0, %s249
    %s251 = sphi 0, %s249
    %s252 = sphi 0, %s251
    %s266 = sphi 0, %s252
    %s270 = sphi 0, %s270
    %s272 = sphi 0, %s270
    %s273 = sphi 0, %s272
    %s287 = sphi 0, %s273
    %s291 = sphi 0, %s291
    %s293 = sphi 0, %s291
    %s294 = sphi 0, %s293
    %s308 = sphi 0, %s294
    %s312 = sphi 0, %s312
    %s314 = sphi 0, %s312
    %s315 = sphi 0, %s314
    %s329 = sphi 0, %s315
    %s333 = sphi 0, %s333
    %s335 = sphi 0, %s333
    %s336 = sphi 0, %s335
    %s350 = sphi 0, %s336
    %s356 = sphi 0, %s358
    %s359 = sphi 0, %s356
    %s360 = sphi 0, %s359
    %s376 = sphi 0, %s360
  $region4: #{up_forward.1} parent=0 // loop_header_branch
    %24 = sbr.rel (%p22) target = $region8
  $region5: #{up_forward.1} parent=0 // loop_body
    %s26 = ssub.s32 %s21, 1
    %s27 = ssub.s32 %s21, 2
    %s28 = sadd.s32 %s21, 1
    %s29 = ssub.s32 %s21, %s28
    %p30 = scmp.eq.s32.totalorder %s29, 0
    %s32 = sadd.s32 %s31, 1
    %s33 = scalar_select %p30, %s31, %s32
    %p36 = pneg %p30
    %p37 = scmp.eq.s32.totalorder %s21, 1
    %p38 = por %p36, %p37
    %p39 = scmp.ne.s32.totalorder %s31, %s34
    %p40 = scmp.eq.s32.totalorder %s21, 0
    %p41 = por %p39, %p40
    %p42 = scmp.ne.s32.totalorder %s31, %s34
    %p43 = scmp.eq.s32.totalorder %s26, 1
    %p44 = por %p42, %p43
    %p45 = scmp.ne.s32.totalorder %s34, %s35
    %p46 = scmp.eq.s32.totalorder %s26, 0
    %p47 = por %p45, %p46
    %p48 = scmp.ne.s32.totalorder %s34, %s35
    %p49 = scmp.eq.s32.totalorder %s27, 1
    %p50 = por %p48, %p49
    %p52 = scmp.ne.s32.totalorder %s35, %s51
    %p53 = scmp.eq.s32.totalorder %s27, 0
    %p54 = por %p52, %p53
    %s55 = ssub.s32 %s21, %s28
    %p56 = scmp.eq.s32.totalorder %s55, 0
    %s58 = sadd.s32 %s57, 1
    %s59 = scalar_select %p56, %s57, %s58
    %p62 = pneg %p56
    %p63 = scmp.eq.s32.totalorder %s21, 1
    %p64 = por %p62, %p63
    %p65 = scmp.ne.s32.totalorder %s57, %s60
    %p66 = scmp.eq.s32.totalorder %s21, 0
    %p67 = por %p65, %p66
    %p68 = scmp.ne.s32.totalorder %s57, %s60
    %p69 = scmp.eq.s32.totalorder %s26, 1
    %p70 = por %p68, %p69
    %p71 = scmp.ne.s32.totalorder %s60, %s61
    %p72 = scmp.eq.s32.totalorder %s26, 0
    %p73 = por %p71, %p72
    %p74 = scmp.ne.s32.totalorder %s60, %s61
    %p75 = scmp.eq.s32.totalorder %s27, 1
    %p76 = por %p74, %p75
    %p78 = scmp.ne.s32.totalorder %s61, %s77
    %p79 = scmp.eq.s32.totalorder %s27, 0
    %p80 = por %p78, %p79
    %s82 = sadd.s32 %s81, 1
    %p85 = scmp.eq.s32.totalorder %s21, 1
    %p86 = scmp.ne.s32.totalorder %s81, %s83
    %p87 = scmp.eq.s32.totalorder %s21, 0
    %p88 = por %p86, %p87
    %p89 = scmp.ne.s32.totalorder %s81, %s83
    %p90 = scmp.eq.s32.totalorder %s26, 1
    %p91 = por %p89, %p90
    %p92 = scmp.ne.s32.totalorder %s83, %s84
    %p93 = scmp.eq.s32.totalorder %s26, 0
    %p94 = por %p92, %p93
    %p95 = scmp.ne.s32.totalorder %s83, %s84
    %p96 = scmp.eq.s32.totalorder %s27, 1
    %p97 = por %p95, %p96
    %p99 = scmp.ne.s32.totalorder %s84, %s98
    %p100 = scmp.eq.s32.totalorder %s27, 0
    %p101 = por %p99, %p100
    %s103 = sadd.s32 %s102, 1
    %p106 = scmp.eq.s32.totalorder %s21, 1
    %p107 = scmp.ne.s32.totalorder %s102, %s104
    %p108 = scmp.eq.s32.totalorder %s21, 0
    %p109 = por %p107, %p108
    %p110 = scmp.ne.s32.totalorder %s102, %s104
    %p111 = scmp.eq.s32.totalorder %s26, 1
    %p112 = por %p110, %p111
    %p113 = scmp.ne.s32.totalorder %s104, %s105
    %p114 = scmp.eq.s32.totalorder %s26, 0
    %p115 = por %p113, %p114
    %p116 = scmp.ne.s32.totalorder %s104, %s105
    %p117 = scmp.eq.s32.totalorder %s27, 1
    %p118 = por %p116, %p117
    %p120 = scmp.ne.s32.totalorder %s105, %s119
    %p121 = scmp.eq.s32.totalorder %s27, 0
    %p122 = por %p120, %p121
    %s124 = sadd.s32 %s123, 1
    %p127 = scmp.eq.s32.totalorder %s21, 1
    %p128 = scmp.ne.s32.totalorder %s123, %s125
    %p129 = scmp.eq.s32.totalorder %s21, 0
    %p130 = por %p128, %p129
    %p131 = scmp.ne.s32.totalorder %s123, %s125
    %p132 = scmp.eq.s32.totalorder %s26, 1
    %p133 = por %p131, %p132
    %p134 = scmp.ne.s32.totalorder %s125, %s126
    %p135 = scmp.eq.s32.totalorder %s26, 0
    %p136 = por %p134, %p135
    %p137 = scmp.ne.s32.totalorder %s125, %s126
    %p138 = scmp.eq.s32.totalorder %s27, 1
    %p139 = por %p137, %p138
    %p141 = scmp.ne.s32.totalorder %s126, %s140
    %p142 = scmp.eq.s32.totalorder %s27, 0
    %p143 = por %p141, %p142
    %s145 = sadd.s32 %s144, 1
    %p148 = scmp.eq.s32.totalorder %s21, 1
    %p149 = scmp.ne.s32.totalorder %s144, %s146
    %p150 = scmp.eq.s32.totalorder %s21, 0
    %p151 = por %p149, %p150
    %p152 = scmp.ne.s32.totalorder %s144, %s146
    %p153 = scmp.eq.s32.totalorder %s26, 1
    %p154 = por %p152, %p153
    %p155 = scmp.ne.s32.totalorder %s146, %s147
    %p156 = scmp.eq.s32.totalorder %s26, 0
    %p157 = por %p155, %p156
    %p158 = scmp.ne.s32.totalorder %s146, %s147
    %p159 = scmp.eq.s32.totalorder %s27, 1
    %p160 = por %p158, %p159
    %p162 = scmp.ne.s32.totalorder %s147, %s161
    %p163 = scmp.eq.s32.totalorder %s27, 0
    %p164 = por %p162, %p163
    %s166 = sadd.s32 %s165, 1
    %p169 = scmp.eq.s32.totalorder %s21, 1
    %p170 = scmp.ne.s32.totalorder %s165, %s167
    %p171 = scmp.eq.s32.totalorder %s21, 0
    %p172 = por %p170, %p171
    %p173 = scmp.ne.s32.totalorder %s165, %s167
    %p174 = scmp.eq.s32.totalorder %s26, 1
    %p175 = por %p173, %p174
    %p176 = scmp.ne.s32.totalorder %s167, %s168
    %p177 = scmp.eq.s32.totalorder %s26, 0
    %p178 = por %p176, %p177
    %p179 = scmp.ne.s32.totalorder %s167, %s168
    %p180 = scmp.eq.s32.totalorder %s27, 1
    %p181 = por %p179, %p180
    %p183 = scmp.ne.s32.totalorder %s168, %s182
    %p184 = scmp.eq.s32.totalorder %s27, 0
    %p185 = por %p183, %p184
    %s187 = sadd.s32 %s186, 1
    %p190 = scmp.eq.s32.totalorder %s21, 1
    %p191 = scmp.ne.s32.totalorder %s186, %s188
    %p192 = scmp.eq.s32.totalorder %s21, 0
    %p193 = por %p191, %p192
    %p194 = scmp.ne.s32.totalorder %s186, %s188
    %p195 = scmp.eq.s32.totalorder %s26, 1
    %p196 = por %p194, %p195
    %p197 = scmp.ne.s32.totalorder %s188, %s189
    %p198 = scmp.eq.s32.totalorder %s26, 0
    %p199 = por %p197, %p198
    %p200 = scmp.ne.s32.totalorder %s188, %s189
    %p201 = scmp.eq.s32.totalorder %s27, 1
    %p202 = por %p200, %p201
    %p204 = scmp.ne.s32.totalorder %s189, %s203
    %p205 = scmp.eq.s32.totalorder %s27, 0
    %p206 = por %p204, %p205
    %s208 = sadd.s32 %s207, 1
    %p211 = scmp.eq.s32.totalorder %s21, 1
    %p212 = scmp.ne.s32.totalorder %s207, %s209
    %p213 = scmp.eq.s32.totalorder %s21, 0
    %p214 = por %p212, %p213
    %p215 = scmp.ne.s32.totalorder %s207, %s209
    %p216 = scmp.eq.s32.totalorder %s26, 1
    %p217 = por %p215, %p216
    %p218 = scmp.ne.s32.totalorder %s209, %s210
    %p219 = scmp.eq.s32.totalorder %s26, 0
    %p220 = por %p218, %p219
    %p221 = scmp.ne.s32.totalorder %s209, %s210
    %p222 = scmp.eq.s32.totalorder %s27, 1
    %p223 = por %p221, %p222
    %p225 = scmp.ne.s32.totalorder %s210, %s224
    %p226 = scmp.eq.s32.totalorder %s27, 0
    %p227 = por %p225, %p226
    %s229 = sadd.s32 %s228, 1
    %p232 = scmp.eq.s32.totalorder %s21, 1
    %p233 = scmp.ne.s32.totalorder %s228, %s230
    %p234 = scmp.eq.s32.totalorder %s21, 0
    %p235 = por %p233, %p234
    %p236 = scmp.ne.s32.totalorder %s228, %s230
    %p237 = scmp.eq.s32.totalorder %s26, 1
    %p238 = por %p236, %p237
    %p239 = scmp.ne.s32.totalorder %s230, %s231
    %p240 = scmp.eq.s32.totalorder %s26, 0
    %p241 = por %p239, %p240
    %p242 = scmp.ne.s32.totalorder %s230, %s231
    %p243 = scmp.eq.s32.totalorder %s27, 1
    %p244 = por %p242, %p243
    %p246 = scmp.ne.s32.totalorder %s231, %s245
    %p247 = scmp.eq.s32.totalorder %s27, 0
    %p248 = por %p246, %p247
    %s250 = sadd.s32 %s249, 1
    %p253 = scmp.eq.s32.totalorder %s21, 1
    %p254 = scmp.ne.s32.totalorder %s249, %s251
    %p255 = scmp.eq.s32.totalorder %s21, 0
    %p256 = por %p254, %p255
    %p257 = scmp.ne.s32.totalorder %s249, %s251
    %p258 = scmp.eq.s32.totalorder %s26, 1
    %p259 = por %p257, %p258
    %p260 = scmp.ne.s32.totalorder %s251, %s252
    %p261 = scmp.eq.s32.totalorder %s26, 0
    %p262 = por %p260, %p261
    %p263 = scmp.ne.s32.totalorder %s251, %s252
    %p264 = scmp.eq.s32.totalorder %s27, 1
    %p265 = por %p263, %p264
    %p267 = scmp.ne.s32.totalorder %s252, %s266
    %p268 = scmp.eq.s32.totalorder %s27, 0
    %p269 = por %p267, %p268
    %s271 = sadd.s32 %s270, 1
    %p274 = scmp.eq.s32.totalorder %s21, 1
    %p275 = scmp.ne.s32.totalorder %s270, %s272
    %p276 = scmp.eq.s32.totalorder %s21, 0
    %p277 = por %p275, %p276
    %p278 = scmp.ne.s32.totalorder %s270, %s272
    %p279 = scmp.eq.s32.totalorder %s26, 1
    %p280 = por %p278, %p279
    %p281 = scmp.ne.s32.totalorder %s272, %s273
    %p282 = scmp.eq.s32.totalorder %s26, 0
    %p283 = por %p281, %p282
    %p284 = scmp.ne.s32.totalorder %s272, %s273
    %p285 = scmp.eq.s32.totalorder %s27, 1
    %p286 = por %p284, %p285
    %p288 = scmp.ne.s32.totalorder %s273, %s287
    %p289 = scmp.eq.s32.totalorder %s27, 0
    %p290 = por %p288, %p289
    %s292 = sadd.s32 %s291, 1
    %p295 = scmp.eq.s32.totalorder %s21, 1
    %p296 = scmp.ne.s32.totalorder %s291, %s293
    %p297 = scmp.eq.s32.totalorder %s21, 0
    %p298 = por %p296, %p297
    %p299 = scmp.ne.s32.totalorder %s291, %s293
    %p300 = scmp.eq.s32.totalorder %s26, 1
    %p301 = por %p299, %p300
    %p302 = scmp.ne.s32.totalorder %s293, %s294
    %p303 = scmp.eq.s32.totalorder %s26, 0
    %p304 = por %p302, %p303
    %p305 = scmp.ne.s32.totalorder %s293, %s294
    %p306 = scmp.eq.s32.totalorder %s27, 1
    %p307 = por %p305, %p306
    %p309 = scmp.ne.s32.totalorder %s294, %s308
    %p310 = scmp.eq.s32.totalorder %s27, 0
    %p311 = por %p309, %p310
    %s313 = sadd.s32 %s312, 1
    %p316 = scmp.eq.s32.totalorder %s21, 1
    %p317 = scmp.ne.s32.totalorder %s312, %s314
    %p318 = scmp.eq.s32.totalorder %s21, 0
    %p319 = por %p317, %p318
    %p320 = scmp.ne.s32.totalorder %s312, %s314
    %p321 = scmp.eq.s32.totalorder %s26, 1
    %p322 = por %p320, %p321
    %p323 = scmp.ne.s32.totalorder %s314, %s315
    %p324 = scmp.eq.s32.totalorder %s26, 0
    %p325 = por %p323, %p324
    %p326 = scmp.ne.s32.totalorder %s314, %s315
    %p327 = scmp.eq.s32.totalorder %s27, 1
    %p328 = por %p326, %p327
    %p330 = scmp.ne.s32.totalorder %s315, %s329
    %p331 = scmp.eq.s32.totalorder %s27, 0
    %p332 = por %p330, %p331
    %s334 = sadd.s32 %s333, 1
    %p337 = scmp.eq.s32.totalorder %s21, 1
    %p338 = scmp.ne.s32.totalorder %s333, %s335
    %p339 = scmp.eq.s32.totalorder %s21, 0
    %p340 = por %p338, %p339
    %p341 = scmp.ne.s32.totalorder %s333, %s335
    %p342 = scmp.eq.s32.totalorder %s26, 1
    %p343 = por %p341, %p342
    %p344 = scmp.ne.s32.totalorder %s335, %s336
    %p345 = scmp.eq.s32.totalorder %s26, 0
    %p346 = por %p344, %p345
    %p347 = scmp.ne.s32.totalorder %s335, %s336
    %p348 = scmp.eq.s32.totalorder %s27, 1
    %p349 = por %p347, %p348
    %p351 = scmp.ne.s32.totalorder %s336, %s350
    %p352 = scmp.eq.s32.totalorder %s27, 0
    %p353 = por %p351, %p352
    %s354 = ssub.s32 %s21, %s28
    %p355 = scmp.eq.s32.totalorder %s354, 0
    %s357 = sadd.s32 %s356, 1
    %s358 = scalar_select %p355, %s356, %s357
    %p361 = pneg %p355
    %p362 = scmp.eq.s32.totalorder %s21, 1
    %p363 = por %p361, %p362
    %p364 = scmp.ne.s32.totalorder %s356, %s359
    %p365 = scmp.eq.s32.totalorder %s21, 0
    %p366 = por %p364, %p365
    %p367 = scmp.ne.s32.totalorder %s356, %s359
    %p368 = scmp.eq.s32.totalorder %s26, 1
    %p369 = por %p367, %p368
    %p370 = scmp.ne.s32.totalorder %s359, %s360
    %p371 = scmp.eq.s32.totalorder %s26, 0
    %p372 = por %p370, %p371
    %p373 = scmp.ne.s32.totalorder %s359, %s360
    %p374 = scmp.eq.s32.totalorder %s27, 1
    %p375 = por %p373, %p374
    %p377 = scmp.ne.s32.totalorder %s360, %s376
    %p378 = scmp.eq.s32.totalorder %s27, 0
    %p379 = por %p377, %p378
    %p380 = scmp.le.s32.totalorder 1, %s21
    %p381 = scmp.lt.s32.totalorder %s21, 3
    %p382 = pnand %p380, %p381
    %p383 = pneg %p382
    // Predicated region
    $region9: #{up_forward.1} parent=5 // pred_check
      _
    $region10: #{up_forward.1} parent=5 // pred_check_branch
      %385 = sbr.rel (%p382) target = $region12
    $region11: #{up_forward.1} parent=5 // pred_region
      %s386 = ssub.s32 %s21, 1
      // Predicated region
      $region13: #{up_forward.1} parent=11 // pred_check
        %p387 = pneg %p94
      $region14: #{up_forward.1} parent=11 // pred_check_branch
        %389 = sbr.rel (%p387) target = $region16
      $region15: #{up_forward.1} parent=11 // pred_region
        _
      $region16: #{up_forward.1} parent=11 // pred_fallthru
        _
      // Predicated region
      $region17: #{up_forward.1} parent=11 // pred_check
        %p390 = pneg %p115
      $region18: #{up_forward.1} parent=11 // pred_check_branch
        %392 = sbr.rel (%p390) target = $region20
      $region19: #{up_forward.1} parent=11 // pred_region
        _
      $region20: #{up_forward.1} parent=11 // pred_fallthru
        _
      // Predicated region
      $region21: #{up_forward.1} parent=11 // pred_check
        %p393 = pneg %p136
      $region22: #{up_forward.1} parent=11 // pred_check_branch
        %395 = sbr.rel (%p393) target = $region24
      $region23: #{up_forward.1} parent=11 // pred_region
        _
      $region24: #{up_forward.1} parent=11 // pred_fallthru
        _
      // Predicated region
      $region25: #{up_forward.1} parent=11 // pred_check
        %p396 = pneg %p157
      $region26: #{up_forward.1} parent=11 // pred_check_branch
        %398 = sbr.rel (%p396) target = $region28
      $region27: #{up_forward.1} parent=11 // pred_region
        _
      $region28: #{up_forward.1} parent=11 // pred_fallthru
        _
      // Predicated region
      $region29: #{up_forward.1} parent=11 // pred_check
        %p399 = pneg %p178
      $region30: #{up_forward.1} parent=11 // pred_check_branch
        %401 = sbr.rel (%p399) target = $region32
      $region31: #{up_forward.1} parent=11 // pred_region
        _
      $region32: #{up_forward.1} parent=11 // pred_fallthru
        _
      // Predicated region
      $region33: #{up_forward.1} parent=11 // pred_check
        %p402 = pneg %p199
      $region34: #{up_forward.1} parent=11 // pred_check_branch
        %404 = sbr.rel (%p402) target = $region36
      $region35: #{up_forward.1} parent=11 // pred_region
        _
      $region36: #{up_forward.1} parent=11 // pred_fallthru
        _
      // Predicated region
      $region37: #{up_forward.1} parent=11 // pred_check
        %p405 = pneg %p220
      $region38: #{up_forward.1} parent=11 // pred_check_branch
        %407 = sbr.rel (%p405) target = $region40
      $region39: #{up_forward.1} parent=11 // pred_region
        _
      $region40: #{up_forward.1} parent=11 // pred_fallthru
        _
      // Predicated region
      $region41: #{up_forward.1} parent=11 // pred_check
        %p408 = pneg %p241
      $region42: #{up_forward.1} parent=11 // pred_check_branch
        %410 = sbr.rel (%p408) target = $region44
      $region43: #{up_forward.1} parent=11 // pred_region
        _
      $region44: #{up_forward.1} parent=11 // pred_fallthru
        _
      // Predicated region
      $region45: #{up_forward.1} parent=11 // pred_check
        %p411 = pneg %p262
      $region46: #{up_forward.1} parent=11 // pred_check_branch
        %413 = sbr.rel (%p411) target = $region48
      $region47: #{up_forward.1} parent=11 // pred_region
        _
      $region48: #{up_forward.1} parent=11 // pred_fallthru
        _
      // Predicated region
      $region49: #{up_forward.1} parent=11 // pred_check
        %p414 = pneg %p283
      $region50: #{up_forward.1} parent=11 // pred_check_branch
        %416 = sbr.rel (%p414) target = $region52
      $region51: #{up_forward.1} parent=11 // pred_region
        _
      $region52: #{up_forward.1} parent=11 // pred_fallthru
        _
      // Predicated region
      $region53: #{up_forward.1} parent=11 // pred_check
        %p417 = pneg %p304
      $region54: #{up_forward.1} parent=11 // pred_check_branch
        %419 = sbr.rel (%p417) target = $region56
      $region55: #{up_forward.1} parent=11 // pred_region
        _
      $region56: #{up_forward.1} parent=11 // pred_fallthru
        _
      // Predicated region
      $region57: #{up_forward.1} parent=11 // pred_check
        %p420 = pneg %p325
      $region58: #{up_forward.1} parent=11 // pred_check_branch
        %422 = sbr.rel (%p420) target = $region60
      $region59: #{up_forward.1} parent=11 // pred_region
        _
      $region60: #{up_forward.1} parent=11 // pred_fallthru
        _
      // Predicated region
      $region61: #{up_forward.1} parent=11 // pred_check
        %p423 = pneg %p346
      $region62: #{up_forward.1} parent=11 // pred_check_branch
        %425 = sbr.rel (%p423) target = $region64
      $region63: #{up_forward.1} parent=11 // pred_region
        _
      $region64: #{up_forward.1} parent=11 // pred_fallthru
        _
    $region12: #{up_forward.1} parent=5 // pred_fallthru
      _
    %p426 = scmp.lt.s32.totalorder %s21, 2
    // Predicated region
    $region65: #{up_forward.1} parent=5 // pred_check
      %p427 = pneg %p426
    $region66: #{up_forward.1} parent=5 // pred_check_branch
      %429 = sbr.rel (%p427) target = $region68
    $region67: #{up_forward.1} parent=5 // pred_region
      // Predicated region
      $region69: #{up_forward.1} parent=67 // pred_check
        %p430 = pneg %p41
      $region70: #{up_forward.1} parent=67 // pred_check_branch
        %432 = sbr.rel (%p430) target = $region72
      $region71: #{up_forward.1} parent=67 // pred_region
        %p433 = scmp.lt.s32.totalorder %s21, 1
        %s434 = scalar_select %p433, %s21, 1
        %s435 = smul.addr %s434, 2
        %s436 = smul.addr %s435, 4
        %s437 = scalar_lea.vmem %s0, %s436
      $region72: #{up_forward.1} parent=67 // pred_fallthru
        _
      // Predicated region
      $region73: #{up_forward.1} parent=67 // pred_check
        %p438 = pneg %p67
      $region74: #{up_forward.1} parent=67 // pred_check_branch
        %440 = sbr.rel (%p438) target = $region76
      $region75: #{up_forward.1} parent=67 // pred_region
        %p441 = scmp.lt.s32.totalorder %s21, 1
        %s442 = scalar_select %p441, %s21, 1
        %s443 = smul.addr %s442, 8
        %s444 = smul.addr %s443, 4
        %s445 = scalar_lea.vmem %s1, %s444
      $region76: #{up_forward.1} parent=67 // pred_fallthru
        _
    $region68: #{up_forward.1} parent=5 // pred_fallthru
      _
    %p446 = scmp.le.s32.totalorder 1, %s21
    %p447 = scmp.lt.s32.totalorder %s21, 3
    %p448 = pnand %p446, %p447
    %p449 = pneg %p448
    // Predicated region
    $region77: #{up_forward.1} parent=5 // pred_check
      _
    $region78: #{up_forward.1} parent=5 // pred_check_branch
      %451 = sbr.rel (%p448) target = $region80
    $region79: #{up_forward.1} parent=5 // pred_region
      %s452 = ssub.s32 %s21, 1
      %p453 = scmp.lt.s32.totalorder %s26, 1
      %s454 = scalar_select %p453, %s26, 1
      %s455 = smul.addr %s454, 2
      %s456 = smul.addr %s455, 4
      %s457 = scalar_lea.vmem %s0, %s456
      %p458 = pneg %p47
      %p459 = pneg %p44
      %p460 = scmp.lt.s32.totalorder %s26, 1
      %s461 = scalar_select %p460, %s26, 1
      %s462 = smul.addr %s461, 8
      %s463 = smul.addr %s462, 4
      %s464 = scalar_lea.vmem %s1, %s463
      %p465 = pneg %p73
      %p466 = pneg %p70
      %p467 = pneg %p94
      %p468 = pneg %p91
      %p469 = pneg %p115
      %p470 = pneg %p112
      %p471 = pneg %p136
      %p472 = pneg %p133
      %p473 = pneg %p157
      %p474 = pneg %p154
      %p475 = pneg %p178
      %p476 = pneg %p175
      %p477 = pneg %p199
      %p478 = pneg %p196
      %p479 = pneg %p220
      %p480 = pneg %p217
      %p481 = pneg %p241
      %p482 = pneg %p238
      %p483 = pneg %p262
      %p484 = pneg %p259
      %p485 = pneg %p283
      %p486 = pneg %p280
      %p487 = pneg %p304
      %p488 = pneg %p301
      %p489 = pneg %p325
      %p490 = pneg %p322
      %p491 = pneg %p346
      %p492 = pneg %p343
      %p493 = pneg %p372
      %p494 = pneg %p369
      %p495 = scmp.lt.s32.totalorder %s26, 1
      %s496 = scalar_select %p495, %s26, 1
      %s497 = smul.addr %s496, 8
      %s498 = smul.addr %s497, 8
      %s499 = scalar_lea.vmem %s15, %s498
      %p500 = scmp.lt.s32.totalorder %s26, 1
      %s501 = scalar_select %p500, %s26, 1
      %s502 = smul.addr %s501, 2
      %s503 = smul.addr %s502, 4
      %s504 = scalar_lea.vmem %s0, %s503
      %p505 = scmp.lt.s32.totalorder %s26, 1
      %s506 = scalar_select %p505, %s26, 1
      %s507 = smul.addr %s506, 8
      %s508 = smul.addr %s507, 4
      %s509 = scalar_lea.vmem %s1, %s508
      %p510 = scmp.lt.s32.totalorder %s26, 1
      %s511 = scalar_select %p510, %s26, 1
      %s512 = smul.addr %s511, 8
      %s513 = smul.addr %s512, 8
      %s514 = scalar_lea.vmem %s15, %s513
      %v516 = vld [vmem:[%s3] sm:$0xff]
      %v517 = vld [vmem:[%s3 + $0x8] sm:$0xff]
      %v518 = vld [vmem:[%s3 + $0x10] sm:$0xff]
      %v519 = vld [vmem:[%s3 + $0x18] sm:$0xff]
      %v520 = vld [vmem:[%s3 + $0x20] sm:$0xff]
      %v521 = vld [vmem:[%s3 + $0x28] sm:$0xff]
      %v522 = vld [vmem:[%s3 + $0x30] sm:$0xff]
      %v523 = vld [vmem:[%s3 + $0x38] sm:$0xff]
      %v524 = vld [vmem:[%s3 + $0x40] sm:$0x1]
      %v525 = vld [vmem:[%s3 + $0x48] sm:$0x1]
      %v526 = vld [vmem:[%s3 + $0x50] sm:$0x1]
      %v527 = vld [vmem:[%s3 + $0x58] sm:$0x1]
      %v528 = vld [vmem:[%s3 + $0x60] sm:$0x1]
      %v529 = vld [vmem:[%s3 + $0x68] sm:$0x1]
      %v530 = vld [vmem:[%s3 + $0x70] sm:$0x1]
      %v531 = vld [vmem:[%s3 + $0x78] sm:$0x1]
      %v532 = vld [vmem:[%s504] sm:$0xff]
      %v533 = vld [vmem:[%s2] sm:$0xff]
      %v534 = vld [vmem:[%s2 + $0x8] sm:$0xff]
      %v535 = vld [vmem:[%s2 + $0x10] sm:$0xff]
      %v536 = vld [vmem:[%s2 + $0x18] sm:$0xff]
      %v537 = vld [vmem:[%s2 + $0x20] sm:$0xff]
      %v538 = vld [vmem:[%s2 + $0x28] sm:$0xff]
      %v539 = vld [vmem:[%s2 + $0x30] sm:$0xff]
      %v540 = vld [vmem:[%s2 + $0x38] sm:$0xff]
      %v541 = vld [vmem:[%s2 + $0x40] sm:$0xff]
      %v542 = vld [vmem:[%s2 + $0x48] sm:$0xff]
      %v543 = vld [vmem:[%s2 + $0x50] sm:$0xff]
      %v544 = vld [vmem:[%s2 + $0x58] sm:$0xff]
      %v545 = vld [vmem:[%s2 + $0x60] sm:$0xff]
      %v546 = vld [vmem:[%s2 + $0x68] sm:$0xff]
      %v547 = vld [vmem:[%s2 + $0x70] sm:$0xff]
      %v548 = vld [vmem:[%s2 + $0x78] sm:$0xff]
      %v549 = vld [vmem:[%s2 + $0x80] sm:$0xff]
      %v550 = vld [vmem:[%s2 + $0x88] sm:$0xff]
      %v551 = vld [vmem:[%s2 + $0x90] sm:$0xff]
      %v552 = vld [vmem:[%s2 + $0x98] sm:$0xff]
      %v553 = vld [vmem:[%s2 + $0xa0] sm:$0xff]
      %v554 = vld [vmem:[%s2 + $0xa8] sm:$0xff]
      %v555 = vld [vmem:[%s2 + $0xb0] sm:$0xff]
      %v556 = vld [vmem:[%s2 + $0xb8] sm:$0xff]
      %v557 = vld [vmem:[%s2 + $0xc0] sm:$0xff]
      %v558 = vld [vmem:[%s2 + $0xc8] sm:$0xff]
      %v559 = vld [vmem:[%s2 + $0xd0] sm:$0xff]
      %v560 = vld [vmem:[%s2 + $0xd8] sm:$0xff]
      %v561 = vld [vmem:[%s2 + $0xe0] sm:$0xff]
      %v562 = vld [vmem:[%s2 + $0xe8] sm:$0xff]
      %v563 = vld [vmem:[%s2 + $0xf0] sm:$0xff]
      %v564 = vld [vmem:[%s2 + $0xf8] sm:$0xff]
      %v565 = vld [vmem:[%s2 + $0x100] sm:$0xff]
      %v566 = vld [vmem:[%s2 + $0x108] sm:$0xff]
      %v567 = vld [vmem:[%s2 + $0x110] sm:$0xff]
      %v568 = vld [vmem:[%s2 + $0x118] sm:$0xff]
      %v569 = vld [vmem:[%s2 + $0x120] sm:$0xff]
      %v570 = vld [vmem:[%s2 + $0x128] sm:$0xff]
      %v571 = vld [vmem:[%s2 + $0x130] sm:$0xff]
      %v572 = vld [vmem:[%s2 + $0x138] sm:$0xff]
      %v573 = vld [vmem:[%s2 + $0x140] sm:$0xff]
      %v574 = vld [vmem:[%s2 + $0x148] sm:$0xff]
      %v575 = vld [vmem:[%s2 + $0x150] sm:$0xff]
      %v576 = vld [vmem:[%s2 + $0x158] sm:$0xff]
      %v577 = vld [vmem:[%s2 + $0x160] sm:$0xff]
      %v578 = vld [vmem:[%s2 + $0x168] sm:$0xff]
      %v579 = vld [vmem:[%s2 + $0x170] sm:$0xff]
      %v580 = vld [vmem:[%s2 + $0x178] sm:$0xff]
      %v581 = vld [vmem:[%s2 + $0x180] sm:$0xff]
      %v582 = vld [vmem:[%s2 + $0x188] sm:$0xff]
      %v583 = vld [vmem:[%s2 + $0x190] sm:$0xff]
      %v584 = vld [vmem:[%s2 + $0x198] sm:$0xff]
      %v585 = vld [vmem:[%s2 + $0x1a0] sm:$0xff]
      %v586 = vld [vmem:[%s2 + $0x1a8] sm:$0xff]
      %v587 = vld [vmem:[%s2 + $0x1b0] sm:$0xff]
      %v588 = vld [vmem:[%s2 + $0x1b8] sm:$0xff]
      %v589 = vld [vmem:[%s2 + $0x1c0] sm:$0xff]
      %v590 = vld [vmem:[%s2 + $0x1c8] sm:$0xff]
      %v591 = vld [vmem:[%s2 + $0x1d0] sm:$0xff]
      %v592 = vld [vmem:[%s2 + $0x1d8] sm:$0xff]
      %v593 = vld [vmem:[%s2 + $0x1e0] sm:$0xff]
      %v594 = vld [vmem:[%s2 + $0x1e8] sm:$0xff]
      %v595 = vld [vmem:[%s2 + $0x1f0] sm:$0xff]
      %v596 = vld [vmem:[%s2 + $0x1f8] sm:$0xff]
      %v597 = vld [vmem:[%s2 + $0x200] sm:$0xff]
      %v598 = vld [vmem:[%s2 + $0x208] sm:$0xff]
      %v599 = vld [vmem:[%s2 + $0x210] sm:$0xff]
      %v600 = vld [vmem:[%s2 + $0x218] sm:$0xff]
      %v601 = vld [vmem:[%s2 + $0x220] sm:$0xff]
      %v602 = vld [vmem:[%s2 + $0x228] sm:$0xff]
      %v603 = vld [vmem:[%s2 + $0x230] sm:$0xff]
      %v604 = vld [vmem:[%s2 + $0x238] sm:$0xff]
      %v605 = vld [vmem:[%s2 + $0x240] sm:$0xff]
      %v606 = vld [vmem:[%s2 + $0x248] sm:$0xff]
      %v607 = vld [vmem:[%s2 + $0x250] sm:$0xff]
      %v608 = vld [vmem:[%s2 + $0x258] sm:$0xff]
      %v609 = vld [vmem:[%s2 + $0x260] sm:$0xff]
      %v610 = vld [vmem:[%s2 + $0x268] sm:$0xff]
      %v611 = vld [vmem:[%s2 + $0x270] sm:$0xff]
      %v612 = vld [vmem:[%s2 + $0x278] sm:$0xff]
      %v613 = vld [vmem:[%s2 + $0x280] sm:$0xff]
      %v614 = vld [vmem:[%s2 + $0x288] sm:$0xff]
      %v615 = vld [vmem:[%s2 + $0x290] sm:$0xff]
      %v616 = vld [vmem:[%s2 + $0x298] sm:$0xff]
      %v617 = vld [vmem:[%s2 + $0x2a0] sm:$0xff]
      %v618 = vld [vmem:[%s2 + $0x2a8] sm:$0xff]
      %v619 = vld [vmem:[%s2 + $0x2b0] sm:$0xff]
      %v620 = vld [vmem:[%s2 + $0x2b8] sm:$0xff]
      %v621 = vld [vmem:[%s2 + $0x2c0] sm:$0xff]
      %v622 = vld [vmem:[%s2 + $0x2c8] sm:$0xff]
      %v623 = vld [vmem:[%s2 + $0x2d0] sm:$0xff]
      %v624 = vld [vmem:[%s2 + $0x2d8] sm:$0xff]
      %v625 = vld [vmem:[%s2 + $0x2e0] sm:$0xff]
      %v626 = vld [vmem:[%s2 + $0x2e8] sm:$0xff]
      %v627 = vld [vmem:[%s2 + $0x2f0] sm:$0xff]
      %v628 = vld [vmem:[%s2 + $0x2f8] sm:$0xff]
      %v629 = vld [vmem:[%s2 + $0x300] sm:$0xff]
      %v630 = vld [vmem:[%s2 + $0x308] sm:$0xff]
      %v631 = vld [vmem:[%s2 + $0x310] sm:$0xff]
      %v632 = vld [vmem:[%s2 + $0x318] sm:$0xff]
      %v633 = vld [vmem:[%s2 + $0x320] sm:$0xff]
      %v634 = vld [vmem:[%s2 + $0x328] sm:$0xff]
      %v635 = vld [vmem:[%s2 + $0x330] sm:$0xff]
      %v636 = vld [vmem:[%s2 + $0x338] sm:$0xff]
      %v637 = vld [vmem:[%s2 + $0x340] sm:$0xff]
      %v638 = vld [vmem:[%s2 + $0x348] sm:$0xff]
      %v639 = vld [vmem:[%s2 + $0x350] sm:$0xff]
      %v640 = vld [vmem:[%s2 + $0x358] sm:$0xff]
      %v641 = vld [vmem:[%s2 + $0x360] sm:$0xff]
      %v642 = vld [vmem:[%s2 + $0x368] sm:$0xff]
      %v643 = vld [vmem:[%s2 + $0x370] sm:$0xff]
      %v644 = vld [vmem:[%s2 + $0x378] sm:$0xff]
      %v645 = vld [vmem:[%s2 + $0x380] sm:$0xff]
      %v646 = vld [vmem:[%s2 + $0x388] sm:$0xff]
      %v647 = vld [vmem:[%s2 + $0x390] sm:$0xff]
      %v648 = vld [vmem:[%s2 + $0x398] sm:$0xff]
      %v649 = vld [vmem:[%s2 + $0x3a0] sm:$0xff]
      %v650 = vld [vmem:[%s2 + $0x3a8] sm:$0xff]
      %v651 = vld [vmem:[%s2 + $0x3b0] sm:$0xff]
      %v652 = vld [vmem:[%s2 + $0x3b8] sm:$0xff]
      %v653 = vld [vmem:[%s2 + $0x3c0] sm:$0xff]
      %v654 = vld [vmem:[%s2 + $0x3c8] sm:$0xff]
      %v655 = vld [vmem:[%s2 + $0x3d0] sm:$0xff]
      %v656 = vld [vmem:[%s2 + $0x3d8] sm:$0xff]
      %v657 = vld [vmem:[%s2 + $0x3e0] sm:$0xff]
      %v658 = vld [vmem:[%s2 + $0x3e8] sm:$0xff]
      %v659 = vld [vmem:[%s2 + $0x3f0] sm:$0xff]
      %v660 = vld [vmem:[%s2 + $0x3f8] sm:$0xff]
      %v662 = vunpack.c.l.b16 %v532
      %v663 = vunpack.c.h.b16 %v532
      %v664 = vpack.c.b16 %v662, %v662
      %v665 = vpack.c.b16 %v663, %v663
      %v796 = vunpack.c.l.b16 %v533
      %v797 = vunpack.c.h.b16 %v533
      %v798 = vunpack.c.l.b16 %v534
      %v799 = vunpack.c.h.b16 %v534
      %v800 = vunpack.c.l.b16 %v535
      %v801 = vunpack.c.h.b16 %v535
      %v802 = vunpack.c.l.b16 %v536
      %v803 = vunpack.c.h.b16 %v536
      %v804 = vunpack.c.l.b16 %v537
      %v805 = vunpack.c.h.b16 %v537
      %v806 = vunpack.c.l.b16 %v538
      %v807 = vunpack.c.h.b16 %v538
      %v808 = vunpack.c.l.b16 %v539
      %v809 = vunpack.c.h.b16 %v539
      %v810 = vunpack.c.l.b16 %v540
      %v811 = vunpack.c.h.b16 %v540
      %v812 = vunpack.c.l.b16 %v541
      %v813 = vunpack.c.h.b16 %v541
      %v814 = vunpack.c.l.b16 %v542
      %v815 = vunpack.c.h.b16 %v542
      %v816 = vunpack.c.l.b16 %v543
      %v817 = vunpack.c.h.b16 %v543
      %v818 = vunpack.c.l.b16 %v544
      %v819 = vunpack.c.h.b16 %v544
      %v820 = vunpack.c.l.b16 %v545
      %v821 = vunpack.c.h.b16 %v545
      %v822 = vunpack.c.l.b16 %v546
      %v823 = vunpack.c.h.b16 %v546
      %v824 = vunpack.c.l.b16 %v547
      %v825 = vunpack.c.h.b16 %v547
      %v826 = vunpack.c.l.b16 %v548
      %v827 = vunpack.c.h.b16 %v548
      %v828 = vunpack.c.l.b16 %v549
      %v829 = vunpack.c.h.b16 %v549
      %v830 = vunpack.c.l.b16 %v550
      %v831 = vunpack.c.h.b16 %v550
      %v832 = vunpack.c.l.b16 %v551
      %v833 = vunpack.c.h.b16 %v551
      %v834 = vunpack.c.l.b16 %v552
      %v835 = vunpack.c.h.b16 %v552
      %v836 = vunpack.c.l.b16 %v553
      %v837 = vunpack.c.h.b16 %v553
      %v838 = vunpack.c.l.b16 %v554
      %v839 = vunpack.c.h.b16 %v554
      %v840 = vunpack.c.l.b16 %v555
      %v841 = vunpack.c.h.b16 %v555
      %v842 = vunpack.c.l.b16 %v556
      %v843 = vunpack.c.h.b16 %v556
      %v844 = vunpack.c.l.b16 %v557
      %v845 = vunpack.c.h.b16 %v557
      %v846 = vunpack.c.l.b16 %v558
      %v847 = vunpack.c.h.b16 %v558
      %v848 = vunpack.c.l.b16 %v559
      %v849 = vunpack.c.h.b16 %v559
      %v850 = vunpack.c.l.b16 %v560
      %v851 = vunpack.c.h.b16 %v560
      %v852 = vunpack.c.l.b16 %v561
      %v853 = vunpack.c.h.b16 %v561
      %v854 = vunpack.c.l.b16 %v562
      %v855 = vunpack.c.h.b16 %v562
      %v856 = vunpack.c.l.b16 %v563
      %v857 = vunpack.c.h.b16 %v563
      %v858 = vunpack.c.l.b16 %v564
      %v859 = vunpack.c.h.b16 %v564
      %v860 = vunpack.c.l.b16 %v565
      %v861 = vunpack.c.h.b16 %v565
      %v862 = vunpack.c.l.b16 %v566
      %v863 = vunpack.c.h.b16 %v566
      %v864 = vunpack.c.l.b16 %v567
      %v865 = vunpack.c.h.b16 %v567
      %v866 = vunpack.c.l.b16 %v568
      %v867 = vunpack.c.h.b16 %v568
      %v868 = vunpack.c.l.b16 %v569
      %v869 = vunpack.c.h.b16 %v569
      %v870 = vunpack.c.l.b16 %v570
      %v871 = vunpack.c.h.b16 %v570
      %v872 = vunpack.c.l.b16 %v571
      %v873 = vunpack.c.h.b16 %v571
      %v874 = vunpack.c.l.b16 %v572
      %v875 = vunpack.c.h.b16 %v572
      %v876 = vunpack.c.l.b16 %v573
      %v877 = vunpack.c.h.b16 %v573
      %v878 = vunpack.c.l.b16 %v574
      %v879 = vunpack.c.h.b16 %v574
      %v880 = vunpack.c.l.b16 %v575
      %v881 = vunpack.c.h.b16 %v575
      %v882 = vunpack.c.l.b16 %v576
      %v883 = vunpack.c.h.b16 %v576
      %v884 = vunpack.c.l.b16 %v577
      %v885 = vunpack.c.h.b16 %v577
      %v886 = vunpack.c.l.b16 %v578
      %v887 = vunpack.c.h.b16 %v578
      %v888 = vunpack.c.l.b16 %v579
      %v889 = vunpack.c.h.b16 %v579
      %v890 = vunpack.c.l.b16 %v580
      %v891 = vunpack.c.h.b16 %v580
      %v892 = vunpack.c.l.b16 %v581
      %v893 = vunpack.c.h.b16 %v581
      %v894 = vunpack.c.l.b16 %v582
      %v895 = vunpack.c.h.b16 %v582
      %v896 = vunpack.c.l.b16 %v583
      %v897 = vunpack.c.h.b16 %v583
      %v898 = vunpack.c.l.b16 %v584
      %v899 = vunpack.c.h.b16 %v584
      %v900 = vunpack.c.l.b16 %v585
      %v901 = vunpack.c.h.b16 %v585
      %v902 = vunpack.c.l.b16 %v586
      %v903 = vunpack.c.h.b16 %v586
      %v904 = vunpack.c.l.b16 %v587
      %v905 = vunpack.c.h.b16 %v587
      %v906 = vunpack.c.l.b16 %v588
      %v907 = vunpack.c.h.b16 %v588
      %v908 = vunpack.c.l.b16 %v589
      %v909 = vunpack.c.h.b16 %v589
      %v910 = vunpack.c.l.b16 %v590
      %v911 = vunpack.c.h.b16 %v590
      %v912 = vunpack.c.l.b16 %v591
      %v913 = vunpack.c.h.b16 %v591
      %v914 = vunpack.c.l.b16 %v592
      %v915 = vunpack.c.h.b16 %v592
      %v916 = vunpack.c.l.b16 %v593
      %v917 = vunpack.c.h.b16 %v593
      %v918 = vunpack.c.l.b16 %v594
      %v919 = vunpack.c.h.b16 %v594
      %v920 = vunpack.c.l.b16 %v595
      %v921 = vunpack.c.h.b16 %v595
      %v922 = vunpack.c.l.b16 %v596
      %v923 = vunpack.c.h.b16 %v596
      %v924 = vunpack.c.l.b16 %v597
      %v925 = vunpack.c.h.b16 %v597
      %v926 = vunpack.c.l.b16 %v598
      %v927 = vunpack.c.h.b16 %v598
      %v928 = vunpack.c.l.b16 %v599
      %v929 = vunpack.c.h.b16 %v599
      %v930 = vunpack.c.l.b16 %v600
      %v931 = vunpack.c.h.b16 %v600
      %v932 = vunpack.c.l.b16 %v601
      %v933 = vunpack.c.h.b16 %v601
      %v934 = vunpack.c.l.b16 %v602
      %v935 = vunpack.c.h.b16 %v602
      %v936 = vunpack.c.l.b16 %v603
      %v937 = vunpack.c.h.b16 %v603
      %v938 = vunpack.c.l.b16 %v604
      %v939 = vunpack.c.h.b16 %v604
      %v940 = vunpack.c.l.b16 %v605
      %v941 = vunpack.c.h.b16 %v605
      %v942 = vunpack.c.l.b16 %v606
      %v943 = vunpack.c.h.b16 %v606
      %v944 = vunpack.c.l.b16 %v607
      %v945 = vunpack.c.h.b16 %v607
      %v946 = vunpack.c.l.b16 %v608
      %v947 = vunpack.c.h.b16 %v608
      %v948 = vunpack.c.l.b16 %v609
      %v949 = vunpack.c.h.b16 %v609
      %v950 = vunpack.c.l.b16 %v610
      %v951 = vunpack.c.h.b16 %v610
      %v952 = vunpack.c.l.b16 %v611
      %v953 = vunpack.c.h.b16 %v611
      %v954 = vunpack.c.l.b16 %v612
      %v955 = vunpack.c.h.b16 %v612
      %v956 = vunpack.c.l.b16 %v613
      %v957 = vunpack.c.h.b16 %v613
      %v958 = vunpack.c.l.b16 %v614
      %v959 = vunpack.c.h.b16 %v614
      %v960 = vunpack.c.l.b16 %v615
      %v961 = vunpack.c.h.b16 %v615
      %v962 = vunpack.c.l.b16 %v616
      %v963 = vunpack.c.h.b16 %v616
      %v964 = vunpack.c.l.b16 %v617
      %v965 = vunpack.c.h.b16 %v617
      %v966 = vunpack.c.l.b16 %v618
      %v967 = vunpack.c.h.b16 %v618
      %v968 = vunpack.c.l.b16 %v619
      %v969 = vunpack.c.h.b16 %v619
      %v970 = vunpack.c.l.b16 %v620
      %v971 = vunpack.c.h.b16 %v620
      %v972 = vunpack.c.l.b16 %v621
      %v973 = vunpack.c.h.b16 %v621
      %v974 = vunpack.c.l.b16 %v622
      %v975 = vunpack.c.h.b16 %v622
      %v976 = vunpack.c.l.b16 %v623
      %v977 = vunpack.c.h.b16 %v623
      %v978 = vunpack.c.l.b16 %v624
      %v979 = vunpack.c.h.b16 %v624
      %v980 = vunpack.c.l.b16 %v625
      %v981 = vunpack.c.h.b16 %v625
      %v982 = vunpack.c.l.b16 %v626
      %v983 = vunpack.c.h.b16 %v626
      %v984 = vunpack.c.l.b16 %v627
      %v985 = vunpack.c.h.b16 %v627
      %v986 = vunpack.c.l.b16 %v628
      %v987 = vunpack.c.h.b16 %v628
      %v988 = vunpack.c.l.b16 %v629
      %v989 = vunpack.c.h.b16 %v629
      %v990 = vunpack.c.l.b16 %v630
      %v991 = vunpack.c.h.b16 %v630
      %v992 = vunpack.c.l.b16 %v631
      %v993 = vunpack.c.h.b16 %v631
      %v994 = vunpack.c.l.b16 %v632
      %v995 = vunpack.c.h.b16 %v632
      %v996 = vunpack.c.l.b16 %v633
      %v997 = vunpack.c.h.b16 %v633
      %v998 = vunpack.c.l.b16 %v634
      %v999 = vunpack.c.h.b16 %v634
      %v1000 = vunpack.c.l.b16 %v635
      %v1001 = vunpack.c.h.b16 %v635
      %v1002 = vunpack.c.l.b16 %v636
      %v1003 = vunpack.c.h.b16 %v636
      %v1004 = vunpack.c.l.b16 %v637
      %v1005 = vunpack.c.h.b16 %v637
      %v1006 = vunpack.c.l.b16 %v638
      %v1007 = vunpack.c.h.b16 %v638
      %v1008 = vunpack.c.l.b16 %v639
      %v1009 = vunpack.c.h.b16 %v639
      %v1010 = vunpack.c.l.b16 %v640
      %v1011 = vunpack.c.h.b16 %v640
      %v1012 = vunpack.c.l.b16 %v641
      %v1013 = vunpack.c.h.b16 %v641
      %v1014 = vunpack.c.l.b16 %v642
      %v1015 = vunpack.c.h.b16 %v642
      %v1016 = vunpack.c.l.b16 %v643
      %v1017 = vunpack.c.h.b16 %v643
      %v1018 = vunpack.c.l.b16 %v644
      %v1019 = vunpack.c.h.b16 %v644
      %v1020 = vunpack.c.l.b16 %v645
      %v1021 = vunpack.c.h.b16 %v645
      %v1022 = vunpack.c.l.b16 %v646
      %v1023 = vunpack.c.h.b16 %v646
      %v1024 = vunpack.c.l.b16 %v647
      %v1025 = vunpack.c.h.b16 %v647
      %v1026 = vunpack.c.l.b16 %v648
      %v1027 = vunpack.c.h.b16 %v648
      %v1028 = vunpack.c.l.b16 %v649
      %v1029 = vunpack.c.h.b16 %v649
      %v1030 = vunpack.c.l.b16 %v650
      %v1031 = vunpack.c.h.b16 %v650
      %v1032 = vunpack.c.l.b16 %v651
      %v1033 = vunpack.c.h.b16 %v651
      %v1034 = vunpack.c.l.b16 %v652
      %v1035 = vunpack.c.h.b16 %v652
      %v1036 = vunpack.c.l.b16 %v653
      %v1037 = vunpack.c.h.b16 %v653
      %v1038 = vunpack.c.l.b16 %v654
      %v1039 = vunpack.c.h.b16 %v654
      %v1040 = vunpack.c.l.b16 %v655
      %v1041 = vunpack.c.h.b16 %v655
      %v1042 = vunpack.c.l.b16 %v656
      %v1043 = vunpack.c.h.b16 %v656
      %v1044 = vunpack.c.l.b16 %v657
      %v1045 = vunpack.c.h.b16 %v657
      %v1046 = vunpack.c.l.b16 %v658
      %v1047 = vunpack.c.h.b16 %v658
      %v1048 = vunpack.c.l.b16 %v659
      %v1049 = vunpack.c.h.b16 %v659
      %v1050 = vunpack.c.l.b16 %v660
      %v1051 = vunpack.c.h.b16 %v660
      %v1052 = vpack.c.b16 %v804, %v796
      %v1053 = vpack.c.b16 %v805, %v797
      %v1054 = vpack.c.b16 %v806, %v798
      %v1055 = vpack.c.b16 %v807, %v799
      %v1056 = vpack.c.b16 %v808, %v800
      %v1057 = vpack.c.b16 %v809, %v801
      %v1058 = vpack.c.b16 %v810, %v802
      %v1059 = vpack.c.b16 %v811, %v803
      %v1060 = vpack.c.b16 %v820, %v812
      %v1061 = vpack.c.b16 %v821, %v813
      %v1062 = vpack.c.b16 %v822, %v814
      %v1063 = vpack.c.b16 %v823, %v815
      %v1064 = vpack.c.b16 %v824, %v816
      %v1065 = vpack.c.b16 %v825, %v817
      %v1066 = vpack.c.b16 %v826, %v818
      %v1067 = vpack.c.b16 %v827, %v819
      %v1068 = vpack.c.b16 %v836, %v828
      %v1069 = vpack.c.b16 %v837, %v829
      %v1070 = vpack.c.b16 %v838, %v830
      %v1071 = vpack.c.b16 %v839, %v831
      %v1072 = vpack.c.b16 %v840, %v832
      %v1073 = vpack.c.b16 %v841, %v833
      %v1074 = vpack.c.b16 %v842, %v834
      %v1075 = vpack.c.b16 %v843, %v835
      %v1076 = vpack.c.b16 %v852, %v844
      %v1077 = vpack.c.b16 %v853, %v845
      %v1078 = vpack.c.b16 %v854, %v846
      %v1079 = vpack.c.b16 %v855, %v847
      %v1080 = vpack.c.b16 %v856, %v848
      %v1081 = vpack.c.b16 %v857, %v849
      %v1082 = vpack.c.b16 %v858, %v850
      %v1083 = vpack.c.b16 %v859, %v851
      %v1084 = vpack.c.b16 %v868, %v860
      %v1085 = vpack.c.b16 %v869, %v861
      %v1086 = vpack.c.b16 %v870, %v862
      %v1087 = vpack.c.b16 %v871, %v863
      %v1088 = vpack.c.b16 %v872, %v864
      %v1089 = vpack.c.b16 %v873, %v865
      %v1090 = vpack.c.b16 %v874, %v866
      %v1091 = vpack.c.b16 %v875, %v867
      %v1092 = vpack.c.b16 %v884, %v876
      %v1093 = vpack.c.b16 %v885, %v877
      %v1094 = vpack.c.b16 %v886, %v878
      %v1095 = vpack.c.b16 %v887, %v879
      %v1096 = vpack.c.b16 %v888, %v880
      %v1097 = vpack.c.b16 %v889, %v881
      %v1098 = vpack.c.b16 %v890, %v882
      %v1099 = vpack.c.b16 %v891, %v883
      %v1100 = vpack.c.b16 %v900, %v892
      %v1101 = vpack.c.b16 %v901, %v893
      %v1102 = vpack.c.b16 %v902, %v894
      %v1103 = vpack.c.b16 %v903, %v895
      %v1104 = vpack.c.b16 %v904, %v896
      %v1105 = vpack.c.b16 %v905, %v897
      %v1106 = vpack.c.b16 %v906, %v898
      %v1107 = vpack.c.b16 %v907, %v899
      %v1108 = vpack.c.b16 %v916, %v908
      %v1109 = vpack.c.b16 %v917, %v909
      %v1110 = vpack.c.b16 %v918, %v910
      %v1111 = vpack.c.b16 %v919, %v911
      %v1112 = vpack.c.b16 %v920, %v912
      %v1113 = vpack.c.b16 %v921, %v913
      %v1114 = vpack.c.b16 %v922, %v914
      %v1115 = vpack.c.b16 %v923, %v915
      %v1116 = vpack.c.b16 %v932, %v924
      %v1117 = vpack.c.b16 %v933, %v925
      %v1118 = vpack.c.b16 %v934, %v926
      %v1119 = vpack.c.b16 %v935, %v927
      %v1120 = vpack.c.b16 %v936, %v928
      %v1121 = vpack.c.b16 %v937, %v929
      %v1122 = vpack.c.b16 %v938, %v930
      %v1123 = vpack.c.b16 %v939, %v931
      %v1124 = vpack.c.b16 %v948, %v940
      %v1125 = vpack.c.b16 %v949, %v941
      %v1126 = vpack.c.b16 %v950, %v942
      %v1127 = vpack.c.b16 %v951, %v943
      %v1128 = vpack.c.b16 %v952, %v944
      %v1129 = vpack.c.b16 %v953, %v945
      %v1130 = vpack.c.b16 %v954, %v946
      %v1131 = vpack.c.b16 %v955, %v947
      %v1132 = vpack.c.b16 %v964, %v956
      %v1133 = vpack.c.b16 %v965, %v957
      %v1134 = vpack.c.b16 %v966, %v958
      %v1135 = vpack.c.b16 %v967, %v959
      %v1136 = vpack.c.b16 %v968, %v960
      %v1137 = vpack.c.b16 %v969, %v961
      %v1138 = vpack.c.b16 %v970, %v962
      %v1139 = vpack.c.b16 %v971, %v963
      %v1140 = vpack.c.b16 %v980, %v972
      %v1141 = vpack.c.b16 %v981, %v973
      %v1142 = vpack.c.b16 %v982, %v974
      %v1143 = vpack.c.b16 %v983, %v975
      %v1144 = vpack.c.b16 %v984, %v976
      %v1145 = vpack.c.b16 %v985, %v977
      %v1146 = vpack.c.b16 %v986, %v978
      %v1147 = vpack.c.b16 %v987, %v979
      %v1148 = vpack.c.b16 %v996, %v988
      %v1149 = vpack.c.b16 %v997, %v989
      %v1150 = vpack.c.b16 %v998, %v990
      %v1151 = vpack.c.b16 %v999, %v991
      %v1152 = vpack.c.b16 %v1000, %v992
      %v1153 = vpack.c.b16 %v1001, %v993
      %v1154 = vpack.c.b16 %v1002, %v994
      %v1155 = vpack.c.b16 %v1003, %v995
      %v1156 = vpack.c.b16 %v1012, %v1004
      %v1157 = vpack.c.b16 %v1013, %v1005
      %v1158 = vpack.c.b16 %v1014, %v1006
      %v1159 = vpack.c.b16 %v1015, %v1007
      %v1160 = vpack.c.b16 %v1016, %v1008
      %v1161 = vpack.c.b16 %v1017, %v1009
      %v1162 = vpack.c.b16 %v1018, %v1010
      %v1163 = vpack.c.b16 %v1019, %v1011
      %v1164 = vpack.c.b16 %v1028, %v1020
      %v1165 = vpack.c.b16 %v1029, %v1021
      %v1166 = vpack.c.b16 %v1030, %v1022
      %v1167 = vpack.c.b16 %v1031, %v1023
      %v1168 = vpack.c.b16 %v1032, %v1024
      %v1169 = vpack.c.b16 %v1033, %v1025
      %v1170 = vpack.c.b16 %v1034, %v1026
      %v1171 = vpack.c.b16 %v1035, %v1027
      %v1172 = vpack.c.b16 %v1044, %v1036
      %v1173 = vpack.c.b16 %v1045, %v1037
      %v1174 = vpack.c.b16 %v1046, %v1038
      %v1175 = vpack.c.b16 %v1047, %v1039
      %v1176 = vpack.c.b16 %v1048, %v1040
      %v1177 = vpack.c.b16 %v1049, %v1041
      %v1178 = vpack.c.b16 %v1050, %v1042
      %v1179 = vpack.c.b16 %v1051, %v1043
      %1308 = vmatprep.subr.bf16.mxu0 %v1053
      %1309 = vmatpush1.bf16.msra.mxu0 %v1052
      %1310 = vmatprep.subr.bf16.mxu0 %v1061
      %1311 = vmatpush1.bf16.msra.mxu0 %v1060
      %1312 = vmatprep.subr.bf16.mxu0 %v1069
      %1313 = vmatpush1.bf16.msra.mxu0 %v1068
      %1314 = vmatprep.subr.bf16.mxu0 %v1077
      %1315 = vmatpush1.bf16.msra.mxu0 %v1076
      %1316 = vmatprep.subr.bf16.mxu0 %v1085
      %1317 = vmatpush1.bf16.msra.mxu0 %v1084
      %1318 = vmatprep.subr.bf16.mxu0 %v1093
      %1319 = vmatpush1.bf16.msra.mxu0 %v1092
      %1320 = vmatprep.subr.bf16.mxu0 %v1101
      %1321 = vmatpush1.bf16.msra.mxu0 %v1100
      %1322 = vmatprep.subr.bf16.mxu0 %v1109
      %1323 = vmatpush1.bf16.msra.mxu0 %v1108
      %1324 = vmatprep.subr.bf16.mxu0 %v1117
      %1325 = vmatpush1.bf16.msra.mxu0 %v1116
      %1326 = vmatprep.subr.bf16.mxu0 %v1125
      %1327 = vmatpush1.bf16.msra.mxu0 %v1124
      %1328 = vmatprep.subr.bf16.mxu0 %v1133
      %1329 = vmatpush1.bf16.msra.mxu0 %v1132
      %1330 = vmatprep.subr.bf16.mxu0 %v1141
      %1331 = vmatpush1.bf16.msra.mxu0 %v1140
      %1332 = vmatprep.subr.bf16.mxu0 %v1149
      %1333 = vmatpush1.bf16.msra.mxu0 %v1148
      %1334 = vmatprep.subr.bf16.mxu0 %v1157
      %1335 = vmatpush1.bf16.msra.mxu0 %v1156
      %1336 = vmatprep.subr.bf16.mxu0 %v1165
      %1337 = vmatpush1.bf16.msra.mxu0 %v1164
      %1338 = vmatprep.subr.bf16.mxu0 %v1173
      %1339 = vmatpush1.bf16.msra.mxu0 %v1172
      %1340 = vmatprep.mubr.bf16.mxu0 %v665
      %1341 = vmatmul.mubr.bf16.gmra.mrb[0].mxu0 %v664
      %v1342 = vpop.f32.mrb[0].mxu0
      %v1343 = vadd.f32 0.0, %v1342
      %v1344 = vpop.f32.mrb[0].mxu0
      %v1345 = vadd.f32 0.0, %v1344
      %v1346 = vpop.f32.mrb[0].mxu0
      %v1347 = vpop.f32.mrb[0].mxu0
      %1348 = vdwg.mxu0
      %1349 = vmatprep.subr.bf16.mxu0 %v1055
      %1350 = vmatpush1.bf16.msra.mxu0 %v1054
      %1351 = vmatprep.subr.bf16.mxu0 %v1063
      %1352 = vmatpush1.bf16.msra.mxu0 %v1062
      %1353 = vmatprep.subr.bf16.mxu0 %v1071
      %1354 = vmatpush1.bf16.msra.mxu0 %v1070
      %1355 = vmatprep.subr.bf16.mxu0 %v1079
      %1356 = vmatpush1.bf16.msra.mxu0 %v1078
      %1357 = vmatprep.subr.bf16.mxu0 %v1087
      %1358 = vmatpush1.bf16.msra.mxu0 %v1086
      %1359 = vmatprep.subr.bf16.mxu0 %v1095
      %1360 = vmatpush1.bf16.msra.mxu0 %v1094
      %1361 = vmatprep.subr.bf16.mxu0 %v1103
      %1362 = vmatpush1.bf16.msra.mxu0 %v1102
      %1363 = vmatprep.subr.bf16.mxu0 %v1111
      %1364 = vmatpush1.bf16.msra.mxu0 %v1110
      %1365 = vmatprep.subr.bf16.mxu0 %v1119
      %1366 = vmatpush1.bf16.msra.mxu0 %v1118
      %1367 = vmatprep.subr.bf16.mxu0 %v1127
      %1368 = vmatpush1.bf16.msra.mxu0 %v1126
      %1369 = vmatprep.subr.bf16.mxu0 %v1135
      %1370 = vmatpush1.bf16.msra.mxu0 %v1134
      %1371 = vmatprep.subr.bf16.mxu0 %v1143
      %1372 = vmatpush1.bf16.msra.mxu0 %v1142
      %1373 = vmatprep.subr.bf16.mxu0 %v1151
      %1374 = vmatpush1.bf16.msra.mxu0 %v1150
      %1375 = vmatprep.subr.bf16.mxu0 %v1159
      %1376 = vmatpush1.bf16.msra.mxu0 %v1158
      %1377 = vmatprep.subr.bf16.mxu0 %v1167
      %1378 = vmatpush1.bf16.msra.mxu0 %v1166
      %1379 = vmatprep.subr.bf16.mxu0 %v1175
      %1380 = vmatpush1.bf16.msra.mxu0 %v1174
      %1381 = vmatprep.mubr.bf16.mxu0 %v665
      %1382 = vmatmul.mubr.bf16.gmra.mrb[0].mxu0 %v664
      %v1383 = vpop.f32.mrb[0].mxu0
      %v1384 = vadd.f32 0.0, %v1383
      %v1385 = vpop.f32.mrb[0].mxu0
      %v1386 = vadd.f32 0.0, %v1385
      %v1387 = vpop.f32.mrb[0].mxu0
      %v1388 = vpop.f32.mrb[0].mxu0
      %1389 = vdwg.mxu0
      %1390 = vmatprep.subr.bf16.mxu0 %v1057
      %1391 = vmatpush1.bf16.msra.mxu0 %v1056
      %1392 = vmatprep.subr.bf16.mxu0 %v1065
      %1393 = vmatpush1.bf16.msra.mxu0 %v1064
      %1394 = vmatprep.subr.bf16.mxu0 %v1073
      %1395 = vmatpush1.bf16.msra.mxu0 %v1072
      %1396 = vmatprep.subr.bf16.mxu0 %v1081
      %1397 = vmatpush1.bf16.msra.mxu0 %v1080
      %1398 = vmatprep.subr.bf16.mxu0 %v1089
      %1399 = vmatpush1.bf16.msra.mxu0 %v1088
      %1400 = vmatprep.subr.bf16.mxu0 %v1097
      %1401 = vmatpush1.bf16.msra.mxu0 %v1096
      %1402 = vmatprep.subr.bf16.mxu0 %v1105
      %1403 = vmatpush1.bf16.msra.mxu0 %v1104
      %1404 = vmatprep.subr.bf16.mxu0 %v1113
      %1405 = vmatpush1.bf16.msra.mxu0 %v1112
      %1406 = vmatprep.subr.bf16.mxu0 %v1121
      %1407 = vmatpush1.bf16.msra.mxu0 %v1120
      %1408 = vmatprep.subr.bf16.mxu0 %v1129
      %1409 = vmatpush1.bf16.msra.mxu0 %v1128
      %1410 = vmatprep.subr.bf16.mxu0 %v1137
      %1411 = vmatpush1.bf16.msra.mxu0 %v1136
      %1412 = vmatprep.subr.bf16.mxu0 %v1145
      %1413 = vmatpush1.bf16.msra.mxu0 %v1144
      %1414 = vmatprep.subr.bf16.mxu0 %v1153
      %1415 = vmatpush1.bf16.msra.mxu0 %v1152
      %1416 = vmatprep.subr.bf16.mxu0 %v1161
      %1417 = vmatpush1.bf16.msra.mxu0 %v1160
      %1418 = vmatprep.subr.bf16.mxu0 %v1169
      %1419 = vmatpush1.bf16.msra.mxu0 %v1168
      %1420 = vmatprep.subr.bf16.mxu0 %v1177
      %1421 = vmatpush1.bf16.msra.mxu0 %v1176
      %1422 = vmatprep.mubr.bf16.mxu0 %v665
      %1423 = vmatmul.mubr.bf16.gmra.mrb[0].mxu0 %v664
      %v1424 = vpop.f32.mrb[0].mxu0
      %v1425 = vadd.f32 0.0, %v1424
      %v1426 = vpop.f32.mrb[0].mxu0
      %v1427 = vadd.f32 0.0, %v1426
      %v1428 = vpop.f32.mrb[0].mxu0
      %v1429 = vpop.f32.mrb[0].mxu0
      %1430 = vdwg.mxu0
      %1431 = vmatprep.subr.bf16.mxu0 %v1059
      %1432 = vmatpush1.bf16.msra.mxu0 %v1058
      %1433 = vmatprep.subr.bf16.mxu0 %v1067
      %1434 = vmatpush1.bf16.msra.mxu0 %v1066
      %1435 = vmatprep.subr.bf16.mxu0 %v1075
      %1436 = vmatpush1.bf16.msra.mxu0 %v1074
      %1437 = vmatprep.subr.bf16.mxu0 %v1083
      %1438 = vmatpush1.bf16.msra.mxu0 %v1082
      %1439 = vmatprep.subr.bf16.mxu0 %v1091
      %1440 = vmatpush1.bf16.msra.mxu0 %v1090
      %1441 = vmatprep.subr.bf16.mxu0 %v1099
      %1442 = vmatpush1.bf16.msra.mxu0 %v1098
      %1443 = vmatprep.subr.bf16.mxu0 %v1107
      %1444 = vmatpush1.bf16.msra.mxu0 %v1106
      %1445 = vmatprep.subr.bf16.mxu0 %v1115
      %1446 = vmatpush1.bf16.msra.mxu0 %v1114
      %1447 = vmatprep.subr.bf16.mxu0 %v1123
      %1448 = vmatpush1.bf16.msra.mxu0 %v1122
      %1449 = vmatprep.subr.bf16.mxu0 %v1131
      %1450 = vmatpush1.bf16.msra.mxu0 %v1130
      %1451 = vmatprep.subr.bf16.mxu0 %v1139
      %1452 = vmatpush1.bf16.msra.mxu0 %v1138
      %1453 = vmatprep.subr.bf16.mxu0 %v1147
      %1454 = vmatpush1.bf16.msra.mxu0 %v1146
      %1455 = vmatprep.subr.bf16.mxu0 %v1155
      %1456 = vmatpush1.bf16.msra.mxu0 %v1154
      %1457 = vmatprep.subr.bf16.mxu0 %v1163
      %1458 = vmatpush1.bf16.msra.mxu0 %v1162
      %1459 = vmatprep.subr.bf16.mxu0 %v1171
      %1460 = vmatpush1.bf16.msra.mxu0 %v1170
      %1461 = vmatprep.subr.bf16.mxu0 %v1179
      %1462 = vmatpush1.bf16.msra.mxu0 %v1178
      %1463 = vmatprep.mubr.bf16.mxu0 %v665
      %1464 = vmatmul.mubr.bf16.gmra.mrb[0].mxu0 %v664
      %v1465 = vpop.f32.mrb[0].mxu0
      %v1466 = vadd.f32 0.0, %v1465
      %v1467 = vpop.f32.mrb[0].mxu0
      %v1468 = vadd.f32 0.0, %v1467
      %v1469 = vpop.f32.mrb[0].mxu0
      %v1470 = vpop.f32.mrb[0].mxu0
      %1471 = vdwg.mxu0
      %1472 = vrot.lane.b32.xlu0 %v1343, 33
      %v1473 = vpop.permute.xlu0 %1472
      %1474 = vrot.lane.b32.xlu0 %v1345, 33
      %v1475 = vpop.permute.xlu0 %1474
      %1476 = vrot.lane.b32.xlu0 %v1384, 33
      %v1477 = vpop.permute.xlu0 %1476
      %1478 = vrot.lane.b32.xlu0 %v1386, 33
      %v1479 = vpop.permute.xlu0 %1478
      %1480 = vrot.lane.b32.xlu0 %v1425, 33
      %v1481 = vpop.permute.xlu0 %1480
      %1482 = vrot.lane.b32.xlu0 %v1427, 33
      %v1483 = vpop.permute.xlu0 %1482
      %1484 = vrot.lane.b32.xlu0 %v1466, 33
      %v1485 = vpop.permute.xlu0 %1484
      %1486 = vrot.lane.b32.xlu0 %v1468, 33
      %v1487 = vpop.permute.xlu0 %1486
      %v1488 = vlaneseq
      %v1489 = vand.u32 %v1488, 127
      %vm1490 = vcmp.lt.s32.totalorder %v1489, 33
      %v1491 = vsel %vm1490, %v1485, %v1487
      %v1492 = vsel %vm1490, %v1483, %v1485
      %v1493 = vsel %vm1490, %v1481, %v1483
      %v1494 = vsel %vm1490, %v1479, %v1481
      %v1495 = vsel %vm1490, %v1477, %v1479
      %v1496 = vsel %vm1490, %v1475, %v1477
      %v1497 = vsel %vm1490, %v1473, %v1475
      %v1498 = vsel %vm1490, %v1487, %v1473
      %v1499 = vlaneseq
      %v1500 = vshrl.u32 %v1499, 7
      %v1501 = vsub.s32 0, %v1500
      %v1502 = vrot.slane %v516, %v1501
      %v1503 = vlaneseq
      %v1504 = vshrl.u32 %v1503, 7
      %v1505 = vsub.s32 0, %v1504
      %v1506 = vrot.slane %v517, %v1505
      %v1507 = vlaneseq
      %v1508 = vshrl.u32 %v1507, 7
      %v1509 = vsub.s32 0, %v1508
      %v1510 = vrot.slane %v518, %v1509
      %v1511 = vlaneseq
      %v1512 = vshrl.u32 %v1511, 7
      %v1513 = vsub.s32 0, %v1512
      %v1514 = vrot.slane %v519, %v1513
      %v1515 = vlaneseq
      %v1516 = vshrl.u32 %v1515, 7
      %v1517 = vsub.s32 0, %v1516
      %v1518 = vrot.slane %v520, %v1517
      %v1519 = vlaneseq
      %v1520 = vshrl.u32 %v1519, 7
      %v1521 = vsub.s32 0, %v1520
      %v1522 = vrot.slane %v521, %v1521
      %v1523 = vlaneseq
      %v1524 = vshrl.u32 %v1523, 7
      %v1525 = vsub.s32 0, %v1524
      %v1526 = vrot.slane %v522, %v1525
      %v1527 = vlaneseq
      %v1528 = vshrl.u32 %v1527, 7
      %v1529 = vsub.s32 0, %v1528
      %v1530 = vrot.slane %v523, %v1529
      %v1531 = vmul.f32 %v1498, %v1502
      %v1532 = vmul.f32 %v1497, %v1506
      %v1533 = vmul.f32 %v1496, %v1510
      %v1534 = vmul.f32 %v1495, %v1514
      %v1535 = vmul.f32 %v1494, %v1518
      %v1536 = vmul.f32 %v1493, %v1522
      %v1537 = vmul.f32 %v1492, %v1526
      %v1538 = vmul.f32 %v1491, %v1530
      %v1539 = vld [vmem:[%s4] sm:$0xf]
      %v1540 = vpack.c.bf16 %v1531, %v1531
      %v1541 = vpack.c.bf16 %v1532, %v1532
      %v1542 = vpack.c.bf16 %v1533, %v1533
      %v1543 = vpack.c.bf16 %v1534, %v1534
      %v1544 = vpack.c.bf16 %v1535, %v1535
      %v1545 = vpack.c.bf16 %v1536, %v1536
      %v1546 = vpack.c.bf16 %v1537, %v1537
      %v1547 = vpack.c.bf16 %v1538, %v1538
      %1548 = vrot.lane.b32.xlu0 %v1343, 32
      %v1549 = vpop.permute.xlu0 %1548
      %1550 = vrot.lane.b32.xlu0 %v1345, 32
      %v1551 = vpop.permute.xlu0 %1550
      %1552 = vrot.lane.b32.xlu0 %v1384, 32
      %v1553 = vpop.permute.xlu0 %1552
      %1554 = vrot.lane.b32.xlu0 %v1386, 32
      %v1555 = vpop.permute.xlu0 %1554
      %1556 = vrot.lane.b32.xlu0 %v1425, 32
      %v1557 = vpop.permute.xlu0 %1556
      %1558 = vrot.lane.b32.xlu0 %v1427, 32
      %v1559 = vpop.permute.xlu0 %1558
      %1560 = vrot.lane.b32.xlu0 %v1466, 32
      %v1561 = vpop.permute.xlu0 %1560
      %1562 = vrot.lane.b32.xlu0 %v1468, 32
      %v1563 = vpop.permute.xlu0 %1562
      %vm1564 = vcmp.lt.s32.totalorder %v1489, 32
      %v1565 = vsel %vm1564, %v1561, %v1563
      %v1566 = vsel %vm1564, %v1559, %v1561
      %v1567 = vsel %vm1564, %v1557, %v1559
      %v1568 = vsel %vm1564, %v1555, %v1557
      %v1569 = vsel %vm1564, %v1553, %v1555
      %v1570 = vsel %vm1564, %v1551, %v1553
      %v1571 = vsel %vm1564, %v1549, %v1551
      %v1572 = vsel %vm1564, %v1563, %v1549
      %v1573 = vlaneseq
      %v1574 = vshrl.u32 %v1573, 7
      %v1575 = vsub.s32 1, %v1574
      %v1576 = vrot.slane %v516, %v1575
      %v1577 = vlaneseq
      %v1578 = vshrl.u32 %v1577, 7
      %v1579 = vsub.s32 1, %v1578
      %v1580 = vrot.slane %v517, %v1579
      %v1581 = vlaneseq
      %v1582 = vshrl.u32 %v1581, 7
      %v1583 = vsub.s32 1, %v1582
      %v1584 = vrot.slane %v518, %v1583
      %v1585 = vlaneseq
      %v1586 = vshrl.u32 %v1585, 7
      %v1587 = vsub.s32 1, %v1586
      %v1588 = vrot.slane %v519, %v1587
      %v1589 = vlaneseq
      %v1590 = vshrl.u32 %v1589, 7
      %v1591 = vsub.s32 1, %v1590
      %v1592 = vrot.slane %v520, %v1591
      %v1593 = vlaneseq
      %v1594 = vshrl.u32 %v1593, 7
      %v1595 = vsub.s32 1, %v1594
      %v1596 = vrot.slane %v521, %v1595
      %v1597 = vlaneseq
      %v1598 = vshrl.u32 %v1597, 7
      %v1599 = vsub.s32 1, %v1598
      %v1600 = vrot.slane %v522, %v1599
      %v1601 = vlaneseq
      %v1602 = vshrl.u32 %v1601, 7
      %v1603 = vsub.s32 1, %v1602
      %v1604 = vrot.slane %v523, %v1603
      %v1605 = vmul.f32 %v1572, %v1576
      %v1606 = vmul.f32 %v1571, %v1580
      %v1607 = vmul.f32 %v1570, %v1584
      %v1608 = vmul.f32 %v1569, %v1588
      %v1609 = vmul.f32 %v1568, %v1592
      %v1610 = vmul.f32 %v1567, %v1596
      %v1611 = vmul.f32 %v1566, %v1600
      %v1612 = vmul.f32 %v1565, %v1604
      %s1613 = scalar_lea.vmem %s4, 4
      %v1614 = vld [vmem:[%s1613] sm:$0xf]
      %v1615 = vpack.c.bf16 %v1605, %v1605
      %v1616 = vpack.c.bf16 %v1606, %v1606
      %v1617 = vpack.c.bf16 %v1607, %v1607
      %v1618 = vpack.c.bf16 %v1608, %v1608
      %v1619 = vpack.c.bf16 %v1609, %v1609
      %v1620 = vpack.c.bf16 %v1610, %v1610
      %v1621 = vpack.c.bf16 %v1611, %v1611
      %v1622 = vpack.c.bf16 %v1612, %v1612
      %vm1623 = vcmask 64512
      %v1625 = vsel %vm1623, %v1614, 0
      %vm1627 = vcmask 1043456
      %v1629 = vsel %vm1627, %v1615, 0
      %v1632 = vsel %vm1627, %v1616, 0
      %v1635 = vsel %vm1627, %v1617, 0
      %v1638 = vsel %vm1627, %v1618, 0
      %v1641 = vsel %vm1627, %v1619, 0
      %v1644 = vsel %vm1627, %v1620, 0
      %v1647 = vsel %vm1627, %v1621, 0
      %v1650 = vsel %vm1627, %v1622, 0
      %1652 = vmatprep.subr.bf16.mxu0 %v1632
      %1653 = vmatpush1.bf16.msra.mxu0 %v1629
      %1654 = vmatprep.subr.bf16.mxu0 0
      %1655 = vmatpush1.bf16.msra.mxu0 0
      %1656 = vmatprep.subr.bf16.mxu0 0
      %1657 = vmatpush1.bf16.msra.mxu0 0
      %1658 = vmatprep.subr.bf16.mxu0 0
      %1659 = vmatpush1.bf16.msra.mxu0 0
      %1660 = vmatprep.subr.bf16.mxu0 0
      %1661 = vmatpush1.bf16.msra.mxu0 0
      %1662 = vmatprep.subr.bf16.mxu0 0
      %1663 = vmatpush1.bf16.msra.mxu0 0
      %1664 = vmatprep.subr.bf16.mxu0 0
      %1665 = vmatpush1.bf16.msra.mxu0 0
      %1666 = vmatprep.subr.bf16.mxu0 0
      %1667 = vmatpush1.bf16.msra.mxu0 0
      %1668 = vmatprep.subr.bf16.mxu0 0
      %1669 = vmatpush1.bf16.msra.mxu0 0
      %1670 = vmatprep.subr.bf16.mxu0 0
      %1671 = vmatpush1.bf16.msra.mxu0 0
      %1672 = vmatprep.subr.bf16.mxu0 0
      %1673 = vmatpush1.bf16.msra.mxu0 0
      %1674 = vmatprep.subr.bf16.mxu0 0
      %1675 = vmatpush1.bf16.msra.mxu0 0
      %1676 = vmatprep.subr.bf16.mxu0 0
      %1677 = vmatpush1.bf16.msra.mxu0 0
      %1678 = vmatprep.subr.bf16.mxu0 0
      %1679 = vmatpush1.bf16.msra.mxu0 0
      %1680 = vmatprep.subr.bf16.mxu0 0
      %1681 = vmatpush1.bf16.msra.mxu0 0
      %1682 = vmatprep.subr.bf16.mxu0 0
      %1683 = vmatpush1.bf16.msra.mxu0 0
      %1684 = vmatprep.mubr.bf16.mxu0 0
      %1685 = vmatmul.mubr.bf16.gmra.mrb[0].mxu0 %v1625
      %v1686 = vpop.f32.mrb[0].mxu0
      %v1687 = vadd.f32 0.0, %v1686
      %v1688 = vpop.f32.mrb[0].mxu0
      %v1689 = vadd.f32 0.0, %v1688
      %v1690 = vpop.f32.mrb[0].mxu0
      %v1691 = vpop.f32.mrb[0].mxu0
      %1692 = vdwg.mxu0
      %1693 = vmatprep.subr.bf16.mxu0 %v1638
      %1694 = vmatpush1.bf16.msra.mxu0 %v1635
      %1695 = vmatprep.subr.bf16.mxu0 0
      %1696 = vmatpush1.bf16.msra.mxu0 0
      %1697 = vmatprep.subr.bf16.mxu0 0
      %1698 = vmatpush1.bf16.msra.mxu0 0
      %1699 = vmatprep.subr.bf16.mxu0 0
      %1700 = vmatpush1.bf16.msra.mxu0 0
      %1701 = vmatprep.subr.bf16.mxu0 0
      %1702 = vmatpush1.bf16.msra.mxu0 0
      %1703 = vmatprep.subr.bf16.mxu0 0
      %1704 = vmatpush1.bf16.msra.mxu0 0
      %1705 = vmatprep.subr.bf16.mxu0 0
      %1706 = vmatpush1.bf16.msra.mxu0 0
      %1707 = vmatprep.subr.bf16.mxu0 0
      %1708 = vmatpush1.bf16.msra.mxu0 0
      %1709 = vmatprep.subr.bf16.mxu0 0
      %1710 = vmatpush1.bf16.msra.mxu0 0
      %1711 = vmatprep.subr.bf16.mxu0 0
      %1712 = vmatpush1.bf16.msra.mxu0 0
      %1713 = vmatprep.subr.bf16.mxu0 0
      %1714 = vmatpush1.bf16.msra.mxu0 0
      %1715 = vmatprep.subr.bf16.mxu0 0
      %1716 = vmatpush1.bf16.msra.mxu0 0
      %1717 = vmatprep.subr.bf16.mxu0 0
      %1718 = vmatpush1.bf16.msra.mxu0 0
      %1719 = vmatprep.subr.bf16.mxu0 0
      %1720 = vmatpush1.bf16.msra.mxu0 0
      %1721 = vmatprep.subr.bf16.mxu0 0
      %1722 = vmatpush1.bf16.msra.mxu0 0
      %1723 = vmatprep.subr.bf16.mxu0 0
      %1724 = vmatpush1.bf16.msra.mxu0 0
      %1725 = vmatprep.mubr.bf16.mxu0 0
      %1726 = vmatmul.mubr.bf16.gmra.mrb[0].mxu0 %v1625
      %v1727 = vpop.f32.mrb[0].mxu0
      %v1728 = vadd.f32 0.0, %v1727
      %v1729 = vpop.f32.mrb[0].mxu0
      %v1730 = vadd.f32 0.0, %v1729
      %v1731 = vpop.f32.mrb[0].mxu0
      %v1732 = vpop.f32.mrb[0].mxu0
      %1733 = vdwg.mxu0
      %1734 = vmatprep.subr.bf16.mxu0 %v1644
      %1735 = vmatpush1.bf16.msra.mxu0 %v1641
      %1736 = vmatprep.subr.bf16.mxu0 0
      %1737 = vmatpush1.bf16.msra.mxu0 0
      %1738 = vmatprep.subr.bf16.mxu0 0
      %1739 = vmatpush1.bf16.msra.mxu0 0
      %1740 = vmatprep.subr.bf16.mxu0 0
      %1741 = vmatpush1.bf16.msra.mxu0 0
      %1742 = vmatprep.subr.bf16.mxu0 0
      %1743 = vmatpush1.bf16.msra.mxu0 0
      %1744 = vmatprep.subr.bf16.mxu0 0
      %1745 = vmatpush1.bf16.msra.mxu0 0
      %1746 = vmatprep.subr.bf16.mxu0 0
      %1747 = vmatpush1.bf16.msra.mxu0 0
      %1748 = vmatprep.subr.bf16.mxu0 0
      %1749 = vmatpush1.bf16.msra.mxu0 0
      %1750 = vmatprep.subr.bf16.mxu0 0
      %1751 = vmatpush1.bf16.msra.mxu0 0
      %1752 = vmatprep.subr.bf16.mxu0 0
      %1753 = vmatpush1.bf16.msra.mxu0 0
      %1754 = vmatprep.subr.bf16.mxu0 0
      %1755 = vmatpush1.bf16.msra.mxu0 0
      %1756 = vmatprep.subr.bf16.mxu0 0
      %1757 = vmatpush1.bf16.msra.mxu0 0
      %1758 = vmatprep.subr.bf16.mxu0 0
      %1759 = vmatpush1.bf16.msra.mxu0 0
      %1760 = vmatprep.subr.bf16.mxu0 0
      %1761 = vmatpush1.bf16.msra.mxu0 0
      %1762 = vmatprep.subr.bf16.mxu0 0
      %1763 = vmatpush1.bf16.msra.mxu0 0
      %1764 = vmatprep.subr.bf16.mxu0 0
      %1765 = vmatpush1.bf16.msra.mxu0 0
      %1766 = vmatprep.mubr.bf16.mxu0 0
      %1767 = vmatmul.mubr.bf16.gmra.mrb[0].mxu0 %v1625
      %v1768 = vpop.f32.mrb[0].mxu0
      %v1769 = vadd.f32 0.0, %v1768
      %v1770 = vpop.f32.mrb[0].mxu0
      %v1771 = vadd.f32 0.0, %v1770
      %v1772 = vpop.f32.mrb[0].mxu0
      %v1773 = vpop.f32.mrb[0].mxu0
      %1774 = vdwg.mxu0
      %1775 = vmatprep.subr.bf16.mxu0 %v1650
      %1776 = vmatpush1.bf16.msra.mxu0 %v1647
      %1777 = vmatprep.subr.bf16.mxu0 0
      %1778 = vmatpush1.bf16.msra.mxu0 0
      %1779 = vmatprep.subr.bf16.mxu0 0
      %1780 = vmatpush1.bf16.msra.mxu0 0
      %1781 = vmatprep.subr.bf16.mxu0 0
      %1782 = vmatpush1.bf16.msra.mxu0 0
      %1783 = vmatprep.subr.bf16.mxu0 0
      %1784 = vmatpush1.bf16.msra.mxu0 0
      %1785 = vmatprep.subr.bf16.mxu0 0
      %1786 = vmatpush1.bf16.msra.mxu0 0
      %1787 = vmatprep.subr.bf16.mxu0 0
      %1788 = vmatpush1.bf16.msra.mxu0 0
      %1789 = vmatprep.subr.bf16.mxu0 0
      %1790 = vmatpush1.bf16.msra.mxu0 0
      %1791 = vmatprep.subr.bf16.mxu0 0
      %1792 = vmatpush1.bf16.msra.mxu0 0
      %1793 = vmatprep.subr.bf16.mxu0 0
      %1794 = vmatpush1.bf16.msra.mxu0 0
      %1795 = vmatprep.subr.bf16.mxu0 0
      %1796 = vmatpush1.bf16.msra.mxu0 0
      %1797 = vmatprep.subr.bf16.mxu0 0
      %1798 = vmatpush1.bf16.msra.mxu0 0
      %1799 = vmatprep.subr.bf16.mxu0 0
      %1800 = vmatpush1.bf16.msra.mxu0 0
      %1801 = vmatprep.subr.bf16.mxu0 0
      %1802 = vmatpush1.bf16.msra.mxu0 0
      %1803 = vmatprep.subr.bf16.mxu0 0
      %1804 = vmatpush1.bf16.msra.mxu0 0
      %1805 = vmatprep.subr.bf16.mxu0 0
      %1806 = vmatpush1.bf16.msra.mxu0 0
      %1807 = vmatprep.mubr.bf16.mxu0 0
      %1808 = vmatmul.mubr.bf16.gmra.mrb[0].mxu0 %v1625
      %v1809 = vpop.f32.mrb[0].mxu0
      %v1810 = vadd.f32 0.0, %v1809
      %v1811 = vpop.f32.mrb[0].mxu0
      %v1812 = vadd.f32 0.0, %v1811
      %v1813 = vpop.f32.mrb[0].mxu0
      %v1814 = vpop.f32.mrb[0].mxu0
      %1815 = vdwg.mxu0
      %v1817 = vsel %vm1623, %v1539, 0
      %v1820 = vsel %vm1627, %v1540, 0
      %v1823 = vsel %vm1627, %v1541, 0
      %v1826 = vsel %vm1627, %v1542, 0
      %v1829 = vsel %vm1627, %v1543, 0
      %v1832 = vsel %vm1627, %v1544, 0
      %v1835 = vsel %vm1627, %v1545, 0
      %v1838 = vsel %vm1627, %v1546, 0
      %v1841 = vsel %vm1627, %v1547, 0
      %1843 = vmatprep.subr.bf16.mxu0 %v1823
      %1844 = vmatpush1.bf16.msra.mxu0 %v1820
      %1845 = vmatprep.subr.bf16.mxu0 0
      %1846 = vmatpush1.bf16.msra.mxu0 0
      %1847 = vmatprep.subr.bf16.mxu0 0
      %1848 = vmatpush1.bf16.msra.mxu0 0
      %1849 = vmatprep.subr.bf16.mxu0 0
      %1850 = vmatpush1.bf16.msra.mxu0 0
      %1851 = vmatprep.subr.bf16.mxu0 0
      %1852 = vmatpush1.bf16.msra.mxu0 0
      %1853 = vmatprep.subr.bf16.mxu0 0
      %1854 = vmatpush1.bf16.msra.mxu0 0
      %1855 = vmatprep.subr.bf16.mxu0 0
      %1856 = vmatpush1.bf16.msra.mxu0 0
      %1857 = vmatprep.subr.bf16.mxu0 0
      %1858 = vmatpush1.bf16.msra.mxu0 0
      %1859 = vmatprep.subr.bf16.mxu0 0
      %1860 = vmatpush1.bf16.msra.mxu0 0
      %1861 = vmatprep.subr.bf16.mxu0 0
      %1862 = vmatpush1.bf16.msra.mxu0 0
      %1863 = vmatprep.subr.bf16.mxu0 0
      %1864 = vmatpush1.bf16.msra.mxu0 0
      %1865 = vmatprep.subr.bf16.mxu0 0
      %1866 = vmatpush1.bf16.msra.mxu0 0
      %1867 = vmatprep.subr.bf16.mxu0 0
      %1868 = vmatpush1.bf16.msra.mxu0 0
      %1869 = vmatprep.subr.bf16.mxu0 0
      %1870 = vmatpush1.bf16.msra.mxu0 0
      %1871 = vmatprep.subr.bf16.mxu0 0
      %1872 = vmatpush1.bf16.msra.mxu0 0
      %1873 = vmatprep.subr.bf16.mxu0 0
      %1874 = vmatpush1.bf16.msra.mxu0 0
      %1875 = vmatprep.mubr.bf16.mxu0 0
      %1876 = vmatmul.mubr.bf16.gmra.mrb[0].mxu0 %v1817
      %v1877 = vpop.f32.mrb[0].mxu0
      %v1878 = vadd.f32 %v1687, %v1877
      %v1879 = vpop.f32.mrb[0].mxu0
      %v1880 = vadd.f32 %v1689, %v1879
      %v1881 = vpop.f32.mrb[0].mxu0
      %v1882 = vpop.f32.mrb[0].mxu0
      %1883 = vdwg.mxu0
      %1884 = vmatprep.subr.bf16.mxu0 %v1829
      %1885 = vmatpush1.bf16.msra.mxu0 %v1826
      %1886 = vmatprep.subr.bf16.mxu0 0
      %1887 = vmatpush1.bf16.msra.mxu0 0
      %1888 = vmatprep.subr.bf16.mxu0 0
      %1889 = vmatpush1.bf16.msra.mxu0 0
      %1890 = vmatprep.subr.bf16.mxu0 0
      %1891 = vmatpush1.bf16.msra.mxu0 0
      %1892 = vmatprep.subr.bf16.mxu0 0
      %1893 = vmatpush1.bf16.msra.mxu0 0
      %1894 = vmatprep.subr.bf16.mxu0 0
      %1895 = vmatpush1.bf16.msra.mxu0 0
      %1896 = vmatprep.subr.bf16.mxu0 0
      %1897 = vmatpush1.bf16.msra.mxu0 0
      %1898 = vmatprep.subr.bf16.mxu0 0
      %1899 = vmatpush1.bf16.msra.mxu0 0
      %1900 = vmatprep.subr.bf16.mxu0 0
      %1901 = vmatpush1.bf16.msra.mxu0 0
      %1902 = vmatprep.subr.bf16.mxu0 0
      %1903 = vmatpush1.bf16.msra.mxu0 0
      %1904 = vmatprep.subr.bf16.mxu0 0
      %1905 = vmatpush1.bf16.msra.mxu0 0
      %1906 = vmatprep.subr.bf16.mxu0 0
      %1907 = vmatpush1.bf16.msra.mxu0 0
      %1908 = vmatprep.subr.bf16.mxu0 0
      %1909 = vmatpush1.bf16.msra.mxu0 0
      %1910 = vmatprep.subr.bf16.mxu0 0
      %1911 = vmatpush1.bf16.msra.mxu0 0
      %1912 = vmatprep.subr.bf16.mxu0 0
      %1913 = vmatpush1.bf16.msra.mxu0 0
      %1914 = vmatprep.subr.bf16.mxu0 0
      %1915 = vmatpush1.bf16.msra.mxu0 0
      %1916 = vmatprep.mubr.bf16.mxu0 0
      %1917 = vmatmul.mubr.bf16.gmra.mrb[0].mxu0 %v1817
      %v1918 = vpop.f32.mrb[0].mxu0
      %v1919 = vadd.f32 %v1728, %v1918
      %v1920 = vpop.f32.mrb[0].mxu0
      %v1921 = vadd.f32 %v1730, %v1920
      %v1922 = vpop.f32.mrb[0].mxu0
      %v1923 = vpop.f32.mrb[0].mxu0
      %1924 = vdwg.mxu0
      %1925 = vmatprep.subr.bf16.mxu0 %v1835
      %1926 = vmatpush1.bf16.msra.mxu0 %v1832
      %1927 = vmatprep.subr.bf16.mxu0 0
      %1928 = vmatpush1.bf16.msra.mxu0 0
      %1929 = vmatprep.subr.bf16.mxu0 0
      %1930 = vmatpush1.bf16.msra.mxu0 0
      %1931 = vmatprep.subr.bf16.mxu0 0
      %1932 = vmatpush1.bf16.msra.mxu0 0
      %1933 = vmatprep.subr.bf16.mxu0 0
      %1934 = vmatpush1.bf16.msra.mxu0 0
      %1935 = vmatprep.subr.bf16.mxu0 0
      %1936 = vmatpush1.bf16.msra.mxu0 0
      %1937 = vmatprep.subr.bf16.mxu0 0
      %1938 = vmatpush1.bf16.msra.mxu0 0
      %1939 = vmatprep.subr.bf16.mxu0 0
      %1940 = vmatpush1.bf16.msra.mxu0 0
      %1941 = vmatprep.subr.bf16.mxu0 0
      %1942 = vmatpush1.bf16.msra.mxu0 0
      %1943 = vmatprep.subr.bf16.mxu0 0
      %1944 = vmatpush1.bf16.msra.mxu0 0
      %1945 = vmatprep.subr.bf16.mxu0 0
      %1946 = vmatpush1.bf16.msra.mxu0 0
      %1947 = vmatprep.subr.bf16.mxu0 0
      %1948 = vmatpush1.bf16.msra.mxu0 0
      %1949 = vmatprep.subr.bf16.mxu0 0
      %1950 = vmatpush1.bf16.msra.mxu0 0
      %1951 = vmatprep.subr.bf16.mxu0 0
      %1952 = vmatpush1.bf16.msra.mxu0 0
      %1953 = vmatprep.subr.bf16.mxu0 0
      %1954 = vmatpush1.bf16.msra.mxu0 0
      %1955 = vmatprep.subr.bf16.mxu0 0
      %1956 = vmatpush1.bf16.msra.mxu0 0
      %1957 = vmatprep.mubr.bf16.mxu0 0
      %1958 = vmatmul.mubr.bf16.gmra.mrb[0].mxu0 %v1817
      %v1959 = vpop.f32.mrb[0].mxu0
      %v1960 = vadd.f32 %v1769, %v1959
      %v1961 = vpop.f32.mrb[0].mxu0
      %v1962 = vadd.f32 %v1771, %v1961
      %v1963 = vpop.f32.mrb[0].mxu0
      %v1964 = vpop.f32.mrb[0].mxu0
      %1965 = vdwg.mxu0
      %1966 = vmatprep.subr.bf16.mxu0 %v1841
      %1967 = vmatpush1.bf16.msra.mxu0 %v1838
      %1968 = vmatprep.subr.bf16.mxu0 0
      %1969 = vmatpush1.bf16.msra.mxu0 0
      %1970 = vmatprep.subr.bf16.mxu0 0
      %1971 = vmatpush1.bf16.msra.mxu0 0
      %1972 = vmatprep.subr.bf16.mxu0 0
      %1973 = vmatpush1.bf16.msra.mxu0 0
      %1974 = vmatprep.subr.bf16.mxu0 0
      %1975 = vmatpush1.bf16.msra.mxu0 0
      %1976 = vmatprep.subr.bf16.mxu0 0
      %1977 = vmatpush1.bf16.msra.mxu0 0
      %1978 = vmatprep.subr.bf16.mxu0 0
      %1979 = vmatpush1.bf16.msra.mxu0 0
      %1980 = vmatprep.subr.bf16.mxu0 0
      %1981 = vmatpush1.bf16.msra.mxu0 0
      %1982 = vmatprep.subr.bf16.mxu0 0
      %1983 = vmatpush1.bf16.msra.mxu0 0
      %1984 = vmatprep.subr.bf16.mxu0 0
      %1985 = vmatpush1.bf16.msra.mxu0 0
      %1986 = vmatprep.subr.bf16.mxu0 0
      %1987 = vmatpush1.bf16.msra.mxu0 0
      %1988 = vmatprep.subr.bf16.mxu0 0
      %1989 = vmatpush1.bf16.msra.mxu0 0
      %1990 = vmatprep.subr.bf16.mxu0 0
      %1991 = vmatpush1.bf16.msra.mxu0 0
      %1992 = vmatprep.subr.bf16.mxu0 0
      %1993 = vmatpush1.bf16.msra.mxu0 0
      %1994 = vmatprep.subr.bf16.mxu0 0
      %1995 = vmatpush1.bf16.msra.mxu0 0
      %1996 = vmatprep.subr.bf16.mxu0 0
      %1997 = vmatpush1.bf16.msra.mxu0 0
      %1998 = vmatprep.mubr.bf16.mxu0 0
      %1999 = vmatmul.mubr.bf16.gmra.mrb[0].mxu0 %v1817
      %v2000 = vpop.f32.mrb[0].mxu0
      %v2001 = vadd.f32 %v1810, %v2000
      %v2002 = vpop.f32.mrb[0].mxu0
      %v2003 = vadd.f32 %v1812, %v2002
      %v2004 = vpop.f32.mrb[0].mxu0
      %v2005 = vpop.f32.mrb[0].mxu0
      %2006 = vdwg.mxu0
      %2007 = vrot.lane.b32.xlu0 %v1343, 31
      %v2008 = vpop.permute.xlu0 %2007
      %2009 = vrot.lane.b32.xlu0 %v1345, 31
      %v2010 = vpop.permute.xlu0 %2009
      %2011 = vrot.lane.b32.xlu0 %v1384, 31
      %v2012 = vpop.permute.xlu0 %2011
      %2013 = vrot.lane.b32.xlu0 %v1386, 31
      %v2014 = vpop.permute.xlu0 %2013
      %2015 = vrot.lane.b32.xlu0 %v1425, 31
      %v2016 = vpop.permute.xlu0 %2015
      %2017 = vrot.lane.b32.xlu0 %v1427, 31
      %v2018 = vpop.permute.xlu0 %2017
      %2019 = vrot.lane.b32.xlu0 %v1466, 31
      %v2020 = vpop.permute.xlu0 %2019
      %2021 = vrot.lane.b32.xlu0 %v1468, 31
      %v2022 = vpop.permute.xlu0 %2021
      %vm2023 = vcmp.lt.s32.totalorder %v1489, 31
      %v2024 = vsel %vm2023, %v2020, %v2022
      %v2025 = vsel %vm2023, %v2018, %v2020
      %v2026 = vsel %vm2023, %v2016, %v2018
      %v2027 = vsel %vm2023, %v2014, %v2016
      %v2028 = vsel %vm2023, %v2012, %v2014
      %v2029 = vsel %vm2023, %v2010, %v2012
      %v2030 = vsel %vm2023, %v2008, %v2010
      %v2031 = vsel %vm2023, %v2022, %v2008
      %v2032 = vlaneseq
      %v2033 = vshrl.u32 %v2032, 7
      %v2034 = vsub.s32 2, %v2033
      %v2035 = vrot.slane %v516, %v2034
      %v2036 = vlaneseq
      %v2037 = vshrl.u32 %v2036, 7
      %v2038 = vsub.s32 2, %v2037
      %v2039 = vrot.slane %v517, %v2038
      %v2040 = vlaneseq
      %v2041 = vshrl.u32 %v2040, 7
      %v2042 = vsub.s32 2, %v2041
      %v2043 = vrot.slane %v518, %v2042
      %v2044 = vlaneseq
      %v2045 = vshrl.u32 %v2044, 7
      %v2046 = vsub.s32 2, %v2045
      %v2047 = vrot.slane %v519, %v2046
      %v2048 = vlaneseq
      %v2049 = vshrl.u32 %v2048, 7
      %v2050 = vsub.s32 2, %v2049
      %v2051 = vrot.slane %v520, %v2050
      %v2052 = vlaneseq
      %v2053 = vshrl.u32 %v2052, 7
      %v2054 = vsub.s32 2, %v2053
      %v2055 = vrot.slane %v521, %v2054
      %v2056 = vlaneseq
      %v2057 = vshrl.u32 %v2056, 7
      %v2058 = vsub.s32 2, %v2057
      %v2059 = vrot.slane %v522, %v2058
      %v2060 = vlaneseq
      %v2061 = vshrl.u32 %v2060, 7
      %v2062 = vsub.s32 2, %v2061
      %v2063 = vrot.slane %v523, %v2062
      %v2064 = vmul.f32 %v2031, %v2035
      %v2065 = vmul.f32 %v2030, %v2039
      %v2066 = vmul.f32 %v2029, %v2043
      %v2067 = vmul.f32 %v2028, %v2047
      %v2068 = vmul.f32 %v2027, %v2051
      %v2069 = vmul.f32 %v2026, %v2055
      %v2070 = vmul.f32 %v2025, %v2059
      %v2071 = vmul.f32 %v2024, %v2063
      %s2072 = scalar_lea.vmem %s4, 8
      %v2073 = vld [vmem:[%s2072] sm:$0xf]
      %v2074 = vpack.c.bf16 %v2064, %v2064
      %v2075 = vpack.c.bf16 %v2065, %v2065
      %v2076 = vpack.c.bf16 %v2066, %v2066
      %v2077 = vpack.c.bf16 %v2067, %v2067
      %v2078 = vpack.c.bf16 %v2068, %v2068
      %v2079 = vpack.c.bf16 %v2069, %v2069
      %v2080 = vpack.c.bf16 %v2070, %v2070
      %v2081 = vpack.c.bf16 %v2071, %v2071
      %v2083 = vsel %vm1623, %v2073, 0
      %v2086 = vsel %vm1627, %v2074, 0
      %v2089 = vsel %vm1627, %v2075, 0
      %v2092 = vsel %vm1627, %v2076, 0
      %v2095 = vsel %vm1627, %v2077, 0
      %v2098 = vsel %vm1627, %v2078, 0
      %v2101 = vsel %vm1627, %v2079, 0
      %v2104 = vsel %vm1627, %v2080, 0
      %v2107 = vsel %vm1627, %v2081, 0
      %2109 = vmatprep.subr.bf16.mxu0 %v2089
      %2110 = vmatpush1.bf16.msra.mxu0 %v2086
      %2111 = vmatprep.subr.bf16.mxu0 0
      %2112 = vmatpush1.bf16.msra.mxu0 0
      %2113 = vmatprep.subr.bf16.mxu0 0
      %2114 = vmatpush1.bf16.msra.mxu0 0
      %2115 = vmatprep.subr.bf16.mxu0 0
      %2116 = vmatpush1.bf16.msra.mxu0 0
      %2117 = vmatprep.subr.bf16.mxu0 0
      %2118 = vmatpush1.bf16.msra.mxu0 0
      %2119 = vmatprep.subr.bf16.mxu0 0
      %2120 = vmatpush1.bf16.msra.mxu0 0
      %2121 = vmatprep.subr.bf16.mxu0 0
      %2122 = vmatpush1.bf16.msra.mxu0 0
      %2123 = vmatprep.subr.bf16.mxu0 0
      %2124 = vmatpush1.bf16.msra.mxu0 0
      %2125 = vmatprep.subr.bf16.mxu0 0
      %2126 = vmatpush1.bf16.msra.mxu0 0
      %2127 = vmatprep.subr.bf16.mxu0 0
      %2128 = vmatpush1.bf16.msra.mxu0 0
      %2129 = vmatprep.subr.bf16.mxu0 0
      %2130 = vmatpush1.bf16.msra.mxu0 0
      %2131 = vmatprep.subr.bf16.mxu0 0
      %2132 = vmatpush1.bf16.msra.mxu0 0
      %2133 = vmatprep.subr.bf16.mxu0 0
      %2134 = vmatpush1.bf16.msra.mxu0 0
      %2135 = vmatprep.subr.bf16.mxu0 0
      %2136 = vmatpush1.bf16.msra.mxu0 0
      %2137 = vmatprep.subr.bf16.mxu0 0
      %2138 = vmatpush1.bf16.msra.mxu0 0
      %2139 = vmatprep.subr.bf16.mxu0 0
      %2140 = vmatpush1.bf16.msra.mxu0 0
      %2141 = vmatprep.mubr.bf16.mxu0 0
      %2142 = vmatmul.mubr.bf16.gmra.mrb[0].mxu0 %v2083
      %v2143 = vpop.f32.mrb[0].mxu0
      %v2144 = vadd.f32 0.0, %v2143
      %v2145 = vpop.f32.mrb[0].mxu0
      %v2146 = vadd.f32 0.0, %v2145
      %v2147 = vpop.f32.mrb[0].mxu0
      %v2148 = vpop.f32.mrb[0].mxu0
      %2149 = vdwg.mxu0
      %2150 = vmatprep.subr.bf16.mxu0 %v2095
      %2151 = vmatpush1.bf16.msra.mxu0 %v2092
      %2152 = vmatprep.subr.bf16.mxu0 0
      %2153 = vmatpush1.bf16.msra.mxu0 0
      %2154 = vmatprep.subr.bf16.mxu0 0
      %2155 = vmatpush1.bf16.msra.mxu0 0
      %2156 = vmatprep.subr.bf16.mxu0 0
      %2157 = vmatpush1.bf16.msra.mxu0 0
      %2158 = vmatprep.subr.bf16.mxu0 0
      %2159 = vmatpush1.bf16.msra.mxu0 0
      %2160 = vmatprep.subr.bf16.mxu0 0
      %2161 = vmatpush1.bf16.msra.mxu0 0
      %2162 = vmatprep.subr.bf16.mxu0 0
      %2163 = vmatpush1.bf16.msra.mxu0 0
      %2164 = vmatprep.subr.bf16.mxu0 0
      %2165 = vmatpush1.bf16.msra.mxu0 0
      %2166 = vmatprep.subr.bf16.mxu0 0
      %2167 = vmatpush1.bf16.msra.mxu0 0
      %2168 = vmatprep.subr.bf16.mxu0 0
      %2169 = vmatpush1.bf16.msra.mxu0 0
      %2170 = vmatprep.subr.bf16.mxu0 0
      %2171 = vmatpush1.bf16.msra.mxu0 0
      %2172 = vmatprep.subr.bf16.mxu0 0
      %2173 = vmatpush1.bf16.msra.mxu0 0
      %2174 = vmatprep.subr.bf16.mxu0 0
      %2175 = vmatpush1.bf16.msra.mxu0 0
      %2176 = vmatprep.subr.bf16.mxu0 0
      %2177 = vmatpush1.bf16.msra.mxu0 0
      %2178 = vmatprep.subr.bf16.mxu0 0
      %2179 = vmatpush1.bf16.msra.mxu0 0
      %2180 = vmatprep.subr.bf16.mxu0 0
      %2181 = vmatpush1.bf16.msra.mxu0 0
      %2182 = vmatprep.mubr.bf16.mxu0 0
      %2183 = vmatmul.mubr.bf16.gmra.mrb[0].mxu0 %v2083
      %v2184 = vpop.f32.mrb[0].mxu0
      %v2185 = vadd.f32 0.0, %v2184
      %v2186 = vpop.f32.mrb[0].mxu0
      %v2187 = vadd.f32 0.0, %v2186
      %v2188 = vpop.f32.mrb[0].mxu0
      %v2189 = vpop.f32.mrb[0].mxu0
      %2190 = vdwg.mxu0
      %2191 = vmatprep.subr.bf16.mxu0 %v2101
      %2192 = vmatpush1.bf16.msra.mxu0 %v2098
      %2193 = vmatprep.subr.bf16.mxu0 0
      %2194 = vmatpush1.bf16.msra.mxu0 0
      %2195 = vmatprep.subr.bf16.mxu0 0
      %2196 = vmatpush1.bf16.msra.mxu0 0
      %2197 = vmatprep.subr.bf16.mxu0 0
      %2198 = vmatpush1.bf16.msra.mxu0 0
      %2199 = vmatprep.subr.bf16.mxu0 0
      %2200 = vmatpush1.bf16.msra.mxu0 0
      %2201 = vmatprep.subr.bf16.mxu0 0
      %2202 = vmatpush1.bf16.msra.mxu0 0
      %2203 = vmatprep.subr.bf16.mxu0 0
      %2204 = vmatpush1.bf16.msra.mxu0 0
      %2205 = vmatprep.subr.bf16.mxu0 0
      %2206 = vmatpush1.bf16.msra.mxu0 0
      %2207 = vmatprep.subr.bf16.mxu0 0
      %2208 = vmatpush1.bf16.msra.mxu0 0
      %2209 = vmatprep.subr.bf16.mxu0 0
      %2210 = vmatpush1.bf16.msra.mxu0 0
      %2211 = vmatprep.subr.bf16.mxu0 0
      %2212 = vmatpush1.bf16.msra.mxu0 0
      %2213 = vmatprep.subr.bf16.mxu0 0
      %2214 = vmatpush1.bf16.msra.mxu0 0
      %2215 = vmatprep.subr.bf16.mxu0 0
      %2216 = vmatpush1.bf16.msra.mxu0 0
      %2217 = vmatprep.subr.bf16.mxu0 0
      %2218 = vmatpush1.bf16.msra.mxu0 0
      %2219 = vmatprep.subr.bf16.mxu0 0
      %2220 = vmatpush1.bf16.msra.mxu0 0
      %2221 = vmatprep.subr.bf16.mxu0 0
      %2222 = vmatpush1.bf16.msra.mxu0 0
      %2223 = vmatprep.mubr.bf16.mxu0 0
      %2224 = vmatmul.mubr.bf16.gmra.mrb[0].mxu0 %v2083
      %v2225 = vpop.f32.mrb[0].mxu0
      %v2226 = vadd.f32 0.0, %v2225
      %v2227 = vpop.f32.mrb[0].mxu0
      %v2228 = vadd.f32 0.0, %v2227
      %v2229 = vpop.f32.mrb[0].mxu0
      %v2230 = vpop.f32.mrb[0].mxu0
      %2231 = vdwg.mxu0
      %2232 = vmatprep.subr.bf16.mxu0 %v2107
      %2233 = vmatpush1.bf16.msra.mxu0 %v2104
      %2234 = vmatprep.subr.bf16.mxu0 0
      %2235 = vmatpush1.bf16.msra.mxu0 0
      %2236 = vmatprep.subr.bf16.mxu0 0
      %2237 = vmatpush1.bf16.msra.mxu0 0
      %2238 = vmatprep.subr.bf16.mxu0 0
      %2239 = vmatpush1.bf16.msra.mxu0 0
      %2240 = vmatprep.subr.bf16.mxu0 0
      %2241 = vmatpush1.bf16.msra.mxu0 0
      %2242 = vmatprep.subr.bf16.mxu0 0
      %2243 = vmatpush1.bf16.msra.mxu0 0
      %2244 = vmatprep.subr.bf16.mxu0 0
      %2245 = vmatpush1.bf16.msra.mxu0 0
      %2246 = vmatprep.subr.bf16.mxu0 0
      %2247 = vmatpush1.bf16.msra.mxu0 0
      %2248 = vmatprep.subr.bf16.mxu0 0
      %2249 = vmatpush1.bf16.msra.mxu0 0
      %2250 = vmatprep.subr.bf16.mxu0 0
      %2251 = vmatpush1.bf16.msra.mxu0 0
      %2252 = vmatprep.subr.bf16.mxu0 0
      %2253 = vmatpush1.bf16.msra.mxu0 0
      %2254 = vmatprep.subr.bf16.mxu0 0
      %2255 = vmatpush1.bf16.msra.mxu0 0
      %2256 = vmatprep.subr.bf16.mxu0 0
      %2257 = vmatpush1.bf16.msra.mxu0 0
      %2258 = vmatprep.subr.bf16.mxu0 0
      %2259 = vmatpush1.bf16.msra.mxu0 0
      %2260 = vmatprep.subr.bf16.mxu0 0
      %2261 = vmatpush1.bf16.msra.mxu0 0
      %2262 = vmatprep.subr.bf16.mxu0 0
      %2263 = vmatpush1.bf16.msra.mxu0 0
      %2264 = vmatprep.mubr.bf16.mxu0 0
      %2265 = vmatmul.mubr.bf16.gmra.mrb[0].mxu0 %v2083
      %v2266 = vpop.f32.mrb[0].mxu0
      %v2267 = vadd.f32 0.0, %v2266
      %v2268 = vpop.f32.mrb[0].mxu0
      %v2269 = vadd.f32 0.0, %v2268
      %v2270 = vpop.f32.mrb[0].mxu0
      %v2271 = vpop.f32.mrb[0].mxu0
      %2272 = vdwg.mxu0
      %v2273 = vadd.f32 %v1878, %v2144
      %v2274 = vadd.f32 %v1880, %v2146
      %v2275 = vadd.f32 %v1919, %v2185
      %v2276 = vadd.f32 %v1921, %v2187
      %v2277 = vadd.f32 %v1960, %v2226
      %v2278 = vadd.f32 %v1962, %v2228
      %v2279 = vadd.f32 %v2001, %v2267
      %v2280 = vadd.f32 %v2003, %v2269
      %2281 = vrot.lane.b32.xlu0 %v1343, 1
      %v2282 = vpop.permute.xlu0 %2281
      %2283 = vrot.lane.b32.xlu0 %v1345, 1
      %v2284 = vpop.permute.xlu0 %2283
      %2285 = vrot.lane.b32.xlu0 %v1384, 1
      %v2286 = vpop.permute.xlu0 %2285
      %2287 = vrot.lane.b32.xlu0 %v1386, 1
      %v2288 = vpop.permute.xlu0 %2287
      %2289 = vrot.lane.b32.xlu0 %v1425, 1
      %v2290 = vpop.permute.xlu0 %2289
      %2291 = vrot.lane.b32.xlu0 %v1427, 1
      %v2292 = vpop.permute.xlu0 %2291
      %2293 = vrot.lane.b32.xlu0 %v1466, 1
      %v2294 = vpop.permute.xlu0 %2293
      %2295 = vrot.lane.b32.xlu0 %v1468, 1
      %v2296 = vpop.permute.xlu0 %2295
      %vm2297 = vcmp.lt.s32.totalorder %v1489, 1
      %v2298 = vsel %vm2297, %v2294, %v2296
      %v2299 = vsel %vm2297, %v2292, %v2294
      %v2300 = vsel %vm2297, %v2290, %v2292
      %v2301 = vsel %vm2297, %v2288, %v2290
      %v2302 = vsel %vm2297, %v2286, %v2288
      %v2303 = vsel %vm2297, %v2284, %v2286
      %v2304 = vsel %vm2297, %v2282, %v2284
      %v2305 = vsel %vm2297, %v2296, %v2282
      %v2306 = vlaneseq
      %v2307 = vshrl.u32 %v2306, 7
      %v2308 = vsub.s32 3, %v2307
      %v2309 = vrot.slane %v516, %v2308
      %v2310 = vlaneseq
      %v2311 = vshrl.u32 %v2310, 7
      %v2312 = vsub.s32 3, %v2311
      %v2313 = vrot.slane %v517, %v2312
      %v2314 = vlaneseq
      %v2315 = vshrl.u32 %v2314, 7
      %v2316 = vsub.s32 3, %v2315
      %v2317 = vrot.slane %v518, %v2316
      %v2318 = vlaneseq
      %v2319 = vshrl.u32 %v2318, 7
      %v2320 = vsub.s32 3, %v2319
      %v2321 = vrot.slane %v519, %v2320
      %v2322 = vlaneseq
      %v2323 = vshrl.u32 %v2322, 7
      %v2324 = vsub.s32 3, %v2323
      %v2325 = vrot.slane %v520, %v2324
      %v2326 = vlaneseq
      %v2327 = vshrl.u32 %v2326, 7
      %v2328 = vsub.s32 3, %v2327
      %v2329 = vrot.slane %v521, %v2328
      %v2330 = vlaneseq
      %v2331 = vshrl.u32 %v2330, 7
      %v2332 = vsub.s32 3, %v2331
      %v2333 = vrot.slane %v522, %v2332
      %v2334 = vlaneseq
      %v2335 = vshrl.u32 %v2334, 7
      %v2336 = vsub.s32 3, %v2335
      %v2337 = vrot.slane %v523, %v2336
      %v2338 = vmul.f32 %v2305, %v2309
      %v2339 = vmul.f32 %v2304, %v2313
      %v2340 = vmul.f32 %v2303, %v2317
      %v2341 = vmul.f32 %v2302, %v2321
      %v2342 = vmul.f32 %v2301, %v2325
      %v2343 = vmul.f32 %v2300, %v2329
      %v2344 = vmul.f32 %v2299, %v2333
      %v2345 = vmul.f32 %v2298, %v2337
      %s2346 = scalar_lea.vmem %s4, 12
      %v2347 = vld [vmem:[%s2346] sm:$0xf]
      %v2348 = vpack.c.bf16 %v2338, %v2338
      %v2349 = vpack.c.bf16 %v2339, %v2339
      %v2350 = vpack.c.bf16 %v2340, %v2340
      %v2351 = vpack.c.bf16 %v2341, %v2341
      %v2352 = vpack.c.bf16 %v2342, %v2342
      %v2353 = vpack.c.bf16 %v2343, %v2343
      %v2354 = vpack.c.bf16 %v2344, %v2344
      %v2355 = vpack.c.bf16 %v2345, %v2345
      %v2357 = vsel %vm1623, %v2347, 0
      %v2360 = vsel %vm1627, %v2348, 0
      %v2363 = vsel %vm1627, %v2349, 0
      %v2366 = vsel %vm1627, %v2350, 0
      %v2369 = vsel %vm1627, %v2351, 0
      %v2372 = vsel %vm1627, %v2352, 0
      %v2375 = vsel %vm1627, %v2353, 0
      %v2378 = vsel %vm1627, %v2354, 0
      %v2381 = vsel %vm1627, %v2355, 0
      %2383 = vmatprep.subr.bf16.mxu0 %v2363
      %2384 = vmatpush1.bf16.msra.mxu0 %v2360
      %2385 = vmatprep.subr.bf16.mxu0 0
      %2386 = vmatpush1.bf16.msra.mxu0 0
      %2387 = vmatprep.subr.bf16.mxu0 0
      %2388 = vmatpush1.bf16.msra.mxu0 0
      %2389 = vmatprep.subr.bf16.mxu0 0
      %2390 = vmatpush1.bf16.msra.mxu0 0
      %2391 = vmatprep.subr.bf16.mxu0 0
      %2392 = vmatpush1.bf16.msra.mxu0 0
      %2393 = vmatprep.subr.bf16.mxu0 0
      %2394 = vmatpush1.bf16.msra.mxu0 0
      %2395 = vmatprep.subr.bf16.mxu0 0
      %2396 = vmatpush1.bf16.msra.mxu0 0
      %2397 = vmatprep.subr.bf16.mxu0 0
      %2398 = vmatpush1.bf16.msra.mxu0 0
      %2399 = vmatprep.subr.bf16.mxu0 0
      %2400 = vmatpush1.bf16.msra.mxu0 0
      %2401 = vmatprep.subr.bf16.mxu0 0
      %2402 = vmatpush1.bf16.msra.mxu0 0
      %2403 = vmatprep.subr.bf16.mxu0 0
      %2404 = vmatpush1.bf16.msra.mxu0 0
      %2405 = vmatprep.subr.bf16.mxu0 0
      %2406 = vmatpush1.bf16.msra.mxu0 0
      %2407 = vmatprep.subr.bf16.mxu0 0
      %2408 = vmatpush1.bf16.msra.mxu0 0
      %2409 = vmatprep.subr.bf16.mxu0 0
      %2410 = vmatpush1.bf16.msra.mxu0 0
      %2411 = vmatprep.subr.bf16.mxu0 0
      %2412 = vmatpush1.bf16.msra.mxu0 0
      %2413 = vmatprep.subr.bf16.mxu0 0
      %2414 = vmatpush1.bf16.msra.mxu0 0
      %2415 = vmatprep.mubr.bf16.mxu0 0
      %2416 = vmatmul.mubr.bf16.gmra.mrb[0].mxu0 %v2357
      %v2417 = vpop.f32.mrb[0].mxu0
      %v2418 = vadd.f32 0.0, %v2417
      %v2419 = vpop.f32.mrb[0].mxu0
      %v2420 = vadd.f32 0.0, %v2419
      %v2421 = vpop.f32.mrb[0].mxu0
      %v2422 = vpop.f32.mrb[0].mxu0
      %2423 = vdwg.mxu0
      %2424 = vmatprep.subr.bf16.mxu0 %v2369
      %2425 = vmatpush1.bf16.msra.mxu0 %v2366
      %2426 = vmatprep.subr.bf16.mxu0 0
      %2427 = vmatpush1.bf16.msra.mxu0 0
      %2428 = vmatprep.subr.bf16.mxu0 0
      %2429 = vmatpush1.bf16.msra.mxu0 0
      %2430 = vmatprep.subr.bf16.mxu0 0
      %2431 = vmatpush1.bf16.msra.mxu0 0
      %2432 = vmatprep.subr.bf16.mxu0 0
      %2433 = vmatpush1.bf16.msra.mxu0 0
      %2434 = vmatprep.subr.bf16.mxu0 0
      %2435 = vmatpush1.bf16.msra.mxu0 0
      %2436 = vmatprep.subr.bf16.mxu0 0
      %2437 = vmatpush1.bf16.msra.mxu0 0
      %2438 = vmatprep.subr.bf16.mxu0 0
      %2439 = vmatpush1.bf16.msra.mxu0 0
      %2440 = vmatprep.subr.bf16.mxu0 0
      %2441 = vmatpush1.bf16.msra.mxu0 0
      %2442 = vmatprep.subr.bf16.mxu0 0
      %2443 = vmatpush1.bf16.msra.mxu0 0
      %2444 = vmatprep.subr.bf16.mxu0 0
      %2445 = vmatpush1.bf16.msra.mxu0 0
      %2446 = vmatprep.subr.bf16.mxu0 0
      %2447 = vmatpush1.bf16.msra.mxu0 0
      %2448 = vmatprep.subr.bf16.mxu0 0
      %2449 = vmatpush1.bf16.msra.mxu0 0
      %2450 = vmatprep.subr.bf16.mxu0 0
      %2451 = vmatpush1.bf16.msra.mxu0 0
      %2452 = vmatprep.subr.bf16.mxu0 0
      %2453 = vmatpush1.bf16.msra.mxu0 0
      %2454 = vmatprep.subr.bf16.mxu0 0
      %2455 = vmatpush1.bf16.msra.mxu0 0
      %2456 = vmatprep.mubr.bf16.mxu0 0
      %2457 = vmatmul.mubr.bf16.gmra.mrb[0].mxu0 %v2357
      %v2458 = vpop.f32.mrb[0].mxu0
      %v2459 = vadd.f32 0.0, %v2458
      %v2460 = vpop.f32.mrb[0].mxu0
      %v2461 = vadd.f32 0.0, %v2460
      %v2462 = vpop.f32.mrb[0].mxu0
      %v2463 = vpop.f32.mrb[0].mxu0
      %2464 = vdwg.mxu0
      %2465 = vmatprep.subr.bf16.mxu0 %v2375
      %2466 = vmatpush1.bf16.msra.mxu0 %v2372
      %2467 = vmatprep.subr.bf16.mxu0 0
      %2468 = vmatpush1.bf16.msra.mxu0 0
      %2469 = vmatprep.subr.bf16.mxu0 0
      %2470 = vmatpush1.bf16.msra.mxu0 0
      %2471 = vmatprep.subr.bf16.mxu0 0
      %2472 = vmatpush1.bf16.msra.mxu0 0
      %2473 = vmatprep.subr.bf16.mxu0 0
      %2474 = vmatpush1.bf16.msra.mxu0 0
      %2475 = vmatprep.subr.bf16.mxu0 0
      %2476 = vmatpush1.bf16.msra.mxu0 0
      %2477 = vmatprep.subr.bf16.mxu0 0
      %2478 = vmatpush1.bf16.msra.mxu0 0
      %2479 = vmatprep.subr.bf16.mxu0 0
      %2480 = vmatpush1.bf16.msra.mxu0 0
      %2481 = vmatprep.subr.bf16.mxu0 0
      %2482 = vmatpush1.bf16.msra.mxu0 0
      %2483 = vmatprep.subr.bf16.mxu0 0
      %2484 = vmatpush1.bf16.msra.mxu0 0
      %2485 = vmatprep.subr.bf16.mxu0 0
      %2486 = vmatpush1.bf16.msra.mxu0 0
      %2487 = vmatprep.subr.bf16.mxu0 0
      %2488 = vmatpush1.bf16.msra.mxu0 0
      %2489 = vmatprep.subr.bf16.mxu0 0
      %2490 = vmatpush1.bf16.msra.mxu0 0
      %2491 = vmatprep.subr.bf16.mxu0 0
      %2492 = vmatpush1.bf16.msra.mxu0 0
      %2493 = vmatprep.subr.bf16.mxu0 0
      %2494 = vmatpush1.bf16.msra.mxu0 0
      %2495 = vmatprep.subr.bf16.mxu0 0
      %2496 = vmatpush1.bf16.msra.mxu0 0
      %2497 = vmatprep.mubr.bf16.mxu0 0
      %2498 = vmatmul.mubr.bf16.gmra.mrb[0].mxu0 %v2357
      %v2499 = vpop.f32.mrb[0].mxu0
      %v2500 = vadd.f32 0.0, %v2499
      %v2501 = vpop.f32.mrb[0].mxu0
      %v2502 = vadd.f32 0.0, %v2501
      %v2503 = vpop.f32.mrb[0].mxu0
      %v2504 = vpop.f32.mrb[0].mxu0
      %2505 = vdwg.mxu0
      %2506 = vmatprep.subr.bf16.mxu0 %v2381
      %2507 = vmatpush1.bf16.msra.mxu0 %v2378
      %2508 = vmatprep.subr.bf16.mxu0 0
      %2509 = vmatpush1.bf16.msra.mxu0 0
      %2510 = vmatprep.subr.bf16.mxu0 0
      %2511 = vmatpush1.bf16.msra.mxu0 0
      %2512 = vmatprep.subr.bf16.mxu0 0
      %2513 = vmatpush1.bf16.msra.mxu0 0
      %2514 = vmatprep.subr.bf16.mxu0 0
      %2515 = vmatpush1.bf16.msra.mxu0 0
      %2516 = vmatprep.subr.bf16.mxu0 0
      %2517 = vmatpush1.bf16.msra.mxu0 0
      %2518 = vmatprep.subr.bf16.mxu0 0
      %2519 = vmatpush1.bf16.msra.mxu0 0
      %2520 = vmatprep.subr.bf16.mxu0 0
      %2521 = vmatpush1.bf16.msra.mxu0 0
      %2522 = vmatprep.subr.bf16.mxu0 0
      %2523 = vmatpush1.bf16.msra.mxu0 0
      %2524 = vmatprep.subr.bf16.mxu0 0
      %2525 = vmatpush1.bf16.msra.mxu0 0
      %2526 = vmatprep.subr.bf16.mxu0 0
      %2527 = vmatpush1.bf16.msra.mxu0 0
      %2528 = vmatprep.subr.bf16.mxu0 0
      %2529 = vmatpush1.bf16.msra.mxu0 0
      %2530 = vmatprep.subr.bf16.mxu0 0
      %2531 = vmatpush1.bf16.msra.mxu0 0
      %2532 = vmatprep.subr.bf16.mxu0 0
      %2533 = vmatpush1.bf16.msra.mxu0 0
      %2534 = vmatprep.subr.bf16.mxu0 0
      %2535 = vmatpush1.bf16.msra.mxu0 0
      %2536 = vmatprep.subr.bf16.mxu0 0
      %2537 = vmatpush1.bf16.msra.mxu0 0
      %2538 = vmatprep.mubr.bf16.mxu0 0
      %2539 = vmatmul.mubr.bf16.gmra.mrb[0].mxu0 %v2357
      %v2540 = vpop.f32.mrb[0].mxu0
      %v2541 = vadd.f32 0.0, %v2540
      %v2542 = vpop.f32.mrb[0].mxu0
      %v2543 = vadd.f32 0.0, %v2542
      %v2544 = vpop.f32.mrb[0].mxu0
      %v2545 = vpop.f32.mrb[0].mxu0
      %2546 = vdwg.mxu0
      %v2547 = vadd.f32 %v2273, %v2418
      %v2548 = vadd.f32 %v2274, %v2420
      %v2549 = vadd.f32 %v2275, %v2459
      %v2550 = vadd.f32 %v2276, %v2461
      %v2551 = vadd.f32 %v2277, %v2500
      %v2552 = vadd.f32 %v2278, %v2502
      %v2553 = vadd.f32 %v2279, %v2541
      %v2554 = vadd.f32 %v2280, %v2543
      %s2555 = scalar_lea.vmem %s4, 16
      %v2556 = vld [vmem:[%s2555] sm:$0xf]
      %v2557 = vpack.c.bf16 %v1343, %v1343
      %v2558 = vpack.c.bf16 %v1345, %v1345
      %v2559 = vpack.c.bf16 %v1384, %v1384
      %v2560 = vpack.c.bf16 %v1386, %v1386
      %v2561 = vpack.c.bf16 %v1425, %v1425
      %v2562 = vpack.c.bf16 %v1427, %v1427
      %v2563 = vpack.c.bf16 %v1466, %v1466
      %v2564 = vpack.c.bf16 %v1468, %v1468
      %v2566 = vsel %vm1623, %v2556, 0
      %v2569 = vsel %vm1627, %v2557, 0
      %v2572 = vsel %vm1627, %v2558, 0
      %v2575 = vsel %vm1627, %v2559, 0
      %v2578 = vsel %vm1627, %v2560, 0
      %v2581 = vsel %vm1627, %v2561, 0
      %v2584 = vsel %vm1627, %v2562, 0
      %v2587 = vsel %vm1627, %v2563, 0
      %v2590 = vsel %vm1627, %v2564, 0
      %2592 = vmatprep.subr.bf16.mxu0 %v2572
      %2593 = vmatpush1.bf16.msra.mxu0 %v2569
      %2594 = vmatprep.subr.bf16.mxu0 0
      %2595 = vmatpush1.bf16.msra.mxu0 0
      %2596 = vmatprep.subr.bf16.mxu0 0
      %2597 = vmatpush1.bf16.msra.mxu0 0
      %2598 = vmatprep.subr.bf16.mxu0 0
      %2599 = vmatpush1.bf16.msra.mxu0 0
      %2600 = vmatprep.subr.bf16.mxu0 0
      %2601 = vmatpush1.bf16.msra.mxu0 0
      %2602 = vmatprep.subr.bf16.mxu0 0
      %2603 = vmatpush1.bf16.msra.mxu0 0
      %2604 = vmatprep.subr.bf16.mxu0 0
      %2605 = vmatpush1.bf16.msra.mxu0 0
      %2606 = vmatprep.subr.bf16.mxu0 0
      %2607 = vmatpush1.bf16.msra.mxu0 0
      %2608 = vmatprep.subr.bf16.mxu0 0
      %2609 = vmatpush1.bf16.msra.mxu0 0
      %2610 = vmatprep.subr.bf16.mxu0 0
      %2611 = vmatpush1.bf16.msra.mxu0 0
      %2612 = vmatprep.subr.bf16.mxu0 0
      %2613 = vmatpush1.bf16.msra.mxu0 0
      %2614 = vmatprep.subr.bf16.mxu0 0
      %2615 = vmatpush1.bf16.msra.mxu0 0
      %2616 = vmatprep.subr.bf16.mxu0 0
      %2617 = vmatpush1.bf16.msra.mxu0 0
      %2618 = vmatprep.subr.bf16.mxu0 0
      %2619 = vmatpush1.bf16.msra.mxu0 0
      %2620 = vmatprep.subr.bf16.mxu0 0
      %2621 = vmatpush1.bf16.msra.mxu0 0
      %2622 = vmatprep.subr.bf16.mxu0 0
      %2623 = vmatpush1.bf16.msra.mxu0 0
      %2624 = vmatprep.mubr.bf16.mxu0 0
      %2625 = vmatmul.mubr.bf16.gmra.mrb[0].mxu0 %v2566
      %v2626 = vpop.f32.mrb[0].mxu0
      %v2627 = vadd.f32 0.0, %v2626
      %v2628 = vpop.f32.mrb[0].mxu0
      %v2629 = vadd.f32 0.0, %v2628
      %v2630 = vpop.f32.mrb[0].mxu0
      %v2631 = vpop.f32.mrb[0].mxu0
      %2632 = vdwg.mxu0
      %2633 = vmatprep.subr.bf16.mxu0 %v2578
      %2634 = vmatpush1.bf16.msra.mxu0 %v2575
      %2635 = vmatprep.subr.bf16.mxu0 0
      %2636 = vmatpush1.bf16.msra.mxu0 0
      %2637 = vmatprep.subr.bf16.mxu0 0
      %2638 = vmatpush1.bf16.msra.mxu0 0
      %2639 = vmatprep.subr.bf16.mxu0 0
      %2640 = vmatpush1.bf16.msra.mxu0 0
      %2641 = vmatprep.subr.bf16.mxu0 0
      %2642 = vmatpush1.bf16.msra.mxu0 0
      %2643 = vmatprep.subr.bf16.mxu0 0
      %2644 = vmatpush1.bf16.msra.mxu0 0
      %2645 = vmatprep.subr.bf16.mxu0 0
      %2646 = vmatpush1.bf16.msra.mxu0 0
      %2647 = vmatprep.subr.bf16.mxu0 0
      %2648 = vmatpush1.bf16.msra.mxu0 0
      %2649 = vmatprep.subr.bf16.mxu0 0
      %2650 = vmatpush1.bf16.msra.mxu0 0
      %2651 = vmatprep.subr.bf16.mxu0 0
      %2652 = vmatpush1.bf16.msra.mxu0 0
      %2653 = vmatprep.subr.bf16.mxu0 0
      %2654 = vmatpush1.bf16.msra.mxu0 0
      %2655 = vmatprep.subr.bf16.mxu0 0
      %2656 = vmatpush1.bf16.msra.mxu0 0
      %2657 = vmatprep.subr.bf16.mxu0 0
      %2658 = vmatpush1.bf16.msra.mxu0 0
      %2659 = vmatprep.subr.bf16.mxu0 0
      %2660 = vmatpush1.bf16.msra.mxu0 0
      %2661 = vmatprep.subr.bf16.mxu0 0
      %2662 = vmatpush1.bf16.msra.mxu0 0
      %2663 = vmatprep.subr.bf16.mxu0 0
      %2664 = vmatpush1.bf16.msra.mxu0 0
      %2665 = vmatprep.mubr.bf16.mxu0 0
      %2666 = vmatmul.mubr.bf16.gmra.mrb[0].mxu0 %v2566
      %v2667 = vpop.f32.mrb[0].mxu0
      %v2668 = vadd.f32 0.0, %v2667
      %v2669 = vpop.f32.mrb[0].mxu0
      %v2670 = vadd.f32 0.0, %v2669
      %v2671 = vpop.f32.mrb[0].mxu0
      %v2672 = vpop.f32.mrb[0].mxu0
      %2673 = vdwg.mxu0
      %2674 = vmatprep.subr.bf16.mxu0 %v2584
      %2675 = vmatpush1.bf16.msra.mxu0 %v2581
      %2676 = vmatprep.subr.bf16.mxu0 0
      %2677 = vmatpush1.bf16.msra.mxu0 0
      %2678 = vmatprep.subr.bf16.mxu0 0
      %2679 = vmatpush1.bf16.msra.mxu0 0
      %2680 = vmatprep.subr.bf16.mxu0 0
      %2681 = vmatpush1.bf16.msra.mxu0 0
      %2682 = vmatprep.subr.bf16.mxu0 0
      %2683 = vmatpush1.bf16.msra.mxu0 0
      %2684 = vmatprep.subr.bf16.mxu0 0
      %2685 = vmatpush1.bf16.msra.mxu0 0
      %2686 = vmatprep.subr.bf16.mxu0 0
      %2687 = vmatpush1.bf16.msra.mxu0 0
      %2688 = vmatprep.subr.bf16.mxu0 0
      %2689 = vmatpush1.bf16.msra.mxu0 0
      %2690 = vmatprep.subr.bf16.mxu0 0
      %2691 = vmatpush1.bf16.msra.mxu0 0
      %2692 = vmatprep.subr.bf16.mxu0 0
      %2693 = vmatpush1.bf16.msra.mxu0 0
      %2694 = vmatprep.subr.bf16.mxu0 0
      %2695 = vmatpush1.bf16.msra.mxu0 0
      %2696 = vmatprep.subr.bf16.mxu0 0
      %2697 = vmatpush1.bf16.msra.mxu0 0
      %2698 = vmatprep.subr.bf16.mxu0 0
      %2699 = vmatpush1.bf16.msra.mxu0 0
      %2700 = vmatprep.subr.bf16.mxu0 0
      %2701 = vmatpush1.bf16.msra.mxu0 0
      %2702 = vmatprep.subr.bf16.mxu0 0
      %2703 = vmatpush1.bf16.msra.mxu0 0
      %2704 = vmatprep.subr.bf16.mxu0 0
      %2705 = vmatpush1.bf16.msra.mxu0 0
      %2706 = vmatprep.mubr.bf16.mxu0 0
      %2707 = vmatmul.mubr.bf16.gmra.mrb[0].mxu0 %v2566
      %v2708 = vpop.f32.mrb[0].mxu0
      %v2709 = vadd.f32 0.0, %v2708
      %v2710 = vpop.f32.mrb[0].mxu0
      %v2711 = vadd.f32 0.0, %v2710
      %v2712 = vpop.f32.mrb[0].mxu0
      %v2713 = vpop.f32.mrb[0].mxu0
      %2714 = vdwg.mxu0
      %2715 = vmatprep.subr.bf16.mxu0 %v2590
      %2716 = vmatpush1.bf16.msra.mxu0 %v2587
      %2717 = vmatprep.subr.bf16.mxu0 0
      %2718 = vmatpush1.bf16.msra.mxu0 0
      %2719 = vmatprep.subr.bf16.mxu0 0
      %2720 = vmatpush1.bf16.msra.mxu0 0
      %2721 = vmatprep.subr.bf16.mxu0 0
      %2722 = vmatpush1.bf16.msra.mxu0 0
      %2723 = vmatprep.subr.bf16.mxu0 0
      %2724 = vmatpush1.bf16.msra.mxu0 0
      %2725 = vmatprep.subr.bf16.mxu0 0
      %2726 = vmatpush1.bf16.msra.mxu0 0
      %2727 = vmatprep.subr.bf16.mxu0 0
      %2728 = vmatpush1.bf16.msra.mxu0 0
      %2729 = vmatprep.subr.bf16.mxu0 0
      %2730 = vmatpush1.bf16.msra.mxu0 0
      %2731 = vmatprep.subr.bf16.mxu0 0
      %2732 = vmatpush1.bf16.msra.mxu0 0
      %2733 = vmatprep.subr.bf16.mxu0 0
      %2734 = vmatpush1.bf16.msra.mxu0 0
      %2735 = vmatprep.subr.bf16.mxu0 0
      %2736 = vmatpush1.bf16.msra.mxu0 0
      %2737 = vmatprep.subr.bf16.mxu0 0
      %2738 = vmatpush1.bf16.msra.mxu0 0
      %2739 = vmatprep.subr.bf16.mxu0 0
      %2740 = vmatpush1.bf16.msra.mxu0 0
      %2741 = vmatprep.subr.bf16.mxu0 0
      %2742 = vmatpush1.bf16.msra.mxu0 0
      %2743 = vmatprep.subr.bf16.mxu0 0
      %2744 = vmatpush1.bf16.msra.mxu0 0
      %2745 = vmatprep.subr.bf16.mxu0 0
      %2746 = vmatpush1.bf16.msra.mxu0 0
      %2747 = vmatprep.mubr.bf16.mxu0 0
      %2748 = vmatmul.mubr.bf16.gmra.mrb[0].mxu0 %v2566
      %v2749 = vpop.f32.mrb[0].mxu0
      %v2750 = vadd.f32 0.0, %v2749
      %v2751 = vpop.f32.mrb[0].mxu0
      %v2752 = vadd.f32 0.0, %v2751
      %v2753 = vpop.f32.mrb[0].mxu0
      %v2754 = vpop.f32.mrb[0].mxu0
      %2755 = vdwg.mxu0
      %v2756 = vadd.f32 %v2547, %v2627
      %v2757 = vadd.f32 %v2548, %v2629
      %v2758 = vadd.f32 %v2549, %v2668
      %v2759 = vadd.f32 %v2550, %v2670
      %v2760 = vadd.f32 %v2551, %v2709
      %v2761 = vadd.f32 %v2552, %v2711
      %v2762 = vadd.f32 %v2553, %v2750
      %v2763 = vadd.f32 %v2554, %v2752
      %2764 = vrot.lane.b32.xlu0 %v1343, 127
      %v2765 = vpop.permute.xlu0 %2764
      %2766 = vrot.lane.b32.xlu0 %v1345, 127
      %v2767 = vpop.permute.xlu0 %2766
      %2768 = vrot.lane.b32.xlu0 %v1384, 127
      %v2769 = vpop.permute.xlu0 %2768
      %2770 = vrot.lane.b32.xlu0 %v1386, 127
      %v2771 = vpop.permute.xlu0 %2770
      %2772 = vrot.lane.b32.xlu0 %v1425, 127
      %v2773 = vpop.permute.xlu0 %2772
      %2774 = vrot.lane.b32.xlu0 %v1427, 127
      %v2775 = vpop.permute.xlu0 %2774
      %2776 = vrot.lane.b32.xlu0 %v1466, 127
      %v2777 = vpop.permute.xlu0 %2776
      %2778 = vrot.lane.b32.xlu0 %v1468, 127
      %v2779 = vpop.permute.xlu0 %2778
      %vm2780 = vcmp.lt.s32.totalorder %v1489, 127
      %v2781 = vsel %vm2780, %v2777, %v2779
      %v2782 = vsel %vm2780, %v2775, %v2777
      %v2783 = vsel %vm2780, %v2773, %v2775
      %v2784 = vsel %vm2780, %v2771, %v2773
      %v2785 = vsel %vm2780, %v2769, %v2771
      %v2786 = vsel %vm2780, %v2767, %v2769
      %v2787 = vsel %vm2780, %v2765, %v2767
      %v2788 = vsel %vm2780, %v2779, %v2765
      %v2789 = vlaneseq
      %v2790 = vshrl.u32 %v2789, 7
      %v2791 = vsub.s32 5, %v2790
      %v2792 = vrot.slane %v516, %v2791
      %v2793 = vlaneseq
      %v2794 = vshrl.u32 %v2793, 7
      %v2795 = vsub.s32 5, %v2794
      %v2796 = vrot.slane %v517, %v2795
      %v2797 = vlaneseq
      %v2798 = vshrl.u32 %v2797, 7
      %v2799 = vsub.s32 5, %v2798
      %v2800 = vrot.slane %v518, %v2799
      %v2801 = vlaneseq
      %v2802 = vshrl.u32 %v2801, 7
      %v2803 = vsub.s32 5, %v2802
      %v2804 = vrot.slane %v519, %v2803
      %v2805 = vlaneseq
      %v2806 = vshrl.u32 %v2805, 7
      %v2807 = vsub.s32 5, %v2806
      %v2808 = vrot.slane %v520, %v2807
      %v2809 = vlaneseq
      %v2810 = vshrl.u32 %v2809, 7
      %v2811 = vsub.s32 5, %v2810
      %v2812 = vrot.slane %v521, %v2811
      %v2813 = vlaneseq
      %v2814 = vshrl.u32 %v2813, 7
      %v2815 = vsub.s32 5, %v2814
      %v2816 = vrot.slane %v522, %v2815
      %v2817 = vlaneseq
      %v2818 = vshrl.u32 %v2817, 7
      %v2819 = vsub.s32 5, %v2818
      %v2820 = vrot.slane %v523, %v2819
      %v2821 = vmul.f32 %v2787, %v2792
      %v2822 = vmul.f32 %v2786, %v2796
      %v2823 = vmul.f32 %v2785, %v2800
      %v2824 = vmul.f32 %v2784, %v2804
      %v2825 = vmul.f32 %v2783, %v2808
      %v2826 = vmul.f32 %v2782, %v2812
      %v2827 = vmul.f32 %v2781, %v2816
      %v2828 = vmul.f32 %v2788, %v2820
      %s2829 = scalar_lea.vmem %s4, 20
      %v2830 = vld [vmem:[%s2829] sm:$0xf]
      %v2831 = vpack.c.bf16 %v2821, %v2821
      %v2832 = vpack.c.bf16 %v2822, %v2822
      %v2833 = vpack.c.bf16 %v2823, %v2823
      %v2834 = vpack.c.bf16 %v2824, %v2824
      %v2835 = vpack.c.bf16 %v2825, %v2825
      %v2836 = vpack.c.bf16 %v2826, %v2826
      %v2837 = vpack.c.bf16 %v2827, %v2827
      %v2838 = vpack.c.bf16 %v2828, %v2828
      %v2840 = vsel %vm1623, %v2830, 0
      %v2843 = vsel %vm1627, %v2831, 0
      %v2846 = vsel %vm1627, %v2832, 0
      %v2849 = vsel %vm1627, %v2833, 0
      %v2852 = vsel %vm1627, %v2834, 0
      %v2855 = vsel %vm1627, %v2835, 0
      %v2858 = vsel %vm1627, %v2836, 0
      %v2861 = vsel %vm1627, %v2837, 0
      %v2864 = vsel %vm1627, %v2838, 0
      %2866 = vmatprep.subr.bf16.mxu0 %v2846
      %2867 = vmatpush1.bf16.msra.mxu0 %v2843
      %2868 = vmatprep.subr.bf16.mxu0 0
      %2869 = vmatpush1.bf16.msra.mxu0 0
      %2870 = vmatprep.subr.bf16.mxu0 0
      %2871 = vmatpush1.bf16.msra.mxu0 0
      %2872 = vmatprep.subr.bf16.mxu0 0
      %2873 = vmatpush1.bf16.msra.mxu0 0
      %2874 = vmatprep.subr.bf16.mxu0 0
      %2875 = vmatpush1.bf16.msra.mxu0 0
      %2876 = vmatprep.subr.bf16.mxu0 0
      %2877 = vmatpush1.bf16.msra.mxu0 0
      %2878 = vmatprep.subr.bf16.mxu0 0
      %2879 = vmatpush1.bf16.msra.mxu0 0
      %2880 = vmatprep.subr.bf16.mxu0 0
      %2881 = vmatpush1.bf16.msra.mxu0 0
      %2882 = vmatprep.subr.bf16.mxu0 0
      %2883 = vmatpush1.bf16.msra.mxu0 0
      %2884 = vmatprep.subr.bf16.mxu0 0
      %2885 = vmatpush1.bf16.msra.mxu0 0
      %2886 = vmatprep.subr.bf16.mxu0 0
      %2887 = vmatpush1.bf16.msra.mxu0 0
      %2888 = vmatprep.subr.bf16.mxu0 0
      %2889 = vmatpush1.bf16.msra.mxu0 0
      %2890 = vmatprep.subr.bf16.mxu0 0
      %2891 = vmatpush1.bf16.msra.mxu0 0
      %2892 = vmatprep.subr.bf16.mxu0 0
      %2893 = vmatpush1.bf16.msra.mxu0 0
      %2894 = vmatprep.subr.bf16.mxu0 0
      %2895 = vmatpush1.bf16.msra.mxu0 0
      %2896 = vmatprep.subr.bf16.mxu0 0
      %2897 = vmatpush1.bf16.msra.mxu0 0
      %2898 = vmatprep.mubr.bf16.mxu0 0
      %2899 = vmatmul.mubr.bf16.gmra.mrb[0].mxu0 %v2840
      %v2900 = vpop.f32.mrb[0].mxu0
      %v2901 = vadd.f32 0.0, %v2900
      %v2902 = vpop.f32.mrb[0].mxu0
      %v2903 = vadd.f32 0.0, %v2902
      %v2904 = vpop.f32.mrb[0].mxu0
      %v2905 = vpop.f32.mrb[0].mxu0
      %2906 = vdwg.mxu0
      %2907 = vmatprep.subr.bf16.mxu0 %v2852
      %2908 = vmatpush1.bf16.msra.mxu0 %v2849
      %2909 = vmatprep.subr.bf16.mxu0 0
      %2910 = vmatpush1.bf16.msra.mxu0 0
      %2911 = vmatprep.subr.bf16.mxu0 0
      %2912 = vmatpush1.bf16.msra.mxu0 0
      %2913 = vmatprep.subr.bf16.mxu0 0
      %2914 = vmatpush1.bf16.msra.mxu0 0
      %2915 = vmatprep.subr.bf16.mxu0 0
      %2916 = vmatpush1.bf16.msra.mxu0 0
      %2917 = vmatprep.subr.bf16.mxu0 0
      %2918 = vmatpush1.bf16.msra.mxu0 0
      %2919 = vmatprep.subr.bf16.mxu0 0
      %2920 = vmatpush1.bf16.msra.mxu0 0
      %2921 = vmatprep.subr.bf16.mxu0 0
      %2922 = vmatpush1.bf16.msra.mxu0 0
      %2923 = vmatprep.subr.bf16.mxu0 0
      %2924 = vmatpush1.bf16.msra.mxu0 0
      %2925 = vmatprep.subr.bf16.mxu0 0
      %2926 = vmatpush1.bf16.msra.mxu0 0
      %2927 = vmatprep.subr.bf16.mxu0 0
      %2928 = vmatpush1.bf16.msra.mxu0 0
      %2929 = vmatprep.subr.bf16.mxu0 0
      %2930 = vmatpush1.bf16.msra.mxu0 0
      %2931 = vmatprep.subr.bf16.mxu0 0
      %2932 = vmatpush1.bf16.msra.mxu0 0
      %2933 = vmatprep.subr.bf16.mxu0 0
      %2934 = vmatpush1.bf16.msra.mxu0 0
      %2935 = vmatprep.subr.bf16.mxu0 0
      %2936 = vmatpush1.bf16.msra.mxu0 0
      %2937 = vmatprep.subr.bf16.mxu0 0
      %2938 = vmatpush1.bf16.msra.mxu0 0
      %2939 = vmatprep.mubr.bf16.mxu0 0
      %2940 = vmatmul.mubr.bf16.gmra.mrb[0].mxu0 %v2840
      %v2941 = vpop.f32.mrb[0].mxu0
      %v2942 = vadd.f32 0.0, %v2941
      %v2943 = vpop.f32.mrb[0].mxu0
      %v2944 = vadd.f32 0.0, %v2943
      %v2945 = vpop.f32.mrb[0].mxu0
      %v2946 = vpop.f32.mrb[0].mxu0
      %2947 = vdwg.mxu0
      %2948 = vmatprep.subr.bf16.mxu0 %v2858
      %2949 = vmatpush1.bf16.msra.mxu0 %v2855
      %2950 = vmatprep.subr.bf16.mxu0 0
      %2951 = vmatpush1.bf16.msra.mxu0 0
      %2952 = vmatprep.subr.bf16.mxu0 0
      %2953 = vmatpush1.bf16.msra.mxu0 0
      %2954 = vmatprep.subr.bf16.mxu0 0
      %2955 = vmatpush1.bf16.msra.mxu0 0
      %2956 = vmatprep.subr.bf16.mxu0 0
      %2957 = vmatpush1.bf16.msra.mxu0 0
      %2958 = vmatprep.subr.bf16.mxu0 0
      %2959 = vmatpush1.bf16.msra.mxu0 0
      %2960 = vmatprep.subr.bf16.mxu0 0
      %2961 = vmatpush1.bf16.msra.mxu0 0
      %2962 = vmatprep.subr.bf16.mxu0 0
      %2963 = vmatpush1.bf16.msra.mxu0 0
      %2964 = vmatprep.subr.bf16.mxu0 0
      %2965 = vmatpush1.bf16.msra.mxu0 0
      %2966 = vmatprep.subr.bf16.mxu0 0
      %2967 = vmatpush1.bf16.msra.mxu0 0
      %2968 = vmatprep.subr.bf16.mxu0 0
      %2969 = vmatpush1.bf16.msra.mxu0 0
      %2970 = vmatprep.subr.bf16.mxu0 0
      %2971 = vmatpush1.bf16.msra.mxu0 0
      %2972 = vmatprep.subr.bf16.mxu0 0
      %2973 = vmatpush1.bf16.msra.mxu0 0
      %2974 = vmatprep.subr.bf16.mxu0 0
      %2975 = vmatpush1.bf16.msra.mxu0 0
      %2976 = vmatprep.subr.bf16.mxu0 0
      %2977 = vmatpush1.bf16.msra.mxu0 0
      %2978 = vmatprep.subr.bf16.mxu0 0
      %2979 = vmatpush1.bf16.msra.mxu0 0
      %2980 = vmatprep.mubr.bf16.mxu0 0
      %2981 = vmatmul.mubr.bf16.gmra.mrb[0].mxu0 %v2840
      %v2982 = vpop.f32.mrb[0].mxu0
      %v2983 = vadd.f32 0.0, %v2982
      %v2984 = vpop.f32.mrb[0].mxu0
      %v2985 = vadd.f32 0.0, %v2984
      %v2986 = vpop.f32.mrb[0].mxu0
      %v2987 = vpop.f32.mrb[0].mxu0
      %2988 = vdwg.mxu0
      %2989 = vmatprep.subr.bf16.mxu0 %v2864
      %2990 = vmatpush1.bf16.msra.mxu0 %v2861
      %2991 = vmatprep.subr.bf16.mxu0 0
      %2992 = vmatpush1.bf16.msra.mxu0 0
      %2993 = vmatprep.subr.bf16.mxu0 0
      %2994 = vmatpush1.bf16.msra.mxu0 0
      %2995 = vmatprep.subr.bf16.mxu0 0
      %2996 = vmatpush1.bf16.msra.mxu0 0
      %2997 = vmatprep.subr.bf16.mxu0 0
      %2998 = vmatpush1.bf16.msra.mxu0 0
      %2999 = vmatprep.subr.bf16.mxu0 0
      %3000 = vmatpush1.bf16.msra.mxu0 0
      %3001 = vmatprep.subr.bf16.mxu0 0
      %3002 = vmatpush1.bf16.msra.mxu0 0
      %3003 = vmatprep.subr.bf16.mxu0 0
      %3004 = vmatpush1.bf16.msra.mxu0 0
      %3005 = vmatprep.subr.bf16.mxu0 0
      %3006 = vmatpush1.bf16.msra.mxu0 0
      %3007 = vmatprep.subr.bf16.mxu0 0
      %3008 = vmatpush1.bf16.msra.mxu0 0
      %3009 = vmatprep.subr.bf16.mxu0 0
      %3010 = vmatpush1.bf16.msra.mxu0 0
      %3011 = vmatprep.subr.bf16.mxu0 0
      %3012 = vmatpush1.bf16.msra.mxu0 0
      %3013 = vmatprep.subr.bf16.mxu0 0
      %3014 = vmatpush1.bf16.msra.mxu0 0
      %3015 = vmatprep.subr.bf16.mxu0 0
      %3016 = vmatpush1.bf16.msra.mxu0 0
      %3017 = vmatprep.subr.bf16.mxu0 0
      %3018 = vmatpush1.bf16.msra.mxu0 0
      %3019 = vmatprep.subr.bf16.mxu0 0
      %3020 = vmatpush1.bf16.msra.mxu0 0
      %3021 = vmatprep.mubr.bf16.mxu0 0
      %3022 = vmatmul.mubr.bf16.gmra.mrb[0].mxu0 %v2840
      %v3023 = vpop.f32.mrb[0].mxu0
      %v3024 = vadd.f32 0.0, %v3023
      %v3025 = vpop.f32.mrb[0].mxu0
      %v3026 = vadd.f32 0.0, %v3025
      %v3027 = vpop.f32.mrb[0].mxu0
      %v3028 = vpop.f32.mrb[0].mxu0
      %3029 = vdwg.mxu0
      %v3030 = vadd.f32 %v2756, %v2901
      %v3031 = vadd.f32 %v2757, %v2903
      %v3032 = vadd.f32 %v2758, %v2942
      %v3033 = vadd.f32 %v2759, %v2944
      %v3034 = vadd.f32 %v2760, %v2983
      %v3035 = vadd.f32 %v2761, %v2985
      %v3036 = vadd.f32 %v2762, %v3024
      %v3037 = vadd.f32 %v2763, %v3026
      %3038 = vrot.lane.b32.xlu0 %v1343, 97
      %v3039 = vpop.permute.xlu0 %3038
      %3040 = vrot.lane.b32.xlu0 %v1345, 97
      %v3041 = vpop.permute.xlu0 %3040
      %3042 = vrot.lane.b32.xlu0 %v1384, 97
      %v3043 = vpop.permute.xlu0 %3042
      %3044 = vrot.lane.b32.xlu0 %v1386, 97
      %v3045 = vpop.permute.xlu0 %3044
      %3046 = vrot.lane.b32.xlu0 %v1425, 97
      %v3047 = vpop.permute.xlu0 %3046
      %3048 = vrot.lane.b32.xlu0 %v1427, 97
      %v3049 = vpop.permute.xlu0 %3048
      %3050 = vrot.lane.b32.xlu0 %v1466, 97
      %v3051 = vpop.permute.xlu0 %3050
      %3052 = vrot.lane.b32.xlu0 %v1468, 97
      %v3053 = vpop.permute.xlu0 %3052
      %vm3054 = vcmp.lt.s32.totalorder %v1489, 97
      %v3055 = vsel %vm3054, %v3051, %v3053
      %v3056 = vsel %vm3054, %v3049, %v3051
      %v3057 = vsel %vm3054, %v3047, %v3049
      %v3058 = vsel %vm3054, %v3045, %v3047
      %v3059 = vsel %vm3054, %v3043, %v3045
      %v3060 = vsel %vm3054, %v3041, %v3043
      %v3061 = vsel %vm3054, %v3039, %v3041
      %v3062 = vsel %vm3054, %v3053, %v3039
      %v3063 = vlaneseq
      %v3064 = vshrl.u32 %v3063, 7
      %v3065 = vsub.s32 6, %v3064
      %v3066 = vrot.slane %v516, %v3065
      %v3067 = vlaneseq
      %v3068 = vshrl.u32 %v3067, 7
      %v3069 = vsub.s32 6, %v3068
      %v3070 = vrot.slane %v517, %v3069
      %v3071 = vlaneseq
      %v3072 = vshrl.u32 %v3071, 7
      %v3073 = vsub.s32 6, %v3072
      %v3074 = vrot.slane %v518, %v3073
      %v3075 = vlaneseq
      %v3076 = vshrl.u32 %v3075, 7
      %v3077 = vsub.s32 6, %v3076
      %v3078 = vrot.slane %v519, %v3077
      %v3079 = vlaneseq
      %v3080 = vshrl.u32 %v3079, 7
      %v3081 = vsub.s32 6, %v3080
      %v3082 = vrot.slane %v520, %v3081
      %v3083 = vlaneseq
      %v3084 = vshrl.u32 %v3083, 7
      %v3085 = vsub.s32 6, %v3084
      %v3086 = vrot.slane %v521, %v3085
      %v3087 = vlaneseq
      %v3088 = vshrl.u32 %v3087, 7
      %v3089 = vsub.s32 6, %v3088
      %v3090 = vrot.slane %v522, %v3089
      %v3091 = vlaneseq
      %v3092 = vshrl.u32 %v3091, 7
      %v3093 = vsub.s32 6, %v3092
      %v3094 = vrot.slane %v523, %v3093
      %v3095 = vmul.f32 %v3061, %v3066
      %v3096 = vmul.f32 %v3060, %v3070
      %v3097 = vmul.f32 %v3059, %v3074
      %v3098 = vmul.f32 %v3058, %v3078
      %v3099 = vmul.f32 %v3057, %v3082
      %v3100 = vmul.f32 %v3056, %v3086
      %v3101 = vmul.f32 %v3055, %v3090
      %v3102 = vmul.f32 %v3062, %v3094
      %s3103 = scalar_lea.vmem %s4, 24
      %v3104 = vld [vmem:[%s3103] sm:$0xf]
      %v3105 = vpack.c.bf16 %v3095, %v3095
      %v3106 = vpack.c.bf16 %v3096, %v3096
      %v3107 = vpack.c.bf16 %v3097, %v3097
      %v3108 = vpack.c.bf16 %v3098, %v3098
      %v3109 = vpack.c.bf16 %v3099, %v3099
      %v3110 = vpack.c.bf16 %v3100, %v3100
      %v3111 = vpack.c.bf16 %v3101, %v3101
      %v3112 = vpack.c.bf16 %v3102, %v3102
      %v3114 = vsel %vm1623, %v3104, 0
      %v3117 = vsel %vm1627, %v3105, 0
      %v3120 = vsel %vm1627, %v3106, 0
      %v3123 = vsel %vm1627, %v3107, 0
      %v3126 = vsel %vm1627, %v3108, 0
      %v3129 = vsel %vm1627, %v3109, 0
      %v3132 = vsel %vm1627, %v3110, 0
      %v3135 = vsel %vm1627, %v3111, 0
      %v3138 = vsel %vm1627, %v3112, 0
      %3140 = vmatprep.subr.bf16.mxu0 %v3120
      %3141 = vmatpush1.bf16.msra.mxu0 %v3117
      %3142 = vmatprep.subr.bf16.mxu0 0
      %3143 = vmatpush1.bf16.msra.mxu0 0
      %3144 = vmatprep.subr.bf16.mxu0 0
      %3145 = vmatpush1.bf16.msra.mxu0 0
      %3146 = vmatprep.subr.bf16.mxu0 0
      %3147 = vmatpush1.bf16.msra.mxu0 0
      %3148 = vmatprep.subr.bf16.mxu0 0
      %3149 = vmatpush1.bf16.msra.mxu0 0
      %3150 = vmatprep.subr.bf16.mxu0 0
      %3151 = vmatpush1.bf16.msra.mxu0 0
      %3152 = vmatprep.subr.bf16.mxu0 0
      %3153 = vmatpush1.bf16.msra.mxu0 0
      %3154 = vmatprep.subr.bf16.mxu0 0
      %3155 = vmatpush1.bf16.msra.mxu0 0
      %3156 = vmatprep.subr.bf16.mxu0 0
      %3157 = vmatpush1.bf16.msra.mxu0 0
      %3158 = vmatprep.subr.bf16.mxu0 0
      %3159 = vmatpush1.bf16.msra.mxu0 0
      %3160 = vmatprep.subr.bf16.mxu0 0
      %3161 = vmatpush1.bf16.msra.mxu0 0
      %3162 = vmatprep.subr.bf16.mxu0 0
      %3163 = vmatpush1.bf16.msra.mxu0 0
      %3164 = vmatprep.subr.bf16.mxu0 0
      %3165 = vmatpush1.bf16.msra.mxu0 0
      %3166 = vmatprep.subr.bf16.mxu0 0
      %3167 = vmatpush1.bf16.msra.mxu0 0
      %3168 = vmatprep.subr.bf16.mxu0 0
      %3169 = vmatpush1.bf16.msra.mxu0 0
      %3170 = vmatprep.subr.bf16.mxu0 0
      %3171 = vmatpush1.bf16.msra.mxu0 0
      %3172 = vmatprep.mubr.bf16.mxu0 0
      %3173 = vmatmul.mubr.bf16.gmra.mrb[0].mxu0 %v3114
      %v3174 = vpop.f32.mrb[0].mxu0
      %v3175 = vadd.f32 0.0, %v3174
      %v3176 = vpop.f32.mrb[0].mxu0
      %v3177 = vadd.f32 0.0, %v3176
      %v3178 = vpop.f32.mrb[0].mxu0
      %v3179 = vpop.f32.mrb[0].mxu0
      %3180 = vdwg.mxu0
      %3181 = vmatprep.subr.bf16.mxu0 %v3126
      %3182 = vmatpush1.bf16.msra.mxu0 %v3123
      %3183 = vmatprep.subr.bf16.mxu0 0
      %3184 = vmatpush1.bf16.msra.mxu0 0
      %3185 = vmatprep.subr.bf16.mxu0 0
      %3186 = vmatpush1.bf16.msra.mxu0 0
      %3187 = vmatprep.subr.bf16.mxu0 0
      %3188 = vmatpush1.bf16.msra.mxu0 0
      %3189 = vmatprep.subr.bf16.mxu0 0
      %3190 = vmatpush1.bf16.msra.mxu0 0
      %3191 = vmatprep.subr.bf16.mxu0 0
      %3192 = vmatpush1.bf16.msra.mxu0 0
      %3193 = vmatprep.subr.bf16.mxu0 0
      %3194 = vmatpush1.bf16.msra.mxu0 0
      %3195 = vmatprep.subr.bf16.mxu0 0
      %3196 = vmatpush1.bf16.msra.mxu0 0
      %3197 = vmatprep.subr.bf16.mxu0 0
      %3198 = vmatpush1.bf16.msra.mxu0 0
      %3199 = vmatprep.subr.bf16.mxu0 0
      %3200 = vmatpush1.bf16.msra.mxu0 0
      %3201 = vmatprep.subr.bf16.mxu0 0
      %3202 = vmatpush1.bf16.msra.mxu0 0
      %3203 = vmatprep.subr.bf16.mxu0 0
      %3204 = vmatpush1.bf16.msra.mxu0 0
      %3205 = vmatprep.subr.bf16.mxu0 0
      %3206 = vmatpush1.bf16.msra.mxu0 0
      %3207 = vmatprep.subr.bf16.mxu0 0
      %3208 = vmatpush1.bf16.msra.mxu0 0
      %3209 = vmatprep.subr.bf16.mxu0 0
      %3210 = vmatpush1.bf16.msra.mxu0 0
      %3211 = vmatprep.subr.bf16.mxu0 0
      %3212 = vmatpush1.bf16.msra.mxu0 0
      %3213 = vmatprep.mubr.bf16.mxu0 0
      %3214 = vmatmul.mubr.bf16.gmra.mrb[0].mxu0 %v3114
      %v3215 = vpop.f32.mrb[0].mxu0
      %v3216 = vadd.f32 0.0, %v3215
      %v3217 = vpop.f32.mrb[0].mxu0
      %v3218 = vadd.f32 0.0, %v3217
      %v3219 = vpop.f32.mrb[0].mxu0
      %v3220 = vpop.f32.mrb[0].mxu0
      %3221 = vdwg.mxu0
      %3222 = vmatprep.subr.bf16.mxu0 %v3132
      %3223 = vmatpush1.bf16.msra.mxu0 %v3129
      %3224 = vmatprep.subr.bf16.mxu0 0
      %3225 = vmatpush1.bf16.msra.mxu0 0
      %3226 = vmatprep.subr.bf16.mxu0 0
      %3227 = vmatpush1.bf16.msra.mxu0 0
      %3228 = vmatprep.subr.bf16.mxu0 0
      %3229 = vmatpush1.bf16.msra.mxu0 0
      %3230 = vmatprep.subr.bf16.mxu0 0
      %3231 = vmatpush1.bf16.msra.mxu0 0
      %3232 = vmatprep.subr.bf16.mxu0 0
      %3233 = vmatpush1.bf16.msra.mxu0 0
      %3234 = vmatprep.subr.bf16.mxu0 0
      %3235 = vmatpush1.bf16.msra.mxu0 0
      %3236 = vmatprep.subr.bf16.mxu0 0
      %3237 = vmatpush1.bf16.msra.mxu0 0
      %3238 = vmatprep.subr.bf16.mxu0 0
      %3239 = vmatpush1.bf16.msra.mxu0 0
      %3240 = vmatprep.subr.bf16.mxu0 0
      %3241 = vmatpush1.bf16.msra.mxu0 0
      %3242 = vmatprep.subr.bf16.mxu0 0
      %3243 = vmatpush1.bf16.msra.mxu0 0
      %3244 = vmatprep.subr.bf16.mxu0 0
      %3245 = vmatpush1.bf16.msra.mxu0 0
      %3246 = vmatprep.subr.bf16.mxu0 0
      %3247 = vmatpush1.bf16.msra.mxu0 0
      %3248 = vmatprep.subr.bf16.mxu0 0
      %3249 = vmatpush1.bf16.msra.mxu0 0
      %3250 = vmatprep.subr.bf16.mxu0 0
      %3251 = vmatpush1.bf16.msra.mxu0 0
      %3252 = vmatprep.subr.bf16.mxu0 0
      %3253 = vmatpush1.bf16.msra.mxu0 0
      %3254 = vmatprep.mubr.bf16.mxu0 0
      %3255 = vmatmul.mubr.bf16.gmra.mrb[0].mxu0 %v3114
      %v3256 = vpop.f32.mrb[0].mxu0
      %v3257 = vadd.f32 0.0, %v3256
      %v3258 = vpop.f32.mrb[0].mxu0
      %v3259 = vadd.f32 0.0, %v3258
      %v3260 = vpop.f32.mrb[0].mxu0
      %v3261 = vpop.f32.mrb[0].mxu0
      %3262 = vdwg.mxu0
      %3263 = vmatprep.subr.bf16.mxu0 %v3138
      %3264 = vmatpush1.bf16.msra.mxu0 %v3135
      %3265 = vmatprep.subr.bf16.mxu0 0
      %3266 = vmatpush1.bf16.msra.mxu0 0
      %3267 = vmatprep.subr.bf16.mxu0 0
      %3268 = vmatpush1.bf16.msra.mxu0 0
      %3269 = vmatprep.subr.bf16.mxu0 0
      %3270 = vmatpush1.bf16.msra.mxu0 0
      %3271 = vmatprep.subr.bf16.mxu0 0
      %3272 = vmatpush1.bf16.msra.mxu0 0
      %3273 = vmatprep.subr.bf16.mxu0 0
      %3274 = vmatpush1.bf16.msra.mxu0 0
      %3275 = vmatprep.subr.bf16.mxu0 0
      %3276 = vmatpush1.bf16.msra.mxu0 0
      %3277 = vmatprep.subr.bf16.mxu0 0
      %3278 = vmatpush1.bf16.msra.mxu0 0
      %3279 = vmatprep.subr.bf16.mxu0 0
      %3280 = vmatpush1.bf16.msra.mxu0 0
      %3281 = vmatprep.subr.bf16.mxu0 0
      %3282 = vmatpush1.bf16.msra.mxu0 0
      %3283 = vmatprep.subr.bf16.mxu0 0
      %3284 = vmatpush1.bf16.msra.mxu0 0
      %3285 = vmatprep.subr.bf16.mxu0 0
      %3286 = vmatpush1.bf16.msra.mxu0 0
      %3287 = vmatprep.subr.bf16.mxu0 0
      %3288 = vmatpush1.bf16.msra.mxu0 0
      %3289 = vmatprep.subr.bf16.mxu0 0
      %3290 = vmatpush1.bf16.msra.mxu0 0
      %3291 = vmatprep.subr.bf16.mxu0 0
      %3292 = vmatpush1.bf16.msra.mxu0 0
      %3293 = vmatprep.subr.bf16.mxu0 0
      %3294 = vmatpush1.bf16.msra.mxu0 0
      %3295 = vmatprep.mubr.bf16.mxu0 0
      %3296 = vmatmul.mubr.bf16.gmra.mrb[0].mxu0 %v3114
      %v3297 = vpop.f32.mrb[0].mxu0
      %v3298 = vadd.f32 0.0, %v3297
      %v3299 = vpop.f32.mrb[0].mxu0
      %v3300 = vadd.f32 0.0, %v3299
      %v3301 = vpop.f32.mrb[0].mxu0
      %v3302 = vpop.f32.mrb[0].mxu0
      %3303 = vdwg.mxu0
      %v3304 = vadd.f32 %v3030, %v3175
      %v3305 = vadd.f32 %v3031, %v3177
      %v3306 = vadd.f32 %v3032, %v3216
      %v3307 = vadd.f32 %v3033, %v3218
      %v3308 = vadd.f32 %v3034, %v3257
      %v3309 = vadd.f32 %v3035, %v3259
      %v3310 = vadd.f32 %v3036, %v3298
      %v3311 = vadd.f32 %v3037, %v3300
      %3312 = vrot.lane.b32.xlu0 %v1343, 96
      %v3313 = vpop.permute.xlu0 %3312
      %3314 = vrot.lane.b32.xlu0 %v1345, 96
      %v3315 = vpop.permute.xlu0 %3314
      %3316 = vrot.lane.b32.xlu0 %v1384, 96
      %v3317 = vpop.permute.xlu0 %3316
      %3318 = vrot.lane.b32.xlu0 %v1386, 96
      %v3319 = vpop.permute.xlu0 %3318
      %3320 = vrot.lane.b32.xlu0 %v1425, 96
      %v3321 = vpop.permute.xlu0 %3320
      %3322 = vrot.lane.b32.xlu0 %v1427, 96
      %v3323 = vpop.permute.xlu0 %3322
      %3324 = vrot.lane.b32.xlu0 %v1466, 96
      %v3325 = vpop.permute.xlu0 %3324
      %3326 = vrot.lane.b32.xlu0 %v1468, 96
      %v3327 = vpop.permute.xlu0 %3326
      %vm3328 = vcmp.lt.s32.totalorder %v1489, 96
      %v3329 = vsel %vm3328, %v3325, %v3327
      %v3330 = vsel %vm3328, %v3323, %v3325
      %v3331 = vsel %vm3328, %v3321, %v3323
      %v3332 = vsel %vm3328, %v3319, %v3321
      %v3333 = vsel %vm3328, %v3317, %v3319
      %v3334 = vsel %vm3328, %v3315, %v3317
      %v3335 = vsel %vm3328, %v3313, %v3315
      %v3336 = vsel %vm3328, %v3327, %v3313
      %v3337 = vlaneseq
      %v3338 = vshrl.u32 %v3337, 7
      %v3339 = vsub.s32 7, %v3338
      %v3340 = vrot.slane %v516, %v3339
      %v3341 = vlaneseq
      %v3342 = vshrl.u32 %v3341, 7
      %v3343 = vsub.s32 7, %v3342
      %v3344 = vrot.slane %v517, %v3343
      %v3345 = vlaneseq
      %v3346 = vshrl.u32 %v3345, 7
      %v3347 = vsub.s32 7, %v3346
      %v3348 = vrot.slane %v518, %v3347
      %v3349 = vlaneseq
      %v3350 = vshrl.u32 %v3349, 7
      %v3351 = vsub.s32 7, %v3350
      %v3352 = vrot.slane %v519, %v3351
      %v3353 = vlaneseq
      %v3354 = vshrl.u32 %v3353, 7
      %v3355 = vsub.s32 7, %v3354
      %v3356 = vrot.slane %v520, %v3355
      %v3357 = vlaneseq
      %v3358 = vshrl.u32 %v3357, 7
      %v3359 = vsub.s32 7, %v3358
      %v3360 = vrot.slane %v521, %v3359
      %v3361 = vlaneseq
      %v3362 = vshrl.u32 %v3361, 7
      %v3363 = vsub.s32 7, %v3362
      %v3364 = vrot.slane %v522, %v3363
      %v3365 = vlaneseq
      %v3366 = vshrl.u32 %v3365, 7
      %v3367 = vsub.s32 7, %v3366
      %v3368 = vrot.slane %v523, %v3367
      %v3369 = vmul.f32 %v3335, %v3340
      %v3370 = vmul.f32 %v3334, %v3344
      %v3371 = vmul.f32 %v3333, %v3348
      %v3372 = vmul.f32 %v3332, %v3352
      %v3373 = vmul.f32 %v3331, %v3356
      %v3374 = vmul.f32 %v3330, %v3360
      %v3375 = vmul.f32 %v3329, %v3364
      %v3376 = vmul.f32 %v3336, %v3368
      %s3377 = scalar_lea.vmem %s4, 28
      %v3378 = vld [vmem:[%s3377] sm:$0xf]
      %v3379 = vpack.c.bf16 %v3369, %v3369
      %v3380 = vpack.c.bf16 %v3370, %v3370
      %v3381 = vpack.c.bf16 %v3371, %v3371
      %v3382 = vpack.c.bf16 %v3372, %v3372
      %v3383 = vpack.c.bf16 %v3373, %v3373
      %v3384 = vpack.c.bf16 %v3374, %v3374
      %v3385 = vpack.c.bf16 %v3375, %v3375
      %v3386 = vpack.c.bf16 %v3376, %v3376
      %v3388 = vsel %vm1623, %v3378, 0
      %v3391 = vsel %vm1627, %v3379, 0
      %v3394 = vsel %vm1627, %v3380, 0
      %v3397 = vsel %vm1627, %v3381, 0
      %v3400 = vsel %vm1627, %v3382, 0
      %v3403 = vsel %vm1627, %v3383, 0
      %v3406 = vsel %vm1627, %v3384, 0
      %v3409 = vsel %vm1627, %v3385, 0
      %v3412 = vsel %vm1627, %v3386, 0
      %3414 = vmatprep.subr.bf16.mxu0 %v3394
      %3415 = vmatpush1.bf16.msra.mxu0 %v3391
      %3416 = vmatprep.subr.bf16.mxu0 0
      %3417 = vmatpush1.bf16.msra.mxu0 0
      %3418 = vmatprep.subr.bf16.mxu0 0
      %3419 = vmatpush1.bf16.msra.mxu0 0
      %3420 = vmatprep.subr.bf16.mxu0 0
      %3421 = vmatpush1.bf16.msra.mxu0 0
      %3422 = vmatprep.subr.bf16.mxu0 0
      %3423 = vmatpush1.bf16.msra.mxu0 0
      %3424 = vmatprep.subr.bf16.mxu0 0
      %3425 = vmatpush1.bf16.msra.mxu0 0
      %3426 = vmatprep.subr.bf16.mxu0 0
      %3427 = vmatpush1.bf16.msra.mxu0 0
      %3428 = vmatprep.subr.bf16.mxu0 0
      %3429 = vmatpush1.bf16.msra.mxu0 0
      %3430 = vmatprep.subr.bf16.mxu0 0
      %3431 = vmatpush1.bf16.msra.mxu0 0
      %3432 = vmatprep.subr.bf16.mxu0 0
      %3433 = vmatpush1.bf16.msra.mxu0 0
      %3434 = vmatprep.subr.bf16.mxu0 0
      %3435 = vmatpush1.bf16.msra.mxu0 0
      %3436 = vmatprep.subr.bf16.mxu0 0
      %3437 = vmatpush1.bf16.msra.mxu0 0
      %3438 = vmatprep.subr.bf16.mxu0 0
      %3439 = vmatpush1.bf16.msra.mxu0 0
      %3440 = vmatprep.subr.bf16.mxu0 0
      %3441 = vmatpush1.bf16.msra.mxu0 0
      %3442 = vmatprep.subr.bf16.mxu0 0
      %3443 = vmatpush1.bf16.msra.mxu0 0
      %3444 = vmatprep.subr.bf16.mxu0 0
      %3445 = vmatpush1.bf16.msra.mxu0 0
      %3446 = vmatprep.mubr.bf16.mxu0 0
      %3447 = vmatmul.mubr.bf16.gmra.mrb[0].mxu0 %v3388
      %v3448 = vpop.f32.mrb[0].mxu0
      %v3449 = vadd.f32 0.0, %v3448
      %v3450 = vpop.f32.mrb[0].mxu0
      %v3451 = vadd.f32 0.0, %v3450
      %v3452 = vpop.f32.mrb[0].mxu0
      %v3453 = vpop.f32.mrb[0].mxu0
      %3454 = vdwg.mxu0
      %3455 = vmatprep.subr.bf16.mxu0 %v3400
      %3456 = vmatpush1.bf16.msra.mxu0 %v3397
      %3457 = vmatprep.subr.bf16.mxu0 0
      %3458 = vmatpush1.bf16.msra.mxu0 0
      %3459 = vmatprep.subr.bf16.mxu0 0
      %3460 = vmatpush1.bf16.msra.mxu0 0
      %3461 = vmatprep.subr.bf16.mxu0 0
      %3462 = vmatpush1.bf16.msra.mxu0 0
      %3463 = vmatprep.subr.bf16.mxu0 0
      %3464 = vmatpush1.bf16.msra.mxu0 0
      %3465 = vmatprep.subr.bf16.mxu0 0
      %3466 = vmatpush1.bf16.msra.mxu0 0
      %3467 = vmatprep.subr.bf16.mxu0 0
      %3468 = vmatpush1.bf16.msra.mxu0 0
      %3469 = vmatprep.subr.bf16.mxu0 0
      %3470 = vmatpush1.bf16.msra.mxu0 0
      %3471 = vmatprep.subr.bf16.mxu0 0
      %3472 = vmatpush1.bf16.msra.mxu0 0
      %3473 = vmatprep.subr.bf16.mxu0 0
      %3474 = vmatpush1.bf16.msra.mxu0 0
      %3475 = vmatprep.subr.bf16.mxu0 0
      %3476 = vmatpush1.bf16.msra.mxu0 0
      %3477 = vmatprep.subr.bf16.mxu0 0
      %3478 = vmatpush1.bf16.msra.mxu0 0
      %3479 = vmatprep.subr.bf16.mxu0 0
      %3480 = vmatpush1.bf16.msra.mxu0 0
      %3481 = vmatprep.subr.bf16.mxu0 0
      %3482 = vmatpush1.bf16.msra.mxu0 0
      %3483 = vmatprep.subr.bf16.mxu0 0
      %3484 = vmatpush1.bf16.msra.mxu0 0
      %3485 = vmatprep.subr.bf16.mxu0 0
      %3486 = vmatpush1.bf16.msra.mxu0 0
      %3487 = vmatprep.mubr.bf16.mxu0 0
      %3488 = vmatmul.mubr.bf16.gmra.mrb[0].mxu0 %v3388
      %v3489 = vpop.f32.mrb[0].mxu0
      %v3490 = vadd.f32 0.0, %v3489
      %v3491 = vpop.f32.mrb[0].mxu0
      %v3492 = vadd.f32 0.0, %v3491
      %v3493 = vpop.f32.mrb[0].mxu0
      %v3494 = vpop.f32.mrb[0].mxu0
      %3495 = vdwg.mxu0
      %3496 = vmatprep.subr.bf16.mxu0 %v3406
      %3497 = vmatpush1.bf16.msra.mxu0 %v3403
      %3498 = vmatprep.subr.bf16.mxu0 0
      %3499 = vmatpush1.bf16.msra.mxu0 0
      %3500 = vmatprep.subr.bf16.mxu0 0
      %3501 = vmatpush1.bf16.msra.mxu0 0
      %3502 = vmatprep.subr.bf16.mxu0 0
      %3503 = vmatpush1.bf16.msra.mxu0 0
      %3504 = vmatprep.subr.bf16.mxu0 0
      %3505 = vmatpush1.bf16.msra.mxu0 0
      %3506 = vmatprep.subr.bf16.mxu0 0
      %3507 = vmatpush1.bf16.msra.mxu0 0
      %3508 = vmatprep.subr.bf16.mxu0 0
      %3509 = vmatpush1.bf16.msra.mxu0 0
      %3510 = vmatprep.subr.bf16.mxu0 0
      %3511 = vmatpush1.bf16.msra.mxu0 0
      %3512 = vmatprep.subr.bf16.mxu0 0
      %3513 = vmatpush1.bf16.msra.mxu0 0
      %3514 = vmatprep.subr.bf16.mxu0 0
      %3515 = vmatpush1.bf16.msra.mxu0 0
      %3516 = vmatprep.subr.bf16.mxu0 0
      %3517 = vmatpush1.bf16.msra.mxu0 0
      %3518 = vmatprep.subr.bf16.mxu0 0
      %3519 = vmatpush1.bf16.msra.mxu0 0
      %3520 = vmatprep.subr.bf16.mxu0 0
      %3521 = vmatpush1.bf16.msra.mxu0 0
      %3522 = vmatprep.subr.bf16.mxu0 0
      %3523 = vmatpush1.bf16.msra.mxu0 0
      %3524 = vmatprep.subr.bf16.mxu0 0
      %3525 = vmatpush1.bf16.msra.mxu0 0
      %3526 = vmatprep.subr.bf16.mxu0 0
      %3527 = vmatpush1.bf16.msra.mxu0 0
      %3528 = vmatprep.mubr.bf16.mxu0 0
      %3529 = vmatmul.mubr.bf16.gmra.mrb[0].mxu0 %v3388
      %v3530 = vpop.f32.mrb[0].mxu0
      %v3531 = vadd.f32 0.0, %v3530
      %v3532 = vpop.f32.mrb[0].mxu0
      %v3533 = vadd.f32 0.0, %v3532
      %v3534 = vpop.f32.mrb[0].mxu0
      %v3535 = vpop.f32.mrb[0].mxu0
      %3536 = vdwg.mxu0
      %3537 = vmatprep.subr.bf16.mxu0 %v3412
      %3538 = vmatpush1.bf16.msra.mxu0 %v3409
      %3539 = vmatprep.subr.bf16.mxu0 0
      %3540 = vmatpush1.bf16.msra.mxu0 0
      %3541 = vmatprep.subr.bf16.mxu0 0
      %3542 = vmatpush1.bf16.msra.mxu0 0
      %3543 = vmatprep.subr.bf16.mxu0 0
      %3544 = vmatpush1.bf16.msra.mxu0 0
      %3545 = vmatprep.subr.bf16.mxu0 0
      %3546 = vmatpush1.bf16.msra.mxu0 0
      %3547 = vmatprep.subr.bf16.mxu0 0
      %3548 = vmatpush1.bf16.msra.mxu0 0
      %3549 = vmatprep.subr.bf16.mxu0 0
      %3550 = vmatpush1.bf16.msra.mxu0 0
      %3551 = vmatprep.subr.bf16.mxu0 0
      %3552 = vmatpush1.bf16.msra.mxu0 0
      %3553 = vmatprep.subr.bf16.mxu0 0
      %3554 = vmatpush1.bf16.msra.mxu0 0
      %3555 = vmatprep.subr.bf16.mxu0 0
      %3556 = vmatpush1.bf16.msra.mxu0 0
      %3557 = vmatprep.subr.bf16.mxu0 0
      %3558 = vmatpush1.bf16.msra.mxu0 0
      %3559 = vmatprep.subr.bf16.mxu0 0
      %3560 = vmatpush1.bf16.msra.mxu0 0
      %3561 = vmatprep.subr.bf16.mxu0 0
      %3562 = vmatpush1.bf16.msra.mxu0 0
      %3563 = vmatprep.subr.bf16.mxu0 0
      %3564 = vmatpush1.bf16.msra.mxu0 0
      %3565 = vmatprep.subr.bf16.mxu0 0
      %3566 = vmatpush1.bf16.msra.mxu0 0
      %3567 = vmatprep.subr.bf16.mxu0 0
      %3568 = vmatpush1.bf16.msra.mxu0 0
      %3569 = vmatprep.mubr.bf16.mxu0 0
      %3570 = vmatmul.mubr.bf16.gmra.mrb[0].mxu0 %v3388
      %v3571 = vpop.f32.mrb[0].mxu0
      %v3572 = vadd.f32 0.0, %v3571
      %v3573 = vpop.f32.mrb[0].mxu0
      %v3574 = vadd.f32 0.0, %v3573
      %v3575 = vpop.f32.mrb[0].mxu0
      %v3576 = vpop.f32.mrb[0].mxu0
      %3577 = vdwg.mxu0
      %v3578 = vadd.f32 %v3304, %v3449
      %v3579 = vadd.f32 %v3305, %v3451
      %v3580 = vadd.f32 %v3306, %v3490
      %v3581 = vadd.f32 %v3307, %v3492
      %v3582 = vadd.f32 %v3308, %v3531
      %v3583 = vadd.f32 %v3309, %v3533
      %v3584 = vadd.f32 %v3310, %v3572
      %v3585 = vadd.f32 %v3311, %v3574
      %3586 = vrot.lane.b32.xlu0 %v1343, 95
      %v3587 = vpop.permute.xlu0 %3586
      %3588 = vrot.lane.b32.xlu0 %v1345, 95
      %v3589 = vpop.permute.xlu0 %3588
      %3590 = vrot.lane.b32.xlu0 %v1384, 95
      %v3591 = vpop.permute.xlu0 %3590
      %3592 = vrot.lane.b32.xlu0 %v1386, 95
      %v3593 = vpop.permute.xlu0 %3592
      %3594 = vrot.lane.b32.xlu0 %v1425, 95
      %v3595 = vpop.permute.xlu0 %3594
      %3596 = vrot.lane.b32.xlu0 %v1427, 95
      %v3597 = vpop.permute.xlu0 %3596
      %3598 = vrot.lane.b32.xlu0 %v1466, 95
      %v3599 = vpop.permute.xlu0 %3598
      %3600 = vrot.lane.b32.xlu0 %v1468, 95
      %v3601 = vpop.permute.xlu0 %3600
      %vm3602 = vcmp.lt.s32.totalorder %v1489, 95
      %v3603 = vsel %vm3602, %v3599, %v3601
      %v3604 = vsel %vm3602, %v3597, %v3599
      %v3605 = vsel %vm3602, %v3595, %v3597
      %v3606 = vsel %vm3602, %v3593, %v3595
      %v3607 = vsel %vm3602, %v3591, %v3593
      %v3608 = vsel %vm3602, %v3589, %v3591
      %v3609 = vsel %vm3602, %v3587, %v3589
      %v3610 = vsel %vm3602, %v3601, %v3587
      %v3611 = vlaneseq
      %v3612 = vshrl.u32 %v3611, 7
      %v3613 = vsub.s32 0, %v3612
      %v3614 = vrot.slane %v524, %v3613
      %v3615 = vlaneseq
      %v3616 = vshrl.u32 %v3615, 7
      %v3617 = vsub.s32 0, %v3616
      %v3618 = vrot.slane %v525, %v3617
      %v3619 = vlaneseq
      %v3620 = vshrl.u32 %v3619, 7
      %v3621 = vsub.s32 0, %v3620
      %v3622 = vrot.slane %v526, %v3621
      %v3623 = vlaneseq
      %v3624 = vshrl.u32 %v3623, 7
      %v3625 = vsub.s32 0, %v3624
      %v3626 = vrot.slane %v527, %v3625
      %v3627 = vlaneseq
      %v3628 = vshrl.u32 %v3627, 7
      %v3629 = vsub.s32 0, %v3628
      %v3630 = vrot.slane %v528, %v3629
      %v3631 = vlaneseq
      %v3632 = vshrl.u32 %v3631, 7
      %v3633 = vsub.s32 0, %v3632
      %v3634 = vrot.slane %v529, %v3633
      %v3635 = vlaneseq
      %v3636 = vshrl.u32 %v3635, 7
      %v3637 = vsub.s32 0, %v3636
      %v3638 = vrot.slane %v530, %v3637
      %v3639 = vlaneseq
      %v3640 = vshrl.u32 %v3639, 7
      %v3641 = vsub.s32 0, %v3640
      %v3642 = vrot.slane %v531, %v3641
      %v3643 = vmul.f32 %v3609, %v3614
      %v3644 = vmul.f32 %v3608, %v3618
      %v3645 = vmul.f32 %v3607, %v3622
      %v3646 = vmul.f32 %v3606, %v3626
      %v3647 = vmul.f32 %v3605, %v3630
      %v3648 = vmul.f32 %v3604, %v3634
      %v3649 = vmul.f32 %v3603, %v3638
      %v3650 = vmul.f32 %v3610, %v3642
      %s3651 = scalar_lea.vmem %s4, 32
      %v3652 = vld [vmem:[%s3651] sm:$0xf]
      %v3653 = vpack.c.bf16 %v3643, %v3643
      %v3654 = vpack.c.bf16 %v3644, %v3644
      %v3655 = vpack.c.bf16 %v3645, %v3645
      %v3656 = vpack.c.bf16 %v3646, %v3646
      %v3657 = vpack.c.bf16 %v3647, %v3647
      %v3658 = vpack.c.bf16 %v3648, %v3648
      %v3659 = vpack.c.bf16 %v3649, %v3649
      %v3660 = vpack.c.bf16 %v3650, %v3650
      %v3662 = vsel %vm1623, %v3652, 0
      %v3665 = vsel %vm1627, %v3653, 0
      %v3668 = vsel %vm1627, %v3654, 0
      %v3671 = vsel %vm1627, %v3655, 0
      %v3674 = vsel %vm1627, %v3656, 0
      %v3677 = vsel %vm1627, %v3657, 0
      %v3680 = vsel %vm1627, %v3658, 0
      %v3683 = vsel %vm1627, %v3659, 0
      %v3686 = vsel %vm1627, %v3660, 0
      %3688 = vmatprep.subr.bf16.mxu0 %v3668
      %3689 = vmatpush1.bf16.msra.mxu0 %v3665
      %3690 = vmatprep.subr.bf16.mxu0 0
      %3691 = vmatpush1.bf16.msra.mxu0 0
      %3692 = vmatprep.subr.bf16.mxu0 0
      %3693 = vmatpush1.bf16.msra.mxu0 0
      %3694 = vmatprep.subr.bf16.mxu0 0
      %3695 = vmatpush1.bf16.msra.mxu0 0
      %3696 = vmatprep.subr.bf16.mxu0 0
      %3697 = vmatpush1.bf16.msra.mxu0 0
      %3698 = vmatprep.subr.bf16.mxu0 0
      %3699 = vmatpush1.bf16.msra.mxu0 0
      %3700 = vmatprep.subr.bf16.mxu0 0
      %3701 = vmatpush1.bf16.msra.mxu0 0
      %3702 = vmatprep.subr.bf16.mxu0 0
      %3703 = vmatpush1.bf16.msra.mxu0 0
      %3704 = vmatprep.subr.bf16.mxu0 0
      %3705 = vmatpush1.bf16.msra.mxu0 0
      %3706 = vmatprep.subr.bf16.mxu0 0
      %3707 = vmatpush1.bf16.msra.mxu0 0
      %3708 = vmatprep.subr.bf16.mxu0 0
      %3709 = vmatpush1.bf16.msra.mxu0 0
      %3710 = vmatprep.subr.bf16.mxu0 0
      %3711 = vmatpush1.bf16.msra.mxu0 0
      %3712 = vmatprep.subr.bf16.mxu0 0
      %3713 = vmatpush1.bf16.msra.mxu0 0
      %3714 = vmatprep.subr.bf16.mxu0 0
      %3715 = vmatpush1.bf16.msra.mxu0 0
      %3716 = vmatprep.subr.bf16.mxu0 0
      %3717 = vmatpush1.bf16.msra.mxu0 0
      %3718 = vmatprep.subr.bf16.mxu0 0
      %3719 = vmatpush1.bf16.msra.mxu0 0
      %3720 = vmatprep.mubr.bf16.mxu0 0
      %3721 = vmatmul.mubr.bf16.gmra.mrb[0].mxu0 %v3662
      %v3722 = vpop.f32.mrb[0].mxu0
      %v3723 = vadd.f32 0.0, %v3722
      %v3724 = vpop.f32.mrb[0].mxu0
      %v3725 = vadd.f32 0.0, %v3724
      %v3726 = vpop.f32.mrb[0].mxu0
      %v3727 = vpop.f32.mrb[0].mxu0
      %3728 = vdwg.mxu0
      %3729 = vmatprep.subr.bf16.mxu0 %v3674
      %3730 = vmatpush1.bf16.msra.mxu0 %v3671
      %3731 = vmatprep.subr.bf16.mxu0 0
      %3732 = vmatpush1.bf16.msra.mxu0 0
      %3733 = vmatprep.subr.bf16.mxu0 0
      %3734 = vmatpush1.bf16.msra.mxu0 0
      %3735 = vmatprep.subr.bf16.mxu0 0
      %3736 = vmatpush1.bf16.msra.mxu0 0
      %3737 = vmatprep.subr.bf16.mxu0 0
      %3738 = vmatpush1.bf16.msra.mxu0 0
      %3739 = vmatprep.subr.bf16.mxu0 0
      %3740 = vmatpush1.bf16.msra.mxu0 0
      %3741 = vmatprep.subr.bf16.mxu0 0
      %3742 = vmatpush1.bf16.msra.mxu0 0
      %3743 = vmatprep.subr.bf16.mxu0 0
      %3744 = vmatpush1.bf16.msra.mxu0 0
      %3745 = vmatprep.subr.bf16.mxu0 0
      %3746 = vmatpush1.bf16.msra.mxu0 0
      %3747 = vmatprep.subr.bf16.mxu0 0
      %3748 = vmatpush1.bf16.msra.mxu0 0
      %3749 = vmatprep.subr.bf16.mxu0 0
      %3750 = vmatpush1.bf16.msra.mxu0 0
      %3751 = vmatprep.subr.bf16.mxu0 0
      %3752 = vmatpush1.bf16.msra.mxu0 0
      %3753 = vmatprep.subr.bf16.mxu0 0
      %3754 = vmatpush1.bf16.msra.mxu0 0
      %3755 = vmatprep.subr.bf16.mxu0 0
      %3756 = vmatpush1.bf16.msra.mxu0 0
      %3757 = vmatprep.subr.bf16.mxu0 0
      %3758 = vmatpush1.bf16.msra.mxu0 0
      %3759 = vmatprep.subr.bf16.mxu0 0
      %3760 = vmatpush1.bf16.msra.mxu0 0
      %3761 = vmatprep.mubr.bf16.mxu0 0
      %3762 = vmatmul.mubr.bf16.gmra.mrb[0].mxu0 %v3662
      %v3763 = vpop.f32.mrb[0].mxu0
      %v3764 = vadd.f32 0.0, %v3763
      %v3765 = vpop.f32.mrb[0].mxu0
      %v3766 = vadd.f32 0.0, %v3765
      %v3767 = vpop.f32.mrb[0].mxu0
      %v3768 = vpop.f32.mrb[0].mxu0
      %3769 = vdwg.mxu0
      %3770 = vmatprep.subr.bf16.mxu0 %v3680
      %3771 = vmatpush1.bf16.msra.mxu0 %v3677
      %3772 = vmatprep.subr.bf16.mxu0 0
      %3773 = vmatpush1.bf16.msra.mxu0 0
      %3774 = vmatprep.subr.bf16.mxu0 0
      %3775 = vmatpush1.bf16.msra.mxu0 0
      %3776 = vmatprep.subr.bf16.mxu0 0
      %3777 = vmatpush1.bf16.msra.mxu0 0
      %3778 = vmatprep.subr.bf16.mxu0 0
      %3779 = vmatpush1.bf16.msra.mxu0 0
      %3780 = vmatprep.subr.bf16.mxu0 0
      %3781 = vmatpush1.bf16.msra.mxu0 0
      %3782 = vmatprep.subr.bf16.mxu0 0
      %3783 = vmatpush1.bf16.msra.mxu0 0
      %3784 = vmatprep.subr.bf16.mxu0 0
      %3785 = vmatpush1.bf16.msra.mxu0 0
      %3786 = vmatprep.subr.bf16.mxu0 0
      %3787 = vmatpush1.bf16.msra.mxu0 0
      %3788 = vmatprep.subr.bf16.mxu0 0
      %3789 = vmatpush1.bf16.msra.mxu0 0
      %3790 = vmatprep.subr.bf16.mxu0 0
      %3791 = vmatpush1.bf16.msra.mxu0 0
      %3792 = vmatprep.subr.bf16.mxu0 0
      %3793 = vmatpush1.bf16.msra.mxu0 0
      %3794 = vmatprep.subr.bf16.mxu0 0
      %3795 = vmatpush1.bf16.msra.mxu0 0
      %3796 = vmatprep.subr.bf16.mxu0 0
      %3797 = vmatpush1.bf16.msra.mxu0 0
      %3798 = vmatprep.subr.bf16.mxu0 0
      %3799 = vmatpush1.bf16.msra.mxu0 0
      %3800 = vmatprep.subr.bf16.mxu0 0
      %3801 = vmatpush1.bf16.msra.mxu0 0
      %3802 = vmatprep.mubr.bf16.mxu0 0
      %3803 = vmatmul.mubr.bf16.gmra.mrb[0].mxu0 %v3662
      %v3804 = vpop.f32.mrb[0].mxu0
      %v3805 = vadd.f32 0.0, %v3804
      %v3806 = vpop.f32.mrb[0].mxu0
      %v3807 = vadd.f32 0.0, %v3806
      %v3808 = vpop.f32.mrb[0].mxu0
      %v3809 = vpop.f32.mrb[0].mxu0
      %3810 = vdwg.mxu0
      %3811 = vmatprep.subr.bf16.mxu0 %v3686
      %3812 = vmatpush1.bf16.msra.mxu0 %v3683
      %3813 = vmatprep.subr.bf16.mxu0 0
      %3814 = vmatpush1.bf16.msra.mxu0 0
      %3815 = vmatprep.subr.bf16.mxu0 0
      %3816 = vmatpush1.bf16.msra.mxu0 0
      %3817 = vmatprep.subr.bf16.mxu0 0
      %3818 = vmatpush1.bf16.msra.mxu0 0
      %3819 = vmatprep.subr.bf16.mxu0 0
      %3820 = vmatpush1.bf16.msra.mxu0 0
      %3821 = vmatprep.subr.bf16.mxu0 0
      %3822 = vmatpush1.bf16.msra.mxu0 0
      %3823 = vmatprep.subr.bf16.mxu0 0
      %3824 = vmatpush1.bf16.msra.mxu0 0
      %3825 = vmatprep.subr.bf16.mxu0 0
      %3826 = vmatpush1.bf16.msra.mxu0 0
      %3827 = vmatprep.subr.bf16.mxu0 0
      %3828 = vmatpush1.bf16.msra.mxu0 0
      %3829 = vmatprep.subr.bf16.mxu0 0
      %3830 = vmatpush1.bf16.msra.mxu0 0
      %3831 = vmatprep.subr.bf16.mxu0 0
      %3832 = vmatpush1.bf16.msra.mxu0 0
      %3833 = vmatprep.subr.bf16.mxu0 0
      %3834 = vmatpush1.bf16.msra.mxu0 0
      %3835 = vmatprep.subr.bf16.mxu0 0
      %3836 = vmatpush1.bf16.msra.mxu0 0
      %3837 = vmatprep.subr.bf16.mxu0 0
      %3838 = vmatpush1.bf16.msra.mxu0 0
      %3839 = vmatprep.subr.bf16.mxu0 0
      %3840 = vmatpush1.bf16.msra.mxu0 0
      %3841 = vmatprep.subr.bf16.mxu0 0
      %3842 = vmatpush1.bf16.msra.mxu0 0
      %3843 = vmatprep.mubr.bf16.mxu0 0
      %3844 = vmatmul.mubr.bf16.gmra.mrb[0].mxu0 %v3662
      %v3845 = vpop.f32.mrb[0].mxu0
      %v3846 = vadd.f32 0.0, %v3845
      %v3847 = vpop.f32.mrb[0].mxu0
      %v3848 = vadd.f32 0.0, %v3847
      %v3849 = vpop.f32.mrb[0].mxu0
      %v3850 = vpop.f32.mrb[0].mxu0
      %3851 = vdwg.mxu0
      %v3852 = vadd.f32 %v3578, %v3723
      %v3853 = vadd.f32 %v3579, %v3725
      %v3854 = vadd.f32 %v3580, %v3764
      %v3855 = vadd.f32 %v3581, %v3766
      %v3856 = vadd.f32 %v3582, %v3805
      %v3857 = vadd.f32 %v3583, %v3807
      %v3858 = vadd.f32 %v3584, %v3846
      %v3859 = vadd.f32 %v3585, %v3848
      %v3860 = vld [vmem:[%s5] sm:$0xff]
      %3862 = vset.pattern.permute.xlu0 0
      %3863 = vperm.xlu0 %3862, %v3860
      %v3864 = vpop.permute.xlu0 %3863
      %v3866 = vadd.f32 %v3852, %v3864
      %v3867 = vadd.f32 %v3853, %v3864
      %v3868 = vadd.f32 %v3854, %v3864
      %v3869 = vadd.f32 %v3855, %v3864
      %v3870 = vadd.f32 %v3856, %v3864
      %v3871 = vadd.f32 %v3857, %v3864
      %v3872 = vadd.f32 %v3858, %v3864
      %v3873 = vadd.f32 %v3859, %v3864
      %vm3874 = vcmp.ge.f32.partialorder %v3866, 0.0
      %vm3875 = vcmp.ge.f32.partialorder %v3867, 0.0
      %vm3876 = vcmp.ge.f32.partialorder %v3868, 0.0
      %vm3877 = vcmp.ge.f32.partialorder %v3869, 0.0
      %vm3878 = vcmp.ge.f32.partialorder %v3870, 0.0
      %vm3879 = vcmp.ge.f32.partialorder %v3871, 0.0
      %vm3880 = vcmp.ge.f32.partialorder %v3872, 0.0
      %vm3881 = vcmp.ge.f32.partialorder %v3873, 0.0
      %v3882 = vld [vmem:[%s6] sm:$0xff]
      %3884 = vset.pattern.permute.xlu0 0
      %3885 = vperm.xlu0 %3884, %v3882
      %v3886 = vpop.permute.xlu0 %3885
      %v3888 = vmul.f32 %v3866, %v3886
      %v3889 = vmul.f32 %v3867, %v3886
      %v3890 = vmul.f32 %v3868, %v3886
      %v3891 = vmul.f32 %v3869, %v3886
      %v3892 = vmul.f32 %v3870, %v3886
      %v3893 = vmul.f32 %v3871, %v3886
      %v3894 = vmul.f32 %v3872, %v3886
      %v3895 = vmul.f32 %v3873, %v3886
      %v3896 = vsel %vm3874, %v3866, %v3888
      %v3897 = vsel %vm3875, %v3867, %v3889
      %v3898 = vsel %vm3876, %v3868, %v3890
      %v3899 = vsel %vm3877, %v3869, %v3891
      %v3900 = vsel %vm3878, %v3870, %v3892
      %v3901 = vsel %vm3879, %v3871, %v3893
      %v3902 = vsel %vm3880, %v3872, %v3894
      %v3903 = vsel %vm3881, %v3873, %v3895
      %v3904 = vld [vmem:[%s509] sm:$0xff]
      %v3905 = vld [vmem:[%s509 + $0x8] sm:$0xff]
      %v3906 = vld [vmem:[%s509 + $0x10] sm:$0xff]
      %v3907 = vld [vmem:[%s509 + $0x18] sm:$0xff]
      %v3908 = vunpack.c.l.bf16 %v3904
      %v3909 = vunpack.c.h.bf16 %v3904
      %v3910 = vunpack.c.l.bf16 %v3905
      %v3911 = vunpack.c.h.bf16 %v3905
      %v3912 = vunpack.c.l.bf16 %v3906
      %v3913 = vunpack.c.h.bf16 %v3906
      %v3914 = vunpack.c.l.bf16 %v3907
      %v3915 = vunpack.c.h.bf16 %v3907
      %3916 = vrot.lane.b32.xlu0 %v3896, 33
      %v3917 = vpop.permute.xlu0 %3916
      %3918 = vrot.lane.b32.xlu0 %v3897, 33
      %v3919 = vpop.permute.xlu0 %3918
      %3920 = vrot.lane.b32.xlu0 %v3898, 33
      %v3921 = vpop.permute.xlu0 %3920
      %3922 = vrot.lane.b32.xlu0 %v3899, 33
      %v3923 = vpop.permute.xlu0 %3922
      %3924 = vrot.lane.b32.xlu0 %v3900, 33
      %v3925 = vpop.permute.xlu0 %3924
      %3926 = vrot.lane.b32.xlu0 %v3901, 33
      %v3927 = vpop.permute.xlu0 %3926
      %3928 = vrot.lane.b32.xlu0 %v3902, 33
      %v3929 = vpop.permute.xlu0 %3928
      %3930 = vrot.lane.b32.xlu0 %v3903, 33
      %v3931 = vpop.permute.xlu0 %3930
      %v3932 = vsel %vm1490, %v3929, %v3931
      %v3933 = vsel %vm1490, %v3927, %v3929
      %v3934 = vsel %vm1490, %v3925, %v3927
      %v3935 = vsel %vm1490, %v3923, %v3925
      %v3936 = vsel %vm1490, %v3921, %v3923
      %v3937 = vsel %vm1490, %v3919, %v3921
      %v3938 = vsel %vm1490, %v3917, %v3919
      %v3939 = vsel %vm1490, %v3931, %v3917
      %v3940 = vmul.f32 %v3939, %v1502
      %v3941 = vmul.f32 %v3938, %v1506
      %v3942 = vmul.f32 %v3937, %v1510
      %v3943 = vmul.f32 %v3936, %v1514
      %v3944 = vmul.f32 %v3935, %v1518
      %v3945 = vmul.f32 %v3934, %v1522
      %v3946 = vmul.f32 %v3933, %v1526
      %v3947 = vmul.f32 %v3932, %v1530
      %v3948 = vld [vmem:[%s7] sm:$0xf]
      %v3949 = vpack.c.bf16 %v3940, %v3940
      %v3950 = vpack.c.bf16 %v3941, %v3941
      %v3951 = vpack.c.bf16 %v3942, %v3942
      %v3952 = vpack.c.bf16 %v3943, %v3943
      %v3953 = vpack.c.bf16 %v3944, %v3944
      %v3954 = vpack.c.bf16 %v3945, %v3945
      %v3955 = vpack.c.bf16 %v3946, %v3946
      %v3956 = vpack.c.bf16 %v3947, %v3947
      %3957 = vrot.lane.b32.xlu0 %v3896, 32
      %v3958 = vpop.permute.xlu0 %3957
      %3959 = vrot.lane.b32.xlu0 %v3897, 32
      %v3960 = vpop.permute.xlu0 %3959
      %3961 = vrot.lane.b32.xlu0 %v3898, 32
      %v3962 = vpop.permute.xlu0 %3961
      %3963 = vrot.lane.b32.xlu0 %v3899, 32
      %v3964 = vpop.permute.xlu0 %3963
      %3965 = vrot.lane.b32.xlu0 %v3900, 32
      %v3966 = vpop.permute.xlu0 %3965
      %3967 = vrot.lane.b32.xlu0 %v3901, 32
      %v3968 = vpop.permute.xlu0 %3967
      %3969 = vrot.lane.b32.xlu0 %v3902, 32
      %v3970 = vpop.permute.xlu0 %3969
      %3971 = vrot.lane.b32.xlu0 %v3903, 32
      %v3972 = vpop.permute.xlu0 %3971
      %v3973 = vsel %vm1564, %v3970, %v3972
      %v3974 = vsel %vm1564, %v3968, %v3970
      %v3975 = vsel %vm1564, %v3966, %v3968
      %v3976 = vsel %vm1564, %v3964, %v3966
      %v3977 = vsel %vm1564, %v3962, %v3964
      %v3978 = vsel %vm1564, %v3960, %v3962
      %v3979 = vsel %vm1564, %v3958, %v3960
      %v3980 = vsel %vm1564, %v3972, %v3958
      %v3981 = vmul.f32 %v3980, %v1576
      %v3982 = vmul.f32 %v3979, %v1580
      %v3983 = vmul.f32 %v3978, %v1584
      %v3984 = vmul.f32 %v3977, %v1588
      %v3985 = vmul.f32 %v3976, %v1592
      %v3986 = vmul.f32 %v3975, %v1596
      %v3987 = vmul.f32 %v3974, %v1600
      %v3988 = vmul.f32 %v3973, %v1604
      %s3989 = scalar_lea.vmem %s7, 4
      %v3990 = vld [vmem:[%s3989] sm:$0xf]
      %v3991 = vpack.c.bf16 %v3981, %v3981
      %v3992 = vpack.c.bf16 %v3982, %v3982
      %v3993 = vpack.c.bf16 %v3983, %v3983
      %v3994 = vpack.c.bf16 %v3984, %v3984
      %v3995 = vpack.c.bf16 %v3985, %v3985
      %v3996 = vpack.c.bf16 %v3986, %v3986
      %v3997 = vpack.c.bf16 %v3987, %v3987
      %v3998 = vpack.c.bf16 %v3988, %v3988
      %v4000 = vsel %vm1623, %v3990, 0
      %v4003 = vsel %vm1627, %v3991, 0
      %v4006 = vsel %vm1627, %v3992, 0
      %v4009 = vsel %vm1627, %v3993, 0
      %v4012 = vsel %vm1627, %v3994, 0
      %v4015 = vsel %vm1627, %v3995, 0
      %v4018 = vsel %vm1627, %v3996, 0
      %v4021 = vsel %vm1627, %v3997, 0
      %v4024 = vsel %vm1627, %v3998, 0
      %4026 = vmatprep.subr.bf16.mxu0 %v4006
      %4027 = vmatpush1.bf16.msra.mxu0 %v4003
      %4028 = vmatprep.subr.bf16.mxu0 0
      %4029 = vmatpush1.bf16.msra.mxu0 0
      %4030 = vmatprep.subr.bf16.mxu0 0
      %4031 = vmatpush1.bf16.msra.mxu0 0
      %4032 = vmatprep.subr.bf16.mxu0 0
      %4033 = vmatpush1.bf16.msra.mxu0 0
      %4034 = vmatprep.subr.bf16.mxu0 0
      %4035 = vmatpush1.bf16.msra.mxu0 0
      %4036 = vmatprep.subr.bf16.mxu0 0
      %4037 = vmatpush1.bf16.msra.mxu0 0
      %4038 = vmatprep.subr.bf16.mxu0 0
      %4039 = vmatpush1.bf16.msra.mxu0 0
      %4040 = vmatprep.subr.bf16.mxu0 0
      %4041 = vmatpush1.bf16.msra.mxu0 0
      %4042 = vmatprep.subr.bf16.mxu0 0
      %4043 = vmatpush1.bf16.msra.mxu0 0
      %4044 = vmatprep.subr.bf16.mxu0 0
      %4045 = vmatpush1.bf16.msra.mxu0 0
      %4046 = vmatprep.subr.bf16.mxu0 0
      %4047 = vmatpush1.bf16.msra.mxu0 0
      %4048 = vmatprep.subr.bf16.mxu0 0
      %4049 = vmatpush1.bf16.msra.mxu0 0
      %4050 = vmatprep.subr.bf16.mxu0 0
      %4051 = vmatpush1.bf16.msra.mxu0 0
      %4052 = vmatprep.subr.bf16.mxu0 0
      %4053 = vmatpush1.bf16.msra.mxu0 0
      %4054 = vmatprep.subr.bf16.mxu0 0
      %4055 = vmatpush1.bf16.msra.mxu0 0
      %4056 = vmatprep.subr.bf16.mxu0 0
      %4057 = vmatpush1.bf16.msra.mxu0 0
      %4058 = vmatprep.mubr.bf16.mxu0 0
      %4059 = vmatmul.mubr.bf16.gmra.mrb[0].mxu0 %v4000
      %v4060 = vpop.f32.mrb[0].mxu0
      %v4061 = vadd.f32 0.0, %v4060
      %v4062 = vpop.f32.mrb[0].mxu0
      %v4063 = vadd.f32 0.0, %v4062
      %v4064 = vpop.f32.mrb[0].mxu0
      %v4065 = vpop.f32.mrb[0].mxu0
      %4066 = vdwg.mxu0
      %4067 = vmatprep.subr.bf16.mxu0 %v4012
      %4068 = vmatpush1.bf16.msra.mxu0 %v4009
      %4069 = vmatprep.subr.bf16.mxu0 0
      %4070 = vmatpush1.bf16.msra.mxu0 0
      %4071 = vmatprep.subr.bf16.mxu0 0
      %4072 = vmatpush1.bf16.msra.mxu0 0
      %4073 = vmatprep.subr.bf16.mxu0 0
      %4074 = vmatpush1.bf16.msra.mxu0 0
      %4075 = vmatprep.subr.bf16.mxu0 0
      %4076 = vmatpush1.bf16.msra.mxu0 0
      %4077 = vmatprep.subr.bf16.mxu0 0
      %4078 = vmatpush1.bf16.msra.mxu0 0
      %4079 = vmatprep.subr.bf16.mxu0 0
      %4080 = vmatpush1.bf16.msra.mxu0 0
      %4081 = vmatprep.subr.bf16.mxu0 0
      %4082 = vmatpush1.bf16.msra.mxu0 0
      %4083 = vmatprep.subr.bf16.mxu0 0
      %4084 = vmatpush1.bf16.msra.mxu0 0
      %4085 = vmatprep.subr.bf16.mxu0 0
      %4086 = vmatpush1.bf16.msra.mxu0 0
      %4087 = vmatprep.subr.bf16.mxu0 0
      %4088 = vmatpush1.bf16.msra.mxu0 0
      %4089 = vmatprep.subr.bf16.mxu0 0
      %4090 = vmatpush1.bf16.msra.mxu0 0
      %4091 = vmatprep.subr.bf16.mxu0 0
      %4092 = vmatpush1.bf16.msra.mxu0 0
      %4093 = vmatprep.subr.bf16.mxu0 0
      %4094 = vmatpush1.bf16.msra.mxu0 0
      %4095 = vmatprep.subr.bf16.mxu0 0
      %4096 = vmatpush1.bf16.msra.mxu0 0
      %4097 = vmatprep.subr.bf16.mxu0 0
      %4098 = vmatpush1.bf16.msra.mxu0 0
      %4099 = vmatprep.mubr.bf16.mxu0 0
      %4100 = vmatmul.mubr.bf16.gmra.mrb[0].mxu0 %v4000
      %v4101 = vpop.f32.mrb[0].mxu0
      %v4102 = vadd.f32 0.0, %v4101
      %v4103 = vpop.f32.mrb[0].mxu0
      %v4104 = vadd.f32 0.0, %v4103
      %v4105 = vpop.f32.mrb[0].mxu0
      %v4106 = vpop.f32.mrb[0].mxu0
      %4107 = vdwg.mxu0
      %4108 = vmatprep.subr.bf16.mxu0 %v4018
      %4109 = vmatpush1.bf16.msra.mxu0 %v4015
      %4110 = vmatprep.subr.bf16.mxu0 0
      %4111 = vmatpush1.bf16.msra.mxu0 0
      %4112 = vmatprep.subr.bf16.mxu0 0
      %4113 = vmatpush1.bf16.msra.mxu0 0
      %4114 = vmatprep.subr.bf16.mxu0 0
      %4115 = vmatpush1.bf16.msra.mxu0 0
      %4116 = vmatprep.subr.bf16.mxu0 0
      %4117 = vmatpush1.bf16.msra.mxu0 0
      %4118 = vmatprep.subr.bf16.mxu0 0
      %4119 = vmatpush1.bf16.msra.mxu0 0
      %4120 = vmatprep.subr.bf16.mxu0 0
      %4121 = vmatpush1.bf16.msra.mxu0 0
      %4122 = vmatprep.subr.bf16.mxu0 0
      %4123 = vmatpush1.bf16.msra.mxu0 0
      %4124 = vmatprep.subr.bf16.mxu0 0
      %4125 = vmatpush1.bf16.msra.mxu0 0
      %4126 = vmatprep.subr.bf16.mxu0 0
      %4127 = vmatpush1.bf16.msra.mxu0 0
      %4128 = vmatprep.subr.bf16.mxu0 0
      %4129 = vmatpush1.bf16.msra.mxu0 0
      %4130 = vmatprep.subr.bf16.mxu0 0
      %4131 = vmatpush1.bf16.msra.mxu0 0
      %4132 = vmatprep.subr.bf16.mxu0 0
      %4133 = vmatpush1.bf16.msra.mxu0 0
      %4134 = vmatprep.subr.bf16.mxu0 0
      %4135 = vmatpush1.bf16.msra.mxu0 0
      %4136 = vmatprep.subr.bf16.mxu0 0
      %4137 = vmatpush1.bf16.msra.mxu0 0
      %4138 = vmatprep.subr.bf16.mxu0 0
      %4139 = vmatpush1.bf16.msra.mxu0 0
      %4140 = vmatprep.mubr.bf16.mxu0 0
      %4141 = vmatmul.mubr.bf16.gmra.mrb[0].mxu0 %v4000
      %v4142 = vpop.f32.mrb[0].mxu0
      %v4143 = vadd.f32 0.0, %v4142
      %v4144 = vpop.f32.mrb[0].mxu0
      %v4145 = vadd.f32 0.0, %v4144
      %v4146 = vpop.f32.mrb[0].mxu0
      %v4147 = vpop.f32.mrb[0].mxu0
      %4148 = vdwg.mxu0
      %4149 = vmatprep.subr.bf16.mxu0 %v4024
      %4150 = vmatpush1.bf16.msra.mxu0 %v4021
      %4151 = vmatprep.subr.bf16.mxu0 0
      %4152 = vmatpush1.bf16.msra.mxu0 0
      %4153 = vmatprep.subr.bf16.mxu0 0
      %4154 = vmatpush1.bf16.msra.mxu0 0
      %4155 = vmatprep.subr.bf16.mxu0 0
      %4156 = vmatpush1.bf16.msra.mxu0 0
      %4157 = vmatprep.subr.bf16.mxu0 0
      %4158 = vmatpush1.bf16.msra.mxu0 0
      %4159 = vmatprep.subr.bf16.mxu0 0
      %4160 = vmatpush1.bf16.msra.mxu0 0
      %4161 = vmatprep.subr.bf16.mxu0 0
      %4162 = vmatpush1.bf16.msra.mxu0 0
      %4163 = vmatprep.subr.bf16.mxu0 0
      %4164 = vmatpush1.bf16.msra.mxu0 0
      %4165 = vmatprep.subr.bf16.mxu0 0
      %4166 = vmatpush1.bf16.msra.mxu0 0
      %4167 = vmatprep.subr.bf16.mxu0 0
      %4168 = vmatpush1.bf16.msra.mxu0 0
      %4169 = vmatprep.subr.bf16.mxu0 0
      %4170 = vmatpush1.bf16.msra.mxu0 0
      %4171 = vmatprep.subr.bf16.mxu0 0
      %4172 = vmatpush1.bf16.msra.mxu0 0
      %4173 = vmatprep.subr.bf16.mxu0 0
      %4174 = vmatpush1.bf16.msra.mxu0 0
      %4175 = vmatprep.subr.bf16.mxu0 0
      %4176 = vmatpush1.bf16.msra.mxu0 0
      %4177 = vmatprep.subr.bf16.mxu0 0
      %4178 = vmatpush1.bf16.msra.mxu0 0
      %4179 = vmatprep.subr.bf16.mxu0 0
      %4180 = vmatpush1.bf16.msra.mxu0 0
      %4181 = vmatprep.mubr.bf16.mxu0 0
      %4182 = vmatmul.mubr.bf16.gmra.mrb[0].mxu0 %v4000
      %v4183 = vpop.f32.mrb[0].mxu0
      %v4184 = vadd.f32 0.0, %v4183
      %v4185 = vpop.f32.mrb[0].mxu0
      %v4186 = vadd.f32 0.0, %v4185
      %v4187 = vpop.f32.mrb[0].mxu0
      %v4188 = vpop.f32.mrb[0].mxu0
      %4189 = vdwg.mxu0
      %v4191 = vsel %vm1623, %v3948, 0
      %v4194 = vsel %vm1627, %v3949, 0
      %v4197 = vsel %vm1627, %v3950, 0
      %v4200 = vsel %vm1627, %v3951, 0
      %v4203 = vsel %vm1627, %v3952, 0
      %v4206 = vsel %vm1627, %v3953, 0
      %v4209 = vsel %vm1627, %v3954, 0
      %v4212 = vsel %vm1627, %v3955, 0
      %v4215 = vsel %vm1627, %v3956, 0
      %4217 = vmatprep.subr.bf16.mxu0 %v4197
      %4218 = vmatpush1.bf16.msra.mxu0 %v4194
      %4219 = vmatprep.subr.bf16.mxu0 0
      %4220 = vmatpush1.bf16.msra.mxu0 0
      %4221 = vmatprep.subr.bf16.mxu0 0
      %4222 = vmatpush1.bf16.msra.mxu0 0
      %4223 = vmatprep.subr.bf16.mxu0 0
      %4224 = vmatpush1.bf16.msra.mxu0 0
      %4225 = vmatprep.subr.bf16.mxu0 0
      %4226 = vmatpush1.bf16.msra.mxu0 0
      %4227 = vmatprep.subr.bf16.mxu0 0
      %4228 = vmatpush1.bf16.msra.mxu0 0
      %4229 = vmatprep.subr.bf16.mxu0 0
      %4230 = vmatpush1.bf16.msra.mxu0 0
      %4231 = vmatprep.subr.bf16.mxu0 0
      %4232 = vmatpush1.bf16.msra.mxu0 0
      %4233 = vmatprep.subr.bf16.mxu0 0
      %4234 = vmatpush1.bf16.msra.mxu0 0
      %4235 = vmatprep.subr.bf16.mxu0 0
      %4236 = vmatpush1.bf16.msra.mxu0 0
      %4237 = vmatprep.subr.bf16.mxu0 0
      %4238 = vmatpush1.bf16.msra.mxu0 0
      %4239 = vmatprep.subr.bf16.mxu0 0
      %4240 = vmatpush1.bf16.msra.mxu0 0
      %4241 = vmatprep.subr.bf16.mxu0 0
      %4242 = vmatpush1.bf16.msra.mxu0 0
      %4243 = vmatprep.subr.bf16.mxu0 0
      %4244 = vmatpush1.bf16.msra.mxu0 0
      %4245 = vmatprep.subr.bf16.mxu0 0
      %4246 = vmatpush1.bf16.msra.mxu0 0
      %4247 = vmatprep.subr.bf16.mxu0 0
      %4248 = vmatpush1.bf16.msra.mxu0 0
      %4249 = vmatprep.mubr.bf16.mxu0 0
      %4250 = vmatmul.mubr.bf16.gmra.mrb[0].mxu0 %v4191
      %v4251 = vpop.f32.mrb[0].mxu0
      %v4252 = vadd.f32 %v4061, %v4251
      %v4253 = vpop.f32.mrb[0].mxu0
      %v4254 = vadd.f32 %v4063, %v4253
      %v4255 = vpop.f32.mrb[0].mxu0
      %v4256 = vpop.f32.mrb[0].mxu0
      %4257 = vdwg.mxu0
      %4258 = vmatprep.subr.bf16.mxu0 %v4203
      %4259 = vmatpush1.bf16.msra.mxu0 %v4200
      %4260 = vmatprep.subr.bf16.mxu0 0
      %4261 = vmatpush1.bf16.msra.mxu0 0
      %4262 = vmatprep.subr.bf16.mxu0 0
      %4263 = vmatpush1.bf16.msra.mxu0 0
      %4264 = vmatprep.subr.bf16.mxu0 0
      %4265 = vmatpush1.bf16.msra.mxu0 0
      %4266 = vmatprep.subr.bf16.mxu0 0
      %4267 = vmatpush1.bf16.msra.mxu0 0
      %4268 = vmatprep.subr.bf16.mxu0 0
      %4269 = vmatpush1.bf16.msra.mxu0 0
      %4270 = vmatprep.subr.bf16.mxu0 0
      %4271 = vmatpush1.bf16.msra.mxu0 0
      %4272 = vmatprep.subr.bf16.mxu0 0
      %4273 = vmatpush1.bf16.msra.mxu0 0
      %4274 = vmatprep.subr.bf16.mxu0 0
      %4275 = vmatpush1.bf16.msra.mxu0 0
      %4276 = vmatprep.subr.bf16.mxu0 0
      %4277 = vmatpush1.bf16.msra.mxu0 0
      %4278 = vmatprep.subr.bf16.mxu0 0
      %4279 = vmatpush1.bf16.msra.mxu0 0
      %4280 = vmatprep.subr.bf16.mxu0 0
      %4281 = vmatpush1.bf16.msra.mxu0 0
      %4282 = vmatprep.subr.bf16.mxu0 0
      %4283 = vmatpush1.bf16.msra.mxu0 0
      %4284 = vmatprep.subr.bf16.mxu0 0
      %4285 = vmatpush1.bf16.msra.mxu0 0
      %4286 = vmatprep.subr.bf16.mxu0 0
      %4287 = vmatpush1.bf16.msra.mxu0 0
      %4288 = vmatprep.subr.bf16.mxu0 0
      %4289 = vmatpush1.bf16.msra.mxu0 0
      %4290 = vmatprep.mubr.bf16.mxu0 0
      %4291 = vmatmul.mubr.bf16.gmra.mrb[0].mxu0 %v4191
      %v4292 = vpop.f32.mrb[0].mxu0
      %v4293 = vadd.f32 %v4102, %v4292
      %v4294 = vpop.f32.mrb[0].mxu0
      %v4295 = vadd.f32 %v4104, %v4294
      %v4296 = vpop.f32.mrb[0].mxu0
      %v4297 = vpop.f32.mrb[0].mxu0
      %4298 = vdwg.mxu0
      %4299 = vmatprep.subr.bf16.mxu0 %v4209
      %4300 = vmatpush1.bf16.msra.mxu0 %v4206
      %4301 = vmatprep.subr.bf16.mxu0 0
      %4302 = vmatpush1.bf16.msra.mxu0 0
      %4303 = vmatprep.subr.bf16.mxu0 0
      %4304 = vmatpush1.bf16.msra.mxu0 0
      %4305 = vmatprep.subr.bf16.mxu0 0
      %4306 = vmatpush1.bf16.msra.mxu0 0
      %4307 = vmatprep.subr.bf16.mxu0 0
      %4308 = vmatpush1.bf16.msra.mxu0 0
      %4309 = vmatprep.subr.bf16.mxu0 0
      %4310 = vmatpush1.bf16.msra.mxu0 0
      %4311 = vmatprep.subr.bf16.mxu0 0
      %4312 = vmatpush1.bf16.msra.mxu0 0
      %4313 = vmatprep.subr.bf16.mxu0 0
      %4314 = vmatpush1.bf16.msra.mxu0 0
      %4315 = vmatprep.subr.bf16.mxu0 0
      %4316 = vmatpush1.bf16.msra.mxu0 0
      %4317 = vmatprep.subr.bf16.mxu0 0
      %4318 = vmatpush1.bf16.msra.mxu0 0
      %4319 = vmatprep.subr.bf16.mxu0 0
      %4320 = vmatpush1.bf16.msra.mxu0 0
      %4321 = vmatprep.subr.bf16.mxu0 0
      %4322 = vmatpush1.bf16.msra.mxu0 0
      %4323 = vmatprep.subr.bf16.mxu0 0
      %4324 = vmatpush1.bf16.msra.mxu0 0
      %4325 = vmatprep.subr.bf16.mxu0 0
      %4326 = vmatpush1.bf16.msra.mxu0 0
      %4327 = vmatprep.subr.bf16.mxu0 0
      %4328 = vmatpush1.bf16.msra.mxu0 0
      %4329 = vmatprep.subr.bf16.mxu0 0
      %4330 = vmatpush1.bf16.msra.mxu0 0
      %4331 = vmatprep.mubr.bf16.mxu0 0
      %4332 = vmatmul.mubr.bf16.gmra.mrb[0].mxu0 %v4191
      %v4333 = vpop.f32.mrb[0].mxu0
      %v4334 = vadd.f32 %v4143, %v4333
      %v4335 = vpop.f32.mrb[0].mxu0
      %v4336 = vadd.f32 %v4145, %v4335
      %v4337 = vpop.f32.mrb[0].mxu0
      %v4338 = vpop.f32.mrb[0].mxu0
      %4339 = vdwg.mxu0
      %4340 = vmatprep.subr.bf16.mxu0 %v4215
      %4341 = vmatpush1.bf16.msra.mxu0 %v4212
      %4342 = vmatprep.subr.bf16.mxu0 0
      %4343 = vmatpush1.bf16.msra.mxu0 0
      %4344 = vmatprep.subr.bf16.mxu0 0
      %4345 = vmatpush1.bf16.msra.mxu0 0
      %4346 = vmatprep.subr.bf16.mxu0 0
      %4347 = vmatpush1.bf16.msra.mxu0 0
      %4348 = vmatprep.subr.bf16.mxu0 0
      %4349 = vmatpush1.bf16.msra.mxu0 0
      %4350 = vmatprep.subr.bf16.mxu0 0
      %4351 = vmatpush1.bf16.msra.mxu0 0
      %4352 = vmatprep.subr.bf16.mxu0 0
      %4353 = vmatpush1.bf16.msra.mxu0 0
      %4354 = vmatprep.subr.bf16.mxu0 0
      %4355 = vmatpush1.bf16.msra.mxu0 0
      %4356 = vmatprep.subr.bf16.mxu0 0
      %4357 = vmatpush1.bf16.msra.mxu0 0
      %4358 = vmatprep.subr.bf16.mxu0 0
      %4359 = vmatpush1.bf16.msra.mxu0 0
      %4360 = vmatprep.subr.bf16.mxu0 0
      %4361 = vmatpush1.bf16.msra.mxu0 0
      %4362 = vmatprep.subr.bf16.mxu0 0
      %4363 = vmatpush1.bf16.msra.mxu0 0
      %4364 = vmatprep.subr.bf16.mxu0 0
      %4365 = vmatpush1.bf16.msra.mxu0 0
      %4366 = vmatprep.subr.bf16.mxu0 0
      %4367 = vmatpush1.bf16.msra.mxu0 0
      %4368 = vmatprep.subr.bf16.mxu0 0
      %4369 = vmatpush1.bf16.msra.mxu0 0
      %4370 = vmatprep.subr.bf16.mxu0 0
      %4371 = vmatpush1.bf16.msra.mxu0 0
      %4372 = vmatprep.mubr.bf16.mxu0 0
      %4373 = vmatmul.mubr.bf16.gmra.mrb[0].mxu0 %v4191
      %v4374 = vpop.f32.mrb[0].mxu0
      %v4375 = vadd.f32 %v4184, %v4374
      %v4376 = vpop.f32.mrb[0].mxu0
      %v4377 = vadd.f32 %v4186, %v4376
      %v4378 = vpop.f32.mrb[0].mxu0
      %v4379 = vpop.f32.mrb[0].mxu0
      %4380 = vdwg.mxu0
      %4381 = vrot.lane.b32.xlu0 %v3896, 31
      %v4382 = vpop.permute.xlu0 %4381
      %4383 = vrot.lane.b32.xlu0 %v3897, 31
      %v4384 = vpop.permute.xlu0 %4383
      %4385 = vrot.lane.b32.xlu0 %v3898, 31
      %v4386 = vpop.permute.xlu0 %4385
      %4387 = vrot.lane.b32.xlu0 %v3899, 31
      %v4388 = vpop.permute.xlu0 %4387
      %4389 = vrot.lane.b32.xlu0 %v3900, 31
      %v4390 = vpop.permute.xlu0 %4389
      %4391 = vrot.lane.b32.xlu0 %v3901, 31
      %v4392 = vpop.permute.xlu0 %4391
      %4393 = vrot.lane.b32.xlu0 %v3902, 31
      %v4394 = vpop.permute.xlu0 %4393
      %4395 = vrot.lane.b32.xlu0 %v3903, 31
      %v4396 = vpop.permute.xlu0 %4395
      %v4397 = vsel %vm2023, %v4394, %v4396
      %v4398 = vsel %vm2023, %v4392, %v4394
      %v4399 = vsel %vm2023, %v4390, %v4392
      %v4400 = vsel %vm2023, %v4388, %v4390
      %v4401 = vsel %vm2023, %v4386, %v4388
      %v4402 = vsel %vm2023, %v4384, %v4386
      %v4403 = vsel %vm2023, %v4382, %v4384
      %v4404 = vsel %vm2023, %v4396, %v4382
      %v4405 = vmul.f32 %v4404, %v2035
      %v4406 = vmul.f32 %v4403, %v2039
      %v4407 = vmul.f32 %v4402, %v2043
      %v4408 = vmul.f32 %v4401, %v2047
      %v4409 = vmul.f32 %v4400, %v2051
      %v4410 = vmul.f32 %v4399, %v2055
      %v4411 = vmul.f32 %v4398, %v2059
      %v4412 = vmul.f32 %v4397, %v2063
      %s4413 = scalar_lea.vmem %s7, 8
      %v4414 = vld [vmem:[%s4413] sm:$0xf]
      %v4415 = vpack.c.bf16 %v4405, %v4405
      %v4416 = vpack.c.bf16 %v4406, %v4406
      %v4417 = vpack.c.bf16 %v4407, %v4407
      %v4418 = vpack.c.bf16 %v4408, %v4408
      %v4419 = vpack.c.bf16 %v4409, %v4409
      %v4420 = vpack.c.bf16 %v4410, %v4410
      %v4421 = vpack.c.bf16 %v4411, %v4411
      %v4422 = vpack.c.bf16 %v4412, %v4412
      %v4424 = vsel %vm1623, %v4414, 0
      %v4427 = vsel %vm1627, %v4415, 0
      %v4430 = vsel %vm1627, %v4416, 0
      %v4433 = vsel %vm1627, %v4417, 0
      %v4436 = vsel %vm1627, %v4418, 0
      %v4439 = vsel %vm1627, %v4419, 0
      %v4442 = vsel %vm1627, %v4420, 0
      %v4445 = vsel %vm1627, %v4421, 0
      %v4448 = vsel %vm1627, %v4422, 0
      %4450 = vmatprep.subr.bf16.mxu0 %v4430
      %4451 = vmatpush1.bf16.msra.mxu0 %v4427
      %4452 = vmatprep.subr.bf16.mxu0 0
      %4453 = vmatpush1.bf16.msra.mxu0 0
      %4454 = vmatprep.subr.bf16.mxu0 0
      %4455 = vmatpush1.bf16.msra.mxu0 0
      %4456 = vmatprep.subr.bf16.mxu0 0
      %4457 = vmatpush1.bf16.msra.mxu0 0
      %4458 = vmatprep.subr.bf16.mxu0 0
      %4459 = vmatpush1.bf16.msra.mxu0 0
      %4460 = vmatprep.subr.bf16.mxu0 0
      %4461 = vmatpush1.bf16.msra.mxu0 0
      %4462 = vmatprep.subr.bf16.mxu0 0
      %4463 = vmatpush1.bf16.msra.mxu0 0
      %4464 = vmatprep.subr.bf16.mxu0 0
      %4465 = vmatpush1.bf16.msra.mxu0 0
      %4466 = vmatprep.subr.bf16.mxu0 0
      %4467 = vmatpush1.bf16.msra.mxu0 0
      %4468 = vmatprep.subr.bf16.mxu0 0
      %4469 = vmatpush1.bf16.msra.mxu0 0
      %4470 = vmatprep.subr.bf16.mxu0 0
      %4471 = vmatpush1.bf16.msra.mxu0 0
      %4472 = vmatprep.subr.bf16.mxu0 0
      %4473 = vmatpush1.bf16.msra.mxu0 0
      %4474 = vmatprep.subr.bf16.mxu0 0
      %4475 = vmatpush1.bf16.msra.mxu0 0
      %4476 = vmatprep.subr.bf16.mxu0 0
      %4477 = vmatpush1.bf16.msra.mxu0 0
      %4478 = vmatprep.subr.bf16.mxu0 0
      %4479 = vmatpush1.bf16.msra.mxu0 0
      %4480 = vmatprep.subr.bf16.mxu0 0
      %4481 = vmatpush1.bf16.msra.mxu0 0
      %4482 = vmatprep.mubr.bf16.mxu0 0
      %4483 = vmatmul.mubr.bf16.gmra.mrb[0].mxu0 %v4424
      %v4484 = vpop.f32.mrb[0].mxu0
      %v4485 = vadd.f32 0.0, %v4484
      %v4486 = vpop.f32.mrb[0].mxu0
      %v4487 = vadd.f32 0.0, %v4486
      %v4488 = vpop.f32.mrb[0].mxu0
      %v4489 = vpop.f32.mrb[0].mxu0
      %4490 = vdwg.mxu0
      %4491 = vmatprep.subr.bf16.mxu0 %v4436
      %4492 = vmatpush1.bf16.msra.mxu0 %v4433
      %4493 = vmatprep.subr.bf16.mxu0 0
      %4494 = vmatpush1.bf16.msra.mxu0 0
      %4495 = vmatprep.subr.bf16.mxu0 0
      %4496 = vmatpush1.bf16.msra.mxu0 0
      %4497 = vmatprep.subr.bf16.mxu0 0
      %4498 = vmatpush1.bf16.msra.mxu0 0
      %4499 = vmatprep.subr.bf16.mxu0 0
      %4500 = vmatpush1.bf16.msra.mxu0 0
      %4501 = vmatprep.subr.bf16.mxu0 0
      %4502 = vmatpush1.bf16.msra.mxu0 0
      %4503 = vmatprep.subr.bf16.mxu0 0
      %4504 = vmatpush1.bf16.msra.mxu0 0
      %4505 = vmatprep.subr.bf16.mxu0 0
      %4506 = vmatpush1.bf16.msra.mxu0 0
      %4507 = vmatprep.subr.bf16.mxu0 0
      %4508 = vmatpush1.bf16.msra.mxu0 0
      %4509 = vmatprep.subr.bf16.mxu0 0
      %4510 = vmatpush1.bf16.msra.mxu0 0
      %4511 = vmatprep.subr.bf16.mxu0 0
      %4512 = vmatpush1.bf16.msra.mxu0 0
      %4513 = vmatprep.subr.bf16.mxu0 0
      %4514 = vmatpush1.bf16.msra.mxu0 0
      %4515 = vmatprep.subr.bf16.mxu0 0
      %4516 = vmatpush1.bf16.msra.mxu0 0
      %4517 = vmatprep.subr.bf16.mxu0 0
      %4518 = vmatpush1.bf16.msra.mxu0 0
      %4519 = vmatprep.subr.bf16.mxu0 0
      %4520 = vmatpush1.bf16.msra.mxu0 0
      %4521 = vmatprep.subr.bf16.mxu0 0
      %4522 = vmatpush1.bf16.msra.mxu0 0
      %4523 = vmatprep.mubr.bf16.mxu0 0
      %4524 = vmatmul.mubr.bf16.gmra.mrb[0].mxu0 %v4424
      %v4525 = vpop.f32.mrb[0].mxu0
      %v4526 = vadd.f32 0.0, %v4525
      %v4527 = vpop.f32.mrb[0].mxu0
      %v4528 = vadd.f32 0.0, %v4527
      %v4529 = vpop.f32.mrb[0].mxu0
      %v4530 = vpop.f32.mrb[0].mxu0
      %4531 = vdwg.mxu0
      %4532 = vmatprep.subr.bf16.mxu0 %v4442
      %4533 = vmatpush1.bf16.msra.mxu0 %v4439
      %4534 = vmatprep.subr.bf16.mxu0 0
      %4535 = vmatpush1.bf16.msra.mxu0 0
      %4536 = vmatprep.subr.bf16.mxu0 0
      %4537 = vmatpush1.bf16.msra.mxu0 0
      %4538 = vmatprep.subr.bf16.mxu0 0
      %4539 = vmatpush1.bf16.msra.mxu0 0
      %4540 = vmatprep.subr.bf16.mxu0 0
      %4541 = vmatpush1.bf16.msra.mxu0 0
      %4542 = vmatprep.subr.bf16.mxu0 0
      %4543 = vmatpush1.bf16.msra.mxu0 0
      %4544 = vmatprep.subr.bf16.mxu0 0
      %4545 = vmatpush1.bf16.msra.mxu0 0
      %4546 = vmatprep.subr.bf16.mxu0 0
      %4547 = vmatpush1.bf16.msra.mxu0 0
      %4548 = vmatprep.subr.bf16.mxu0 0
      %4549 = vmatpush1.bf16.msra.mxu0 0
      %4550 = vmatprep.subr.bf16.mxu0 0
      %4551 = vmatpush1.bf16.msra.mxu0 0
      %4552 = vmatprep.subr.bf16.mxu0 0
      %4553 = vmatpush1.bf16.msra.mxu0 0
      %4554 = vmatprep.subr.bf16.mxu0 0
      %4555 = vmatpush1.bf16.msra.mxu0 0
      %4556 = vmatprep.subr.bf16.mxu0 0
      %4557 = vmatpush1.bf16.msra.mxu0 0
      %4558 = vmatprep.subr.bf16.mxu0 0
      %4559 = vmatpush1.bf16.msra.mxu0 0
      %4560 = vmatprep.subr.bf16.mxu0 0
      %4561 = vmatpush1.bf16.msra.mxu0 0
      %4562 = vmatprep.subr.bf16.mxu0 0
      %4563 = vmatpush1.bf16.msra.mxu0 0
      %4564 = vmatprep.mubr.bf16.mxu0 0
      %4565 = vmatmul.mubr.bf16.gmra.mrb[0].mxu0 %v4424
      %v4566 = vpop.f32.mrb[0].mxu0
      %v4567 = vadd.f32 0.0, %v4566
      %v4568 = vpop.f32.mrb[0].mxu0
      %v4569 = vadd.f32 0.0, %v4568
      %v4570 = vpop.f32.mrb[0].mxu0
      %v4571 = vpop.f32.mrb[0].mxu0
      %4572 = vdwg.mxu0
      %4573 = vmatprep.subr.bf16.mxu0 %v4448
      %4574 = vmatpush1.bf16.msra.mxu0 %v4445
      %4575 = vmatprep.subr.bf16.mxu0 0
      %4576 = vmatpush1.bf16.msra.mxu0 0
      %4577 = vmatprep.subr.bf16.mxu0 0
      %4578 = vmatpush1.bf16.msra.mxu0 0
      %4579 = vmatprep.subr.bf16.mxu0 0
      %4580 = vmatpush1.bf16.msra.mxu0 0
      %4581 = vmatprep.subr.bf16.mxu0 0
      %4582 = vmatpush1.bf16.msra.mxu0 0
      %4583 = vmatprep.subr.bf16.mxu0 0
      %4584 = vmatpush1.bf16.msra.mxu0 0
      %4585 = vmatprep.subr.bf16.mxu0 0
      %4586 = vmatpush1.bf16.msra.mxu0 0
      %4587 = vmatprep.subr.bf16.mxu0 0
      %4588 = vmatpush1.bf16.msra.mxu0 0
      %4589 = vmatprep.subr.bf16.mxu0 0
      %4590 = vmatpush1.bf16.msra.mxu0 0
      %4591 = vmatprep.subr.bf16.mxu0 0
      %4592 = vmatpush1.bf16.msra.mxu0 0
      %4593 = vmatprep.subr.bf16.mxu0 0
      %4594 = vmatpush1.bf16.msra.mxu0 0
      %4595 = vmatprep.subr.bf16.mxu0 0
      %4596 = vmatpush1.bf16.msra.mxu0 0
      %4597 = vmatprep.subr.bf16.mxu0 0
      %4598 = vmatpush1.bf16.msra.mxu0 0
      %4599 = vmatprep.subr.bf16.mxu0 0
      %4600 = vmatpush1.bf16.msra.mxu0 0
      %4601 = vmatprep.subr.bf16.mxu0 0
      %4602 = vmatpush1.bf16.msra.mxu0 0
      %4603 = vmatprep.subr.bf16.mxu0 0
      %4604 = vmatpush1.bf16.msra.mxu0 0
      %4605 = vmatprep.mubr.bf16.mxu0 0
      %4606 = vmatmul.mubr.bf16.gmra.mrb[0].mxu0 %v4424
      %v4607 = vpop.f32.mrb[0].mxu0
      %v4608 = vadd.f32 0.0, %v4607
      %v4609 = vpop.f32.mrb[0].mxu0
      %v4610 = vadd.f32 0.0, %v4609
      %v4611 = vpop.f32.mrb[0].mxu0
      %v4612 = vpop.f32.mrb[0].mxu0
      %4613 = vdwg.mxu0
      %v4614 = vadd.f32 %v4252, %v4485
      %v4615 = vadd.f32 %v4254, %v4487
      %v4616 = vadd.f32 %v4293, %v4526
      %v4617 = vadd.f32 %v4295, %v4528
      %v4618 = vadd.f32 %v4334, %v4567
      %v4619 = vadd.f32 %v4336, %v4569
      %v4620 = vadd.f32 %v4375, %v4608
      %v4621 = vadd.f32 %v4377, %v4610
      %4622 = vrot.lane.b32.xlu0 %v3896, 1
      %v4623 = vpop.permute.xlu0 %4622
      %4624 = vrot.lane.b32.xlu0 %v3897, 1
      %v4625 = vpop.permute.xlu0 %4624
      %4626 = vrot.lane.b32.xlu0 %v3898, 1
      %v4627 = vpop.permute.xlu0 %4626
      %4628 = vrot.lane.b32.xlu0 %v3899, 1
      %v4629 = vpop.permute.xlu0 %4628
      %4630 = vrot.lane.b32.xlu0 %v3900, 1
      %v4631 = vpop.permute.xlu0 %4630
      %4632 = vrot.lane.b32.xlu0 %v3901, 1
      %v4633 = vpop.permute.xlu0 %4632
      %4634 = vrot.lane.b32.xlu0 %v3902, 1
      %v4635 = vpop.permute.xlu0 %4634
      %4636 = vrot.lane.b32.xlu0 %v3903, 1
      %v4637 = vpop.permute.xlu0 %4636
      %v4638 = vsel %vm2297, %v4635, %v4637
      %v4639 = vsel %vm2297, %v4633, %v4635
      %v4640 = vsel %vm2297, %v4631, %v4633
      %v4641 = vsel %vm2297, %v4629, %v4631
      %v4642 = vsel %vm2297, %v4627, %v4629
      %v4643 = vsel %vm2297, %v4625, %v4627
      %v4644 = vsel %vm2297, %v4623, %v4625
      %v4645 = vsel %vm2297, %v4637, %v4623
      %v4646 = vmul.f32 %v4645, %v2309
      %v4647 = vmul.f32 %v4644, %v2313
      %v4648 = vmul.f32 %v4643, %v2317
      %v4649 = vmul.f32 %v4642, %v2321
      %v4650 = vmul.f32 %v4641, %v2325
      %v4651 = vmul.f32 %v4640, %v2329
      %v4652 = vmul.f32 %v4639, %v2333
      %v4653 = vmul.f32 %v4638, %v2337
      %s4654 = scalar_lea.vmem %s7, 12
      %v4655 = vld [vmem:[%s4654] sm:$0xf]
      %v4656 = vpack.c.bf16 %v4646, %v4646
      %v4657 = vpack.c.bf16 %v4647, %v4647
      %v4658 = vpack.c.bf16 %v4648, %v4648
      %v4659 = vpack.c.bf16 %v4649, %v4649
      %v4660 = vpack.c.bf16 %v4650, %v4650
      %v4661 = vpack.c.bf16 %v4651, %v4651
      %v4662 = vpack.c.bf16 %v4652, %v4652
      %v4663 = vpack.c.bf16 %v4653, %v4653
      %v4665 = vsel %vm1623, %v4655, 0
      %v4668 = vsel %vm1627, %v4656, 0
      %v4671 = vsel %vm1627, %v4657, 0
      %v4674 = vsel %vm1627, %v4658, 0
      %v4677 = vsel %vm1627, %v4659, 0
      %v4680 = vsel %vm1627, %v4660, 0
      %v4683 = vsel %vm1627, %v4661, 0
      %v4686 = vsel %vm1627, %v4662, 0
      %v4689 = vsel %vm1627, %v4663, 0
      %4691 = vmatprep.subr.bf16.mxu0 %v4671
      %4692 = vmatpush1.bf16.msra.mxu0 %v4668
      %4693 = vmatprep.subr.bf16.mxu0 0
      %4694 = vmatpush1.bf16.msra.mxu0 0
      %4695 = vmatprep.subr.bf16.mxu0 0
      %4696 = vmatpush1.bf16.msra.mxu0 0
      %4697 = vmatprep.subr.bf16.mxu0 0
      %4698 = vmatpush1.bf16.msra.mxu0 0
      %4699 = vmatprep.subr.bf16.mxu0 0
      %4700 = vmatpush1.bf16.msra.mxu0 0
      %4701 = vmatprep.subr.bf16.mxu0 0
      %4702 = vmatpush1.bf16.msra.mxu0 0
      %4703 = vmatprep.subr.bf16.mxu0 0
      %4704 = vmatpush1.bf16.msra.mxu0 0
      %4705 = vmatprep.subr.bf16.mxu0 0
      %4706 = vmatpush1.bf16.msra.mxu0 0
      %4707 = vmatprep.subr.bf16.mxu0 0
      %4708 = vmatpush1.bf16.msra.mxu0 0
      %4709 = vmatprep.subr.bf16.mxu0 0
      %4710 = vmatpush1.bf16.msra.mxu0 0
      %4711 = vmatprep.subr.bf16.mxu0 0
      %4712 = vmatpush1.bf16.msra.mxu0 0
      %4713 = vmatprep.subr.bf16.mxu0 0
      %4714 = vmatpush1.bf16.msra.mxu0 0
      %4715 = vmatprep.subr.bf16.mxu0 0
      %4716 = vmatpush1.bf16.msra.mxu0 0
      %4717 = vmatprep.subr.bf16.mxu0 0
      %4718 = vmatpush1.bf16.msra.mxu0 0
      %4719 = vmatprep.subr.bf16.mxu0 0
      %4720 = vmatpush1.bf16.msra.mxu0 0
      %4721 = vmatprep.subr.bf16.mxu0 0
      %4722 = vmatpush1.bf16.msra.mxu0 0
      %4723 = vmatprep.mubr.bf16.mxu0 0
      %4724 = vmatmul.mubr.bf16.gmra.mrb[0].mxu0 %v4665
      %v4725 = vpop.f32.mrb[0].mxu0
      %v4726 = vadd.f32 0.0, %v4725
      %v4727 = vpop.f32.mrb[0].mxu0
      %v4728 = vadd.f32 0.0, %v4727
      %v4729 = vpop.f32.mrb[0].mxu0
      %v4730 = vpop.f32.mrb[0].mxu0
      %4731 = vdwg.mxu0
      %4732 = vmatprep.subr.bf16.mxu0 %v4677
      %4733 = vmatpush1.bf16.msra.mxu0 %v4674
      %4734 = vmatprep.subr.bf16.mxu0 0
      %4735 = vmatpush1.bf16.msra.mxu0 0
      %4736 = vmatprep.subr.bf16.mxu0 0
      %4737 = vmatpush1.bf16.msra.mxu0 0
      %4738 = vmatprep.subr.bf16.mxu0 0
      %4739 = vmatpush1.bf16.msra.mxu0 0
      %4740 = vmatprep.subr.bf16.mxu0 0
      %4741 = vmatpush1.bf16.msra.mxu0 0
      %4742 = vmatprep.subr.bf16.mxu0 0
      %4743 = vmatpush1.bf16.msra.mxu0 0
      %4744 = vmatprep.subr.bf16.mxu0 0
      %4745 = vmatpush1.bf16.msra.mxu0 0
      %4746 = vmatprep.subr.bf16.mxu0 0
      %4747 = vmatpush1.bf16.msra.mxu0 0
      %4748 = vmatprep.subr.bf16.mxu0 0
      %4749 = vmatpush1.bf16.msra.mxu0 0
      %4750 = vmatprep.subr.bf16.mxu0 0
      %4751 = vmatpush1.bf16.msra.mxu0 0
      %4752 = vmatprep.subr.bf16.mxu0 0
      %4753 = vmatpush1.bf16.msra.mxu0 0
      %4754 = vmatprep.subr.bf16.mxu0 0
      %4755 = vmatpush1.bf16.msra.mxu0 0
      %4756 = vmatprep.subr.bf16.mxu0 0
      %4757 = vmatpush1.bf16.msra.mxu0 0
      %4758 = vmatprep.subr.bf16.mxu0 0
      %4759 = vmatpush1.bf16.msra.mxu0 0
      %4760 = vmatprep.subr.bf16.mxu0 0
      %4761 = vmatpush1.bf16.msra.mxu0 0
      %4762 = vmatprep.subr.bf16.mxu0 0
      %4763 = vmatpush1.bf16.msra.mxu0 0
      %4764 = vmatprep.mubr.bf16.mxu0 0
      %4765 = vmatmul.mubr.bf16.gmra.mrb[0].mxu0 %v4665
      %v4766 = vpop.f32.mrb[0].mxu0
      %v4767 = vadd.f32 0.0, %v4766
      %v4768 = vpop.f32.mrb[0].mxu0
      %v4769 = vadd.f32 0.0, %v4768
      %v4770 = vpop.f32.mrb[0].mxu0
      %v4771 = vpop.f32.mrb[0].mxu0
      %4772 = vdwg.mxu0
      %4773 = vmatprep.subr.bf16.mxu0 %v4683
      %4774 = vmatpush1.bf16.msra.mxu0 %v4680
      %4775 = vmatprep.subr.bf16.mxu0 0
      %4776 = vmatpush1.bf16.msra.mxu0 0
      %4777 = vmatprep.subr.bf16.mxu0 0
      %4778 = vmatpush1.bf16.msra.mxu0 0
      %4779 = vmatprep.subr.bf16.mxu0 0
      %4780 = vmatpush1.bf16.msra.mxu0 0
      %4781 = vmatprep.subr.bf16.mxu0 0
      %4782 = vmatpush1.bf16.msra.mxu0 0
      %4783 = vmatprep.subr.bf16.mxu0 0
      %4784 = vmatpush1.bf16.msra.mxu0 0
      %4785 = vmatprep.subr.bf16.mxu0 0
      %4786 = vmatpush1.bf16.msra.mxu0 0
      %4787 = vmatprep.subr.bf16.mxu0 0
      %4788 = vmatpush1.bf16.msra.mxu0 0
      %4789 = vmatprep.subr.bf16.mxu0 0
      %4790 = vmatpush1.bf16.msra.mxu0 0
      %4791 = vmatprep.subr.bf16.mxu0 0
      %4792 = vmatpush1.bf16.msra.mxu0 0
      %4793 = vmatprep.subr.bf16.mxu0 0
      %4794 = vmatpush1.bf16.msra.mxu0 0
      %4795 = vmatprep.subr.bf16.mxu0 0
      %4796 = vmatpush1.bf16.msra.mxu0 0
      %4797 = vmatprep.subr.bf16.mxu0 0
      %4798 = vmatpush1.bf16.msra.mxu0 0
      %4799 = vmatprep.subr.bf16.mxu0 0
      %4800 = vmatpush1.bf16.msra.mxu0 0
      %4801 = vmatprep.subr.bf16.mxu0 0
      %4802 = vmatpush1.bf16.msra.mxu0 0
      %4803 = vmatprep.subr.bf16.mxu0 0
      %4804 = vmatpush1.bf16.msra.mxu0 0
      %4805 = vmatprep.mubr.bf16.mxu0 0
      %4806 = vmatmul.mubr.bf16.gmra.mrb[0].mxu0 %v4665
      %v4807 = vpop.f32.mrb[0].mxu0
      %v4808 = vadd.f32 0.0, %v4807
      %v4809 = vpop.f32.mrb[0].mxu0
      %v4810 = vadd.f32 0.0, %v4809
      %v4811 = vpop.f32.mrb[0].mxu0
      %v4812 = vpop.f32.mrb[0].mxu0
      %4813 = vdwg.mxu0
      %4814 = vmatprep.subr.bf16.mxu0 %v4689
      %4815 = vmatpush1.bf16.msra.mxu0 %v4686
      %4816 = vmatprep.subr.bf16.mxu0 0
      %4817 = vmatpush1.bf16.msra.mxu0 0
      %4818 = vmatprep.subr.bf16.mxu0 0
      %4819 = vmatpush1.bf16.msra.mxu0 0
      %4820 = vmatprep.subr.bf16.mxu0 0
      %4821 = vmatpush1.bf16.msra.mxu0 0
      %4822 = vmatprep.subr.bf16.mxu0 0
      %4823 = vmatpush1.bf16.msra.mxu0 0
      %4824 = vmatprep.subr.bf16.mxu0 0
      %4825 = vmatpush1.bf16.msra.mxu0 0
      %4826 = vmatprep.subr.bf16.mxu0 0
      %4827 = vmatpush1.bf16.msra.mxu0 0
      %4828 = vmatprep.subr.bf16.mxu0 0
      %4829 = vmatpush1.bf16.msra.mxu0 0
      %4830 = vmatprep.subr.bf16.mxu0 0
      %4831 = vmatpush1.bf16.msra.mxu0 0
      %4832 = vmatprep.subr.bf16.mxu0 0
      %4833 = vmatpush1.bf16.msra.mxu0 0
      %4834 = vmatprep.subr.bf16.mxu0 0
      %4835 = vmatpush1.bf16.msra.mxu0 0
      %4836 = vmatprep.subr.bf16.mxu0 0
      %4837 = vmatpush1.bf16.msra.mxu0 0
      %4838 = vmatprep.subr.bf16.mxu0 0
      %4839 = vmatpush1.bf16.msra.mxu0 0
      %4840 = vmatprep.subr.bf16.mxu0 0
      %4841 = vmatpush1.bf16.msra.mxu0 0
      %4842 = vmatprep.subr.bf16.mxu0 0
      %4843 = vmatpush1.bf16.msra.mxu0 0
      %4844 = vmatprep.subr.bf16.mxu0 0
      %4845 = vmatpush1.bf16.msra.mxu0 0
      %4846 = vmatprep.mubr.bf16.mxu0 0
      %4847 = vmatmul.mubr.bf16.gmra.mrb[0].mxu0 %v4665
      %v4848 = vpop.f32.mrb[0].mxu0
      %v4849 = vadd.f32 0.0, %v4848
      %v4850 = vpop.f32.mrb[0].mxu0
      %v4851 = vadd.f32 0.0, %v4850
      %v4852 = vpop.f32.mrb[0].mxu0
      %v4853 = vpop.f32.mrb[0].mxu0
      %4854 = vdwg.mxu0
      %v4855 = vadd.f32 %v4614, %v4726
      %v4856 = vadd.f32 %v4615, %v4728
      %v4857 = vadd.f32 %v4616, %v4767
      %v4858 = vadd.f32 %v4617, %v4769
      %v4859 = vadd.f32 %v4618, %v4808
      %v4860 = vadd.f32 %v4619, %v4810
      %v4861 = vadd.f32 %v4620, %v4849
      %v4862 = vadd.f32 %v4621, %v4851
      %s4863 = scalar_lea.vmem %s7, 16
      %v4864 = vld [vmem:[%s4863] sm:$0xf]
      %v4865 = vpack.c.bf16 %v3896, %v3896
      %v4866 = vpack.c.bf16 %v3897, %v3897
      %v4867 = vpack.c.bf16 %v3898, %v3898
      %v4868 = vpack.c.bf16 %v3899, %v3899
      %v4869 = vpack.c.bf16 %v3900, %v3900
      %v4870 = vpack.c.bf16 %v3901, %v3901
      %v4871 = vpack.c.bf16 %v3902, %v3902
      %v4872 = vpack.c.bf16 %v3903, %v3903
      %v4874 = vsel %vm1623, %v4864, 0
      %v4877 = vsel %vm1627, %v4865, 0
      %v4880 = vsel %vm1627, %v4866, 0
      %v4883 = vsel %vm1627, %v4867, 0
      %v4886 = vsel %vm1627, %v4868, 0
      %v4889 = vsel %vm1627, %v4869, 0
      %v4892 = vsel %vm1627, %v4870, 0
      %v4895 = vsel %vm1627, %v4871, 0
      %v4898 = vsel %vm1627, %v4872, 0
      %4900 = vmatprep.subr.bf16.mxu0 %v4880
      %4901 = vmatpush1.bf16.msra.mxu0 %v4877
      %4902 = vmatprep.subr.bf16.mxu0 0
      %4903 = vmatpush1.bf16.msra.mxu0 0
      %4904 = vmatprep.subr.bf16.mxu0 0
      %4905 = vmatpush1.bf16.msra.mxu0 0
      %4906 = vmatprep.subr.bf16.mxu0 0
      %4907 = vmatpush1.bf16.msra.mxu0 0
      %4908 = vmatprep.subr.bf16.mxu0 0
      %4909 = vmatpush1.bf16.msra.mxu0 0
      %4910 = vmatprep.subr.bf16.mxu0 0
      %4911 = vmatpush1.bf16.msra.mxu0 0
      %4912 = vmatprep.subr.bf16.mxu0 0
      %4913 = vmatpush1.bf16.msra.mxu0 0
      %4914 = vmatprep.subr.bf16.mxu0 0
      %4915 = vmatpush1.bf16.msra.mxu0 0
      %4916 = vmatprep.subr.bf16.mxu0 0
      %4917 = vmatpush1.bf16.msra.mxu0 0
      %4918 = vmatprep.subr.bf16.mxu0 0
      %4919 = vmatpush1.bf16.msra.mxu0 0
      %4920 = vmatprep.subr.bf16.mxu0 0
      %4921 = vmatpush1.bf16.msra.mxu0 0
      %4922 = vmatprep.subr.bf16.mxu0 0
      %4923 = vmatpush1.bf16.msra.mxu0 0
      %4924 = vmatprep.subr.bf16.mxu0 0
      %4925 = vmatpush1.bf16.msra.mxu0 0
      %4926 = vmatprep.subr.bf16.mxu0 0
      %4927 = vmatpush1.bf16.msra.mxu0 0
      %4928 = vmatprep.subr.bf16.mxu0 0
      %4929 = vmatpush1.bf16.msra.mxu0 0
      %4930 = vmatprep.subr.bf16.mxu0 0
      %4931 = vmatpush1.bf16.msra.mxu0 0
      %4932 = vmatprep.mubr.bf16.mxu0 0
      %4933 = vmatmul.mubr.bf16.gmra.mrb[0].mxu0 %v4874
      %v4934 = vpop.f32.mrb[0].mxu0
      %v4935 = vadd.f32 0.0, %v4934
      %v4936 = vpop.f32.mrb[0].mxu0
      %v4937 = vadd.f32 0.0, %v4936
      %v4938 = vpop.f32.mrb[0].mxu0
      %v4939 = vpop.f32.mrb[0].mxu0
      %4940 = vdwg.mxu0
      %4941 = vmatprep.subr.bf16.mxu0 %v4886
      %4942 = vmatpush1.bf16.msra.mxu0 %v4883
      %4943 = vmatprep.subr.bf16.mxu0 0
      %4944 = vmatpush1.bf16.msra.mxu0 0
      %4945 = vmatprep.subr.bf16.mxu0 0
      %4946 = vmatpush1.bf16.msra.mxu0 0
      %4947 = vmatprep.subr.bf16.mxu0 0
      %4948 = vmatpush1.bf16.msra.mxu0 0
      %4949 = vmatprep.subr.bf16.mxu0 0
      %4950 = vmatpush1.bf16.msra.mxu0 0
      %4951 = vmatprep.subr.bf16.mxu0 0
      %4952 = vmatpush1.bf16.msra.mxu0 0
      %4953 = vmatprep.subr.bf16.mxu0 0
      %4954 = vmatpush1.bf16.msra.mxu0 0
      %4955 = vmatprep.subr.bf16.mxu0 0
      %4956 = vmatpush1.bf16.msra.mxu0 0
      %4957 = vmatprep.subr.bf16.mxu0 0
      %4958 = vmatpush1.bf16.msra.mxu0 0
      %4959 = vmatprep.subr.bf16.mxu0 0
      %4960 = vmatpush1.bf16.msra.mxu0 0
      %4961 = vmatprep.subr.bf16.mxu0 0
      %4962 = vmatpush1.bf16.msra.mxu0 0
      %4963 = vmatprep.subr.bf16.mxu0 0
      %4964 = vmatpush1.bf16.msra.mxu0 0
      %4965 = vmatprep.subr.bf16.mxu0 0
      %4966 = vmatpush1.bf16.msra.mxu0 0
      %4967 = vmatprep.subr.bf16.mxu0 0
      %4968 = vmatpush1.bf16.msra.mxu0 0
      %4969 = vmatprep.subr.bf16.mxu0 0
      %4970 = vmatpush1.bf16.msra.mxu0 0
      %4971 = vmatprep.subr.bf16.mxu0 0
      %4972 = vmatpush1.bf16.msra.mxu0 0
      %4973 = vmatprep.mubr.bf16.mxu0 0
      %4974 = vmatmul.mubr.bf16.gmra.mrb[0].mxu0 %v4874
      %v4975 = vpop.f32.mrb[0].mxu0
      %v4976 = vadd.f32 0.0, %v4975
      %v4977 = vpop.f32.mrb[0].mxu0
      %v4978 = vadd.f32 0.0, %v4977
      %v4979 = vpop.f32.mrb[0].mxu0
      %v4980 = vpop.f32.mrb[0].mxu0
      %4981 = vdwg.mxu0
      %4982 = vmatprep.subr.bf16.mxu0 %v4892
      %4983 = vmatpush1.bf16.msra.mxu0 %v4889
      %4984 = vmatprep.subr.bf16.mxu0 0
      %4985 = vmatpush1.bf16.msra.mxu0 0
      %4986 = vmatprep.subr.bf16.mxu0 0
      %4987 = vmatpush1.bf16.msra.mxu0 0
      %4988 = vmatprep.subr.bf16.mxu0 0
      %4989 = vmatpush1.bf16.msra.mxu0 0
      %4990 = vmatprep.subr.bf16.mxu0 0
      %4991 = vmatpush1.bf16.msra.mxu0 0
      %4992 = vmatprep.subr.bf16.mxu0 0
      %4993 = vmatpush1.bf16.msra.mxu0 0
      %4994 = vmatprep.subr.bf16.mxu0 0
      %4995 = vmatpush1.bf16.msra.mxu0 0
      %4996 = vmatprep.subr.bf16.mxu0 0
      %4997 = vmatpush1.bf16.msra.mxu0 0
      %4998 = vmatprep.subr.bf16.mxu0 0
      %4999 = vmatpush1.bf16.msra.mxu0 0
      %5000 = vmatprep.subr.bf16.mxu0 0
      %5001 = vmatpush1.bf16.msra.mxu0 0
      %5002 = vmatprep.subr.bf16.mxu0 0
      %5003 = vmatpush1.bf16.msra.mxu0 0
      %5004 = vmatprep.subr.bf16.mxu0 0
      %5005 = vmatpush1.bf16.msra.mxu0 0
      %5006 = vmatprep.subr.bf16.mxu0 0
      %5007 = vmatpush1.bf16.msra.mxu0 0
      %5008 = vmatprep.subr.bf16.mxu0 0
      %5009 = vmatpush1.bf16.msra.mxu0 0
      %5010 = vmatprep.subr.bf16.mxu0 0
      %5011 = vmatpush1.bf16.msra.mxu0 0
      %5012 = vmatprep.subr.bf16.mxu0 0
      %5013 = vmatpush1.bf16.msra.mxu0 0
      %5014 = vmatprep.mubr.bf16.mxu0 0
      %5015 = vmatmul.mubr.bf16.gmra.mrb[0].mxu0 %v4874
      %v5016 = vpop.f32.mrb[0].mxu0
      %v5017 = vadd.f32 0.0, %v5016
      %v5018 = vpop.f32.mrb[0].mxu0
      %v5019 = vadd.f32 0.0, %v5018
      %v5020 = vpop.f32.mrb[0].mxu0
      %v5021 = vpop.f32.mrb[0].mxu0
      %5022 = vdwg.mxu0
      %5023 = vmatprep.subr.bf16.mxu0 %v4898
      %5024 = vmatpush1.bf16.msra.mxu0 %v4895
      %5025 = vmatprep.subr.bf16.mxu0 0
      %5026 = vmatpush1.bf16.msra.mxu0 0
      %5027 = vmatprep.subr.bf16.mxu0 0
      %5028 = vmatpush1.bf16.msra.mxu0 0
      %5029 = vmatprep.subr.bf16.mxu0 0
      %5030 = vmatpush1.bf16.msra.mxu0 0
      %5031 = vmatprep.subr.bf16.mxu0 0
      %5032 = vmatpush1.bf16.msra.mxu0 0
      %5033 = vmatprep.subr.bf16.mxu0 0
      %5034 = vmatpush1.bf16.msra.mxu0 0
      %5035 = vmatprep.subr.bf16.mxu0 0
      %5036 = vmatpush1.bf16.msra.mxu0 0
      %5037 = vmatprep.subr.bf16.mxu0 0
      %5038 = vmatpush1.bf16.msra.mxu0 0
      %5039 = vmatprep.subr.bf16.mxu0 0
      %5040 = vmatpush1.bf16.msra.mxu0 0
      %5041 = vmatprep.subr.bf16.mxu0 0
      %5042 = vmatpush1.bf16.msra.mxu0 0
      %5043 = vmatprep.subr.bf16.mxu0 0
      %5044 = vmatpush1.bf16.msra.mxu0 0
      %5045 = vmatprep.subr.bf16.mxu0 0
      %5046 = vmatpush1.bf16.msra.mxu0 0
      %5047 = vmatprep.subr.bf16.mxu0 0
      %5048 = vmatpush1.bf16.msra.mxu0 0
      %5049 = vmatprep.subr.bf16.mxu0 0
      %5050 = vmatpush1.bf16.msra.mxu0 0
      %5051 = vmatprep.subr.bf16.mxu0 0
      %5052 = vmatpush1.bf16.msra.mxu0 0
      %5053 = vmatprep.subr.bf16.mxu0 0
      %5054 = vmatpush1.bf16.msra.mxu0 0
      %5055 = vmatprep.mubr.bf16.mxu0 0
      %5056 = vmatmul.mubr.bf16.gmra.mrb[0].mxu0 %v4874
      %v5057 = vpop.f32.mrb[0].mxu0
      %v5058 = vadd.f32 0.0, %v5057
      %v5059 = vpop.f32.mrb[0].mxu0
      %v5060 = vadd.f32 0.0, %v5059
      %v5061 = vpop.f32.mrb[0].mxu0
      %v5062 = vpop.f32.mrb[0].mxu0
      %5063 = vdwg.mxu0
      %v5064 = vadd.f32 %v4855, %v4935
      %v5065 = vadd.f32 %v4856, %v4937
      %v5066 = vadd.f32 %v4857, %v4976
      %v5067 = vadd.f32 %v4858, %v4978
      %v5068 = vadd.f32 %v4859, %v5017
      %v5069 = vadd.f32 %v4860, %v5019
      %v5070 = vadd.f32 %v4861, %v5058
      %v5071 = vadd.f32 %v4862, %v5060
      %5072 = vrot.lane.b32.xlu0 %v3896, 127
      %v5073 = vpop.permute.xlu0 %5072
      %5074 = vrot.lane.b32.xlu0 %v3897, 127
      %v5075 = vpop.permute.xlu0 %5074
      %5076 = vrot.lane.b32.xlu0 %v3898, 127
      %v5077 = vpop.permute.xlu0 %5076
      %5078 = vrot.lane.b32.xlu0 %v3899, 127
      %v5079 = vpop.permute.xlu0 %5078
      %5080 = vrot.lane.b32.xlu0 %v3900, 127
      %v5081 = vpop.permute.xlu0 %5080
      %5082 = vrot.lane.b32.xlu0 %v3901, 127
      %v5083 = vpop.permute.xlu0 %5082
      %5084 = vrot.lane.b32.xlu0 %v3902, 127
      %v5085 = vpop.permute.xlu0 %5084
      %5086 = vrot.lane.b32.xlu0 %v3903, 127
      %v5087 = vpop.permute.xlu0 %5086
      %v5088 = vsel %vm2780, %v5085, %v5087
      %v5089 = vsel %vm2780, %v5083, %v5085
      %v5090 = vsel %vm2780, %v5081, %v5083
      %v5091 = vsel %vm2780, %v5079, %v5081
      %v5092 = vsel %vm2780, %v5077, %v5079
      %v5093 = vsel %vm2780, %v5075, %v5077
      %v5094 = vsel %vm2780, %v5073, %v5075
      %v5095 = vsel %vm2780, %v5087, %v5073
      %v5096 = vmul.f32 %v5094, %v2792
      %v5097 = vmul.f32 %v5093, %v2796
      %v5098 = vmul.f32 %v5092, %v2800
      %v5099 = vmul.f32 %v5091, %v2804
      %v5100 = vmul.f32 %v5090, %v2808
      %v5101 = vmul.f32 %v5089, %v2812
      %v5102 = vmul.f32 %v5088, %v2816
      %v5103 = vmul.f32 %v5095, %v2820
      %s5104 = scalar_lea.vmem %s7, 20
      %v5105 = vld [vmem:[%s5104] sm:$0xf]
      %v5106 = vpack.c.bf16 %v5096, %v5096
      %v5107 = vpack.c.bf16 %v5097, %v5097
      %v5108 = vpack.c.bf16 %v5098, %v5098
      %v5109 = vpack.c.bf16 %v5099, %v5099
      %v5110 = vpack.c.bf16 %v5100, %v5100
      %v5111 = vpack.c.bf16 %v5101, %v5101
      %v5112 = vpack.c.bf16 %v5102, %v5102
      %v5113 = vpack.c.bf16 %v5103, %v5103
      %v5115 = vsel %vm1623, %v5105, 0
      %v5118 = vsel %vm1627, %v5106, 0
      %v5121 = vsel %vm1627, %v5107, 0
      %v5124 = vsel %vm1627, %v5108, 0
      %v5127 = vsel %vm1627, %v5109, 0
      %v5130 = vsel %vm1627, %v5110, 0
      %v5133 = vsel %vm1627, %v5111, 0
      %v5136 = vsel %vm1627, %v5112, 0
      %v5139 = vsel %vm1627, %v5113, 0
      %5141 = vmatprep.subr.bf16.mxu0 %v5121
      %5142 = vmatpush1.bf16.msra.mxu0 %v5118
      %5143 = vmatprep.subr.bf16.mxu0 0
      %5144 = vmatpush1.bf16.msra.mxu0 0
      %5145 = vmatprep.subr.bf16.mxu0 0
      %5146 = vmatpush1.bf16.msra.mxu0 0
      %5147 = vmatprep.subr.bf16.mxu0 0
      %5148 = vmatpush1.bf16.msra.mxu0 0
      %5149 = vmatprep.subr.bf16.mxu0 0
      %5150 = vmatpush1.bf16.msra.mxu0 0
      %5151 = vmatprep.subr.bf16.mxu0 0
      %5152 = vmatpush1.bf16.msra.mxu0 0
      %5153 = vmatprep.subr.bf16.mxu0 0
      %5154 = vmatpush1.bf16.msra.mxu0 0
      %5155 = vmatprep.subr.bf16.mxu0 0
      %5156 = vmatpush1.bf16.msra.mxu0 0
      %5157 = vmatprep.subr.bf16.mxu0 0
      %5158 = vmatpush1.bf16.msra.mxu0 0
      %5159 = vmatprep.subr.bf16.mxu0 0
      %5160 = vmatpush1.bf16.msra.mxu0 0
      %5161 = vmatprep.subr.bf16.mxu0 0
      %5162 = vmatpush1.bf16.msra.mxu0 0
      %5163 = vmatprep.subr.bf16.mxu0 0
      %5164 = vmatpush1.bf16.msra.mxu0 0
      %5165 = vmatprep.subr.bf16.mxu0 0
      %5166 = vmatpush1.bf16.msra.mxu0 0
      %5167 = vmatprep.subr.bf16.mxu0 0
      %5168 = vmatpush1.bf16.msra.mxu0 0
      %5169 = vmatprep.subr.bf16.mxu0 0
      %5170 = vmatpush1.bf16.msra.mxu0 0
      %5171 = vmatprep.subr.bf16.mxu0 0
      %5172 = vmatpush1.bf16.msra.mxu0 0
      %5173 = vmatprep.mubr.bf16.mxu0 0
      %5174 = vmatmul.mubr.bf16.gmra.mrb[0].mxu0 %v5115
      %v5175 = vpop.f32.mrb[0].mxu0
      %v5176 = vadd.f32 0.0, %v5175
      %v5177 = vpop.f32.mrb[0].mxu0
      %v5178 = vadd.f32 0.0, %v5177
      %v5179 = vpop.f32.mrb[0].mxu0
      %v5180 = vpop.f32.mrb[0].mxu0
      %5181 = vdwg.mxu0
      %5182 = vmatprep.subr.bf16.mxu0 %v5127
      %5183 = vmatpush1.bf16.msra.mxu0 %v5124
      %5184 = vmatprep.subr.bf16.mxu0 0
      %5185 = vmatpush1.bf16.msra.mxu0 0
      %5186 = vmatprep.subr.bf16.mxu0 0
      %5187 = vmatpush1.bf16.msra.mxu0 0
      %5188 = vmatprep.subr.bf16.mxu0 0
      %5189 = vmatpush1.bf16.msra.mxu0 0
      %5190 = vmatprep.subr.bf16.mxu0 0
      %5191 = vmatpush1.bf16.msra.mxu0 0
      %5192 = vmatprep.subr.bf16.mxu0 0
      %5193 = vmatpush1.bf16.msra.mxu0 0
      %5194 = vmatprep.subr.bf16.mxu0 0
      %5195 = vmatpush1.bf16.msra.mxu0 0
      %5196 = vmatprep.subr.bf16.mxu0 0
      %5197 = vmatpush1.bf16.msra.mxu0 0
      %5198 = vmatprep.subr.bf16.mxu0 0
      %5199 = vmatpush1.bf16.msra.mxu0 0
      %5200 = vmatprep.subr.bf16.mxu0 0
      %5201 = vmatpush1.bf16.msra.mxu0 0
      %5202 = vmatprep.subr.bf16.mxu0 0
      %5203 = vmatpush1.bf16.msra.mxu0 0
      %5204 = vmatprep.subr.bf16.mxu0 0
      %5205 = vmatpush1.bf16.msra.mxu0 0
      %5206 = vmatprep.subr.bf16.mxu0 0
      %5207 = vmatpush1.bf16.msra.mxu0 0
      %5208 = vmatprep.subr.bf16.mxu0 0
      %5209 = vmatpush1.bf16.msra.mxu0 0
      %5210 = vmatprep.subr.bf16.mxu0 0
      %5211 = vmatpush1.bf16.msra.mxu0 0
      %5212 = vmatprep.subr.bf16.mxu0 0
      %5213 = vmatpush1.bf16.msra.mxu0 0
      %5214 = vmatprep.mubr.bf16.mxu0 0
      %5215 = vmatmul.mubr.bf16.gmra.mrb[0].mxu0 %v5115
      %v5216 = vpop.f32.mrb[0].mxu0
      %v5217 = vadd.f32 0.0, %v5216
      %v5218 = vpop.f32.mrb[0].mxu0
      %v5219 = vadd.f32 0.0, %v5218
      %v5220 = vpop.f32.mrb[0].mxu0
      %v5221 = vpop.f32.mrb[0].mxu0
      %5222 = vdwg.mxu0
      %5223 = vmatprep.subr.bf16.mxu0 %v5133
      %5224 = vmatpush1.bf16.msra.mxu0 %v5130
      %5225 = vmatprep.subr.bf16.mxu0 0
      %5226 = vmatpush1.bf16.msra.mxu0 0
      %5227 = vmatprep.subr.bf16.mxu0 0
      %5228 = vmatpush1.bf16.msra.mxu0 0
      %5229 = vmatprep.subr.bf16.mxu0 0
      %5230 = vmatpush1.bf16.msra.mxu0 0
      %5231 = vmatprep.subr.bf16.mxu0 0
      %5232 = vmatpush1.bf16.msra.mxu0 0
      %5233 = vmatprep.subr.bf16.mxu0 0
      %5234 = vmatpush1.bf16.msra.mxu0 0
      %5235 = vmatprep.subr.bf16.mxu0 0
      %5236 = vmatpush1.bf16.msra.mxu0 0
      %5237 = vmatprep.subr.bf16.mxu0 0
      %5238 = vmatpush1.bf16.msra.mxu0 0
      %5239 = vmatprep.subr.bf16.mxu0 0
      %5240 = vmatpush1.bf16.msra.mxu0 0
      %5241 = vmatprep.subr.bf16.mxu0 0
      %5242 = vmatpush1.bf16.msra.mxu0 0
      %5243 = vmatprep.subr.bf16.mxu0 0
      %5244 = vmatpush1.bf16.msra.mxu0 0
      %5245 = vmatprep.subr.bf16.mxu0 0
      %5246 = vmatpush1.bf16.msra.mxu0 0
      %5247 = vmatprep.subr.bf16.mxu0 0
      %5248 = vmatpush1.bf16.msra.mxu0 0
      %5249 = vmatprep.subr.bf16.mxu0 0
      %5250 = vmatpush1.bf16.msra.mxu0 0
      %5251 = vmatprep.subr.bf16.mxu0 0
      %5252 = vmatpush1.bf16.msra.mxu0 0
      %5253 = vmatprep.subr.bf16.mxu0 0
      %5254 = vmatpush1.bf16.msra.mxu0 0
      %5255 = vmatprep.mubr.bf16.mxu0 0
      %5256 = vmatmul.mubr.bf16.gmra.mrb[0].mxu0 %v5115
      %v5257 = vpop.f32.mrb[0].mxu0
      %v5258 = vadd.f32 0.0, %v5257
      %v5259 = vpop.f32.mrb[0].mxu0
      %v5260 = vadd.f32 0.0, %v5259
      %v5261 = vpop.f32.mrb[0].mxu0
      %v5262 = vpop.f32.mrb[0].mxu0
      %5263 = vdwg.mxu0
      %5264 = vmatprep.subr.bf16.mxu0 %v5139
      %5265 = vmatpush1.bf16.msra.mxu0 %v5136
      %5266 = vmatprep.subr.bf16.mxu0 0
      %5267 = vmatpush1.bf16.msra.mxu0 0
      %5268 = vmatprep.subr.bf16.mxu0 0
      %5269 = vmatpush1.bf16.msra.mxu0 0
      %5270 = vmatprep.subr.bf16.mxu0 0
      %5271 = vmatpush1.bf16.msra.mxu0 0
      %5272 = vmatprep.subr.bf16.mxu0 0
      %5273 = vmatpush1.bf16.msra.mxu0 0
      %5274 = vmatprep.subr.bf16.mxu0 0
      %5275 = vmatpush1.bf16.msra.mxu0 0
      %5276 = vmatprep.subr.bf16.mxu0 0
      %5277 = vmatpush1.bf16.msra.mxu0 0
      %5278 = vmatprep.subr.bf16.mxu0 0
      %5279 = vmatpush1.bf16.msra.mxu0 0
      %5280 = vmatprep.subr.bf16.mxu0 0
      %5281 = vmatpush1.bf16.msra.mxu0 0
      %5282 = vmatprep.subr.bf16.mxu0 0
      %5283 = vmatpush1.bf16.msra.mxu0 0
      %5284 = vmatprep.subr.bf16.mxu0 0
      %5285 = vmatpush1.bf16.msra.mxu0 0
      %5286 = vmatprep.subr.bf16.mxu0 0
      %5287 = vmatpush1.bf16.msra.mxu0 0
      %5288 = vmatprep.subr.bf16.mxu0 0
      %5289 = vmatpush1.bf16.msra.mxu0 0
      %5290 = vmatprep.subr.bf16.mxu0 0
      %5291 = vmatpush1.bf16.msra.mxu0 0
      %5292 = vmatprep.subr.bf16.mxu0 0
      %5293 = vmatpush1.bf16.msra.mxu0 0
      %5294 = vmatprep.subr.bf16.mxu0 0
      %5295 = vmatpush1.bf16.msra.mxu0 0
      %5296 = vmatprep.mubr.bf16.mxu0 0
      %5297 = vmatmul.mubr.bf16.gmra.mrb[0].mxu0 %v5115
      %v5298 = vpop.f32.mrb[0].mxu0
      %v5299 = vadd.f32 0.0, %v5298
      %v5300 = vpop.f32.mrb[0].mxu0
      %v5301 = vadd.f32 0.0, %v5300
      %v5302 = vpop.f32.mrb[0].mxu0
      %v5303 = vpop.f32.mrb[0].mxu0
      %5304 = vdwg.mxu0
      %v5305 = vadd.f32 %v5064, %v5176
      %v5306 = vadd.f32 %v5065, %v5178
      %v5307 = vadd.f32 %v5066, %v5217
      %v5308 = vadd.f32 %v5067, %v5219
      %v5309 = vadd.f32 %v5068, %v5258
      %v5310 = vadd.f32 %v5069, %v5260
      %v5311 = vadd.f32 %v5070, %v5299
      %v5312 = vadd.f32 %v5071, %v5301
      %5313 = vrot.lane.b32.xlu0 %v3896, 97
      %v5314 = vpop.permute.xlu0 %5313
      %5315 = vrot.lane.b32.xlu0 %v3897, 97
      %v5316 = vpop.permute.xlu0 %5315
      %5317 = vrot.lane.b32.xlu0 %v3898, 97
      %v5318 = vpop.permute.xlu0 %5317
      %5319 = vrot.lane.b32.xlu0 %v3899, 97
      %v5320 = vpop.permute.xlu0 %5319
      %5321 = vrot.lane.b32.xlu0 %v3900, 97
      %v5322 = vpop.permute.xlu0 %5321
      %5323 = vrot.lane.b32.xlu0 %v3901, 97
      %v5324 = vpop.permute.xlu0 %5323
      %5325 = vrot.lane.b32.xlu0 %v3902, 97
      %v5326 = vpop.permute.xlu0 %5325
      %5327 = vrot.lane.b32.xlu0 %v3903, 97
      %v5328 = vpop.permute.xlu0 %5327
      %v5329 = vsel %vm3054, %v5326, %v5328
      %v5330 = vsel %vm3054, %v5324, %v5326
      %v5331 = vsel %vm3054, %v5322, %v5324
      %v5332 = vsel %vm3054, %v5320, %v5322
      %v5333 = vsel %vm3054, %v5318, %v5320
      %v5334 = vsel %vm3054, %v5316, %v5318
      %v5335 = vsel %vm3054, %v5314, %v5316
      %v5336 = vsel %vm3054, %v5328, %v5314
      %v5337 = vmul.f32 %v5335, %v3066
      %v5338 = vmul.f32 %v5334, %v3070
      %v5339 = vmul.f32 %v5333, %v3074
      %v5340 = vmul.f32 %v5332, %v3078
      %v5341 = vmul.f32 %v5331, %v3082
      %v5342 = vmul.f32 %v5330, %v3086
      %v5343 = vmul.f32 %v5329, %v3090
      %v5344 = vmul.f32 %v5336, %v3094
      %s5345 = scalar_lea.vmem %s7, 24
      %v5346 = vld [vmem:[%s5345] sm:$0xf]
      %v5347 = vpack.c.bf16 %v5337, %v5337
      %v5348 = vpack.c.bf16 %v5338, %v5338
      %v5349 = vpack.c.bf16 %v5339, %v5339
      %v5350 = vpack.c.bf16 %v5340, %v5340
      %v5351 = vpack.c.bf16 %v5341, %v5341
      %v5352 = vpack.c.bf16 %v5342, %v5342
      %v5353 = vpack.c.bf16 %v5343, %v5343
      %v5354 = vpack.c.bf16 %v5344, %v5344
      %v5356 = vsel %vm1623, %v5346, 0
      %v5359 = vsel %vm1627, %v5347, 0
      %v5362 = vsel %vm1627, %v5348, 0
      %v5365 = vsel %vm1627, %v5349, 0
      %v5368 = vsel %vm1627, %v5350, 0
      %v5371 = vsel %vm1627, %v5351, 0
      %v5374 = vsel %vm1627, %v5352, 0
      %v5377 = vsel %vm1627, %v5353, 0
      %v5380 = vsel %vm1627, %v5354, 0
      %5382 = vmatprep.subr.bf16.mxu0 %v5362
      %5383 = vmatpush1.bf16.msra.mxu0 %v5359
      %5384 = vmatprep.subr.bf16.mxu0 0
      %5385 = vmatpush1.bf16.msra.mxu0 0
      %5386 = vmatprep.subr.bf16.mxu0 0
      %5387 = vmatpush1.bf16.msra.mxu0 0
      %5388 = vmatprep.subr.bf16.mxu0 0
      %5389 = vmatpush1.bf16.msra.mxu0 0
      %5390 = vmatprep.subr.bf16.mxu0 0
      %5391 = vmatpush1.bf16.msra.mxu0 0
      %5392 = vmatprep.subr.bf16.mxu0 0
      %5393 = vmatpush1.bf16.msra.mxu0 0
      %5394 = vmatprep.subr.bf16.mxu0 0
      %5395 = vmatpush1.bf16.msra.mxu0 0
      %5396 = vmatprep.subr.bf16.mxu0 0
      %5397 = vmatpush1.bf16.msra.mxu0 0
      %5398 = vmatprep.subr.bf16.mxu0 0
      %5399 = vmatpush1.bf16.msra.mxu0 0
      %5400 = vmatprep.subr.bf16.mxu0 0
      %5401 = vmatpush1.bf16.msra.mxu0 0
      %5402 = vmatprep.subr.bf16.mxu0 0
      %5403 = vmatpush1.bf16.msra.mxu0 0
      %5404 = vmatprep.subr.bf16.mxu0 0
      %5405 = vmatpush1.bf16.msra.mxu0 0
      %5406 = vmatprep.subr.bf16.mxu0 0
      %5407 = vmatpush1.bf16.msra.mxu0 0
      %5408 = vmatprep.subr.bf16.mxu0 0
      %5409 = vmatpush1.bf16.msra.mxu0 0
      %5410 = vmatprep.subr.bf16.mxu0 0
      %5411 = vmatpush1.bf16.msra.mxu0 0
      %5412 = vmatprep.subr.bf16.mxu0 0
      %5413 = vmatpush1.bf16.msra.mxu0 0
      %5414 = vmatprep.mubr.bf16.mxu0 0
      %5415 = vmatmul.mubr.bf16.gmra.mrb[0].mxu0 %v5356
      %v5416 = vpop.f32.mrb[0].mxu0
      %v5417 = vadd.f32 0.0, %v5416
      %v5418 = vpop.f32.mrb[0].mxu0
      %v5419 = vadd.f32 0.0, %v5418
      %v5420 = vpop.f32.mrb[0].mxu0
      %v5421 = vpop.f32.mrb[0].mxu0
      %5422 = vdwg.mxu0
      %5423 = vmatprep.subr.bf16.mxu0 %v5368
      %5424 = vmatpush1.bf16.msra.mxu0 %v5365
      %5425 = vmatprep.subr.bf16.mxu0 0
      %5426 = vmatpush1.bf16.msra.mxu0 0
      %5427 = vmatprep.subr.bf16.mxu0 0
      %5428 = vmatpush1.bf16.msra.mxu0 0
      %5429 = vmatprep.subr.bf16.mxu0 0
      %5430 = vmatpush1.bf16.msra.mxu0 0
      %5431 = vmatprep.subr.bf16.mxu0 0
      %5432 = vmatpush1.bf16.msra.mxu0 0
      %5433 = vmatprep.subr.bf16.mxu0 0
      %5434 = vmatpush1.bf16.msra.mxu0 0
      %5435 = vmatprep.subr.bf16.mxu0 0
      %5436 = vmatpush1.bf16.msra.mxu0 0
      %5437 = vmatprep.subr.bf16.mxu0 0
      %5438 = vmatpush1.bf16.msra.mxu0 0
      %5439 = vmatprep.subr.bf16.mxu0 0
      %5440 = vmatpush1.bf16.msra.mxu0 0
      %5441 = vmatprep.subr.bf16.mxu0 0
      %5442 = vmatpush1.bf16.msra.mxu0 0
      %5443 = vmatprep.subr.bf16.mxu0 0
      %5444 = vmatpush1.bf16.msra.mxu0 0
      %5445 = vmatprep.subr.bf16.mxu0 0
      %5446 = vmatpush1.bf16.msra.mxu0 0
      %5447 = vmatprep.subr.bf16.mxu0 0
      %5448 = vmatpush1.bf16.msra.mxu0 0
      %5449 = vmatprep.subr.bf16.mxu0 0
      %5450 = vmatpush1.bf16.msra.mxu0 0
      %5451 = vmatprep.subr.bf16.mxu0 0
      %5452 = vmatpush1.bf16.msra.mxu0 0
      %5453 = vmatprep.subr.bf16.mxu0 0
      %5454 = vmatpush1.bf16.msra.mxu0 0
      %5455 = vmatprep.mubr.bf16.mxu0 0
      %5456 = vmatmul.mubr.bf16.gmra.mrb[0].mxu0 %v5356
      %v5457 = vpop.f32.mrb[0].mxu0
      %v5458 = vadd.f32 0.0, %v5457
      %v5459 = vpop.f32.mrb[0].mxu0
      %v5460 = vadd.f32 0.0, %v5459
      %v5461 = vpop.f32.mrb[0].mxu0
      %v5462 = vpop.f32.mrb[0].mxu0
      %5463 = vdwg.mxu0
      %5464 = vmatprep.subr.bf16.mxu0 %v5374
      %5465 = vmatpush1.bf16.msra.mxu0 %v5371
      %5466 = vmatprep.subr.bf16.mxu0 0
      %5467 = vmatpush1.bf16.msra.mxu0 0
      %5468 = vmatprep.subr.bf16.mxu0 0
      %5469 = vmatpush1.bf16.msra.mxu0 0
      %5470 = vmatprep.subr.bf16.mxu0 0
      %5471 = vmatpush1.bf16.msra.mxu0 0
      %5472 = vmatprep.subr.bf16.mxu0 0
      %5473 = vmatpush1.bf16.msra.mxu0 0
      %5474 = vmatprep.subr.bf16.mxu0 0
      %5475 = vmatpush1.bf16.msra.mxu0 0
      %5476 = vmatprep.subr.bf16.mxu0 0
      %5477 = vmatpush1.bf16.msra.mxu0 0
      %5478 = vmatprep.subr.bf16.mxu0 0
      %5479 = vmatpush1.bf16.msra.mxu0 0
      %5480 = vmatprep.subr.bf16.mxu0 0
      %5481 = vmatpush1.bf16.msra.mxu0 0
      %5482 = vmatprep.subr.bf16.mxu0 0
      %5483 = vmatpush1.bf16.msra.mxu0 0
      %5484 = vmatprep.subr.bf16.mxu0 0
      %5485 = vmatpush1.bf16.msra.mxu0 0
      %5486 = vmatprep.subr.bf16.mxu0 0
      %5487 = vmatpush1.bf16.msra.mxu0 0
      %5488 = vmatprep.subr.bf16.mxu0 0
      %5489 = vmatpush1.bf16.msra.mxu0 0
      %5490 = vmatprep.subr.bf16.mxu0 0
      %5491 = vmatpush1.bf16.msra.mxu0 0
      %5492 = vmatprep.subr.bf16.mxu0 0
      %5493 = vmatpush1.bf16.msra.mxu0 0
      %5494 = vmatprep.subr.bf16.mxu0 0
      %5495 = vmatpush1.bf16.msra.mxu0 0
      %5496 = vmatprep.mubr.bf16.mxu0 0
      %5497 = vmatmul.mubr.bf16.gmra.mrb[0].mxu0 %v5356
      %v5498 = vpop.f32.mrb[0].mxu0
      %v5499 = vadd.f32 0.0, %v5498
      %v5500 = vpop.f32.mrb[0].mxu0
      %v5501 = vadd.f32 0.0, %v5500
      %v5502 = vpop.f32.mrb[0].mxu0
      %v5503 = vpop.f32.mrb[0].mxu0
      %5504 = vdwg.mxu0
      %5505 = vmatprep.subr.bf16.mxu0 %v5380
      %5506 = vmatpush1.bf16.msra.mxu0 %v5377
      %5507 = vmatprep.subr.bf16.mxu0 0
      %5508 = vmatpush1.bf16.msra.mxu0 0
      %5509 = vmatprep.subr.bf16.mxu0 0
      %5510 = vmatpush1.bf16.msra.mxu0 0
      %5511 = vmatprep.subr.bf16.mxu0 0
      %5512 = vmatpush1.bf16.msra.mxu0 0
      %5513 = vmatprep.subr.bf16.mxu0 0
      %5514 = vmatpush1.bf16.msra.mxu0 0
      %5515 = vmatprep.subr.bf16.mxu0 0
      %5516 = vmatpush1.bf16.msra.mxu0 0
      %5517 = vmatprep.subr.bf16.mxu0 0
      %5518 = vmatpush1.bf16.msra.mxu0 0
      %5519 = vmatprep.subr.bf16.mxu0 0
      %5520 = vmatpush1.bf16.msra.mxu0 0
      %5521 = vmatprep.subr.bf16.mxu0 0
      %5522 = vmatpush1.bf16.msra.mxu0 0
      %5523 = vmatprep.subr.bf16.mxu0 0
      %5524 = vmatpush1.bf16.msra.mxu0 0
      %5525 = vmatprep.subr.bf16.mxu0 0
      %5526 = vmatpush1.bf16.msra.mxu0 0
      %5527 = vmatprep.subr.bf16.mxu0 0
      %5528 = vmatpush1.bf16.msra.mxu0 0
      %5529 = vmatprep.subr.bf16.mxu0 0
      %5530 = vmatpush1.bf16.msra.mxu0 0
      %5531 = vmatprep.subr.bf16.mxu0 0
      %5532 = vmatpush1.bf16.msra.mxu0 0
      %5533 = vmatprep.subr.bf16.mxu0 0
      %5534 = vmatpush1.bf16.msra.mxu0 0
      %5535 = vmatprep.subr.bf16.mxu0 0
      %5536 = vmatpush1.bf16.msra.mxu0 0
      %5537 = vmatprep.mubr.bf16.mxu0 0
      %5538 = vmatmul.mubr.bf16.gmra.mrb[0].mxu0 %v5356
      %v5539 = vpop.f32.mrb[0].mxu0
      %v5540 = vadd.f32 0.0, %v5539
      %v5541 = vpop.f32.mrb[0].mxu0
      %v5542 = vadd.f32 0.0, %v5541
      %v5543 = vpop.f32.mrb[0].mxu0
      %v5544 = vpop.f32.mrb[0].mxu0
      %5545 = vdwg.mxu0
      %v5546 = vadd.f32 %v5305, %v5417
      %v5547 = vadd.f32 %v5306, %v5419
      %v5548 = vadd.f32 %v5307, %v5458
      %v5549 = vadd.f32 %v5308, %v5460
      %v5550 = vadd.f32 %v5309, %v5499
      %v5551 = vadd.f32 %v5310, %v5501
      %v5552 = vadd.f32 %v5311, %v5540
      %v5553 = vadd.f32 %v5312, %v5542
      %5554 = vrot.lane.b32.xlu0 %v3896, 96
      %v5555 = vpop.permute.xlu0 %5554
      %5556 = vrot.lane.b32.xlu0 %v3897, 96
      %v5557 = vpop.permute.xlu0 %5556
      %5558 = vrot.lane.b32.xlu0 %v3898, 96
      %v5559 = vpop.permute.xlu0 %5558
      %5560 = vrot.lane.b32.xlu0 %v3899, 96
      %v5561 = vpop.permute.xlu0 %5560
      %5562 = vrot.lane.b32.xlu0 %v3900, 96
      %v5563 = vpop.permute.xlu0 %5562
      %5564 = vrot.lane.b32.xlu0 %v3901, 96
      %v5565 = vpop.permute.xlu0 %5564
      %5566 = vrot.lane.b32.xlu0 %v3902, 96
      %v5567 = vpop.permute.xlu0 %5566
      %5568 = vrot.lane.b32.xlu0 %v3903, 96
      %v5569 = vpop.permute.xlu0 %5568
      %v5570 = vsel %vm3328, %v5567, %v5569
      %v5571 = vsel %vm3328, %v5565, %v5567
      %v5572 = vsel %vm3328, %v5563, %v5565
      %v5573 = vsel %vm3328, %v5561, %v5563
      %v5574 = vsel %vm3328, %v5559, %v5561
      %v5575 = vsel %vm3328, %v5557, %v5559
      %v5576 = vsel %vm3328, %v5555, %v5557
      %v5577 = vsel %vm3328, %v5569, %v5555
      %v5578 = vmul.f32 %v5576, %v3340
      %v5579 = vmul.f32 %v5575, %v3344
      %v5580 = vmul.f32 %v5574, %v3348
      %v5581 = vmul.f32 %v5573, %v3352
      %v5582 = vmul.f32 %v5572, %v3356
      %v5583 = vmul.f32 %v5571, %v3360
      %v5584 = vmul.f32 %v5570, %v3364
      %v5585 = vmul.f32 %v5577, %v3368
      %s5586 = scalar_lea.vmem %s7, 28
      %v5587 = vld [vmem:[%s5586] sm:$0xf]
      %v5588 = vpack.c.bf16 %v5578, %v5578
      %v5589 = vpack.c.bf16 %v5579, %v5579
      %v5590 = vpack.c.bf16 %v5580, %v5580
      %v5591 = vpack.c.bf16 %v5581, %v5581
      %v5592 = vpack.c.bf16 %v5582, %v5582
      %v5593 = vpack.c.bf16 %v5583, %v5583
      %v5594 = vpack.c.bf16 %v5584, %v5584
      %v5595 = vpack.c.bf16 %v5585, %v5585
      %v5597 = vsel %vm1623, %v5587, 0
      %v5600 = vsel %vm1627, %v5588, 0
      %v5603 = vsel %vm1627, %v5589, 0
      %v5606 = vsel %vm1627, %v5590, 0
      %v5609 = vsel %vm1627, %v5591, 0
      %v5612 = vsel %vm1627, %v5592, 0
      %v5615 = vsel %vm1627, %v5593, 0
      %v5618 = vsel %vm1627, %v5594, 0
      %v5621 = vsel %vm1627, %v5595, 0
      %5623 = vmatprep.subr.bf16.mxu0 %v5603
      %5624 = vmatpush1.bf16.msra.mxu0 %v5600
      %5625 = vmatprep.subr.bf16.mxu0 0
      %5626 = vmatpush1.bf16.msra.mxu0 0
      %5627 = vmatprep.subr.bf16.mxu0 0
      %5628 = vmatpush1.bf16.msra.mxu0 0
      %5629 = vmatprep.subr.bf16.mxu0 0
      %5630 = vmatpush1.bf16.msra.mxu0 0
      %5631 = vmatprep.subr.bf16.mxu0 0
      %5632 = vmatpush1.bf16.msra.mxu0 0
      %5633 = vmatprep.subr.bf16.mxu0 0
      %5634 = vmatpush1.bf16.msra.mxu0 0
      %5635 = vmatprep.subr.bf16.mxu0 0
      %5636 = vmatpush1.bf16.msra.mxu0 0
      %5637 = vmatprep.subr.bf16.mxu0 0
      %5638 = vmatpush1.bf16.msra.mxu0 0
      %5639 = vmatprep.subr.bf16.mxu0 0
      %5640 = vmatpush1.bf16.msra.mxu0 0
      %5641 = vmatprep.subr.bf16.mxu0 0
      %5642 = vmatpush1.bf16.msra.mxu0 0
      %5643 = vmatprep.subr.bf16.mxu0 0
      %5644 = vmatpush1.bf16.msra.mxu0 0
      %5645 = vmatprep.subr.bf16.mxu0 0
      %5646 = vmatpush1.bf16.msra.mxu0 0
      %5647 = vmatprep.subr.bf16.mxu0 0
      %5648 = vmatpush1.bf16.msra.mxu0 0
      %5649 = vmatprep.subr.bf16.mxu0 0
      %5650 = vmatpush1.bf16.msra.mxu0 0
      %5651 = vmatprep.subr.bf16.mxu0 0
      %5652 = vmatpush1.bf16.msra.mxu0 0
      %5653 = vmatprep.subr.bf16.mxu0 0
      %5654 = vmatpush1.bf16.msra.mxu0 0
      %5655 = vmatprep.mubr.bf16.mxu0 0
      %5656 = vmatmul.mubr.bf16.gmra.mrb[0].mxu0 %v5597
      %v5657 = vpop.f32.mrb[0].mxu0
      %v5658 = vadd.f32 0.0, %v5657
      %v5659 = vpop.f32.mrb[0].mxu0
      %v5660 = vadd.f32 0.0, %v5659
      %v5661 = vpop.f32.mrb[0].mxu0
      %v5662 = vpop.f32.mrb[0].mxu0
      %5663 = vdwg.mxu0
      %5664 = vmatprep.subr.bf16.mxu0 %v5609
      %5665 = vmatpush1.bf16.msra.mxu0 %v5606
      %5666 = vmatprep.subr.bf16.mxu0 0
      %5667 = vmatpush1.bf16.msra.mxu0 0
      %5668 = vmatprep.subr.bf16.mxu0 0
      %5669 = vmatpush1.bf16.msra.mxu0 0
      %5670 = vmatprep.subr.bf16.mxu0 0
      %5671 = vmatpush1.bf16.msra.mxu0 0
      %5672 = vmatprep.subr.bf16.mxu0 0
      %5673 = vmatpush1.bf16.msra.mxu0 0
      %5674 = vmatprep.subr.bf16.mxu0 0
      %5675 = vmatpush1.bf16.msra.mxu0 0
      %5676 = vmatprep.subr.bf16.mxu0 0
      %5677 = vmatpush1.bf16.msra.mxu0 0
      %5678 = vmatprep.subr.bf16.mxu0 0
      %5679 = vmatpush1.bf16.msra.mxu0 0
      %5680 = vmatprep.subr.bf16.mxu0 0
      %5681 = vmatpush1.bf16.msra.mxu0 0
      %5682 = vmatprep.subr.bf16.mxu0 0
      %5683 = vmatpush1.bf16.msra.mxu0 0
      %5684 = vmatprep.subr.bf16.mxu0 0
      %5685 = vmatpush1.bf16.msra.mxu0 0
      %5686 = vmatprep.subr.bf16.mxu0 0
      %5687 = vmatpush1.bf16.msra.mxu0 0
      %5688 = vmatprep.subr.bf16.mxu0 0
      %5689 = vmatpush1.bf16.msra.mxu0 0
      %5690 = vmatprep.subr.bf16.mxu0 0
      %5691 = vmatpush1.bf16.msra.mxu0 0
      %5692 = vmatprep.subr.bf16.mxu0 0
      %5693 = vmatpush1.bf16.msra.mxu0 0
      %5694 = vmatprep.subr.bf16.mxu0 0
      %5695 = vmatpush1.bf16.msra.mxu0 0
      %5696 = vmatprep.mubr.bf16.mxu0 0
      %5697 = vmatmul.mubr.bf16.gmra.mrb[0].mxu0 %v5597
      %v5698 = vpop.f32.mrb[0].mxu0
      %v5699 = vadd.f32 0.0, %v5698
      %v5700 = vpop.f32.mrb[0].mxu0
      %v5701 = vadd.f32 0.0, %v5700
      %v5702 = vpop.f32.mrb[0].mxu0
      %v5703 = vpop.f32.mrb[0].mxu0
      %5704 = vdwg.mxu0
      %5705 = vmatprep.subr.bf16.mxu0 %v5615
      %5706 = vmatpush1.bf16.msra.mxu0 %v5612
      %5707 = vmatprep.subr.bf16.mxu0 0
      %5708 = vmatpush1.bf16.msra.mxu0 0
      %5709 = vmatprep.subr.bf16.mxu0 0
      %5710 = vmatpush1.bf16.msra.mxu0 0
      %5711 = vmatprep.subr.bf16.mxu0 0
      %5712 = vmatpush1.bf16.msra.mxu0 0
      %5713 = vmatprep.subr.bf16.mxu0 0
      %5714 = vmatpush1.bf16.msra.mxu0 0
      %5715 = vmatprep.subr.bf16.mxu0 0
      %5716 = vmatpush1.bf16.msra.mxu0 0
      %5717 = vmatprep.subr.bf16.mxu0 0
      %5718 = vmatpush1.bf16.msra.mxu0 0
      %5719 = vmatprep.subr.bf16.mxu0 0
      %5720 = vmatpush1.bf16.msra.mxu0 0
      %5721 = vmatprep.subr.bf16.mxu0 0
      %5722 = vmatpush1.bf16.msra.mxu0 0
      %5723 = vmatprep.subr.bf16.mxu0 0
      %5724 = vmatpush1.bf16.msra.mxu0 0
      %5725 = vmatprep.subr.bf16.mxu0 0
      %5726 = vmatpush1.bf16.msra.mxu0 0
      %5727 = vmatprep.subr.bf16.mxu0 0
      %5728 = vmatpush1.bf16.msra.mxu0 0
      %5729 = vmatprep.subr.bf16.mxu0 0
      %5730 = vmatpush1.bf16.msra.mxu0 0
      %5731 = vmatprep.subr.bf16.mxu0 0
      %5732 = vmatpush1.bf16.msra.mxu0 0
      %5733 = vmatprep.subr.bf16.mxu0 0
      %5734 = vmatpush1.bf16.msra.mxu0 0
      %5735 = vmatprep.subr.bf16.mxu0 0
      %5736 = vmatpush1.bf16.msra.mxu0 0
      %5737 = vmatprep.mubr.bf16.mxu0 0
      %5738 = vmatmul.mubr.bf16.gmra.mrb[0].mxu0 %v5597
      %v5739 = vpop.f32.mrb[0].mxu0
      %v5740 = vadd.f32 0.0, %v5739
      %v5741 = vpop.f32.mrb[0].mxu0
      %v5742 = vadd.f32 0.0, %v5741
      %v5743 = vpop.f32.mrb[0].mxu0
      %v5744 = vpop.f32.mrb[0].mxu0
      %5745 = vdwg.mxu0
      %5746 = vmatprep.subr.bf16.mxu0 %v5621
      %5747 = vmatpush1.bf16.msra.mxu0 %v5618
      %5748 = vmatprep.subr.bf16.mxu0 0
      %5749 = vmatpush1.bf16.msra.mxu0 0
      %5750 = vmatprep.subr.bf16.mxu0 0
      %5751 = vmatpush1.bf16.msra.mxu0 0
      %5752 = vmatprep.subr.bf16.mxu0 0
      %5753 = vmatpush1.bf16.msra.mxu0 0
      %5754 = vmatprep.subr.bf16.mxu0 0
      %5755 = vmatpush1.bf16.msra.mxu0 0
      %5756 = vmatprep.subr.bf16.mxu0 0
      %5757 = vmatpush1.bf16.msra.mxu0 0
      %5758 = vmatprep.subr.bf16.mxu0 0
      %5759 = vmatpush1.bf16.msra.mxu0 0
      %5760 = vmatprep.subr.bf16.mxu0 0
      %5761 = vmatpush1.bf16.msra.mxu0 0
      %5762 = vmatprep.subr.bf16.mxu0 0
      %5763 = vmatpush1.bf16.msra.mxu0 0
      %5764 = vmatprep.subr.bf16.mxu0 0
      %5765 = vmatpush1.bf16.msra.mxu0 0
      %5766 = vmatprep.subr.bf16.mxu0 0
      %5767 = vmatpush1.bf16.msra.mxu0 0
      %5768 = vmatprep.subr.bf16.mxu0 0
      %5769 = vmatpush1.bf16.msra.mxu0 0
      %5770 = vmatprep.subr.bf16.mxu0 0
      %5771 = vmatpush1.bf16.msra.mxu0 0
      %5772 = vmatprep.subr.bf16.mxu0 0
      %5773 = vmatpush1.bf16.msra.mxu0 0
      %5774 = vmatprep.subr.bf16.mxu0 0
      %5775 = vmatpush1.bf16.msra.mxu0 0
      %5776 = vmatprep.subr.bf16.mxu0 0
      %5777 = vmatpush1.bf16.msra.mxu0 0
      %5778 = vmatprep.mubr.bf16.mxu0 0
      %5779 = vmatmul.mubr.bf16.gmra.mrb[0].mxu0 %v5597
      %v5780 = vpop.f32.mrb[0].mxu0
      %v5781 = vadd.f32 0.0, %v5780
      %v5782 = vpop.f32.mrb[0].mxu0
      %v5783 = vadd.f32 0.0, %v5782
      %v5784 = vpop.f32.mrb[0].mxu0
      %v5785 = vpop.f32.mrb[0].mxu0
      %5786 = vdwg.mxu0
      %v5787 = vadd.f32 %v5546, %v5658
      %v5788 = vadd.f32 %v5547, %v5660
      %v5789 = vadd.f32 %v5548, %v5699
      %v5790 = vadd.f32 %v5549, %v5701
      %v5791 = vadd.f32 %v5550, %v5740
      %v5792 = vadd.f32 %v5551, %v5742
      %v5793 = vadd.f32 %v5552, %v5781
      %v5794 = vadd.f32 %v5553, %v5783
      %5795 = vrot.lane.b32.xlu0 %v3896, 95
      %v5796 = vpop.permute.xlu0 %5795
      %5797 = vrot.lane.b32.xlu0 %v3897, 95
      %v5798 = vpop.permute.xlu0 %5797
      %5799 = vrot.lane.b32.xlu0 %v3898, 95
      %v5800 = vpop.permute.xlu0 %5799
      %5801 = vrot.lane.b32.xlu0 %v3899, 95
      %v5802 = vpop.permute.xlu0 %5801
      %5803 = vrot.lane.b32.xlu0 %v3900, 95
      %v5804 = vpop.permute.xlu0 %5803
      %5805 = vrot.lane.b32.xlu0 %v3901, 95
      %v5806 = vpop.permute.xlu0 %5805
      %5807 = vrot.lane.b32.xlu0 %v3902, 95
      %v5808 = vpop.permute.xlu0 %5807
      %5809 = vrot.lane.b32.xlu0 %v3903, 95
      %v5810 = vpop.permute.xlu0 %5809
      %v5811 = vsel %vm3602, %v5808, %v5810
      %v5812 = vsel %vm3602, %v5806, %v5808
      %v5813 = vsel %vm3602, %v5804, %v5806
      %v5814 = vsel %vm3602, %v5802, %v5804
      %v5815 = vsel %vm3602, %v5800, %v5802
      %v5816 = vsel %vm3602, %v5798, %v5800
      %v5817 = vsel %vm3602, %v5796, %v5798
      %v5818 = vsel %vm3602, %v5810, %v5796
      %v5819 = vmul.f32 %v5817, %v3614
      %v5820 = vmul.f32 %v5816, %v3618
      %v5821 = vmul.f32 %v5815, %v3622
      %v5822 = vmul.f32 %v5814, %v3626
      %v5823 = vmul.f32 %v5813, %v3630
      %v5824 = vmul.f32 %v5812, %v3634
      %v5825 = vmul.f32 %v5811, %v3638
      %v5826 = vmul.f32 %v5818, %v3642
      %s5827 = scalar_lea.vmem %s7, 32
      %v5828 = vld [vmem:[%s5827] sm:$0xf]
      %v5829 = vpack.c.bf16 %v5819, %v5819
      %v5830 = vpack.c.bf16 %v5820, %v5820
      %v5831 = vpack.c.bf16 %v5821, %v5821
      %v5832 = vpack.c.bf16 %v5822, %v5822
      %v5833 = vpack.c.bf16 %v5823, %v5823
      %v5834 = vpack.c.bf16 %v5824, %v5824
      %v5835 = vpack.c.bf16 %v5825, %v5825
      %v5836 = vpack.c.bf16 %v5826, %v5826
      %v5838 = vsel %vm1623, %v5828, 0
      %v5841 = vsel %vm1627, %v5829, 0
      %v5844 = vsel %vm1627, %v5830, 0
      %v5847 = vsel %vm1627, %v5831, 0
      %v5850 = vsel %vm1627, %v5832, 0
      %v5853 = vsel %vm1627, %v5833, 0
      %v5856 = vsel %vm1627, %v5834, 0
      %v5859 = vsel %vm1627, %v5835, 0
      %v5862 = vsel %vm1627, %v5836, 0
      %5864 = vmatprep.subr.bf16.mxu0 %v5844
      %5865 = vmatpush1.bf16.msra.mxu0 %v5841
      %5866 = vmatprep.subr.bf16.mxu0 0
      %5867 = vmatpush1.bf16.msra.mxu0 0
      %5868 = vmatprep.subr.bf16.mxu0 0
      %5869 = vmatpush1.bf16.msra.mxu0 0
      %5870 = vmatprep.subr.bf16.mxu0 0
      %5871 = vmatpush1.bf16.msra.mxu0 0
      %5872 = vmatprep.subr.bf16.mxu0 0
      %5873 = vmatpush1.bf16.msra.mxu0 0
      %5874 = vmatprep.subr.bf16.mxu0 0
      %5875 = vmatpush1.bf16.msra.mxu0 0
      %5876 = vmatprep.subr.bf16.mxu0 0
      %5877 = vmatpush1.bf16.msra.mxu0 0
      %5878 = vmatprep.subr.bf16.mxu0 0
      %5879 = vmatpush1.bf16.msra.mxu0 0
      %5880 = vmatprep.subr.bf16.mxu0 0
      %5881 = vmatpush1.bf16.msra.mxu0 0
      %5882 = vmatprep.subr.bf16.mxu0 0
      %5883 = vmatpush1.bf16.msra.mxu0 0
      %5884 = vmatprep.subr.bf16.mxu0 0
      %5885 = vmatpush1.bf16.msra.mxu0 0
      %5886 = vmatprep.subr.bf16.mxu0 0
      %5887 = vmatpush1.bf16.msra.mxu0 0
      %5888 = vmatprep.subr.bf16.mxu0 0
      %5889 = vmatpush1.bf16.msra.mxu0 0
      %5890 = vmatprep.subr.bf16.mxu0 0
      %5891 = vmatpush1.bf16.msra.mxu0 0
      %5892 = vmatprep.subr.bf16.mxu0 0
      %5893 = vmatpush1.bf16.msra.mxu0 0
      %5894 = vmatprep.subr.bf16.mxu0 0
      %5895 = vmatpush1.bf16.msra.mxu0 0
      %5896 = vmatprep.mubr.bf16.mxu0 0
      %5897 = vmatmul.mubr.bf16.gmra.mrb[0].mxu0 %v5838
      %v5898 = vpop.f32.mrb[0].mxu0
      %v5899 = vadd.f32 0.0, %v5898
      %v5900 = vpop.f32.mrb[0].mxu0
      %v5901 = vadd.f32 0.0, %v5900
      %v5902 = vpop.f32.mrb[0].mxu0
      %v5903 = vpop.f32.mrb[0].mxu0
      %5904 = vdwg.mxu0
      %5905 = vmatprep.subr.bf16.mxu0 %v5850
      %5906 = vmatpush1.bf16.msra.mxu0 %v5847
      %5907 = vmatprep.subr.bf16.mxu0 0
      %5908 = vmatpush1.bf16.msra.mxu0 0
      %5909 = vmatprep.subr.bf16.mxu0 0
      %5910 = vmatpush1.bf16.msra.mxu0 0
      %5911 = vmatprep.subr.bf16.mxu0 0
      %5912 = vmatpush1.bf16.msra.mxu0 0
      %5913 = vmatprep.subr.bf16.mxu0 0
      %5914 = vmatpush1.bf16.msra.mxu0 0
      %5915 = vmatprep.subr.bf16.mxu0 0
      %5916 = vmatpush1.bf16.msra.mxu0 0
      %5917 = vmatprep.subr.bf16.mxu0 0
      %5918 = vmatpush1.bf16.msra.mxu0 0
      %5919 = vmatprep.subr.bf16.mxu0 0
      %5920 = vmatpush1.bf16.msra.mxu0 0
      %5921 = vmatprep.subr.bf16.mxu0 0
      %5922 = vmatpush1.bf16.msra.mxu0 0
      %5923 = vmatprep.subr.bf16.mxu0 0
      %5924 = vmatpush1.bf16.msra.mxu0 0
      %5925 = vmatprep.subr.bf16.mxu0 0
      %5926 = vmatpush1.bf16.msra.mxu0 0
      %5927 = vmatprep.subr.bf16.mxu0 0
      %5928 = vmatpush1.bf16.msra.mxu0 0
      %5929 = vmatprep.subr.bf16.mxu0 0
      %5930 = vmatpush1.bf16.msra.mxu0 0
      %5931 = vmatprep.subr.bf16.mxu0 0
      %5932 = vmatpush1.bf16.msra.mxu0 0
      %5933 = vmatprep.subr.bf16.mxu0 0
      %5934 = vmatpush1.bf16.msra.mxu0 0
      %5935 = vmatprep.subr.bf16.mxu0 0
      %5936 = vmatpush1.bf16.msra.mxu0 0
      %5937 = vmatprep.mubr.bf16.mxu0 0
      %5938 = vmatmul.mubr.bf16.gmra.mrb[0].mxu0 %v5838
      %v5939 = vpop.f32.mrb[0].mxu0
      %v5940 = vadd.f32 0.0, %v5939
      %v5941 = vpop.f32.mrb[0].mxu0
      %v5942 = vadd.f32 0.0, %v5941
      %v5943 = vpop.f32.mrb[0].mxu0
      %v5944 = vpop.f32.mrb[0].mxu0
      %5945 = vdwg.mxu0
      %5946 = vmatprep.subr.bf16.mxu0 %v5856
      %5947 = vmatpush1.bf16.msra.mxu0 %v5853
      %5948 = vmatprep.subr.bf16.mxu0 0
      %5949 = vmatpush1.bf16.msra.mxu0 0
      %5950 = vmatprep.subr.bf16.mxu0 0
      %5951 = vmatpush1.bf16.msra.mxu0 0
      %5952 = vmatprep.subr.bf16.mxu0 0
      %5953 = vmatpush1.bf16.msra.mxu0 0
      %5954 = vmatprep.subr.bf16.mxu0 0
      %5955 = vmatpush1.bf16.msra.mxu0 0
      %5956 = vmatprep.subr.bf16.mxu0 0
      %5957 = vmatpush1.bf16.msra.mxu0 0
      %5958 = vmatprep.subr.bf16.mxu0 0
      %5959 = vmatpush1.bf16.msra.mxu0 0
      %5960 = vmatprep.subr.bf16.mxu0 0
      %5961 = vmatpush1.bf16.msra.mxu0 0
      %5962 = vmatprep.subr.bf16.mxu0 0
      %5963 = vmatpush1.bf16.msra.mxu0 0
      %5964 = vmatprep.subr.bf16.mxu0 0
      %5965 = vmatpush1.bf16.msra.mxu0 0
      %5966 = vmatprep.subr.bf16.mxu0 0
      %5967 = vmatpush1.bf16.msra.mxu0 0
      %5968 = vmatprep.subr.bf16.mxu0 0
      %5969 = vmatpush1.bf16.msra.mxu0 0
      %5970 = vmatprep.subr.bf16.mxu0 0
      %5971 = vmatpush1.bf16.msra.mxu0 0
      %5972 = vmatprep.subr.bf16.mxu0 0
      %5973 = vmatpush1.bf16.msra.mxu0 0
      %5974 = vmatprep.subr.bf16.mxu0 0
      %5975 = vmatpush1.bf16.msra.mxu0 0
      %5976 = vmatprep.subr.bf16.mxu0 0
      %5977 = vmatpush1.bf16.msra.mxu0 0
      %5978 = vmatprep.mubr.bf16.mxu0 0
      %5979 = vmatmul.mubr.bf16.gmra.mrb[0].mxu0 %v5838
      %v5980 = vpop.f32.mrb[0].mxu0
      %v5981 = vadd.f32 0.0, %v5980
      %v5982 = vpop.f32.mrb[0].mxu0
      %v5983 = vadd.f32 0.0, %v5982
      %v5984 = vpop.f32.mrb[0].mxu0
      %v5985 = vpop.f32.mrb[0].mxu0
      %5986 = vdwg.mxu0
      %5987 = vmatprep.subr.bf16.mxu0 %v5862
      %5988 = vmatpush1.bf16.msra.mxu0 %v5859
      %5989 = vmatprep.subr.bf16.mxu0 0
      %5990 = vmatpush1.bf16.msra.mxu0 0
      %5991 = vmatprep.subr.bf16.mxu0 0
      %5992 = vmatpush1.bf16.msra.mxu0 0
      %5993 = vmatprep.subr.bf16.mxu0 0
      %5994 = vmatpush1.bf16.msra.mxu0 0
      %5995 = vmatprep.subr.bf16.mxu0 0
      %5996 = vmatpush1.bf16.msra.mxu0 0
      %5997 = vmatprep.subr.bf16.mxu0 0
      %5998 = vmatpush1.bf16.msra.mxu0 0
      %5999 = vmatprep.subr.bf16.mxu0 0
      %6000 = vmatpush1.bf16.msra.mxu0 0
      %6001 = vmatprep.subr.bf16.mxu0 0
      %6002 = vmatpush1.bf16.msra.mxu0 0
      %6003 = vmatprep.subr.bf16.mxu0 0
      %6004 = vmatpush1.bf16.msra.mxu0 0
      %6005 = vmatprep.subr.bf16.mxu0 0
      %6006 = vmatpush1.bf16.msra.mxu0 0
      %6007 = vmatprep.subr.bf16.mxu0 0
      %6008 = vmatpush1.bf16.msra.mxu0 0
      %6009 = vmatprep.subr.bf16.mxu0 0
      %6010 = vmatpush1.bf16.msra.mxu0 0
      %6011 = vmatprep.subr.bf16.mxu0 0
      %6012 = vmatpush1.bf16.msra.mxu0 0
      %6013 = vmatprep.subr.bf16.mxu0 0
      %6014 = vmatpush1.bf16.msra.mxu0 0
      %6015 = vmatprep.subr.bf16.mxu0 0
      %6016 = vmatpush1.bf16.msra.mxu0 0
      %6017 = vmatprep.subr.bf16.mxu0 0
      %6018 = vmatpush1.bf16.msra.mxu0 0
      %6019 = vmatprep.mubr.bf16.mxu0 0
      %6020 = vmatmul.mubr.bf16.gmra.mrb[0].mxu0 %v5838
      %v6021 = vpop.f32.mrb[0].mxu0
      %v6022 = vadd.f32 0.0, %v6021
      %v6023 = vpop.f32.mrb[0].mxu0
      %v6024 = vadd.f32 0.0, %v6023
      %v6025 = vpop.f32.mrb[0].mxu0
      %v6026 = vpop.f32.mrb[0].mxu0
      %6027 = vdwg.mxu0
      %v6028 = vadd.f32 %v5787, %v5899
      %v6029 = vadd.f32 %v5788, %v5901
      %v6030 = vadd.f32 %v5789, %v5940
      %v6031 = vadd.f32 %v5790, %v5942
      %v6032 = vadd.f32 %v5791, %v5981
      %v6033 = vadd.f32 %v5792, %v5983
      %v6034 = vadd.f32 %v5793, %v6022
      %v6035 = vadd.f32 %v5794, %v6024
      %6036 = vrot.lane.b32.xlu0 %v3908, 33
      %v6037 = vpop.permute.xlu0 %6036
      %6038 = vrot.lane.b32.xlu0 %v3909, 33
      %v6039 = vpop.permute.xlu0 %6038
      %6040 = vrot.lane.b32.xlu0 %v3910, 33
      %v6041 = vpop.permute.xlu0 %6040
      %6042 = vrot.lane.b32.xlu0 %v3911, 33
      %v6043 = vpop.permute.xlu0 %6042
      %6044 = vrot.lane.b32.xlu0 %v3912, 33
      %v6045 = vpop.permute.xlu0 %6044
      %6046 = vrot.lane.b32.xlu0 %v3913, 33
      %v6047 = vpop.permute.xlu0 %6046
      %6048 = vrot.lane.b32.xlu0 %v3914, 33
      %v6049 = vpop.permute.xlu0 %6048
      %6050 = vrot.lane.b32.xlu0 %v3915, 33
      %v6051 = vpop.permute.xlu0 %6050
      %v6052 = vsel %vm1490, %v6049, %v6051
      %v6053 = vsel %vm1490, %v6047, %v6049
      %v6054 = vsel %vm1490, %v6045, %v6047
      %v6055 = vsel %vm1490, %v6043, %v6045
      %v6056 = vsel %vm1490, %v6041, %v6043
      %v6057 = vsel %vm1490, %v6039, %v6041
      %v6058 = vsel %vm1490, %v6037, %v6039
      %v6059 = vsel %vm1490, %v6051, %v6037
      %v6060 = vmul.f32 %v6059, %v1502
      %v6061 = vmul.f32 %v6058, %v1506
      %v6062 = vmul.f32 %v6057, %v1510
      %v6063 = vmul.f32 %v6056, %v1514
      %v6064 = vmul.f32 %v6055, %v1518
      %v6065 = vmul.f32 %v6054, %v1522
      %v6066 = vmul.f32 %v6053, %v1526
      %v6067 = vmul.f32 %v6052, %v1530
      %v6068 = vld [vmem:[%s8] sm:$0xf]
      %v6069 = vpack.c.bf16 %v6060, %v6060
      %v6070 = vpack.c.bf16 %v6061, %v6061
      %v6071 = vpack.c.bf16 %v6062, %v6062
      %v6072 = vpack.c.bf16 %v6063, %v6063
      %v6073 = vpack.c.bf16 %v6064, %v6064
      %v6074 = vpack.c.bf16 %v6065, %v6065
      %v6075 = vpack.c.bf16 %v6066, %v6066
      %v6076 = vpack.c.bf16 %v6067, %v6067
      %v6078 = vsel %vm1623, %v6068, 0
      %v6081 = vsel %vm1627, %v6069, 0
      %v6084 = vsel %vm1627, %v6070, 0
      %v6087 = vsel %vm1627, %v6071, 0
      %v6090 = vsel %vm1627, %v6072, 0
      %v6093 = vsel %vm1627, %v6073, 0
      %v6096 = vsel %vm1627, %v6074, 0
      %v6099 = vsel %vm1627, %v6075, 0
      %v6102 = vsel %vm1627, %v6076, 0
      %6104 = vmatprep.subr.bf16.mxu0 %v6084
      %6105 = vmatpush1.bf16.msra.mxu0 %v6081
      %6106 = vmatprep.subr.bf16.mxu0 0
      %6107 = vmatpush1.bf16.msra.mxu0 0
      %6108 = vmatprep.subr.bf16.mxu0 0
      %6109 = vmatpush1.bf16.msra.mxu0 0
      %6110 = vmatprep.subr.bf16.mxu0 0
      %6111 = vmatpush1.bf16.msra.mxu0 0
      %6112 = vmatprep.subr.bf16.mxu0 0
      %6113 = vmatpush1.bf16.msra.mxu0 0
      %6114 = vmatprep.subr.bf16.mxu0 0
      %6115 = vmatpush1.bf16.msra.mxu0 0
      %6116 = vmatprep.subr.bf16.mxu0 0
      %6117 = vmatpush1.bf16.msra.mxu0 0
      %6118 = vmatprep.subr.bf16.mxu0 0
      %6119 = vmatpush1.bf16.msra.mxu0 0
      %6120 = vmatprep.subr.bf16.mxu0 0
      %6121 = vmatpush1.bf16.msra.mxu0 0
      %6122 = vmatprep.subr.bf16.mxu0 0
      %6123 = vmatpush1.bf16.msra.mxu0 0
      %6124 = vmatprep.subr.bf16.mxu0 0
      %6125 = vmatpush1.bf16.msra.mxu0 0
      %6126 = vmatprep.subr.bf16.mxu0 0
      %6127 = vmatpush1.bf16.msra.mxu0 0
      %6128 = vmatprep.subr.bf16.mxu0 0
      %6129 = vmatpush1.bf16.msra.mxu0 0
      %6130 = vmatprep.subr.bf16.mxu0 0
      %6131 = vmatpush1.bf16.msra.mxu0 0
      %6132 = vmatprep.subr.bf16.mxu0 0
      %6133 = vmatpush1.bf16.msra.mxu0 0
      %6134 = vmatprep.subr.bf16.mxu0 0
      %6135 = vmatpush1.bf16.msra.mxu0 0
      %6136 = vmatprep.mubr.bf16.mxu0 0
      %6137 = vmatmul.mubr.bf16.gmra.mrb[0].mxu0 %v6078
      %v6138 = vpop.f32.mrb[0].mxu0
      %v6139 = vadd.f32 0.0, %v6138
      %v6140 = vpop.f32.mrb[0].mxu0
      %v6141 = vadd.f32 0.0, %v6140
      %v6142 = vpop.f32.mrb[0].mxu0
      %v6143 = vpop.f32.mrb[0].mxu0
      %6144 = vdwg.mxu0
      %6145 = vmatprep.subr.bf16.mxu0 %v6090
      %6146 = vmatpush1.bf16.msra.mxu0 %v6087
      %6147 = vmatprep.subr.bf16.mxu0 0
      %6148 = vmatpush1.bf16.msra.mxu0 0
      %6149 = vmatprep.subr.bf16.mxu0 0
      %6150 = vmatpush1.bf16.msra.mxu0 0
      %6151 = vmatprep.subr.bf16.mxu0 0
      %6152 = vmatpush1.bf16.msra.mxu0 0
      %6153 = vmatprep.subr.bf16.mxu0 0
      %6154 = vmatpush1.bf16.msra.mxu0 0
      %6155 = vmatprep.subr.bf16.mxu0 0
      %6156 = vmatpush1.bf16.msra.mxu0 0
      %6157 = vmatprep.subr.bf16.mxu0 0
      %6158 = vmatpush1.bf16.msra.mxu0 0
      %6159 = vmatprep.subr.bf16.mxu0 0
      %6160 = vmatpush1.bf16.msra.mxu0 0
      %6161 = vmatprep.subr.bf16.mxu0 0
      %6162 = vmatpush1.bf16.msra.mxu0 0
      %6163 = vmatprep.subr.bf16.mxu0 0
      %6164 = vmatpush1.bf16.msra.mxu0 0
      %6165 = vmatprep.subr.bf16.mxu0 0
      %6166 = vmatpush1.bf16.msra.mxu0 0
      %6167 = vmatprep.subr.bf16.mxu0 0
      %6168 = vmatpush1.bf16.msra.mxu0 0
      %6169 = vmatprep.subr.bf16.mxu0 0
      %6170 = vmatpush1.bf16.msra.mxu0 0
      %6171 = vmatprep.subr.bf16.mxu0 0
      %6172 = vmatpush1.bf16.msra.mxu0 0
      %6173 = vmatprep.subr.bf16.mxu0 0
      %6174 = vmatpush1.bf16.msra.mxu0 0
      %6175 = vmatprep.subr.bf16.mxu0 0
      %6176 = vmatpush1.bf16.msra.mxu0 0
      %6177 = vmatprep.mubr.bf16.mxu0 0
      %6178 = vmatmul.mubr.bf16.gmra.mrb[0].mxu0 %v6078
      %v6179 = vpop.f32.mrb[0].mxu0
      %v6180 = vadd.f32 0.0, %v6179
      %v6181 = vpop.f32.mrb[0].mxu0
      %v6182 = vadd.f32 0.0, %v6181
      %v6183 = vpop.f32.mrb[0].mxu0
      %v6184 = vpop.f32.mrb[0].mxu0
      %6185 = vdwg.mxu0
      %6186 = vmatprep.subr.bf16.mxu0 %v6096
      %6187 = vmatpush1.bf16.msra.mxu0 %v6093
      %6188 = vmatprep.subr.bf16.mxu0 0
      %6189 = vmatpush1.bf16.msra.mxu0 0
      %6190 = vmatprep.subr.bf16.mxu0 0
      %6191 = vmatpush1.bf16.msra.mxu0 0
      %6192 = vmatprep.subr.bf16.mxu0 0
      %6193 = vmatpush1.bf16.msra.mxu0 0
      %6194 = vmatprep.subr.bf16.mxu0 0
      %6195 = vmatpush1.bf16.msra.mxu0 0
      %6196 = vmatprep.subr.bf16.mxu0 0
      %6197 = vmatpush1.bf16.msra.mxu0 0
      %6198 = vmatprep.subr.bf16.mxu0 0
      %6199 = vmatpush1.bf16.msra.mxu0 0
      %6200 = vmatprep.subr.bf16.mxu0 0
      %6201 = vmatpush1.bf16.msra.mxu0 0
      %6202 = vmatprep.subr.bf16.mxu0 0
      %6203 = vmatpush1.bf16.msra.mxu0 0
      %6204 = vmatprep.subr.bf16.mxu0 0
      %6205 = vmatpush1.bf16.msra.mxu0 0
      %6206 = vmatprep.subr.bf16.mxu0 0
      %6207 = vmatpush1.bf16.msra.mxu0 0
      %6208 = vmatprep.subr.bf16.mxu0 0
      %6209 = vmatpush1.bf16.msra.mxu0 0
      %6210 = vmatprep.subr.bf16.mxu0 0
      %6211 = vmatpush1.bf16.msra.mxu0 0
      %6212 = vmatprep.subr.bf16.mxu0 0
      %6213 = vmatpush1.bf16.msra.mxu0 0
      %6214 = vmatprep.subr.bf16.mxu0 0
      %6215 = vmatpush1.bf16.msra.mxu0 0
      %6216 = vmatprep.subr.bf16.mxu0 0
      %6217 = vmatpush1.bf16.msra.mxu0 0
      %6218 = vmatprep.mubr.bf16.mxu0 0
      %6219 = vmatmul.mubr.bf16.gmra.mrb[0].mxu0 %v6078
      %v6220 = vpop.f32.mrb[0].mxu0
      %v6221 = vadd.f32 0.0, %v6220
      %v6222 = vpop.f32.mrb[0].mxu0
      %v6223 = vadd.f32 0.0, %v6222
      %v6224 = vpop.f32.mrb[0].mxu0
      %v6225 = vpop.f32.mrb[0].mxu0
      %6226 = vdwg.mxu0
      %6227 = vmatprep.subr.bf16.mxu0 %v6102
      %6228 = vmatpush1.bf16.msra.mxu0 %v6099
      %6229 = vmatprep.subr.bf16.mxu0 0
      %6230 = vmatpush1.bf16.msra.mxu0 0
      %6231 = vmatprep.subr.bf16.mxu0 0
      %6232 = vmatpush1.bf16.msra.mxu0 0
      %6233 = vmatprep.subr.bf16.mxu0 0
      %6234 = vmatpush1.bf16.msra.mxu0 0
      %6235 = vmatprep.subr.bf16.mxu0 0
      %6236 = vmatpush1.bf16.msra.mxu0 0
      %6237 = vmatprep.subr.bf16.mxu0 0
      %6238 = vmatpush1.bf16.msra.mxu0 0
      %6239 = vmatprep.subr.bf16.mxu0 0
      %6240 = vmatpush1.bf16.msra.mxu0 0
      %6241 = vmatprep.subr.bf16.mxu0 0
      %6242 = vmatpush1.bf16.msra.mxu0 0
      %6243 = vmatprep.subr.bf16.mxu0 0
      %6244 = vmatpush1.bf16.msra.mxu0 0
      %6245 = vmatprep.subr.bf16.mxu0 0
      %6246 = vmatpush1.bf16.msra.mxu0 0
      %6247 = vmatprep.subr.bf16.mxu0 0
      %6248 = vmatpush1.bf16.msra.mxu0 0
      %6249 = vmatprep.subr.bf16.mxu0 0
      %6250 = vmatpush1.bf16.msra.mxu0 0
      %6251 = vmatprep.subr.bf16.mxu0 0
      %6252 = vmatpush1.bf16.msra.mxu0 0
      %6253 = vmatprep.subr.bf16.mxu0 0
      %6254 = vmatpush1.bf16.msra.mxu0 0
      %6255 = vmatprep.subr.bf16.mxu0 0
      %6256 = vmatpush1.bf16.msra.mxu0 0
      %6257 = vmatprep.subr.bf16.mxu0 0
      %6258 = vmatpush1.bf16.msra.mxu0 0
      %6259 = vmatprep.mubr.bf16.mxu0 0
      %6260 = vmatmul.mubr.bf16.gmra.mrb[0].mxu0 %v6078
      %v6261 = vpop.f32.mrb[0].mxu0
      %v6262 = vadd.f32 0.0, %v6261
      %v6263 = vpop.f32.mrb[0].mxu0
      %v6264 = vadd.f32 0.0, %v6263
      %v6265 = vpop.f32.mrb[0].mxu0
      %v6266 = vpop.f32.mrb[0].mxu0
      %6267 = vdwg.mxu0
      %v6268 = vadd.f32 %v6028, %v6139
      %v6269 = vadd.f32 %v6029, %v6141
      %v6270 = vadd.f32 %v6030, %v6180
      %v6271 = vadd.f32 %v6031, %v6182
      %v6272 = vadd.f32 %v6032, %v6221
      %v6273 = vadd.f32 %v6033, %v6223
      %v6274 = vadd.f32 %v6034, %v6262
      %v6275 = vadd.f32 %v6035, %v6264
      %6276 = vrot.lane.b32.xlu0 %v3908, 32
      %v6277 = vpop.permute.xlu0 %6276
      %6278 = vrot.lane.b32.xlu0 %v3909, 32
      %v6279 = vpop.permute.xlu0 %6278
      %6280 = vrot.lane.b32.xlu0 %v3910, 32
      %v6281 = vpop.permute.xlu0 %6280
      %6282 = vrot.lane.b32.xlu0 %v3911, 32
      %v6283 = vpop.permute.xlu0 %6282
      %6284 = vrot.lane.b32.xlu0 %v3912, 32
      %v6285 = vpop.permute.xlu0 %6284
      %6286 = vrot.lane.b32.xlu0 %v3913, 32
      %v6287 = vpop.permute.xlu0 %6286
      %6288 = vrot.lane.b32.xlu0 %v3914, 32
      %v6289 = vpop.permute.xlu0 %6288
      %6290 = vrot.lane.b32.xlu0 %v3915, 32
      %v6291 = vpop.permute.xlu0 %6290
      %v6292 = vsel %vm1564, %v6289, %v6291
      %v6293 = vsel %vm1564, %v6287, %v6289
      %v6294 = vsel %vm1564, %v6285, %v6287
      %v6295 = vsel %vm1564, %v6283, %v6285
      %v6296 = vsel %vm1564, %v6281, %v6283
      %v6297 = vsel %vm1564, %v6279, %v6281
      %v6298 = vsel %vm1564, %v6277, %v6279
      %v6299 = vsel %vm1564, %v6291, %v6277
      %v6300 = vmul.f32 %v6299, %v1576
      %v6301 = vmul.f32 %v6298, %v1580
      %v6302 = vmul.f32 %v6297, %v1584
      %v6303 = vmul.f32 %v6296, %v1588
      %v6304 = vmul.f32 %v6295, %v1592
      %v6305 = vmul.f32 %v6294, %v1596
      %v6306 = vmul.f32 %v6293, %v1600
      %v6307 = vmul.f32 %v6292, %v1604
      %s6308 = scalar_lea.vmem %s8, 4
      %v6309 = vld [vmem:[%s6308] sm:$0xf]
      %v6310 = vpack.c.bf16 %v6300, %v6300
      %v6311 = vpack.c.bf16 %v6301, %v6301
      %v6312 = vpack.c.bf16 %v6302, %v6302
      %v6313 = vpack.c.bf16 %v6303, %v6303
      %v6314 = vpack.c.bf16 %v6304, %v6304
      %v6315 = vpack.c.bf16 %v6305, %v6305
      %v6316 = vpack.c.bf16 %v6306, %v6306
      %v6317 = vpack.c.bf16 %v6307, %v6307
      %v6319 = vsel %vm1623, %v6309, 0
      %v6322 = vsel %vm1627, %v6310, 0
      %v6325 = vsel %vm1627, %v6311, 0
      %v6328 = vsel %vm1627, %v6312, 0
      %v6331 = vsel %vm1627, %v6313, 0
      %v6334 = vsel %vm1627, %v6314, 0
      %v6337 = vsel %vm1627, %v6315, 0
      %v6340 = vsel %vm1627, %v6316, 0
      %v6343 = vsel %vm1627, %v6317, 0
      %6345 = vmatprep.subr.bf16.mxu0 %v6325
      %6346 = vmatpush1.bf16.msra.mxu0 %v6322
      %6347 = vmatprep.subr.bf16.mxu0 0
      %6348 = vmatpush1.bf16.msra.mxu0 0
      %6349 = vmatprep.subr.bf16.mxu0 0
      %6350 = vmatpush1.bf16.msra.mxu0 0
      %6351 = vmatprep.subr.bf16.mxu0 0
      %6352 = vmatpush1.bf16.msra.mxu0 0
      %6353 = vmatprep.subr.bf16.mxu0 0
      %6354 = vmatpush1.bf16.msra.mxu0 0
      %6355 = vmatprep.subr.bf16.mxu0 0
      %6356 = vmatpush1.bf16.msra.mxu0 0
      %6357 = vmatprep.subr.bf16.mxu0 0
      %6358 = vmatpush1.bf16.msra.mxu0 0
      %6359 = vmatprep.subr.bf16.mxu0 0
      %6360 = vmatpush1.bf16.msra.mxu0 0
      %6361 = vmatprep.subr.bf16.mxu0 0
      %6362 = vmatpush1.bf16.msra.mxu0 0
      %6363 = vmatprep.subr.bf16.mxu0 0
      %6364 = vmatpush1.bf16.msra.mxu0 0
      %6365 = vmatprep.subr.bf16.mxu0 0
      %6366 = vmatpush1.bf16.msra.mxu0 0
      %6367 = vmatprep.subr.bf16.mxu0 0
      %6368 = vmatpush1.bf16.msra.mxu0 0
      %6369 = vmatprep.subr.bf16.mxu0 0
      %6370 = vmatpush1.bf16.msra.mxu0 0
      %6371 = vmatprep.subr.bf16.mxu0 0
      %6372 = vmatpush1.bf16.msra.mxu0 0
      %6373 = vmatprep.subr.bf16.mxu0 0
      %6374 = vmatpush1.bf16.msra.mxu0 0
      %6375 = vmatprep.subr.bf16.mxu0 0
      %6376 = vmatpush1.bf16.msra.mxu0 0
      %6377 = vmatprep.mubr.bf16.mxu0 0
      %6378 = vmatmul.mubr.bf16.gmra.mrb[0].mxu0 %v6319
      %v6379 = vpop.f32.mrb[0].mxu0
      %v6380 = vadd.f32 0.0, %v6379
      %v6381 = vpop.f32.mrb[0].mxu0
      %v6382 = vadd.f32 0.0, %v6381
      %v6383 = vpop.f32.mrb[0].mxu0
      %v6384 = vpop.f32.mrb[0].mxu0
      %6385 = vdwg.mxu0
      %6386 = vmatprep.subr.bf16.mxu0 %v6331
      %6387 = vmatpush1.bf16.msra.mxu0 %v6328
      %6388 = vmatprep.subr.bf16.mxu0 0
      %6389 = vmatpush1.bf16.msra.mxu0 0
      %6390 = vmatprep.subr.bf16.mxu0 0
      %6391 = vmatpush1.bf16.msra.mxu0 0
      %6392 = vmatprep.subr.bf16.mxu0 0
      %6393 = vmatpush1.bf16.msra.mxu0 0
      %6394 = vmatprep.subr.bf16.mxu0 0
      %6395 = vmatpush1.bf16.msra.mxu0 0
      %6396 = vmatprep.subr.bf16.mxu0 0
      %6397 = vmatpush1.bf16.msra.mxu0 0
      %6398 = vmatprep.subr.bf16.mxu0 0
      %6399 = vmatpush1.bf16.msra.mxu0 0
      %6400 = vmatprep.subr.bf16.mxu0 0
      %6401 = vmatpush1.bf16.msra.mxu0 0
      %6402 = vmatprep.subr.bf16.mxu0 0
      %6403 = vmatpush1.bf16.msra.mxu0 0
      %6404 = vmatprep.subr.bf16.mxu0 0
      %6405 = vmatpush1.bf16.msra.mxu0 0
      %6406 = vmatprep.subr.bf16.mxu0 0
      %6407 = vmatpush1.bf16.msra.mxu0 0
      %6408 = vmatprep.subr.bf16.mxu0 0
      %6409 = vmatpush1.bf16.msra.mxu0 0
      %6410 = vmatprep.subr.bf16.mxu0 0
      %6411 = vmatpush1.bf16.msra.mxu0 0
      %6412 = vmatprep.subr.bf16.mxu0 0
      %6413 = vmatpush1.bf16.msra.mxu0 0
      %6414 = vmatprep.subr.bf16.mxu0 0
      %6415 = vmatpush1.bf16.msra.mxu0 0
      %6416 = vmatprep.subr.bf16.mxu0 0
      %6417 = vmatpush1.bf16.msra.mxu0 0
      %6418 = vmatprep.mubr.bf16.mxu0 0
      %6419 = vmatmul.mubr.bf16.gmra.mrb[0].mxu0 %v6319
      %v6420 = vpop.f32.mrb[0].mxu0
      %v6421 = vadd.f32 0.0, %v6420
      %v6422 = vpop.f32.mrb[0].mxu0
      %v6423 = vadd.f32 0.0, %v6422
      %v6424 = vpop.f32.mrb[0].mxu0
      %v6425 = vpop.f32.mrb[0].mxu0
      %6426 = vdwg.mxu0
      %6427 = vmatprep.subr.bf16.mxu0 %v6337
      %6428 = vmatpush1.bf16.msra.mxu0 %v6334
      %6429 = vmatprep.subr.bf16.mxu0 0
      %6430 = vmatpush1.bf16.msra.mxu0 0
      %6431 = vmatprep.subr.bf16.mxu0 0
      %6432 = vmatpush1.bf16.msra.mxu0 0
      %6433 = vmatprep.subr.bf16.mxu0 0
      %6434 = vmatpush1.bf16.msra.mxu0 0
      %6435 = vmatprep.subr.bf16.mxu0 0
      %6436 = vmatpush1.bf16.msra.mxu0 0
      %6437 = vmatprep.subr.bf16.mxu0 0
      %6438 = vmatpush1.bf16.msra.mxu0 0
      %6439 = vmatprep.subr.bf16.mxu0 0
      %6440 = vmatpush1.bf16.msra.mxu0 0
      %6441 = vmatprep.subr.bf16.mxu0 0
      %6442 = vmatpush1.bf16.msra.mxu0 0
      %6443 = vmatprep.subr.bf16.mxu0 0
      %6444 = vmatpush1.bf16.msra.mxu0 0
      %6445 = vmatprep.subr.bf16.mxu0 0
      %6446 = vmatpush1.bf16.msra.mxu0 0
      %6447 = vmatprep.subr.bf16.mxu0 0
      %6448 = vmatpush1.bf16.msra.mxu0 0
      %6449 = vmatprep.subr.bf16.mxu0 0
      %6450 = vmatpush1.bf16.msra.mxu0 0
      %6451 = vmatprep.subr.bf16.mxu0 0
      %6452 = vmatpush1.bf16.msra.mxu0 0
      %6453 = vmatprep.subr.bf16.mxu0 0
      %6454 = vmatpush1.bf16.msra.mxu0 0
      %6455 = vmatprep.subr.bf16.mxu0 0
      %6456 = vmatpush1.bf16.msra.mxu0 0
      %6457 = vmatprep.subr.bf16.mxu0 0
      %6458 = vmatpush1.bf16.msra.mxu0 0
      %6459 = vmatprep.mubr.bf16.mxu0 0
      %6460 = vmatmul.mubr.bf16.gmra.mrb[0].mxu0 %v6319
      %v6461 = vpop.f32.mrb[0].mxu0
      %v6462 = vadd.f32 0.0, %v6461
      %v6463 = vpop.f32.mrb[0].mxu0
      %v6464 = vadd.f32 0.0, %v6463
      %v6465 = vpop.f32.mrb[0].mxu0
      %v6466 = vpop.f32.mrb[0].mxu0
      %6467 = vdwg.mxu0
      %6468 = vmatprep.subr.bf16.mxu0 %v6343
      %6469 = vmatpush1.bf16.msra.mxu0 %v6340
      %6470 = vmatprep.subr.bf16.mxu0 0
      %6471 = vmatpush1.bf16.msra.mxu0 0
      %6472 = vmatprep.subr.bf16.mxu0 0
      %6473 = vmatpush1.bf16.msra.mxu0 0
      %6474 = vmatprep.subr.bf16.mxu0 0
      %6475 = vmatpush1.bf16.msra.mxu0 0
      %6476 = vmatprep.subr.bf16.mxu0 0
      %6477 = vmatpush1.bf16.msra.mxu0 0
      %6478 = vmatprep.subr.bf16.mxu0 0
      %6479 = vmatpush1.bf16.msra.mxu0 0
      %6480 = vmatprep.subr.bf16.mxu0 0
      %6481 = vmatpush1.bf16.msra.mxu0 0
      %6482 = vmatprep.subr.bf16.mxu0 0
      %6483 = vmatpush1.bf16.msra.mxu0 0
      %6484 = vmatprep.subr.bf16.mxu0 0
      %6485 = vmatpush1.bf16.msra.mxu0 0
      %6486 = vmatprep.subr.bf16.mxu0 0
      %6487 = vmatpush1.bf16.msra.mxu0 0
      %6488 = vmatprep.subr.bf16.mxu0 0
      %6489 = vmatpush1.bf16.msra.mxu0 0
      %6490 = vmatprep.subr.bf16.mxu0 0
      %6491 = vmatpush1.bf16.msra.mxu0 0
      %6492 = vmatprep.subr.bf16.mxu0 0
      %6493 = vmatpush1.bf16.msra.mxu0 0
      %6494 = vmatprep.subr.bf16.mxu0 0
      %6495 = vmatpush1.bf16.msra.mxu0 0
      %6496 = vmatprep.subr.bf16.mxu0 0
      %6497 = vmatpush1.bf16.msra.mxu0 0
      %6498 = vmatprep.subr.bf16.mxu0 0
      %6499 = vmatpush1.bf16.msra.mxu0 0
      %6500 = vmatprep.mubr.bf16.mxu0 0
      %6501 = vmatmul.mubr.bf16.gmra.mrb[0].mxu0 %v6319
      %v6502 = vpop.f32.mrb[0].mxu0
      %v6503 = vadd.f32 0.0, %v6502
      %v6504 = vpop.f32.mrb[0].mxu0
      %v6505 = vadd.f32 0.0, %v6504
      %v6506 = vpop.f32.mrb[0].mxu0
      %v6507 = vpop.f32.mrb[0].mxu0
      %6508 = vdwg.mxu0
      %v6509 = vadd.f32 %v6268, %v6380
      %v6510 = vadd.f32 %v6269, %v6382
      %v6511 = vadd.f32 %v6270, %v6421
      %v6512 = vadd.f32 %v6271, %v6423
      %v6513 = vadd.f32 %v6272, %v6462
      %v6514 = vadd.f32 %v6273, %v6464
      %v6515 = vadd.f32 %v6274, %v6503
      %v6516 = vadd.f32 %v6275, %v6505
      %6517 = vrot.lane.b32.xlu0 %v3908, 31
      %v6518 = vpop.permute.xlu0 %6517
      %6519 = vrot.lane.b32.xlu0 %v3909, 31
      %v6520 = vpop.permute.xlu0 %6519
      %6521 = vrot.lane.b32.xlu0 %v3910, 31
      %v6522 = vpop.permute.xlu0 %6521
      %6523 = vrot.lane.b32.xlu0 %v3911, 31
      %v6524 = vpop.permute.xlu0 %6523
      %6525 = vrot.lane.b32.xlu0 %v3912, 31
      %v6526 = vpop.permute.xlu0 %6525
      %6527 = vrot.lane.b32.xlu0 %v3913, 31
      %v6528 = vpop.permute.xlu0 %6527
      %6529 = vrot.lane.b32.xlu0 %v3914, 31
      %v6530 = vpop.permute.xlu0 %6529
      %6531 = vrot.lane.b32.xlu0 %v3915, 31
      %v6532 = vpop.permute.xlu0 %6531
      %v6533 = vsel %vm2023, %v6530, %v6532
      %v6534 = vsel %vm2023, %v6528, %v6530
      %v6535 = vsel %vm2023, %v6526, %v6528
      %v6536 = vsel %vm2023, %v6524, %v6526
      %v6537 = vsel %vm2023, %v6522, %v6524
      %v6538 = vsel %vm2023, %v6520, %v6522
      %v6539 = vsel %vm2023, %v6518, %v6520
      %v6540 = vsel %vm2023, %v6532, %v6518
      %v6541 = vmul.f32 %v6540, %v2035
      %v6542 = vmul.f32 %v6539, %v2039
      %v6543 = vmul.f32 %v6538, %v2043
      %v6544 = vmul.f32 %v6537, %v2047
      %v6545 = vmul.f32 %v6536, %v2051
      %v6546 = vmul.f32 %v6535, %v2055
      %v6547 = vmul.f32 %v6534, %v2059
      %v6548 = vmul.f32 %v6533, %v2063
      %s6549 = scalar_lea.vmem %s8, 8
      %v6550 = vld [vmem:[%s6549] sm:$0xf]
      %v6551 = vpack.c.bf16 %v6541, %v6541
      %v6552 = vpack.c.bf16 %v6542, %v6542
      %v6553 = vpack.c.bf16 %v6543, %v6543
      %v6554 = vpack.c.bf16 %v6544, %v6544
      %v6555 = vpack.c.bf16 %v6545, %v6545
      %v6556 = vpack.c.bf16 %v6546, %v6546
      %v6557 = vpack.c.bf16 %v6547, %v6547
      %v6558 = vpack.c.bf16 %v6548, %v6548
      %v6560 = vsel %vm1623, %v6550, 0
      %v6563 = vsel %vm1627, %v6551, 0
      %v6566 = vsel %vm1627, %v6552, 0
      %v6569 = vsel %vm1627, %v6553, 0
      %v6572 = vsel %vm1627, %v6554, 0
      %v6575 = vsel %vm1627, %v6555, 0
      %v6578 = vsel %vm1627, %v6556, 0
      %v6581 = vsel %vm1627, %v6557, 0
      %v6584 = vsel %vm1627, %v6558, 0
      %6586 = vmatprep.subr.bf16.mxu0 %v6566
      %6587 = vmatpush1.bf16.msra.mxu0 %v6563
      %6588 = vmatprep.subr.bf16.mxu0 0
      %6589 = vmatpush1.bf16.msra.mxu0 0
      %6590 = vmatprep.subr.bf16.mxu0 0
      %6591 = vmatpush1.bf16.msra.mxu0 0
      %6592 = vmatprep.subr.bf16.mxu0 0
      %6593 = vmatpush1.bf16.msra.mxu0 0
      %6594 = vmatprep.subr.bf16.mxu0 0
      %6595 = vmatpush1.bf16.msra.mxu0 0
      %6596 = vmatprep.subr.bf16.mxu0 0
      %6597 = vmatpush1.bf16.msra.mxu0 0
      %6598 = vmatprep.subr.bf16.mxu0 0
      %6599 = vmatpush1.bf16.msra.mxu0 0
      %6600 = vmatprep.subr.bf16.mxu0 0
      %6601 = vmatpush1.bf16.msra.mxu0 0
      %6602 = vmatprep.subr.bf16.mxu0 0
      %6603 = vmatpush1.bf16.msra.mxu0 0
      %6604 = vmatprep.subr.bf16.mxu0 0
      %6605 = vmatpush1.bf16.msra.mxu0 0
      %6606 = vmatprep.subr.bf16.mxu0 0
      %6607 = vmatpush1.bf16.msra.mxu0 0
      %6608 = vmatprep.subr.bf16.mxu0 0
      %6609 = vmatpush1.bf16.msra.mxu0 0
      %6610 = vmatprep.subr.bf16.mxu0 0
      %6611 = vmatpush1.bf16.msra.mxu0 0
      %6612 = vmatprep.subr.bf16.mxu0 0
      %6613 = vmatpush1.bf16.msra.mxu0 0
      %6614 = vmatprep.subr.bf16.mxu0 0
      %6615 = vmatpush1.bf16.msra.mxu0 0
      %6616 = vmatprep.subr.bf16.mxu0 0
      %6617 = vmatpush1.bf16.msra.mxu0 0
      %6618 = vmatprep.mubr.bf16.mxu0 0
      %6619 = vmatmul.mubr.bf16.gmra.mrb[0].mxu0 %v6560
      %v6620 = vpop.f32.mrb[0].mxu0
      %v6621 = vadd.f32 0.0, %v6620
      %v6622 = vpop.f32.mrb[0].mxu0
      %v6623 = vadd.f32 0.0, %v6622
      %v6624 = vpop.f32.mrb[0].mxu0
      %v6625 = vpop.f32.mrb[0].mxu0
      %6626 = vdwg.mxu0
      %6627 = vmatprep.subr.bf16.mxu0 %v6572
      %6628 = vmatpush1.bf16.msra.mxu0 %v6569
      %6629 = vmatprep.subr.bf16.mxu0 0
      %6630 = vmatpush1.bf16.msra.mxu0 0
      %6631 = vmatprep.subr.bf16.mxu0 0
      %6632 = vmatpush1.bf16.msra.mxu0 0
      %6633 = vmatprep.subr.bf16.mxu0 0
      %6634 = vmatpush1.bf16.msra.mxu0 0
      %6635 = vmatprep.subr.bf16.mxu0 0
      %6636 = vmatpush1.bf16.msra.mxu0 0
      %6637 = vmatprep.subr.bf16.mxu0 0
      %6638 = vmatpush1.bf16.msra.mxu0 0
      %6639 = vmatprep.subr.bf16.mxu0 0
      %6640 = vmatpush1.bf16.msra.mxu0 0
      %6641 = vmatprep.subr.bf16.mxu0 0
      %6642 = vmatpush1.bf16.msra.mxu0 0
      %6643 = vmatprep.subr.bf16.mxu0 0
      %6644 = vmatpush1.bf16.msra.mxu0 0
      %6645 = vmatprep.subr.bf16.mxu0 0
      %6646 = vmatpush1.bf16.msra.mxu0 0
      %6647 = vmatprep.subr.bf16.mxu0 0
      %6648 = vmatpush1.bf16.msra.mxu0 0
      %6649 = vmatprep.subr.bf16.mxu0 0
      %6650 = vmatpush1.bf16.msra.mxu0 0
      %6651 = vmatprep.subr.bf16.mxu0 0
      %6652 = vmatpush1.bf16.msra.mxu0 0
      %6653 = vmatprep.subr.bf16.mxu0 0
      %6654 = vmatpush1.bf16.msra.mxu0 0
      %6655 = vmatprep.subr.bf16.mxu0 0
      %6656 = vmatpush1.bf16.msra.mxu0 0
      %6657 = vmatprep.subr.bf16.mxu0 0
      %6658 = vmatpush1.bf16.msra.mxu0 0
      %6659 = vmatprep.mubr.bf16.mxu0 0
      %6660 = vmatmul.mubr.bf16.gmra.mrb[0].mxu0 %v6560
      %v6661 = vpop.f32.mrb[0].mxu0
      %v6662 = vadd.f32 0.0, %v6661
      %v6663 = vpop.f32.mrb[0].mxu0
      %v6664 = vadd.f32 0.0, %v6663
      %v6665 = vpop.f32.mrb[0].mxu0
      %v6666 = vpop.f32.mrb[0].mxu0
      %6667 = vdwg.mxu0
      %6668 = vmatprep.subr.bf16.mxu0 %v6578
      %6669 = vmatpush1.bf16.msra.mxu0 %v6575
      %6670 = vmatprep.subr.bf16.mxu0 0
      %6671 = vmatpush1.bf16.msra.mxu0 0
      %6672 = vmatprep.subr.bf16.mxu0 0
      %6673 = vmatpush1.bf16.msra.mxu0 0
      %6674 = vmatprep.subr.bf16.mxu0 0
      %6675 = vmatpush1.bf16.msra.mxu0 0
      %6676 = vmatprep.subr.bf16.mxu0 0
      %6677 = vmatpush1.bf16.msra.mxu0 0
      %6678 = vmatprep.subr.bf16.mxu0 0
      %6679 = vmatpush1.bf16.msra.mxu0 0
      %6680 = vmatprep.subr.bf16.mxu0 0
      %6681 = vmatpush1.bf16.msra.mxu0 0
      %6682 = vmatprep.subr.bf16.mxu0 0
      %6683 = vmatpush1.bf16.msra.mxu0 0
      %6684 = vmatprep.subr.bf16.mxu0 0
      %6685 = vmatpush1.bf16.msra.mxu0 0
      %6686 = vmatprep.subr.bf16.mxu0 0
      %6687 = vmatpush1.bf16.msra.mxu0 0
      %6688 = vmatprep.subr.bf16.mxu0 0
      %6689 = vmatpush1.bf16.msra.mxu0 0
      %6690 = vmatprep.subr.bf16.mxu0 0
      %6691 = vmatpush1.bf16.msra.mxu0 0
      %6692 = vmatprep.subr.bf16.mxu0 0
      %6693 = vmatpush1.bf16.msra.mxu0 0
      %6694 = vmatprep.subr.bf16.mxu0 0
      %6695 = vmatpush1.bf16.msra.mxu0 0
      %6696 = vmatprep.subr.bf16.mxu0 0
      %6697 = vmatpush1.bf16.msra.mxu0 0
      %6698 = vmatprep.subr.bf16.mxu0 0
      %6699 = vmatpush1.bf16.msra.mxu0 0
      %6700 = vmatprep.mubr.bf16.mxu0 0
      %6701 = vmatmul.mubr.bf16.gmra.mrb[0].mxu0 %v6560
      %v6702 = vpop.f32.mrb[0].mxu0
      %v6703 = vadd.f32 0.0, %v6702
      %v6704 = vpop.f32.mrb[0].mxu0
      %v6705 = vadd.f32 0.0, %v6704
      %v6706 = vpop.f32.mrb[0].mxu0
      %v6707 = vpop.f32.mrb[0].mxu0
      %6708 = vdwg.mxu0
      %6709 = vmatprep.subr.bf16.mxu0 %v6584
      %6710 = vmatpush1.bf16.msra.mxu0 %v6581
      %6711 = vmatprep.subr.bf16.mxu0 0
      %6712 = vmatpush1.bf16.msra.mxu0 0
      %6713 = vmatprep.subr.bf16.mxu0 0
      %6714 = vmatpush1.bf16.msra.mxu0 0
      %6715 = vmatprep.subr.bf16.mxu0 0
      %6716 = vmatpush1.bf16.msra.mxu0 0
      %6717 = vmatprep.subr.bf16.mxu0 0
      %6718 = vmatpush1.bf16.msra.mxu0 0
      %6719 = vmatprep.subr.bf16.mxu0 0
      %6720 = vmatpush1.bf16.msra.mxu0 0
      %6721 = vmatprep.subr.bf16.mxu0 0
      %6722 = vmatpush1.bf16.msra.mxu0 0
      %6723 = vmatprep.subr.bf16.mxu0 0
      %6724 = vmatpush1.bf16.msra.mxu0 0
      %6725 = vmatprep.subr.bf16.mxu0 0
      %6726 = vmatpush1.bf16.msra.mxu0 0
      %6727 = vmatprep.subr.bf16.mxu0 0
      %6728 = vmatpush1.bf16.msra.mxu0 0
      %6729 = vmatprep.subr.bf16.mxu0 0
      %6730 = vmatpush1.bf16.msra.mxu0 0
      %6731 = vmatprep.subr.bf16.mxu0 0
      %6732 = vmatpush1.bf16.msra.mxu0 0
      %6733 = vmatprep.subr.bf16.mxu0 0
      %6734 = vmatpush1.bf16.msra.mxu0 0
      %6735 = vmatprep.subr.bf16.mxu0 0
      %6736 = vmatpush1.bf16.msra.mxu0 0
      %6737 = vmatprep.subr.bf16.mxu0 0
      %6738 = vmatpush1.bf16.msra.mxu0 0
      %6739 = vmatprep.subr.bf16.mxu0 0
      %6740 = vmatpush1.bf16.msra.mxu0 0
      %6741 = vmatprep.mubr.bf16.mxu0 0
      %6742 = vmatmul.mubr.bf16.gmra.mrb[0].mxu0 %v6560
      %v6743 = vpop.f32.mrb[0].mxu0
      %v6744 = vadd.f32 0.0, %v6743
      %v6745 = vpop.f32.mrb[0].mxu0
      %v6746 = vadd.f32 0.0, %v6745
      %v6747 = vpop.f32.mrb[0].mxu0
      %v6748 = vpop.f32.mrb[0].mxu0
      %6749 = vdwg.mxu0
      %v6750 = vadd.f32 %v6509, %v6621
      %v6751 = vadd.f32 %v6510, %v6623
      %v6752 = vadd.f32 %v6511, %v6662
      %v6753 = vadd.f32 %v6512, %v6664
      %v6754 = vadd.f32 %v6513, %v6703
      %v6755 = vadd.f32 %v6514, %v6705
      %v6756 = vadd.f32 %v6515, %v6744
      %v6757 = vadd.f32 %v6516, %v6746
      %6758 = vrot.lane.b32.xlu0 %v3908, 1
      %v6759 = vpop.permute.xlu0 %6758
      %6760 = vrot.lane.b32.xlu0 %v3909, 1
      %v6761 = vpop.permute.xlu0 %6760
      %6762 = vrot.lane.b32.xlu0 %v3910, 1
      %v6763 = vpop.permute.xlu0 %6762
      %6764 = vrot.lane.b32.xlu0 %v3911, 1
      %v6765 = vpop.permute.xlu0 %6764
      %6766 = vrot.lane.b32.xlu0 %v3912, 1
      %v6767 = vpop.permute.xlu0 %6766
      %6768 = vrot.lane.b32.xlu0 %v3913, 1
      %v6769 = vpop.permute.xlu0 %6768
      %6770 = vrot.lane.b32.xlu0 %v3914, 1
      %v6771 = vpop.permute.xlu0 %6770
      %6772 = vrot.lane.b32.xlu0 %v3915, 1
      %v6773 = vpop.permute.xlu0 %6772
      %v6774 = vsel %vm2297, %v6771, %v6773
      %v6775 = vsel %vm2297, %v6769, %v6771
      %v6776 = vsel %vm2297, %v6767, %v6769
      %v6777 = vsel %vm2297, %v6765, %v6767
      %v6778 = vsel %vm2297, %v6763, %v6765
      %v6779 = vsel %vm2297, %v6761, %v6763
      %v6780 = vsel %vm2297, %v6759, %v6761
      %v6781 = vsel %vm2297, %v6773, %v6759
      %v6782 = vmul.f32 %v6781, %v2309
      %v6783 = vmul.f32 %v6780, %v2313
      %v6784 = vmul.f32 %v6779, %v2317
      %v6785 = vmul.f32 %v6778, %v2321
      %v6786 = vmul.f32 %v6777, %v2325
      %v6787 = vmul.f32 %v6776, %v2329
      %v6788 = vmul.f32 %v6775, %v2333
      %v6789 = vmul.f32 %v6774, %v2337
      %s6790 = scalar_lea.vmem %s8, 12
      %v6791 = vld [vmem:[%s6790] sm:$0xf]
      %v6792 = vpack.c.bf16 %v6782, %v6782
      %v6793 = vpack.c.bf16 %v6783, %v6783
      %v6794 = vpack.c.bf16 %v6784, %v6784
      %v6795 = vpack.c.bf16 %v6785, %v6785
      %v6796 = vpack.c.bf16 %v6786, %v6786
      %v6797 = vpack.c.bf16 %v6787, %v6787
      %v6798 = vpack.c.bf16 %v6788, %v6788
      %v6799 = vpack.c.bf16 %v6789, %v6789
      %v6801 = vsel %vm1623, %v6791, 0
      %v6804 = vsel %vm1627, %v6792, 0
      %v6807 = vsel %vm1627, %v6793, 0
      %v6810 = vsel %vm1627, %v6794, 0
      %v6813 = vsel %vm1627, %v6795, 0
      %v6816 = vsel %vm1627, %v6796, 0
      %v6819 = vsel %vm1627, %v6797, 0
      %v6822 = vsel %vm1627, %v6798, 0
      %v6825 = vsel %vm1627, %v6799, 0
      %6827 = vmatprep.subr.bf16.mxu0 %v6807
      %6828 = vmatpush1.bf16.msra.mxu0 %v6804
      %6829 = vmatprep.subr.bf16.mxu0 0
      %6830 = vmatpush1.bf16.msra.mxu0 0
      %6831 = vmatprep.subr.bf16.mxu0 0
      %6832 = vmatpush1.bf16.msra.mxu0 0
      %6833 = vmatprep.subr.bf16.mxu0 0
      %6834 = vmatpush1.bf16.msra.mxu0 0
      %6835 = vmatprep.subr.bf16.mxu0 0
      %6836 = vmatpush1.bf16.msra.mxu0 0
      %6837 = vmatprep.subr.bf16.mxu0 0
      %6838 = vmatpush1.bf16.msra.mxu0 0
      %6839 = vmatprep.subr.bf16.mxu0 0
      %6840 = vmatpush1.bf16.msra.mxu0 0
      %6841 = vmatprep.subr.bf16.mxu0 0
      %6842 = vmatpush1.bf16.msra.mxu0 0
      %6843 = vmatprep.subr.bf16.mxu0 0
      %6844 = vmatpush1.bf16.msra.mxu0 0
      %6845 = vmatprep.subr.bf16.mxu0 0
      %6846 = vmatpush1.bf16.msra.mxu0 0
      %6847 = vmatprep.subr.bf16.mxu0 0
      %6848 = vmatpush1.bf16.msra.mxu0 0
      %6849 = vmatprep.subr.bf16.mxu0 0
      %6850 = vmatpush1.bf16.msra.mxu0 0
      %6851 = vmatprep.subr.bf16.mxu0 0
      %6852 = vmatpush1.bf16.msra.mxu0 0
      %6853 = vmatprep.subr.bf16.mxu0 0
      %6854 = vmatpush1.bf16.msra.mxu0 0
      %6855 = vmatprep.subr.bf16.mxu0 0
      %6856 = vmatpush1.bf16.msra.mxu0 0
      %6857 = vmatprep.subr.bf16.mxu0 0
      %6858 = vmatpush1.bf16.msra.mxu0 0
      %6859 = vmatprep.mubr.bf16.mxu0 0
      %6860 = vmatmul.mubr.bf16.gmra.mrb[0].mxu0 %v6801
      %v6861 = vpop.f32.mrb[0].mxu0
      %v6862 = vadd.f32 0.0, %v6861
      %v6863 = vpop.f32.mrb[0].mxu0
      %v6864 = vadd.f32 0.0, %v6863
      %v6865 = vpop.f32.mrb[0].mxu0
      %v6866 = vpop.f32.mrb[0].mxu0
      %6867 = vdwg.mxu0
      %6868 = vmatprep.subr.bf16.mxu0 %v6813
      %6869 = vmatpush1.bf16.msra.mxu0 %v6810
      %6870 = vmatprep.subr.bf16.mxu0 0
      %6871 = vmatpush1.bf16.msra.mxu0 0
      %6872 = vmatprep.subr.bf16.mxu0 0
      %6873 = vmatpush1.bf16.msra.mxu0 0
      %6874 = vmatprep.subr.bf16.mxu0 0
      %6875 = vmatpush1.bf16.msra.mxu0 0
      %6876 = vmatprep.subr.bf16.mxu0 0
      %6877 = vmatpush1.bf16.msra.mxu0 0
      %6878 = vmatprep.subr.bf16.mxu0 0
      %6879 = vmatpush1.bf16.msra.mxu0 0
      %6880 = vmatprep.subr.bf16.mxu0 0
      %6881 = vmatpush1.bf16.msra.mxu0 0
      %6882 = vmatprep.subr.bf16.mxu0 0
      %6883 = vmatpush1.bf16.msra.mxu0 0
      %6884 = vmatprep.subr.bf16.mxu0 0
      %6885 = vmatpush1.bf16.msra.mxu0 0
      %6886 = vmatprep.subr.bf16.mxu0 0
      %6887 = vmatpush1.bf16.msra.mxu0 0
      %6888 = vmatprep.subr.bf16.mxu0 0
      %6889 = vmatpush1.bf16.msra.mxu0 0
      %6890 = vmatprep.subr.bf16.mxu0 0
      %6891 = vmatpush1.bf16.msra.mxu0 0
      %6892 = vmatprep.subr.bf16.mxu0 0
      %6893 = vmatpush1.bf16.msra.mxu0 0
      %6894 = vmatprep.subr.bf16.mxu0 0
      %6895 = vmatpush1.bf16.msra.mxu0 0
      %6896 = vmatprep.subr.bf16.mxu0 0
      %6897 = vmatpush1.bf16.msra.mxu0 0
      %6898 = vmatprep.subr.bf16.mxu0 0
      %6899 = vmatpush1.bf16.msra.mxu0 0
      %6900 = vmatprep.mubr.bf16.mxu0 0
      %6901 = vmatmul.mubr.bf16.gmra.mrb[0].mxu0 %v6801
      %v6902 = vpop.f32.mrb[0].mxu0
      %v6903 = vadd.f32 0.0, %v6902
      %v6904 = vpop.f32.mrb[0].mxu0
      %v6905 = vadd.f32 0.0, %v6904
      %v6906 = vpop.f32.mrb[0].mxu0
      %v6907 = vpop.f32.mrb[0].mxu0
      %6908 = vdwg.mxu0
      %6909 = vmatprep.subr.bf16.mxu0 %v6819
      %6910 = vmatpush1.bf16.msra.mxu0 %v6816
      %6911 = vmatprep.subr.bf16.mxu0 0
      %6912 = vmatpush1.bf16.msra.mxu0 0
      %6913 = vmatprep.subr.bf16.mxu0 0
      %6914 = vmatpush1.bf16.msra.mxu0 0
      %6915 = vmatprep.subr.bf16.mxu0 0
      %6916 = vmatpush1.bf16.msra.mxu0 0
      %6917 = vmatprep.subr.bf16.mxu0 0
      %6918 = vmatpush1.bf16.msra.mxu0 0
      %6919 = vmatprep.subr.bf16.mxu0 0
      %6920 = vmatpush1.bf16.msra.mxu0 0
      %6921 = vmatprep.subr.bf16.mxu0 0
      %6922 = vmatpush1.bf16.msra.mxu0 0
      %6923 = vmatprep.subr.bf16.mxu0 0
      %6924 = vmatpush1.bf16.msra.mxu0 0
      %6925 = vmatprep.subr.bf16.mxu0 0
      %6926 = vmatpush1.bf16.msra.mxu0 0
      %6927 = vmatprep.subr.bf16.mxu0 0
      %6928 = vmatpush1.bf16.msra.mxu0 0
      %6929 = vmatprep.subr.bf16.mxu0 0
      %6930 = vmatpush1.bf16.msra.mxu0 0
      %6931 = vmatprep.subr.bf16.mxu0 0
      %6932 = vmatpush1.bf16.msra.mxu0 0
      %6933 = vmatprep.subr.bf16.mxu0 0
      %6934 = vmatpush1.bf16.msra.mxu0 0
      %6935 = vmatprep.subr.bf16.mxu0 0
      %6936 = vmatpush1.bf16.msra.mxu0 0
      %6937 = vmatprep.subr.bf16.mxu0 0
      %6938 = vmatpush1.bf16.msra.mxu0 0
      %6939 = vmatprep.subr.bf16.mxu0 0
      %6940 = vmatpush1.bf16.msra.mxu0 0
      %6941 = vmatprep.mubr.bf16.mxu0 0
      %6942 = vmatmul.mubr.bf16.gmra.mrb[0].mxu0 %v6801
      %v6943 = vpop.f32.mrb[0].mxu0
      %v6944 = vadd.f32 0.0, %v6943
      %v6945 = vpop.f32.mrb[0].mxu0
      %v6946 = vadd.f32 0.0, %v6945
      %v6947 = vpop.f32.mrb[0].mxu0
      %v6948 = vpop.f32.mrb[0].mxu0
      %6949 = vdwg.mxu0
      %6950 = vmatprep.subr.bf16.mxu0 %v6825
      %6951 = vmatpush1.bf16.msra.mxu0 %v6822
      %6952 = vmatprep.subr.bf16.mxu0 0
      %6953 = vmatpush1.bf16.msra.mxu0 0
      %6954 = vmatprep.subr.bf16.mxu0 0
      %6955 = vmatpush1.bf16.msra.mxu0 0
      %6956 = vmatprep.subr.bf16.mxu0 0
      %6957 = vmatpush1.bf16.msra.mxu0 0
      %6958 = vmatprep.subr.bf16.mxu0 0
      %6959 = vmatpush1.bf16.msra.mxu0 0
      %6960 = vmatprep.subr.bf16.mxu0 0
      %6961 = vmatpush1.bf16.msra.mxu0 0
      %6962 = vmatprep.subr.bf16.mxu0 0
      %6963 = vmatpush1.bf16.msra.mxu0 0
      %6964 = vmatprep.subr.bf16.mxu0 0
      %6965 = vmatpush1.bf16.msra.mxu0 0
      %6966 = vmatprep.subr.bf16.mxu0 0
      %6967 = vmatpush1.bf16.msra.mxu0 0
      %6968 = vmatprep.subr.bf16.mxu0 0
      %6969 = vmatpush1.bf16.msra.mxu0 0
      %6970 = vmatprep.subr.bf16.mxu0 0
      %6971 = vmatpush1.bf16.msra.mxu0 0
      %6972 = vmatprep.subr.bf16.mxu0 0
      %6973 = vmatpush1.bf16.msra.mxu0 0
      %6974 = vmatprep.subr.bf16.mxu0 0
      %6975 = vmatpush1.bf16.msra.mxu0 0
      %6976 = vmatprep.subr.bf16.mxu0 0
      %6977 = vmatpush1.bf16.msra.mxu0 0
      %6978 = vmatprep.subr.bf16.mxu0 0
      %6979 = vmatpush1.bf16.msra.mxu0 0
      %6980 = vmatprep.subr.bf16.mxu0 0
      %6981 = vmatpush1.bf16.msra.mxu0 0
      %6982 = vmatprep.mubr.bf16.mxu0 0
      %6983 = vmatmul.mubr.bf16.gmra.mrb[0].mxu0 %v6801
      %v6984 = vpop.f32.mrb[0].mxu0
      %v6985 = vadd.f32 0.0, %v6984
      %v6986 = vpop.f32.mrb[0].mxu0
      %v6987 = vadd.f32 0.0, %v6986
      %v6988 = vpop.f32.mrb[0].mxu0
      %v6989 = vpop.f32.mrb[0].mxu0
      %6990 = vdwg.mxu0
      %v6991 = vadd.f32 %v6750, %v6862
      %v6992 = vadd.f32 %v6751, %v6864
      %v6993 = vadd.f32 %v6752, %v6903
      %v6994 = vadd.f32 %v6753, %v6905
      %v6995 = vadd.f32 %v6754, %v6944
      %v6996 = vadd.f32 %v6755, %v6946
      %v6997 = vadd.f32 %v6756, %v6985
      %v6998 = vadd.f32 %v6757, %v6987
      %s6999 = scalar_lea.vmem %s8, 16
      %v7000 = vld [vmem:[%s6999] sm:$0xf]
      %v7005 = vunpack.c.l.b16 %v3904
      %v7006 = vunpack.c.h.b16 %v3904
      %v7007 = vunpack.c.l.b16 %v3905
      %v7008 = vunpack.c.h.b16 %v3905
      %v7009 = vunpack.c.l.b16 %v3906
      %v7010 = vunpack.c.h.b16 %v3906
      %v7011 = vunpack.c.l.b16 %v3907
      %v7012 = vunpack.c.h.b16 %v3907
      %v7013 = vpack.c.b16 %v7005, %v7005
      %v7014 = vpack.c.b16 %v7006, %v7006
      %v7015 = vpack.c.b16 %v7007, %v7007
      %v7016 = vpack.c.b16 %v7008, %v7008
      %v7017 = vpack.c.b16 %v7009, %v7009
      %v7018 = vpack.c.b16 %v7010, %v7010
      %v7019 = vpack.c.b16 %v7011, %v7011
      %v7020 = vpack.c.b16 %v7012, %v7012
      %v7022 = vsel %vm1623, %v7000, 0
      %v7025 = vsel %vm1627, %v7013, 0
      %v7028 = vsel %vm1627, %v7014, 0
      %v7031 = vsel %vm1627, %v7015, 0
      %v7034 = vsel %vm1627, %v7016, 0
      %v7037 = vsel %vm1627, %v7017, 0
      %v7040 = vsel %vm1627, %v7018, 0
      %v7043 = vsel %vm1627, %v7019, 0
      %v7046 = vsel %vm1627, %v7020, 0
      %7048 = vmatprep.subr.bf16.mxu0 %v7028
      %7049 = vmatpush1.bf16.msra.mxu0 %v7025
      %7050 = vmatprep.subr.bf16.mxu0 0
      %7051 = vmatpush1.bf16.msra.mxu0 0
      %7052 = vmatprep.subr.bf16.mxu0 0
      %7053 = vmatpush1.bf16.msra.mxu0 0
      %7054 = vmatprep.subr.bf16.mxu0 0
      %7055 = vmatpush1.bf16.msra.mxu0 0
      %7056 = vmatprep.subr.bf16.mxu0 0
      %7057 = vmatpush1.bf16.msra.mxu0 0
      %7058 = vmatprep.subr.bf16.mxu0 0
      %7059 = vmatpush1.bf16.msra.mxu0 0
      %7060 = vmatprep.subr.bf16.mxu0 0
      %7061 = vmatpush1.bf16.msra.mxu0 0
      %7062 = vmatprep.subr.bf16.mxu0 0
      %7063 = vmatpush1.bf16.msra.mxu0 0
      %7064 = vmatprep.subr.bf16.mxu0 0
      %7065 = vmatpush1.bf16.msra.mxu0 0
      %7066 = vmatprep.subr.bf16.mxu0 0
      %7067 = vmatpush1.bf16.msra.mxu0 0
      %7068 = vmatprep.subr.bf16.mxu0 0
      %7069 = vmatpush1.bf16.msra.mxu0 0
      %7070 = vmatprep.subr.bf16.mxu0 0
      %7071 = vmatpush1.bf16.msra.mxu0 0
      %7072 = vmatprep.subr.bf16.mxu0 0
      %7073 = vmatpush1.bf16.msra.mxu0 0
      %7074 = vmatprep.subr.bf16.mxu0 0
      %7075 = vmatpush1.bf16.msra.mxu0 0
      %7076 = vmatprep.subr.bf16.mxu0 0
      %7077 = vmatpush1.bf16.msra.mxu0 0
      %7078 = vmatprep.subr.bf16.mxu0 0
      %7079 = vmatpush1.bf16.msra.mxu0 0
      %7080 = vmatprep.mubr.bf16.mxu0 0
      %7081 = vmatmul.mubr.bf16.gmra.mrb[0].mxu0 %v7022
      %v7082 = vpop.f32.mrb[0].mxu0
      %v7083 = vadd.f32 0.0, %v7082
      %v7084 = vpop.f32.mrb[0].mxu0
      %v7085 = vadd.f32 0.0, %v7084
      %v7086 = vpop.f32.mrb[0].mxu0
      %v7087 = vpop.f32.mrb[0].mxu0
      %7088 = vdwg.mxu0
      %7089 = vmatprep.subr.bf16.mxu0 %v7034
      %7090 = vmatpush1.bf16.msra.mxu0 %v7031
      %7091 = vmatprep.subr.bf16.mxu0 0
      %7092 = vmatpush1.bf16.msra.mxu0 0
      %7093 = vmatprep.subr.bf16.mxu0 0
      %7094 = vmatpush1.bf16.msra.mxu0 0
      %7095 = vmatprep.subr.bf16.mxu0 0
      %7096 = vmatpush1.bf16.msra.mxu0 0
      %7097 = vmatprep.subr.bf16.mxu0 0
      %7098 = vmatpush1.bf16.msra.mxu0 0
      %7099 = vmatprep.subr.bf16.mxu0 0
      %7100 = vmatpush1.bf16.msra.mxu0 0
      %7101 = vmatprep.subr.bf16.mxu0 0
      %7102 = vmatpush1.bf16.msra.mxu0 0
      %7103 = vmatprep.subr.bf16.mxu0 0
      %7104 = vmatpush1.bf16.msra.mxu0 0
      %7105 = vmatprep.subr.bf16.mxu0 0
      %7106 = vmatpush1.bf16.msra.mxu0 0
      %7107 = vmatprep.subr.bf16.mxu0 0
      %7108 = vmatpush1.bf16.msra.mxu0 0
      %7109 = vmatprep.subr.bf16.mxu0 0
      %7110 = vmatpush1.bf16.msra.mxu0 0
      %7111 = vmatprep.subr.bf16.mxu0 0
      %7112 = vmatpush1.bf16.msra.mxu0 0
      %7113 = vmatprep.subr.bf16.mxu0 0
      %7114 = vmatpush1.bf16.msra.mxu0 0
      %7115 = vmatprep.subr.bf16.mxu0 0
      %7116 = vmatpush1.bf16.msra.mxu0 0
      %7117 = vmatprep.subr.bf16.mxu0 0
      %7118 = vmatpush1.bf16.msra.mxu0 0
      %7119 = vmatprep.subr.bf16.mxu0 0
      %7120 = vmatpush1.bf16.msra.mxu0 0
      %7121 = vmatprep.mubr.bf16.mxu0 0
      %7122 = vmatmul.mubr.bf16.gmra.mrb[0].mxu0 %v7022
      %v7123 = vpop.f32.mrb[0].mxu0
      %v7124 = vadd.f32 0.0, %v7123
      %v7125 = vpop.f32.mrb[0].mxu0
      %v7126 = vadd.f32 0.0, %v7125
      %v7127 = vpop.f32.mrb[0].mxu0
      %v7128 = vpop.f32.mrb[0].mxu0
      %7129 = vdwg.mxu0
      %7130 = vmatprep.subr.bf16.mxu0 %v7040
      %7131 = vmatpush1.bf16.msra.mxu0 %v7037
      %7132 = vmatprep.subr.bf16.mxu0 0
      %7133 = vmatpush1.bf16.msra.mxu0 0
      %7134 = vmatprep.subr.bf16.mxu0 0
      %7135 = vmatpush1.bf16.msra.mxu0 0
      %7136 = vmatprep.subr.bf16.mxu0 0
      %7137 = vmatpush1.bf16.msra.mxu0 0
      %7138 = vmatprep.subr.bf16.mxu0 0
      %7139 = vmatpush1.bf16.msra.mxu0 0
      %7140 = vmatprep.subr.bf16.mxu0 0
      %7141 = vmatpush1.bf16.msra.mxu0 0
      %7142 = vmatprep.subr.bf16.mxu0 0
      %7143 = vmatpush1.bf16.msra.mxu0 0
      %7144 = vmatprep.subr.bf16.mxu0 0
      %7145 = vmatpush1.bf16.msra.mxu0 0
      %7146 = vmatprep.subr.bf16.mxu0 0
      %7147 = vmatpush1.bf16.msra.mxu0 0
      %7148 = vmatprep.subr.bf16.mxu0 0
      %7149 = vmatpush1.bf16.msra.mxu0 0
      %7150 = vmatprep.subr.bf16.mxu0 0
      %7151 = vmatpush1.bf16.msra.mxu0 0
      %7152 = vmatprep.subr.bf16.mxu0 0
      %7153 = vmatpush1.bf16.msra.mxu0 0
      %7154 = vmatprep.subr.bf16.mxu0 0
      %7155 = vmatpush1.bf16.msra.mxu0 0
      %7156 = vmatprep.subr.bf16.mxu0 0
      %7157 = vmatpush1.bf16.msra.mxu0 0
      %7158 = vmatprep.subr.bf16.mxu0 0
      %7159 = vmatpush1.bf16.msra.mxu0 0
      %7160 = vmatprep.subr.bf16.mxu0 0
      %7161 = vmatpush1.bf16.msra.mxu0 0
      %7162 = vmatprep.mubr.bf16.mxu0 0
      %7163 = vmatmul.mubr.bf16.gmra.mrb[0].mxu0 %v7022
      %v7164 = vpop.f32.mrb[0].mxu0
      %v7165 = vadd.f32 0.0, %v7164
      %v7166 = vpop.f32.mrb[0].mxu0
      %v7167 = vadd.f32 0.0, %v7166
      %v7168 = vpop.f32.mrb[0].mxu0
      %v7169 = vpop.f32.mrb[0].mxu0
      %7170 = vdwg.mxu0
      %7171 = vmatprep.subr.bf16.mxu0 %v7046
      %7172 = vmatpush1.bf16.msra.mxu0 %v7043
      %7173 = vmatprep.subr.bf16.mxu0 0
      %7174 = vmatpush1.bf16.msra.mxu0 0
      %7175 = vmatprep.subr.bf16.mxu0 0
      %7176 = vmatpush1.bf16.msra.mxu0 0
      %7177 = vmatprep.subr.bf16.mxu0 0
      %7178 = vmatpush1.bf16.msra.mxu0 0
      %7179 = vmatprep.subr.bf16.mxu0 0
      %7180 = vmatpush1.bf16.msra.mxu0 0
      %7181 = vmatprep.subr.bf16.mxu0 0
      %7182 = vmatpush1.bf16.msra.mxu0 0
      %7183 = vmatprep.subr.bf16.mxu0 0
      %7184 = vmatpush1.bf16.msra.mxu0 0
      %7185 = vmatprep.subr.bf16.mxu0 0
      %7186 = vmatpush1.bf16.msra.mxu0 0
      %7187 = vmatprep.subr.bf16.mxu0 0
      %7188 = vmatpush1.bf16.msra.mxu0 0
      %7189 = vmatprep.subr.bf16.mxu0 0
      %7190 = vmatpush1.bf16.msra.mxu0 0
      %7191 = vmatprep.subr.bf16.mxu0 0
      %7192 = vmatpush1.bf16.msra.mxu0 0
      %7193 = vmatprep.subr.bf16.mxu0 0
      %7194 = vmatpush1.bf16.msra.mxu0 0
      %7195 = vmatprep.subr.bf16.mxu0 0
      %7196 = vmatpush1.bf16.msra.mxu0 0
      %7197 = vmatprep.subr.bf16.mxu0 0
      %7198 = vmatpush1.bf16.msra.mxu0 0
      %7199 = vmatprep.subr.bf16.mxu0 0
      %7200 = vmatpush1.bf16.msra.mxu0 0
      %7201 = vmatprep.subr.bf16.mxu0 0
      %7202 = vmatpush1.bf16.msra.mxu0 0
      %7203 = vmatprep.mubr.bf16.mxu0 0
      %7204 = vmatmul.mubr.bf16.gmra.mrb[0].mxu0 %v7022
      %v7205 = vpop.f32.mrb[0].mxu0
      %v7206 = vadd.f32 0.0, %v7205
      %v7207 = vpop.f32.mrb[0].mxu0
      %v7208 = vadd.f32 0.0, %v7207
      %v7209 = vpop.f32.mrb[0].mxu0
      %v7210 = vpop.f32.mrb[0].mxu0
      %7211 = vdwg.mxu0
      %v7212 = vadd.f32 %v6991, %v7083
      %v7213 = vadd.f32 %v6992, %v7085
      %v7214 = vadd.f32 %v6993, %v7124
      %v7215 = vadd.f32 %v6994, %v7126
      %v7216 = vadd.f32 %v6995, %v7165
      %v7217 = vadd.f32 %v6996, %v7167
      %v7218 = vadd.f32 %v6997, %v7206
      %v7219 = vadd.f32 %v6998, %v7208
      %7220 = vrot.lane.b32.xlu0 %v3908, 127
      %v7221 = vpop.permute.xlu0 %7220
      %7222 = vrot.lane.b32.xlu0 %v3909, 127
      %v7223 = vpop.permute.xlu0 %7222
      %7224 = vrot.lane.b32.xlu0 %v3910, 127
      %v7225 = vpop.permute.xlu0 %7224
      %7226 = vrot.lane.b32.xlu0 %v3911, 127
      %v7227 = vpop.permute.xlu0 %7226
      %7228 = vrot.lane.b32.xlu0 %v3912, 127
      %v7229 = vpop.permute.xlu0 %7228
      %7230 = vrot.lane.b32.xlu0 %v3913, 127
      %v7231 = vpop.permute.xlu0 %7230
      %7232 = vrot.lane.b32.xlu0 %v3914, 127
      %v7233 = vpop.permute.xlu0 %7232
      %7234 = vrot.lane.b32.xlu0 %v3915, 127
      %v7235 = vpop.permute.xlu0 %7234
      %v7236 = vsel %vm2780, %v7233, %v7235
      %v7237 = vsel %vm2780, %v7231, %v7233
      %v7238 = vsel %vm2780, %v7229, %v7231
      %v7239 = vsel %vm2780, %v7227, %v7229
      %v7240 = vsel %vm2780, %v7225, %v7227
      %v7241 = vsel %vm2780, %v7223, %v7225
      %v7242 = vsel %vm2780, %v7221, %v7223
      %v7243 = vsel %vm2780, %v7235, %v7221
      %v7244 = vmul.f32 %v7242, %v2792
      %v7245 = vmul.f32 %v7241, %v2796
      %v7246 = vmul.f32 %v7240, %v2800
      %v7247 = vmul.f32 %v7239, %v2804
      %v7248 = vmul.f32 %v7238, %v2808
      %v7249 = vmul.f32 %v7237, %v2812
      %v7250 = vmul.f32 %v7236, %v2816
      %v7251 = vmul.f32 %v7243, %v2820
      %s7252 = scalar_lea.vmem %s8, 20
      %v7253 = vld [vmem:[%s7252] sm:$0xf]
      %v7254 = vpack.c.bf16 %v7244, %v7244
      %v7255 = vpack.c.bf16 %v7245, %v7245
      %v7256 = vpack.c.bf16 %v7246, %v7246
      %v7257 = vpack.c.bf16 %v7247, %v7247
      %v7258 = vpack.c.bf16 %v7248, %v7248
      %v7259 = vpack.c.bf16 %v7249, %v7249
      %v7260 = vpack.c.bf16 %v7250, %v7250
      %v7261 = vpack.c.bf16 %v7251, %v7251
      %v7263 = vsel %vm1623, %v7253, 0
      %v7266 = vsel %vm1627, %v7254, 0
      %v7269 = vsel %vm1627, %v7255, 0
      %v7272 = vsel %vm1627, %v7256, 0
      %v7275 = vsel %vm1627, %v7257, 0
      %v7278 = vsel %vm1627, %v7258, 0
      %v7281 = vsel %vm1627, %v7259, 0
      %v7284 = vsel %vm1627, %v7260, 0
      %v7287 = vsel %vm1627, %v7261, 0
      %7289 = vmatprep.subr.bf16.mxu0 %v7269
      %7290 = vmatpush1.bf16.msra.mxu0 %v7266
      %7291 = vmatprep.subr.bf16.mxu0 0
      %7292 = vmatpush1.bf16.msra.mxu0 0
      %7293 = vmatprep.subr.bf16.mxu0 0
      %7294 = vmatpush1.bf16.msra.mxu0 0
      %7295 = vmatprep.subr.bf16.mxu0 0
      %7296 = vmatpush1.bf16.msra.mxu0 0
      %7297 = vmatprep.subr.bf16.mxu0 0
      %7298 = vmatpush1.bf16.msra.mxu0 0
      %7299 = vmatprep.subr.bf16.mxu0 0
      %7300 = vmatpush1.bf16.msra.mxu0 0
      %7301 = vmatprep.subr.bf16.mxu0 0
      %7302 = vmatpush1.bf16.msra.mxu0 0
      %7303 = vmatprep.subr.bf16.mxu0 0
      %7304 = vmatpush1.bf16.msra.mxu0 0
      %7305 = vmatprep.subr.bf16.mxu0 0
      %7306 = vmatpush1.bf16.msra.mxu0 0
      %7307 = vmatprep.subr.bf16.mxu0 0
      %7308 = vmatpush1.bf16.msra.mxu0 0
      %7309 = vmatprep.subr.bf16.mxu0 0
      %7310 = vmatpush1.bf16.msra.mxu0 0
      %7311 = vmatprep.subr.bf16.mxu0 0
      %7312 = vmatpush1.bf16.msra.mxu0 0
      %7313 = vmatprep.subr.bf16.mxu0 0
      %7314 = vmatpush1.bf16.msra.mxu0 0
      %7315 = vmatprep.subr.bf16.mxu0 0
      %7316 = vmatpush1.bf16.msra.mxu0 0
      %7317 = vmatprep.subr.bf16.mxu0 0
      %7318 = vmatpush1.bf16.msra.mxu0 0
      %7319 = vmatprep.subr.bf16.mxu0 0
      %7320 = vmatpush1.bf16.msra.mxu0 0
      %7321 = vmatprep.mubr.bf16.mxu0 0
      %7322 = vmatmul.mubr.bf16.gmra.mrb[0].mxu0 %v7263
      %v7323 = vpop.f32.mrb[0].mxu0
      %v7324 = vadd.f32 0.0, %v7323
      %v7325 = vpop.f32.mrb[0].mxu0
      %v7326 = vadd.f32 0.0, %v7325
      %v7327 = vpop.f32.mrb[0].mxu0
      %v7328 = vpop.f32.mrb[0].mxu0
      %7329 = vdwg.mxu0
      %7330 = vmatprep.subr.bf16.mxu0 %v7275
      %7331 = vmatpush1.bf16.msra.mxu0 %v7272
      %7332 = vmatprep.subr.bf16.mxu0 0
      %7333 = vmatpush1.bf16.msra.mxu0 0
      %7334 = vmatprep.subr.bf16.mxu0 0
      %7335 = vmatpush1.bf16.msra.mxu0 0
      %7336 = vmatprep.subr.bf16.mxu0 0
      %7337 = vmatpush1.bf16.msra.mxu0 0
      %7338 = vmatprep.subr.bf16.mxu0 0
      %7339 = vmatpush1.bf16.msra.mxu0 0
      %7340 = vmatprep.subr.bf16.mxu0 0
      %7341 = vmatpush1.bf16.msra.mxu0 0
      %7342 = vmatprep.subr.bf16.mxu0 0
      %7343 = vmatpush1.bf16.msra.mxu0 0
      %7344 = vmatprep.subr.bf16.mxu0 0
      %7345 = vmatpush1.bf16.msra.mxu0 0
      %7346 = vmatprep.subr.bf16.mxu0 0
      %7347 = vmatpush1.bf16.msra.mxu0 0
      %7348 = vmatprep.subr.bf16.mxu0 0
      %7349 = vmatpush1.bf16.msra.mxu0 0
      %7350 = vmatprep.subr.bf16.mxu0 0
      %7351 = vmatpush1.bf16.msra.mxu0 0
      %7352 = vmatprep.subr.bf16.mxu0 0
      %7353 = vmatpush1.bf16.msra.mxu0 0
      %7354 = vmatprep.subr.bf16.mxu0 0
      %7355 = vmatpush1.bf16.msra.mxu0 0
      %7356 = vmatprep.subr.bf16.mxu0 0
      %7357 = vmatpush1.bf16.msra.mxu0 0
      %7358 = vmatprep.subr.bf16.mxu0 0
      %7359 = vmatpush1.bf16.msra.mxu0 0
      %7360 = vmatprep.subr.bf16.mxu0 0
      %7361 = vmatpush1.bf16.msra.mxu0 0
      %7362 = vmatprep.mubr.bf16.mxu0 0
      %7363 = vmatmul.mubr.bf16.gmra.mrb[0].mxu0 %v7263
      %v7364 = vpop.f32.mrb[0].mxu0
      %v7365 = vadd.f32 0.0, %v7364
      %v7366 = vpop.f32.mrb[0].mxu0
      %v7367 = vadd.f32 0.0, %v7366
      %v7368 = vpop.f32.mrb[0].mxu0
      %v7369 = vpop.f32.mrb[0].mxu0
      %7370 = vdwg.mxu0
      %7371 = vmatprep.subr.bf16.mxu0 %v7281
      %7372 = vmatpush1.bf16.msra.mxu0 %v7278
      %7373 = vmatprep.subr.bf16.mxu0 0
      %7374 = vmatpush1.bf16.msra.mxu0 0
      %7375 = vmatprep.subr.bf16.mxu0 0
      %7376 = vmatpush1.bf16.msra.mxu0 0
      %7377 = vmatprep.subr.bf16.mxu0 0
      %7378 = vmatpush1.bf16.msra.mxu0 0
      %7379 = vmatprep.subr.bf16.mxu0 0
      %7380 = vmatpush1.bf16.msra.mxu0 0
      %7381 = vmatprep.subr.bf16.mxu0 0
      %7382 = vmatpush1.bf16.msra.mxu0 0
      %7383 = vmatprep.subr.bf16.mxu0 0
      %7384 = vmatpush1.bf16.msra.mxu0 0
      %7385 = vmatprep.subr.bf16.mxu0 0
      %7386 = vmatpush1.bf16.msra.mxu0 0
      %7387 = vmatprep.subr.bf16.mxu0 0
      %7388 = vmatpush1.bf16.msra.mxu0 0
      %7389 = vmatprep.subr.bf16.mxu0 0
      %7390 = vmatpush1.bf16.msra.mxu0 0
      %7391 = vmatprep.subr.bf16.mxu0 0
      %7392 = vmatpush1.bf16.msra.mxu0 0
      %7393 = vmatprep.subr.bf16.mxu0 0
      %7394 = vmatpush1.bf16.msra.mxu0 0
      %7395 = vmatprep.subr.bf16.mxu0 0
      %7396 = vmatpush1.bf16.msra.mxu0 0
      %7397 = vmatprep.subr.bf16.mxu0 0
      %7398 = vmatpush1.bf16.msra.mxu0 0
      %7399 = vmatprep.subr.bf16.mxu0 0
      %7400 = vmatpush1.bf16.msra.mxu0 0
      %7401 = vmatprep.subr.bf16.mxu0 0
      %7402 = vmatpush1.bf16.msra.mxu0 0
      %7403 = vmatprep.mubr.bf16.mxu0 0
      %7404 = vmatmul.mubr.bf16.gmra.mrb[0].mxu0 %v7263
      %v7405 = vpop.f32.mrb[0].mxu0
      %v7406 = vadd.f32 0.0, %v7405
      %v7407 = vpop.f32.mrb[0].mxu0
      %v7408 = vadd.f32 0.0, %v7407
      %v7409 = vpop.f32.mrb[0].mxu0
      %v7410 = vpop.f32.mrb[0].mxu0
      %7411 = vdwg.mxu0
      %7412 = vmatprep.subr.bf16.mxu0 %v7287
      %7413 = vmatpush1.bf16.msra.mxu0 %v7284
      %7414 = vmatprep.subr.bf16.mxu0 0
      %7415 = vmatpush1.bf16.msra.mxu0 0
      %7416 = vmatprep.subr.bf16.mxu0 0
      %7417 = vmatpush1.bf16.msra.mxu0 0
      %7418 = vmatprep.subr.bf16.mxu0 0
      %7419 = vmatpush1.bf16.msra.mxu0 0
      %7420 = vmatprep.subr.bf16.mxu0 0
      %7421 = vmatpush1.bf16.msra.mxu0 0
      %7422 = vmatprep.subr.bf16.mxu0 0
      %7423 = vmatpush1.bf16.msra.mxu0 0
      %7424 = vmatprep.subr.bf16.mxu0 0
      %7425 = vmatpush1.bf16.msra.mxu0 0
      %7426 = vmatprep.subr.bf16.mxu0 0
      %7427 = vmatpush1.bf16.msra.mxu0 0
      %7428 = vmatprep.subr.bf16.mxu0 0
      %7429 = vmatpush1.bf16.msra.mxu0 0
      %7430 = vmatprep.subr.bf16.mxu0 0
      %7431 = vmatpush1.bf16.msra.mxu0 0
      %7432 = vmatprep.subr.bf16.mxu0 0
      %7433 = vmatpush1.bf16.msra.mxu0 0
      %7434 = vmatprep.subr.bf16.mxu0 0
      %7435 = vmatpush1.bf16.msra.mxu0 0
      %7436 = vmatprep.subr.bf16.mxu0 0
      %7437 = vmatpush1.bf16.msra.mxu0 0
      %7438 = vmatprep.subr.bf16.mxu0 0
      %7439 = vmatpush1.bf16.msra.mxu0 0
      %7440 = vmatprep.subr.bf16.mxu0 0
      %7441 = vmatpush1.bf16.msra.mxu0 0
      %7442 = vmatprep.subr.bf16.mxu0 0
      %7443 = vmatpush1.bf16.msra.mxu0 0
      %7444 = vmatprep.mubr.bf16.mxu0 0
      %7445 = vmatmul.mubr.bf16.gmra.mrb[0].mxu0 %v7263
      %v7446 = vpop.f32.mrb[0].mxu0
      %v7447 = vadd.f32 0.0, %v7446
      %v7448 = vpop.f32.mrb[0].mxu0
      %v7449 = vadd.f32 0.0, %v7448
      %v7450 = vpop.f32.mrb[0].mxu0
      %v7451 = vpop.f32.mrb[0].mxu0
      %7452 = vdwg.mxu0
      %v7453 = vadd.f32 %v7212, %v7324
      %v7454 = vadd.f32 %v7213, %v7326
      %v7455 = vadd.f32 %v7214, %v7365
      %v7456 = vadd.f32 %v7215, %v7367
      %v7457 = vadd.f32 %v7216, %v7406
      %v7458 = vadd.f32 %v7217, %v7408
      %v7459 = vadd.f32 %v7218, %v7447
      %v7460 = vadd.f32 %v7219, %v7449
      %7461 = vrot.lane.b32.xlu0 %v3908, 97
      %v7462 = vpop.permute.xlu0 %7461
      %7463 = vrot.lane.b32.xlu0 %v3909, 97
      %v7464 = vpop.permute.xlu0 %7463
      %7465 = vrot.lane.b32.xlu0 %v3910, 97
      %v7466 = vpop.permute.xlu0 %7465
      %7467 = vrot.lane.b32.xlu0 %v3911, 97
      %v7468 = vpop.permute.xlu0 %7467
      %7469 = vrot.lane.b32.xlu0 %v3912, 97
      %v7470 = vpop.permute.xlu0 %7469
      %7471 = vrot.lane.b32.xlu0 %v3913, 97
      %v7472 = vpop.permute.xlu0 %7471
      %7473 = vrot.lane.b32.xlu0 %v3914, 97
      %v7474 = vpop.permute.xlu0 %7473
      %7475 = vrot.lane.b32.xlu0 %v3915, 97
      %v7476 = vpop.permute.xlu0 %7475
      %v7477 = vsel %vm3054, %v7474, %v7476
      %v7478 = vsel %vm3054, %v7472, %v7474
      %v7479 = vsel %vm3054, %v7470, %v7472
      %v7480 = vsel %vm3054, %v7468, %v7470
      %v7481 = vsel %vm3054, %v7466, %v7468
      %v7482 = vsel %vm3054, %v7464, %v7466
      %v7483 = vsel %vm3054, %v7462, %v7464
      %v7484 = vsel %vm3054, %v7476, %v7462
      %v7485 = vmul.f32 %v7483, %v3066
      %v7486 = vmul.f32 %v7482, %v3070
      %v7487 = vmul.f32 %v7481, %v3074
      %v7488 = vmul.f32 %v7480, %v3078
      %v7489 = vmul.f32 %v7479, %v3082
      %v7490 = vmul.f32 %v7478, %v3086
      %v7491 = vmul.f32 %v7477, %v3090
      %v7492 = vmul.f32 %v7484, %v3094
      %s7493 = scalar_lea.vmem %s8, 24
      %v7494 = vld [vmem:[%s7493] sm:$0xf]
      %v7495 = vpack.c.bf16 %v7485, %v7485
      %v7496 = vpack.c.bf16 %v7486, %v7486
      %v7497 = vpack.c.bf16 %v7487, %v7487
      %v7498 = vpack.c.bf16 %v7488, %v7488
      %v7499 = vpack.c.bf16 %v7489, %v7489
      %v7500 = vpack.c.bf16 %v7490, %v7490
      %v7501 = vpack.c.bf16 %v7491, %v7491
      %v7502 = vpack.c.bf16 %v7492, %v7492
      %v7504 = vsel %vm1623, %v7494, 0
      %v7507 = vsel %vm1627, %v7495, 0
      %v7510 = vsel %vm1627, %v7496, 0
      %v7513 = vsel %vm1627, %v7497, 0
      %v7516 = vsel %vm1627, %v7498, 0
      %v7519 = vsel %vm1627, %v7499, 0
      %v7522 = vsel %vm1627, %v7500, 0
      %v7525 = vsel %vm1627, %v7501, 0
      %v7528 = vsel %vm1627, %v7502, 0
      %7530 = vmatprep.subr.bf16.mxu0 %v7510
      %7531 = vmatpush1.bf16.msra.mxu0 %v7507
      %7532 = vmatprep.subr.bf16.mxu0 0
      %7533 = vmatpush1.bf16.msra.mxu0 0
      %7534 = vmatprep.subr.bf16.mxu0 0
      %7535 = vmatpush1.bf16.msra.mxu0 0
      %7536 = vmatprep.subr.bf16.mxu0 0
      %7537 = vmatpush1.bf16.msra.mxu0 0
      %7538 = vmatprep.subr.bf16.mxu0 0
      %7539 = vmatpush1.bf16.msra.mxu0 0
      %7540 = vmatprep.subr.bf16.mxu0 0
      %7541 = vmatpush1.bf16.msra.mxu0 0
      %7542 = vmatprep.subr.bf16.mxu0 0
      %7543 = vmatpush1.bf16.msra.mxu0 0
      %7544 = vmatprep.subr.bf16.mxu0 0
      %7545 = vmatpush1.bf16.msra.mxu0 0
      %7546 = vmatprep.subr.bf16.mxu0 0
      %7547 = vmatpush1.bf16.msra.mxu0 0
      %7548 = vmatprep.subr.bf16.mxu0 0
      %7549 = vmatpush1.bf16.msra.mxu0 0
      %7550 = vmatprep.subr.bf16.mxu0 0
      %7551 = vmatpush1.bf16.msra.mxu0 0
      %7552 = vmatprep.subr.bf16.mxu0 0
      %7553 = vmatpush1.bf16.msra.mxu0 0
      %7554 = vmatprep.subr.bf16.mxu0 0
      %7555 = vmatpush1.bf16.msra.mxu0 0
      %7556 = vmatprep.subr.bf16.mxu0 0
      %7557 = vmatpush1.bf16.msra.mxu0 0
      %7558 = vmatprep.subr.bf16.mxu0 0
      %7559 = vmatpush1.bf16.msra.mxu0 0
      %7560 = vmatprep.subr.bf16.mxu0 0
      %7561 = vmatpush1.bf16.msra.mxu0 0
      %7562 = vmatprep.mubr.bf16.mxu0 0
      %7563 = vmatmul.mubr.bf16.gmra.mrb[0].mxu0 %v7504
      %v7564 = vpop.f32.mrb[0].mxu0
      %v7565 = vadd.f32 0.0, %v7564
      %v7566 = vpop.f32.mrb[0].mxu0
      %v7567 = vadd.f32 0.0, %v7566
      %v7568 = vpop.f32.mrb[0].mxu0
      %v7569 = vpop.f32.mrb[0].mxu0
      %7570 = vdwg.mxu0
      %7571 = vmatprep.subr.bf16.mxu0 %v7516
      %7572 = vmatpush1.bf16.msra.mxu0 %v7513
      %7573 = vmatprep.subr.bf16.mxu0 0
      %7574 = vmatpush1.bf16.msra.mxu0 0
      %7575 = vmatprep.subr.bf16.mxu0 0
      %7576 = vmatpush1.bf16.msra.mxu0 0
      %7577 = vmatprep.subr.bf16.mxu0 0
      %7578 = vmatpush1.bf16.msra.mxu0 0
      %7579 = vmatprep.subr.bf16.mxu0 0
      %7580 = vmatpush1.bf16.msra.mxu0 0
      %7581 = vmatprep.subr.bf16.mxu0 0
      %7582 = vmatpush1.bf16.msra.mxu0 0
      %7583 = vmatprep.subr.bf16.mxu0 0
      %7584 = vmatpush1.bf16.msra.mxu0 0
      %7585 = vmatprep.subr.bf16.mxu0 0
      %7586 = vmatpush1.bf16.msra.mxu0 0
      %7587 = vmatprep.subr.bf16.mxu0 0
      %7588 = vmatpush1.bf16.msra.mxu0 0
      %7589 = vmatprep.subr.bf16.mxu0 0
      %7590 = vmatpush1.bf16.msra.mxu0 0
      %7591 = vmatprep.subr.bf16.mxu0 0
      %7592 = vmatpush1.bf16.msra.mxu0 0
      %7593 = vmatprep.subr.bf16.mxu0 0
      %7594 = vmatpush1.bf16.msra.mxu0 0
      %7595 = vmatprep.subr.bf16.mxu0 0
      %7596 = vmatpush1.bf16.msra.mxu0 0
      %7597 = vmatprep.subr.bf16.mxu0 0
      %7598 = vmatpush1.bf16.msra.mxu0 0
      %7599 = vmatprep.subr.bf16.mxu0 0
      %7600 = vmatpush1.bf16.msra.mxu0 0
      %7601 = vmatprep.subr.bf16.mxu0 0
      %7602 = vmatpush1.bf16.msra.mxu0 0
      %7603 = vmatprep.mubr.bf16.mxu0 0
      %7604 = vmatmul.mubr.bf16.gmra.mrb[0].mxu0 %v7504
      %v7605 = vpop.f32.mrb[0].mxu0
      %v7606 = vadd.f32 0.0, %v7605
      %v7607 = vpop.f32.mrb[0].mxu0
      %v7608 = vadd.f32 0.0, %v7607
      %v7609 = vpop.f32.mrb[0].mxu0
      %v7610 = vpop.f32.mrb[0].mxu0
      %7611 = vdwg.mxu0
      %7612 = vmatprep.subr.bf16.mxu0 %v7522
      %7613 = vmatpush1.bf16.msra.mxu0 %v7519
      %7614 = vmatprep.subr.bf16.mxu0 0
      %7615 = vmatpush1.bf16.msra.mxu0 0
      %7616 = vmatprep.subr.bf16.mxu0 0
      %7617 = vmatpush1.bf16.msra.mxu0 0
      %7618 = vmatprep.subr.bf16.mxu0 0
      %7619 = vmatpush1.bf16.msra.mxu0 0
      %7620 = vmatprep.subr.bf16.mxu0 0
      %7621 = vmatpush1.bf16.msra.mxu0 0
      %7622 = vmatprep.subr.bf16.mxu0 0
      %7623 = vmatpush1.bf16.msra.mxu0 0
      %7624 = vmatprep.subr.bf16.mxu0 0
      %7625 = vmatpush1.bf16.msra.mxu0 0
      %7626 = vmatprep.subr.bf16.mxu0 0
      %7627 = vmatpush1.bf16.msra.mxu0 0
      %7628 = vmatprep.subr.bf16.mxu0 0
      %7629 = vmatpush1.bf16.msra.mxu0 0
      %7630 = vmatprep.subr.bf16.mxu0 0
      %7631 = vmatpush1.bf16.msra.mxu0 0
      %7632 = vmatprep.subr.bf16.mxu0 0
      %7633 = vmatpush1.bf16.msra.mxu0 0
      %7634 = vmatprep.subr.bf16.mxu0 0
      %7635 = vmatpush1.bf16.msra.mxu0 0
      %7636 = vmatprep.subr.bf16.mxu0 0
      %7637 = vmatpush1.bf16.msra.mxu0 0
      %7638 = vmatprep.subr.bf16.mxu0 0
      %7639 = vmatpush1.bf16.msra.mxu0 0
      %7640 = vmatprep.subr.bf16.mxu0 0
      %7641 = vmatpush1.bf16.msra.mxu0 0
      %7642 = vmatprep.subr.bf16.mxu0 0
      %7643 = vmatpush1.bf16.msra.mxu0 0
      %7644 = vmatprep.mubr.bf16.mxu0 0
      %7645 = vmatmul.mubr.bf16.gmra.mrb[0].mxu0 %v7504
      %v7646 = vpop.f32.mrb[0].mxu0
      %v7647 = vadd.f32 0.0, %v7646
      %v7648 = vpop.f32.mrb[0].mxu0
      %v7649 = vadd.f32 0.0, %v7648
      %v7650 = vpop.f32.mrb[0].mxu0
      %v7651 = vpop.f32.mrb[0].mxu0
      %7652 = vdwg.mxu0
      %7653 = vmatprep.subr.bf16.mxu0 %v7528
      %7654 = vmatpush1.bf16.msra.mxu0 %v7525
      %7655 = vmatprep.subr.bf16.mxu0 0
      %7656 = vmatpush1.bf16.msra.mxu0 0
      %7657 = vmatprep.subr.bf16.mxu0 0
      %7658 = vmatpush1.bf16.msra.mxu0 0
      %7659 = vmatprep.subr.bf16.mxu0 0
      %7660 = vmatpush1.bf16.msra.mxu0 0
      %7661 = vmatprep.subr.bf16.mxu0 0
      %7662 = vmatpush1.bf16.msra.mxu0 0
      %7663 = vmatprep.subr.bf16.mxu0 0
      %7664 = vmatpush1.bf16.msra.mxu0 0
      %7665 = vmatprep.subr.bf16.mxu0 0
      %7666 = vmatpush1.bf16.msra.mxu0 0
      %7667 = vmatprep.subr.bf16.mxu0 0
      %7668 = vmatpush1.bf16.msra.mxu0 0
      %7669 = vmatprep.subr.bf16.mxu0 0
      %7670 = vmatpush1.bf16.msra.mxu0 0
      %7671 = vmatprep.subr.bf16.mxu0 0
      %7672 = vmatpush1.bf16.msra.mxu0 0
      %7673 = vmatprep.subr.bf16.mxu0 0
      %7674 = vmatpush1.bf16.msra.mxu0 0
      %7675 = vmatprep.subr.bf16.mxu0 0
      %7676 = vmatpush1.bf16.msra.mxu0 0
      %7677 = vmatprep.subr.bf16.mxu0 0
      %7678 = vmatpush1.bf16.msra.mxu0 0
      %7679 = vmatprep.subr.bf16.mxu0 0
      %7680 = vmatpush1.bf16.msra.mxu0 0
      %7681 = vmatprep.subr.bf16.mxu0 0
      %7682 = vmatpush1.bf16.msra.mxu0 0
      %7683 = vmatprep.subr.bf16.mxu0 0
      %7684 = vmatpush1.bf16.msra.mxu0 0
      %7685 = vmatprep.mubr.bf16.mxu0 0
      %7686 = vmatmul.mubr.bf16.gmra.mrb[0].mxu0 %v7504
      %v7687 = vpop.f32.mrb[0].mxu0
      %v7688 = vadd.f32 0.0, %v7687
      %v7689 = vpop.f32.mrb[0].mxu0
      %v7690 = vadd.f32 0.0, %v7689
      %v7691 = vpop.f32.mrb[0].mxu0
      %v7692 = vpop.f32.mrb[0].mxu0
      %7693 = vdwg.mxu0
      %v7694 = vadd.f32 %v7453, %v7565
      %v7695 = vadd.f32 %v7454, %v7567
      %v7696 = vadd.f32 %v7455, %v7606
      %v7697 = vadd.f32 %v7456, %v7608
      %v7698 = vadd.f32 %v7457, %v7647
      %v7699 = vadd.f32 %v7458, %v7649
      %v7700 = vadd.f32 %v7459, %v7688
      %v7701 = vadd.f32 %v7460, %v7690
      %7702 = vrot.lane.b32.xlu0 %v3908, 96
      %v7703 = vpop.permute.xlu0 %7702
      %7704 = vrot.lane.b32.xlu0 %v3909, 96
      %v7705 = vpop.permute.xlu0 %7704
      %7706 = vrot.lane.b32.xlu0 %v3910, 96
      %v7707 = vpop.permute.xlu0 %7706
      %7708 = vrot.lane.b32.xlu0 %v3911, 96
      %v7709 = vpop.permute.xlu0 %7708
      %7710 = vrot.lane.b32.xlu0 %v3912, 96
      %v7711 = vpop.permute.xlu0 %7710
      %7712 = vrot.lane.b32.xlu0 %v3913, 96
      %v7713 = vpop.permute.xlu0 %7712
      %7714 = vrot.lane.b32.xlu0 %v3914, 96
      %v7715 = vpop.permute.xlu0 %7714
      %7716 = vrot.lane.b32.xlu0 %v3915, 96
      %v7717 = vpop.permute.xlu0 %7716
      %v7718 = vsel %vm3328, %v7715, %v7717
      %v7719 = vsel %vm3328, %v7713, %v7715
      %v7720 = vsel %vm3328, %v7711, %v7713
      %v7721 = vsel %vm3328, %v7709, %v7711
      %v7722 = vsel %vm3328, %v7707, %v7709
      %v7723 = vsel %vm3328, %v7705, %v7707
      %v7724 = vsel %vm3328, %v7703, %v7705
      %v7725 = vsel %vm3328, %v7717, %v7703
      %v7726 = vmul.f32 %v7724, %v3340
      %v7727 = vmul.f32 %v7723, %v3344
      %v7728 = vmul.f32 %v7722, %v3348
      %v7729 = vmul.f32 %v7721, %v3352
      %v7730 = vmul.f32 %v7720, %v3356
      %v7731 = vmul.f32 %v7719, %v3360
      %v7732 = vmul.f32 %v7718, %v3364
      %v7733 = vmul.f32 %v7725, %v3368
      %s7734 = scalar_lea.vmem %s8, 28
      %v7735 = vld [vmem:[%s7734] sm:$0xf]
      %v7736 = vpack.c.bf16 %v7726, %v7726
      %v7737 = vpack.c.bf16 %v7727, %v7727
      %v7738 = vpack.c.bf16 %v7728, %v7728
      %v7739 = vpack.c.bf16 %v7729, %v7729
      %v7740 = vpack.c.bf16 %v7730, %v7730
      %v7741 = vpack.c.bf16 %v7731, %v7731
      %v7742 = vpack.c.bf16 %v7732, %v7732
      %v7743 = vpack.c.bf16 %v7733, %v7733
      %v7745 = vsel %vm1623, %v7735, 0
      %v7748 = vsel %vm1627, %v7736, 0
      %v7751 = vsel %vm1627, %v7737, 0
      %v7754 = vsel %vm1627, %v7738, 0
      %v7757 = vsel %vm1627, %v7739, 0
      %v7760 = vsel %vm1627, %v7740, 0
      %v7763 = vsel %vm1627, %v7741, 0
      %v7766 = vsel %vm1627, %v7742, 0
      %v7769 = vsel %vm1627, %v7743, 0
      %7771 = vmatprep.subr.bf16.mxu0 %v7751
      %7772 = vmatpush1.bf16.msra.mxu0 %v7748
      %7773 = vmatprep.subr.bf16.mxu0 0
      %7774 = vmatpush1.bf16.msra.mxu0 0
      %7775 = vmatprep.subr.bf16.mxu0 0
      %7776 = vmatpush1.bf16.msra.mxu0 0
      %7777 = vmatprep.subr.bf16.mxu0 0
      %7778 = vmatpush1.bf16.msra.mxu0 0
      %7779 = vmatprep.subr.bf16.mxu0 0
      %7780 = vmatpush1.bf16.msra.mxu0 0
      %7781 = vmatprep.subr.bf16.mxu0 0
      %7782 = vmatpush1.bf16.msra.mxu0 0
      %7783 = vmatprep.subr.bf16.mxu0 0
      %7784 = vmatpush1.bf16.msra.mxu0 0
      %7785 = vmatprep.subr.bf16.mxu0 0
      %7786 = vmatpush1.bf16.msra.mxu0 0
      %7787 = vmatprep.subr.bf16.mxu0 0
      %7788 = vmatpush1.bf16.msra.mxu0 0
      %7789 = vmatprep.subr.bf16.mxu0 0
      %7790 = vmatpush1.bf16.msra.mxu0 0
      %7791 = vmatprep.subr.bf16.mxu0 0
      %7792 = vmatpush1.bf16.msra.mxu0 0
      %7793 = vmatprep.subr.bf16.mxu0 0
      %7794 = vmatpush1.bf16.msra.mxu0 0
      %7795 = vmatprep.subr.bf16.mxu0 0
      %7796 = vmatpush1.bf16.msra.mxu0 0
      %7797 = vmatprep.subr.bf16.mxu0 0
      %7798 = vmatpush1.bf16.msra.mxu0 0
      %7799 = vmatprep.subr.bf16.mxu0 0
      %7800 = vmatpush1.bf16.msra.mxu0 0
      %7801 = vmatprep.subr.bf16.mxu0 0
      %7802 = vmatpush1.bf16.msra.mxu0 0
      %7803 = vmatprep.mubr.bf16.mxu0 0
      %7804 = vmatmul.mubr.bf16.gmra.mrb[0].mxu0 %v7745
      %v7805 = vpop.f32.mrb[0].mxu0
      %v7806 = vadd.f32 0.0, %v7805
      %v7807 = vpop.f32.mrb[0].mxu0
      %v7808 = vadd.f32 0.0, %v7807
      %v7809 = vpop.f32.mrb[0].mxu0
      %v7810 = vpop.f32.mrb[0].mxu0
      %7811 = vdwg.mxu0
      %7812 = vmatprep.subr.bf16.mxu0 %v7757
      %7813 = vmatpush1.bf16.msra.mxu0 %v7754
      %7814 = vmatprep.subr.bf16.mxu0 0
      %7815 = vmatpush1.bf16.msra.mxu0 0
      %7816 = vmatprep.subr.bf16.mxu0 0
      %7817 = vmatpush1.bf16.msra.mxu0 0
      %7818 = vmatprep.subr.bf16.mxu0 0
      %7819 = vmatpush1.bf16.msra.mxu0 0
      %7820 = vmatprep.subr.bf16.mxu0 0
      %7821 = vmatpush1.bf16.msra.mxu0 0
      %7822 = vmatprep.subr.bf16.mxu0 0
      %7823 = vmatpush1.bf16.msra.mxu0 0
      %7824 = vmatprep.subr.bf16.mxu0 0
      %7825 = vmatpush1.bf16.msra.mxu0 0
      %7826 = vmatprep.subr.bf16.mxu0 0
      %7827 = vmatpush1.bf16.msra.mxu0 0
      %7828 = vmatprep.subr.bf16.mxu0 0
      %7829 = vmatpush1.bf16.msra.mxu0 0
      %7830 = vmatprep.subr.bf16.mxu0 0
      %7831 = vmatpush1.bf16.msra.mxu0 0
      %7832 = vmatprep.subr.bf16.mxu0 0
      %7833 = vmatpush1.bf16.msra.mxu0 0
      %7834 = vmatprep.subr.bf16.mxu0 0
      %7835 = vmatpush1.bf16.msra.mxu0 0
      %7836 = vmatprep.subr.bf16.mxu0 0
      %7837 = vmatpush1.bf16.msra.mxu0 0
      %7838 = vmatprep.subr.bf16.mxu0 0
      %7839 = vmatpush1.bf16.msra.mxu0 0
      %7840 = vmatprep.subr.bf16.mxu0 0
      %7841 = vmatpush1.bf16.msra.mxu0 0
      %7842 = vmatprep.subr.bf16.mxu0 0
      %7843 = vmatpush1.bf16.msra.mxu0 0
      %7844 = vmatprep.mubr.bf16.mxu0 0
      %7845 = vmatmul.mubr.bf16.gmra.mrb[0].mxu0 %v7745
      %v7846 = vpop.f32.mrb[0].mxu0
      %v7847 = vadd.f32 0.0, %v7846
      %v7848 = vpop.f32.mrb[0].mxu0
      %v7849 = vadd.f32 0.0, %v7848
      %v7850 = vpop.f32.mrb[0].mxu0
      %v7851 = vpop.f32.mrb[0].mxu0
      %7852 = vdwg.mxu0
      %7853 = vmatprep.subr.bf16.mxu0 %v7763
      %7854 = vmatpush1.bf16.msra.mxu0 %v7760
      %7855 = vmatprep.subr.bf16.mxu0 0
      %7856 = vmatpush1.bf16.msra.mxu0 0
      %7857 = vmatprep.subr.bf16.mxu0 0
      %7858 = vmatpush1.bf16.msra.mxu0 0
      %7859 = vmatprep.subr.bf16.mxu0 0
      %7860 = vmatpush1.bf16.msra.mxu0 0
      %7861 = vmatprep.subr.bf16.mxu0 0
      %7862 = vmatpush1.bf16.msra.mxu0 0
      %7863 = vmatprep.subr.bf16.mxu0 0
      %7864 = vmatpush1.bf16.msra.mxu0 0
      %7865 = vmatprep.subr.bf16.mxu0 0
      %7866 = vmatpush1.bf16.msra.mxu0 0
      %7867 = vmatprep.subr.bf16.mxu0 0
      %7868 = vmatpush1.bf16.msra.mxu0 0
      %7869 = vmatprep.subr.bf16.mxu0 0
      %7870 = vmatpush1.bf16.msra.mxu0 0
      %7871 = vmatprep.subr.bf16.mxu0 0
      %7872 = vmatpush1.bf16.msra.mxu0 0
      %7873 = vmatprep.subr.bf16.mxu0 0
      %7874 = vmatpush1.bf16.msra.mxu0 0
      %7875 = vmatprep.subr.bf16.mxu0 0
      %7876 = vmatpush1.bf16.msra.mxu0 0
      %7877 = vmatprep.subr.bf16.mxu0 0
      %7878 = vmatpush1.bf16.msra.mxu0 0
      %7879 = vmatprep.subr.bf16.mxu0 0
      %7880 = vmatpush1.bf16.msra.mxu0 0
      %7881 = vmatprep.subr.bf16.mxu0 0
      %7882 = vmatpush1.bf16.msra.mxu0 0
      %7883 = vmatprep.subr.bf16.mxu0 0
      %7884 = vmatpush1.bf16.msra.mxu0 0
      %7885 = vmatprep.mubr.bf16.mxu0 0
      %7886 = vmatmul.mubr.bf16.gmra.mrb[0].mxu0 %v7745
      %v7887 = vpop.f32.mrb[0].mxu0
      %v7888 = vadd.f32 0.0, %v7887
      %v7889 = vpop.f32.mrb[0].mxu0
      %v7890 = vadd.f32 0.0, %v7889
      %v7891 = vpop.f32.mrb[0].mxu0
      %v7892 = vpop.f32.mrb[0].mxu0
      %7893 = vdwg.mxu0
      %7894 = vmatprep.subr.bf16.mxu0 %v7769
      %7895 = vmatpush1.bf16.msra.mxu0 %v7766
      %7896 = vmatprep.subr.bf16.mxu0 0
      %7897 = vmatpush1.bf16.msra.mxu0 0
      %7898 = vmatprep.subr.bf16.mxu0 0
      %7899 = vmatpush1.bf16.msra.mxu0 0
      %7900 = vmatprep.subr.bf16.mxu0 0
      %7901 = vmatpush1.bf16.msra.mxu0 0
      %7902 = vmatprep.subr.bf16.mxu0 0
      %7903 = vmatpush1.bf16.msra.mxu0 0
      %7904 = vmatprep.subr.bf16.mxu0 0
      %7905 = vmatpush1.bf16.msra.mxu0 0
      %7906 = vmatprep.subr.bf16.mxu0 0
      %7907 = vmatpush1.bf16.msra.mxu0 0
      %7908 = vmatprep.subr.bf16.mxu0 0
      %7909 = vmatpush1.bf16.msra.mxu0 0
      %7910 = vmatprep.subr.bf16.mxu0 0
      %7911 = vmatpush1.bf16.msra.mxu0 0
      %7912 = vmatprep.subr.bf16.mxu0 0
      %7913 = vmatpush1.bf16.msra.mxu0 0
      %7914 = vmatprep.subr.bf16.mxu0 0
      %7915 = vmatpush1.bf16.msra.mxu0 0
      %7916 = vmatprep.subr.bf16.mxu0 0
      %7917 = vmatpush1.bf16.msra.mxu0 0
      %7918 = vmatprep.subr.bf16.mxu0 0
      %7919 = vmatpush1.bf16.msra.mxu0 0
      %7920 = vmatprep.subr.bf16.mxu0 0
      %7921 = vmatpush1.bf16.msra.mxu0 0
      %7922 = vmatprep.subr.bf16.mxu0 0
      %7923 = vmatpush1.bf16.msra.mxu0 0
      %7924 = vmatprep.subr.bf16.mxu0 0
      %7925 = vmatpush1.bf16.msra.mxu0 0
      %7926 = vmatprep.mubr.bf16.mxu0 0
      %7927 = vmatmul.mubr.bf16.gmra.mrb[0].mxu0 %v7745
      %v7928 = vpop.f32.mrb[0].mxu0
      %v7929 = vadd.f32 0.0, %v7928
      %v7930 = vpop.f32.mrb[0].mxu0
      %v7931 = vadd.f32 0.0, %v7930
      %v7932 = vpop.f32.mrb[0].mxu0
      %v7933 = vpop.f32.mrb[0].mxu0
      %7934 = vdwg.mxu0
      %v7935 = vadd.f32 %v7694, %v7806
      %v7936 = vadd.f32 %v7695, %v7808
      %v7937 = vadd.f32 %v7696, %v7847
      %v7938 = vadd.f32 %v7697, %v7849
      %v7939 = vadd.f32 %v7698, %v7888
      %v7940 = vadd.f32 %v7699, %v7890
      %v7941 = vadd.f32 %v7700, %v7929
      %v7942 = vadd.f32 %v7701, %v7931
      %7943 = vrot.lane.b32.xlu0 %v3908, 95
      %v7944 = vpop.permute.xlu0 %7943
      %7945 = vrot.lane.b32.xlu0 %v3909, 95
      %v7946 = vpop.permute.xlu0 %7945
      %7947 = vrot.lane.b32.xlu0 %v3910, 95
      %v7948 = vpop.permute.xlu0 %7947
      %7949 = vrot.lane.b32.xlu0 %v3911, 95
      %v7950 = vpop.permute.xlu0 %7949
      %7951 = vrot.lane.b32.xlu0 %v3912, 95
      %v7952 = vpop.permute.xlu0 %7951
      %7953 = vrot.lane.b32.xlu0 %v3913, 95
      %v7954 = vpop.permute.xlu0 %7953
      %7955 = vrot.lane.b32.xlu0 %v3914, 95
      %v7956 = vpop.permute.xlu0 %7955
      %7957 = vrot.lane.b32.xlu0 %v3915, 95
      %v7958 = vpop.permute.xlu0 %7957
      %v7959 = vsel %vm3602, %v7956, %v7958
      %v7960 = vsel %vm3602, %v7954, %v7956
      %v7961 = vsel %vm3602, %v7952, %v7954
      %v7962 = vsel %vm3602, %v7950, %v7952
      %v7963 = vsel %vm3602, %v7948, %v7950
      %v7964 = vsel %vm3602, %v7946, %v7948
      %v7965 = vsel %vm3602, %v7944, %v7946
      %v7966 = vsel %vm3602, %v7958, %v7944
      %v7967 = vmul.f32 %v7965, %v3614
      %v7968 = vmul.f32 %v7964, %v3618
      %v7969 = vmul.f32 %v7963, %v3622
      %v7970 = vmul.f32 %v7962, %v3626
      %v7971 = vmul.f32 %v7961, %v3630
      %v7972 = vmul.f32 %v7960, %v3634
      %v7973 = vmul.f32 %v7959, %v3638
      %v7974 = vmul.f32 %v7966, %v3642
      %s7975 = scalar_lea.vmem %s8, 32
      %v7976 = vld [vmem:[%s7975] sm:$0xf]
      %v7977 = vpack.c.bf16 %v7967, %v7967
      %v7978 = vpack.c.bf16 %v7968, %v7968
      %v7979 = vpack.c.bf16 %v7969, %v7969
      %v7980 = vpack.c.bf16 %v7970, %v7970
      %v7981 = vpack.c.bf16 %v7971, %v7971
      %v7982 = vpack.c.bf16 %v7972, %v7972
      %v7983 = vpack.c.bf16 %v7973, %v7973
      %v7984 = vpack.c.bf16 %v7974, %v7974
      %v7986 = vsel %vm1623, %v7976, 0
      %v7989 = vsel %vm1627, %v7977, 0
      %v7992 = vsel %vm1627, %v7978, 0
      %v7995 = vsel %vm1627, %v7979, 0
      %v7998 = vsel %vm1627, %v7980, 0
      %v8001 = vsel %vm1627, %v7981, 0
      %v8004 = vsel %vm1627, %v7982, 0
      %v8007 = vsel %vm1627, %v7983, 0
      %v8010 = vsel %vm1627, %v7984, 0
      %8012 = vmatprep.subr.bf16.mxu0 %v7992
      %8013 = vmatpush1.bf16.msra.mxu0 %v7989
      %8014 = vmatprep.subr.bf16.mxu0 0
      %8015 = vmatpush1.bf16.msra.mxu0 0
      %8016 = vmatprep.subr.bf16.mxu0 0
      %8017 = vmatpush1.bf16.msra.mxu0 0
      %8018 = vmatprep.subr.bf16.mxu0 0
      %8019 = vmatpush1.bf16.msra.mxu0 0
      %8020 = vmatprep.subr.bf16.mxu0 0
      %8021 = vmatpush1.bf16.msra.mxu0 0
      %8022 = vmatprep.subr.bf16.mxu0 0
      %8023 = vmatpush1.bf16.msra.mxu0 0
      %8024 = vmatprep.subr.bf16.mxu0 0
      %8025 = vmatpush1.bf16.msra.mxu0 0
      %8026 = vmatprep.subr.bf16.mxu0 0
      %8027 = vmatpush1.bf16.msra.mxu0 0
      %8028 = vmatprep.subr.bf16.mxu0 0
      %8029 = vmatpush1.bf16.msra.mxu0 0
      %8030 = vmatprep.subr.bf16.mxu0 0
      %8031 = vmatpush1.bf16.msra.mxu0 0
      %8032 = vmatprep.subr.bf16.mxu0 0
      %8033 = vmatpush1.bf16.msra.mxu0 0
      %8034 = vmatprep.subr.bf16.mxu0 0
      %8035 = vmatpush1.bf16.msra.mxu0 0
      %8036 = vmatprep.subr.bf16.mxu0 0
      %8037 = vmatpush1.bf16.msra.mxu0 0
      %8038 = vmatprep.subr.bf16.mxu0 0
      %8039 = vmatpush1.bf16.msra.mxu0 0
      %8040 = vmatprep.subr.bf16.mxu0 0
      %8041 = vmatpush1.bf16.msra.mxu0 0
      %8042 = vmatprep.subr.bf16.mxu0 0
      %8043 = vmatpush1.bf16.msra.mxu0 0
      %8044 = vmatprep.mubr.bf16.mxu0 0
      %8045 = vmatmul.mubr.bf16.gmra.mrb[0].mxu0 %v7986
      %v8046 = vpop.f32.mrb[0].mxu0
      %v8047 = vadd.f32 0.0, %v8046
      %v8048 = vpop.f32.mrb[0].mxu0
      %v8049 = vadd.f32 0.0, %v8048
      %v8050 = vpop.f32.mrb[0].mxu0
      %v8051 = vpop.f32.mrb[0].mxu0
      %8052 = vdwg.mxu0
      %8053 = vmatprep.subr.bf16.mxu0 %v7998
      %8054 = vmatpush1.bf16.msra.mxu0 %v7995
      %8055 = vmatprep.subr.bf16.mxu0 0
      %8056 = vmatpush1.bf16.msra.mxu0 0
      %8057 = vmatprep.subr.bf16.mxu0 0
      %8058 = vmatpush1.bf16.msra.mxu0 0
      %8059 = vmatprep.subr.bf16.mxu0 0
      %8060 = vmatpush1.bf16.msra.mxu0 0
      %8061 = vmatprep.subr.bf16.mxu0 0
      %8062 = vmatpush1.bf16.msra.mxu0 0
      %8063 = vmatprep.subr.bf16.mxu0 0
      %8064 = vmatpush1.bf16.msra.mxu0 0
      %8065 = vmatprep.subr.bf16.mxu0 0
      %8066 = vmatpush1.bf16.msra.mxu0 0
      %8067 = vmatprep.subr.bf16.mxu0 0
      %8068 = vmatpush1.bf16.msra.mxu0 0
      %8069 = vmatprep.subr.bf16.mxu0 0
      %8070 = vmatpush1.bf16.msra.mxu0 0
      %8071 = vmatprep.subr.bf16.mxu0 0
      %8072 = vmatpush1.bf16.msra.mxu0 0
      %8073 = vmatprep.subr.bf16.mxu0 0
      %8074 = vmatpush1.bf16.msra.mxu0 0
      %8075 = vmatprep.subr.bf16.mxu0 0
      %8076 = vmatpush1.bf16.msra.mxu0 0
      %8077 = vmatprep.subr.bf16.mxu0 0
      %8078 = vmatpush1.bf16.msra.mxu0 0
      %8079 = vmatprep.subr.bf16.mxu0 0
      %8080 = vmatpush1.bf16.msra.mxu0 0
      %8081 = vmatprep.subr.bf16.mxu0 0
      %8082 = vmatpush1.bf16.msra.mxu0 0
      %8083 = vmatprep.subr.bf16.mxu0 0
      %8084 = vmatpush1.bf16.msra.mxu0 0
      %8085 = vmatprep.mubr.bf16.mxu0 0
      %8086 = vmatmul.mubr.bf16.gmra.mrb[0].mxu0 %v7986
      %v8087 = vpop.f32.mrb[0].mxu0
      %v8088 = vadd.f32 0.0, %v8087
      %v8089 = vpop.f32.mrb[0].mxu0
      %v8090 = vadd.f32 0.0, %v8089
      %v8091 = vpop.f32.mrb[0].mxu0
      %v8092 = vpop.f32.mrb[0].mxu0
      %8093 = vdwg.mxu0
      %8094 = vmatprep.subr.bf16.mxu0 %v8004
      %8095 = vmatpush1.bf16.msra.mxu0 %v8001
      %8096 = vmatprep.subr.bf16.mxu0 0
      %8097 = vmatpush1.bf16.msra.mxu0 0
      %8098 = vmatprep.subr.bf16.mxu0 0
      %8099 = vmatpush1.bf16.msra.mxu0 0
      %8100 = vmatprep.subr.bf16.mxu0 0
      %8101 = vmatpush1.bf16.msra.mxu0 0
      %8102 = vmatprep.subr.bf16.mxu0 0
      %8103 = vmatpush1.bf16.msra.mxu0 0
      %8104 = vmatprep.subr.bf16.mxu0 0
      %8105 = vmatpush1.bf16.msra.mxu0 0
      %8106 = vmatprep.subr.bf16.mxu0 0
      %8107 = vmatpush1.bf16.msra.mxu0 0
      %8108 = vmatprep.subr.bf16.mxu0 0
      %8109 = vmatpush1.bf16.msra.mxu0 0
      %8110 = vmatprep.subr.bf16.mxu0 0
      %8111 = vmatpush1.bf16.msra.mxu0 0
      %8112 = vmatprep.subr.bf16.mxu0 0
      %8113 = vmatpush1.bf16.msra.mxu0 0
      %8114 = vmatprep.subr.bf16.mxu0 0
      %8115 = vmatpush1.bf16.msra.mxu0 0
      %8116 = vmatprep.subr.bf16.mxu0 0
      %8117 = vmatpush1.bf16.msra.mxu0 0
      %8118 = vmatprep.subr.bf16.mxu0 0
      %8119 = vmatpush1.bf16.msra.mxu0 0
      %8120 = vmatprep.subr.bf16.mxu0 0
      %8121 = vmatpush1.bf16.msra.mxu0 0
      %8122 = vmatprep.subr.bf16.mxu0 0
      %8123 = vmatpush1.bf16.msra.mxu0 0
      %8124 = vmatprep.subr.bf16.mxu0 0
      %8125 = vmatpush1.bf16.msra.mxu0 0
      %8126 = vmatprep.mubr.bf16.mxu0 0
      %8127 = vmatmul.mubr.bf16.gmra.mrb[0].mxu0 %v7986
      %v8128 = vpop.f32.mrb[0].mxu0
      %v8129 = vadd.f32 0.0, %v8128
      %v8130 = vpop.f32.mrb[0].mxu0
      %v8131 = vadd.f32 0.0, %v8130
      %v8132 = vpop.f32.mrb[0].mxu0
      %v8133 = vpop.f32.mrb[0].mxu0
      %8134 = vdwg.mxu0
      %8135 = vmatprep.subr.bf16.mxu0 %v8010
      %8136 = vmatpush1.bf16.msra.mxu0 %v8007
      %8137 = vmatprep.subr.bf16.mxu0 0
      %8138 = vmatpush1.bf16.msra.mxu0 0
      %8139 = vmatprep.subr.bf16.mxu0 0
      %8140 = vmatpush1.bf16.msra.mxu0 0
      %8141 = vmatprep.subr.bf16.mxu0 0
      %8142 = vmatpush1.bf16.msra.mxu0 0
      %8143 = vmatprep.subr.bf16.mxu0 0
      %8144 = vmatpush1.bf16.msra.mxu0 0
      %8145 = vmatprep.subr.bf16.mxu0 0
      %8146 = vmatpush1.bf16.msra.mxu0 0
      %8147 = vmatprep.subr.bf16.mxu0 0
      %8148 = vmatpush1.bf16.msra.mxu0 0
      %8149 = vmatprep.subr.bf16.mxu0 0
      %8150 = vmatpush1.bf16.msra.mxu0 0
      %8151 = vmatprep.subr.bf16.mxu0 0
      %8152 = vmatpush1.bf16.msra.mxu0 0
      %8153 = vmatprep.subr.bf16.mxu0 0
      %8154 = vmatpush1.bf16.msra.mxu0 0
      %8155 = vmatprep.subr.bf16.mxu0 0
      %8156 = vmatpush1.bf16.msra.mxu0 0
      %8157 = vmatprep.subr.bf16.mxu0 0
      %8158 = vmatpush1.bf16.msra.mxu0 0
      %8159 = vmatprep.subr.bf16.mxu0 0
      %8160 = vmatpush1.bf16.msra.mxu0 0
      %8161 = vmatprep.subr.bf16.mxu0 0
      %8162 = vmatpush1.bf16.msra.mxu0 0
      %8163 = vmatprep.subr.bf16.mxu0 0
      %8164 = vmatpush1.bf16.msra.mxu0 0
      %8165 = vmatprep.subr.bf16.mxu0 0
      %8166 = vmatpush1.bf16.msra.mxu0 0
      %8167 = vmatprep.mubr.bf16.mxu0 0
      %8168 = vmatmul.mubr.bf16.gmra.mrb[0].mxu0 %v7986
      %v8169 = vpop.f32.mrb[0].mxu0
      %v8170 = vadd.f32 0.0, %v8169
      %v8171 = vpop.f32.mrb[0].mxu0
      %v8172 = vadd.f32 0.0, %v8171
      %v8173 = vpop.f32.mrb[0].mxu0
      %v8174 = vpop.f32.mrb[0].mxu0
      %8175 = vdwg.mxu0
      %v8176 = vadd.f32 %v7935, %v8047
      %v8177 = vadd.f32 %v7936, %v8049
      %v8178 = vadd.f32 %v7937, %v8088
      %v8179 = vadd.f32 %v7938, %v8090
      %v8180 = vadd.f32 %v7939, %v8129
      %v8181 = vadd.f32 %v7940, %v8131
      %v8182 = vadd.f32 %v7941, %v8170
      %v8183 = vadd.f32 %v7942, %v8172
      %v8184 = vld [vmem:[%s9] sm:$0xff]
      %8186 = vset.pattern.permute.xlu0 0
      %8187 = vperm.xlu0 %8186, %v8184
      %v8188 = vpop.permute.xlu0 %8187
      %v8190 = vadd.f32 %v8176, %v8188
      %v8191 = vadd.f32 %v8177, %v8188
      %v8192 = vadd.f32 %v8178, %v8188
      %v8193 = vadd.f32 %v8179, %v8188
      %v8194 = vadd.f32 %v8180, %v8188
      %v8195 = vadd.f32 %v8181, %v8188
      %v8196 = vadd.f32 %v8182, %v8188
      %v8197 = vadd.f32 %v8183, %v8188
      %vm8198 = vcmp.ge.f32.partialorder %v8190, 0.0
      %vm8199 = vcmp.ge.f32.partialorder %v8191, 0.0
      %vm8200 = vcmp.ge.f32.partialorder %v8192, 0.0
      %vm8201 = vcmp.ge.f32.partialorder %v8193, 0.0
      %vm8202 = vcmp.ge.f32.partialorder %v8194, 0.0
      %vm8203 = vcmp.ge.f32.partialorder %v8195, 0.0
      %vm8204 = vcmp.ge.f32.partialorder %v8196, 0.0
      %vm8205 = vcmp.ge.f32.partialorder %v8197, 0.0
      %v8206 = vld [vmem:[%s10] sm:$0xff]
      %8208 = vset.pattern.permute.xlu0 0
      %8209 = vperm.xlu0 %8208, %v8206
      %v8210 = vpop.permute.xlu0 %8209
      %v8212 = vmul.f32 %v8190, %v8210
      %v8213 = vmul.f32 %v8191, %v8210
      %v8214 = vmul.f32 %v8192, %v8210
      %v8215 = vmul.f32 %v8193, %v8210
      %v8216 = vmul.f32 %v8194, %v8210
      %v8217 = vmul.f32 %v8195, %v8210
      %v8218 = vmul.f32 %v8196, %v8210
      %v8219 = vmul.f32 %v8197, %v8210
      %v8220 = vsel %vm8198, %v8190, %v8212
      %v8221 = vsel %vm8199, %v8191, %v8213
      %v8222 = vsel %vm8200, %v8192, %v8214
      %v8223 = vsel %vm8201, %v8193, %v8215
      %v8224 = vsel %vm8202, %v8194, %v8216
      %v8225 = vsel %vm8203, %v8195, %v8217
      %v8226 = vsel %vm8204, %v8196, %v8218
      %v8227 = vsel %vm8205, %v8197, %v8219
      %v8228 = vld [vmem:[%s14] sm:$0xff]
      %8230 = vset.pattern.permute.xlu0 0
      %8231 = vperm.xlu0 %8230, %v8228
      %v8232 = vpop.permute.xlu0 %8231
      %v8234 = vmul.f32 %v8220, %v8232
      %v8235 = vmul.f32 %v8221, %v8232
      %v8236 = vmul.f32 %v8222, %v8232
      %v8237 = vmul.f32 %v8223, %v8232
      %v8238 = vmul.f32 %v8224, %v8232
      %v8239 = vmul.f32 %v8225, %v8232
      %v8240 = vmul.f32 %v8226, %v8232
      %v8241 = vmul.f32 %v8227, %v8232
      %8242 = vrot.lane.b32.xlu0 %v8234, 33
      %v8243 = vpop.permute.xlu0 %8242
      %8244 = vrot.lane.b32.xlu0 %v8235, 33
      %v8245 = vpop.permute.xlu0 %8244
      %8246 = vrot.lane.b32.xlu0 %v8236, 33
      %v8247 = vpop.permute.xlu0 %8246
      %8248 = vrot.lane.b32.xlu0 %v8237, 33
      %v8249 = vpop.permute.xlu0 %8248
      %8250 = vrot.lane.b32.xlu0 %v8238, 33
      %v8251 = vpop.permute.xlu0 %8250
      %8252 = vrot.lane.b32.xlu0 %v8239, 33
      %v8253 = vpop.permute.xlu0 %8252
      %8254 = vrot.lane.b32.xlu0 %v8240, 33
      %v8255 = vpop.permute.xlu0 %8254
      %8256 = vrot.lane.b32.xlu0 %v8241, 33
      %v8257 = vpop.permute.xlu0 %8256
      %v8258 = vsel %vm1490, %v8255, %v8257
      %v8259 = vsel %vm1490, %v8253, %v8255
      %v8260 = vsel %vm1490, %v8251, %v8253
      %v8261 = vsel %vm1490, %v8249, %v8251
      %v8262 = vsel %vm1490, %v8247, %v8249
      %v8263 = vsel %vm1490, %v8245, %v8247
      %v8264 = vsel %vm1490, %v8243, %v8245
      %v8265 = vsel %vm1490, %v8257, %v8243
      %v8266 = vmul.f32 %v8265, %v1502
      %v8267 = vmul.f32 %v8264, %v1506
      %v8268 = vmul.f32 %v8263, %v1510
      %v8269 = vmul.f32 %v8262, %v1514
      %v8270 = vmul.f32 %v8261, %v1518
      %v8271 = vmul.f32 %v8260, %v1522
      %v8272 = vmul.f32 %v8259, %v1526
      %v8273 = vmul.f32 %v8258, %v1530
      %v8274 = vld [vmem:[%s11] sm:$0xf]
      %v8275 = vpack.c.bf16 %v8266, %v8266
      %v8276 = vpack.c.bf16 %v8267, %v8267
      %v8277 = vpack.c.bf16 %v8268, %v8268
      %v8278 = vpack.c.bf16 %v8269, %v8269
      %v8279 = vpack.c.bf16 %v8270, %v8270
      %v8280 = vpack.c.bf16 %v8271, %v8271
      %v8281 = vpack.c.bf16 %v8272, %v8272
      %v8282 = vpack.c.bf16 %v8273, %v8273
      %8283 = vrot.lane.b32.xlu0 %v8234, 32
      %v8284 = vpop.permute.xlu0 %8283
      %8285 = vrot.lane.b32.xlu0 %v8235, 32
      %v8286 = vpop.permute.xlu0 %8285
      %8287 = vrot.lane.b32.xlu0 %v8236, 32
      %v8288 = vpop.permute.xlu0 %8287
      %8289 = vrot.lane.b32.xlu0 %v8237, 32
      %v8290 = vpop.permute.xlu0 %8289
      %8291 = vrot.lane.b32.xlu0 %v8238, 32
      %v8292 = vpop.permute.xlu0 %8291
      %8293 = vrot.lane.b32.xlu0 %v8239, 32
      %v8294 = vpop.permute.xlu0 %8293
      %8295 = vrot.lane.b32.xlu0 %v8240, 32
      %v8296 = vpop.permute.xlu0 %8295
      %8297 = vrot.lane.b32.xlu0 %v8241, 32
      %v8298 = vpop.permute.xlu0 %8297
      %v8299 = vsel %vm1564, %v8296, %v8298
      %v8300 = vsel %vm1564, %v8294, %v8296
      %v8301 = vsel %vm1564, %v8292, %v8294
      %v8302 = vsel %vm1564, %v8290, %v8292
      %v8303 = vsel %vm1564, %v8288, %v8290
      %v8304 = vsel %vm1564, %v8286, %v8288
      %v8305 = vsel %vm1564, %v8284, %v8286
      %v8306 = vsel %vm1564, %v8298, %v8284
      %v8307 = vmul.f32 %v8306, %v1576
      %v8308 = vmul.f32 %v8305, %v1580
      %v8309 = vmul.f32 %v8304, %v1584
      %v8310 = vmul.f32 %v8303, %v1588
      %v8311 = vmul.f32 %v8302, %v1592
      %v8312 = vmul.f32 %v8301, %v1596
      %v8313 = vmul.f32 %v8300, %v1600
      %v8314 = vmul.f32 %v8299, %v1604
      %s8315 = scalar_lea.vmem %s11, 4
      %v8316 = vld [vmem:[%s8315] sm:$0xf]
      %v8317 = vpack.c.bf16 %v8307, %v8307
      %v8318 = vpack.c.bf16 %v8308, %v8308
      %v8319 = vpack.c.bf16 %v8309, %v8309
      %v8320 = vpack.c.bf16 %v8310, %v8310
      %v8321 = vpack.c.bf16 %v8311, %v8311
      %v8322 = vpack.c.bf16 %v8312, %v8312
      %v8323 = vpack.c.bf16 %v8313, %v8313
      %v8324 = vpack.c.bf16 %v8314, %v8314
      %v8326 = vsel %vm1623, %v8316, 0
      %v8329 = vsel %vm1627, %v8317, 0
      %v8332 = vsel %vm1627, %v8318, 0
      %v8335 = vsel %vm1627, %v8319, 0
      %v8338 = vsel %vm1627, %v8320, 0
      %v8341 = vsel %vm1627, %v8321, 0
      %v8344 = vsel %vm1627, %v8322, 0
      %v8347 = vsel %vm1627, %v8323, 0
      %v8350 = vsel %vm1627, %v8324, 0
      %8352 = vmatprep.subr.bf16.mxu0 %v8332
      %8353 = vmatpush1.bf16.msra.mxu0 %v8329
      %8354 = vmatprep.subr.bf16.mxu0 0
      %8355 = vmatpush1.bf16.msra.mxu0 0
      %8356 = vmatprep.subr.bf16.mxu0 0
      %8357 = vmatpush1.bf16.msra.mxu0 0
      %8358 = vmatprep.subr.bf16.mxu0 0
      %8359 = vmatpush1.bf16.msra.mxu0 0
      %8360 = vmatprep.subr.bf16.mxu0 0
      %8361 = vmatpush1.bf16.msra.mxu0 0
      %8362 = vmatprep.subr.bf16.mxu0 0
      %8363 = vmatpush1.bf16.msra.mxu0 0
      %8364 = vmatprep.subr.bf16.mxu0 0
      %8365 = vmatpush1.bf16.msra.mxu0 0
      %8366 = vmatprep.subr.bf16.mxu0 0
      %8367 = vmatpush1.bf16.msra.mxu0 0
      %8368 = vmatprep.subr.bf16.mxu0 0
      %8369 = vmatpush1.bf16.msra.mxu0 0
      %8370 = vmatprep.subr.bf16.mxu0 0
      %8371 = vmatpush1.bf16.msra.mxu0 0
      %8372 = vmatprep.subr.bf16.mxu0 0
      %8373 = vmatpush1.bf16.msra.mxu0 0
      %8374 = vmatprep.subr.bf16.mxu0 0
      %8375 = vmatpush1.bf16.msra.mxu0 0
      %8376 = vmatprep.subr.bf16.mxu0 0
      %8377 = vmatpush1.bf16.msra.mxu0 0
      %8378 = vmatprep.subr.bf16.mxu0 0
      %8379 = vmatpush1.bf16.msra.mxu0 0
      %8380 = vmatprep.subr.bf16.mxu0 0
      %8381 = vmatpush1.bf16.msra.mxu0 0
      %8382 = vmatprep.subr.bf16.mxu0 0
      %8383 = vmatpush1.bf16.msra.mxu0 0
      %8384 = vmatprep.mubr.bf16.mxu0 0
      %8385 = vmatmul.mubr.bf16.gmra.mrb[0].mxu0 %v8326
      %v8386 = vpop.f32.mrb[0].mxu0
      %v8387 = vadd.f32 0.0, %v8386
      %v8388 = vpop.f32.mrb[0].mxu0
      %v8389 = vadd.f32 0.0, %v8388
      %v8390 = vpop.f32.mrb[0].mxu0
      %v8391 = vpop.f32.mrb[0].mxu0
      %8392 = vdwg.mxu0
      %8393 = vmatprep.subr.bf16.mxu0 %v8338
      %8394 = vmatpush1.bf16.msra.mxu0 %v8335
      %8395 = vmatprep.subr.bf16.mxu0 0
      %8396 = vmatpush1.bf16.msra.mxu0 0
      %8397 = vmatprep.subr.bf16.mxu0 0
      %8398 = vmatpush1.bf16.msra.mxu0 0
      %8399 = vmatprep.subr.bf16.mxu0 0
      %8400 = vmatpush1.bf16.msra.mxu0 0
      %8401 = vmatprep.subr.bf16.mxu0 0
      %8402 = vmatpush1.bf16.msra.mxu0 0
      %8403 = vmatprep.subr.bf16.mxu0 0
      %8404 = vmatpush1.bf16.msra.mxu0 0
      %8405 = vmatprep.subr.bf16.mxu0 0
      %8406 = vmatpush1.bf16.msra.mxu0 0
      %8407 = vmatprep.subr.bf16.mxu0 0
      %8408 = vmatpush1.bf16.msra.mxu0 0
      %8409 = vmatprep.subr.bf16.mxu0 0
      %8410 = vmatpush1.bf16.msra.mxu0 0
      %8411 = vmatprep.subr.bf16.mxu0 0
      %8412 = vmatpush1.bf16.msra.mxu0 0
      %8413 = vmatprep.subr.bf16.mxu0 0
      %8414 = vmatpush1.bf16.msra.mxu0 0
      %8415 = vmatprep.subr.bf16.mxu0 0
      %8416 = vmatpush1.bf16.msra.mxu0 0
      %8417 = vmatprep.subr.bf16.mxu0 0
      %8418 = vmatpush1.bf16.msra.mxu0 0
      %8419 = vmatprep.subr.bf16.mxu0 0
      %8420 = vmatpush1.bf16.msra.mxu0 0
      %8421 = vmatprep.subr.bf16.mxu0 0
      %8422 = vmatpush1.bf16.msra.mxu0 0
      %8423 = vmatprep.subr.bf16.mxu0 0
      %8424 = vmatpush1.bf16.msra.mxu0 0
      %8425 = vmatprep.mubr.bf16.mxu0 0
      %8426 = vmatmul.mubr.bf16.gmra.mrb[0].mxu0 %v8326
      %v8427 = vpop.f32.mrb[0].mxu0
      %v8428 = vadd.f32 0.0, %v8427
      %v8429 = vpop.f32.mrb[0].mxu0
      %v8430 = vadd.f32 0.0, %v8429
      %v8431 = vpop.f32.mrb[0].mxu0
      %v8432 = vpop.f32.mrb[0].mxu0
      %8433 = vdwg.mxu0
      %8434 = vmatprep.subr.bf16.mxu0 %v8344
      %8435 = vmatpush1.bf16.msra.mxu0 %v8341
      %8436 = vmatprep.subr.bf16.mxu0 0
      %8437 = vmatpush1.bf16.msra.mxu0 0
      %8438 = vmatprep.subr.bf16.mxu0 0
      %8439 = vmatpush1.bf16.msra.mxu0 0
      %8440 = vmatprep.subr.bf16.mxu0 0
      %8441 = vmatpush1.bf16.msra.mxu0 0
      %8442 = vmatprep.subr.bf16.mxu0 0
      %8443 = vmatpush1.bf16.msra.mxu0 0
      %8444 = vmatprep.subr.bf16.mxu0 0
      %8445 = vmatpush1.bf16.msra.mxu0 0
      %8446 = vmatprep.subr.bf16.mxu0 0
      %8447 = vmatpush1.bf16.msra.mxu0 0
      %8448 = vmatprep.subr.bf16.mxu0 0
      %8449 = vmatpush1.bf16.msra.mxu0 0
      %8450 = vmatprep.subr.bf16.mxu0 0
      %8451 = vmatpush1.bf16.msra.mxu0 0
      %8452 = vmatprep.subr.bf16.mxu0 0
      %8453 = vmatpush1.bf16.msra.mxu0 0
      %8454 = vmatprep.subr.bf16.mxu0 0
      %8455 = vmatpush1.bf16.msra.mxu0 0
      %8456 = vmatprep.subr.bf16.mxu0 0
      %8457 = vmatpush1.bf16.msra.mxu0 0
      %8458 = vmatprep.subr.bf16.mxu0 0
      %8459 = vmatpush1.bf16.msra.mxu0 0
      %8460 = vmatprep.subr.bf16.mxu0 0
      %8461 = vmatpush1.bf16.msra.mxu0 0
      %8462 = vmatprep.subr.bf16.mxu0 0
      %8463 = vmatpush1.bf16.msra.mxu0 0
      %8464 = vmatprep.subr.bf16.mxu0 0
      %8465 = vmatpush1.bf16.msra.mxu0 0
      %8466 = vmatprep.mubr.bf16.mxu0 0
      %8467 = vmatmul.mubr.bf16.gmra.mrb[0].mxu0 %v8326
      %v8468 = vpop.f32.mrb[0].mxu0
      %v8469 = vadd.f32 0.0, %v8468
      %v8470 = vpop.f32.mrb[0].mxu0
      %v8471 = vadd.f32 0.0, %v8470
      %v8472 = vpop.f32.mrb[0].mxu0
      %v8473 = vpop.f32.mrb[0].mxu0
      %8474 = vdwg.mxu0
      %8475 = vmatprep.subr.bf16.mxu0 %v8350
      %8476 = vmatpush1.bf16.msra.mxu0 %v8347
      %8477 = vmatprep.subr.bf16.mxu0 0
      %8478 = vmatpush1.bf16.msra.mxu0 0
      %8479 = vmatprep.subr.bf16.mxu0 0
      %8480 = vmatpush1.bf16.msra.mxu0 0
      %8481 = vmatprep.subr.bf16.mxu0 0
      %8482 = vmatpush1.bf16.msra.mxu0 0
      %8483 = vmatprep.subr.bf16.mxu0 0
      %8484 = vmatpush1.bf16.msra.mxu0 0
      %8485 = vmatprep.subr.bf16.mxu0 0
      %8486 = vmatpush1.bf16.msra.mxu0 0
      %8487 = vmatprep.subr.bf16.mxu0 0
      %8488 = vmatpush1.bf16.msra.mxu0 0
      %8489 = vmatprep.subr.bf16.mxu0 0
      %8490 = vmatpush1.bf16.msra.mxu0 0
      %8491 = vmatprep.subr.bf16.mxu0 0
      %8492 = vmatpush1.bf16.msra.mxu0 0
      %8493 = vmatprep.subr.bf16.mxu0 0
      %8494 = vmatpush1.bf16.msra.mxu0 0
      %8495 = vmatprep.subr.bf16.mxu0 0
      %8496 = vmatpush1.bf16.msra.mxu0 0
      %8497 = vmatprep.subr.bf16.mxu0 0
      %8498 = vmatpush1.bf16.msra.mxu0 0
      %8499 = vmatprep.subr.bf16.mxu0 0
      %8500 = vmatpush1.bf16.msra.mxu0 0
      %8501 = vmatprep.subr.bf16.mxu0 0
      %8502 = vmatpush1.bf16.msra.mxu0 0
      %8503 = vmatprep.subr.bf16.mxu0 0
      %8504 = vmatpush1.bf16.msra.mxu0 0
      %8505 = vmatprep.subr.bf16.mxu0 0
      %8506 = vmatpush1.bf16.msra.mxu0 0
      %8507 = vmatprep.mubr.bf16.mxu0 0
      %8508 = vmatmul.mubr.bf16.gmra.mrb[0].mxu0 %v8326
      %v8509 = vpop.f32.mrb[0].mxu0
      %v8510 = vadd.f32 0.0, %v8509
      %v8511 = vpop.f32.mrb[0].mxu0
      %v8512 = vadd.f32 0.0, %v8511
      %v8513 = vpop.f32.mrb[0].mxu0
      %v8514 = vpop.f32.mrb[0].mxu0
      %8515 = vdwg.mxu0
      %v8517 = vsel %vm1623, %v8274, 0
      %v8520 = vsel %vm1627, %v8275, 0
      %v8523 = vsel %vm1627, %v8276, 0
      %v8526 = vsel %vm1627, %v8277, 0
      %v8529 = vsel %vm1627, %v8278, 0
      %v8532 = vsel %vm1627, %v8279, 0
      %v8535 = vsel %vm1627, %v8280, 0
      %v8538 = vsel %vm1627, %v8281, 0
      %v8541 = vsel %vm1627, %v8282, 0
      %8543 = vmatprep.subr.bf16.mxu0 %v8523
      %8544 = vmatpush1.bf16.msra.mxu0 %v8520
      %8545 = vmatprep.subr.bf16.mxu0 0
      %8546 = vmatpush1.bf16.msra.mxu0 0
      %8547 = vmatprep.subr.bf16.mxu0 0
      %8548 = vmatpush1.bf16.msra.mxu0 0
      %8549 = vmatprep.subr.bf16.mxu0 0
      %8550 = vmatpush1.bf16.msra.mxu0 0
      %8551 = vmatprep.subr.bf16.mxu0 0
      %8552 = vmatpush1.bf16.msra.mxu0 0
      %8553 = vmatprep.subr.bf16.mxu0 0
      %8554 = vmatpush1.bf16.msra.mxu0 0
      %8555 = vmatprep.subr.bf16.mxu0 0
      %8556 = vmatpush1.bf16.msra.mxu0 0
      %8557 = vmatprep.subr.bf16.mxu0 0
      %8558 = vmatpush1.bf16.msra.mxu0 0
      %8559 = vmatprep.subr.bf16.mxu0 0
      %8560 = vmatpush1.bf16.msra.mxu0 0
      %8561 = vmatprep.subr.bf16.mxu0 0
      %8562 = vmatpush1.bf16.msra.mxu0 0
      %8563 = vmatprep.subr.bf16.mxu0 0
      %8564 = vmatpush1.bf16.msra.mxu0 0
      %8565 = vmatprep.subr.bf16.mxu0 0
      %8566 = vmatpush1.bf16.msra.mxu0 0
      %8567 = vmatprep.subr.bf16.mxu0 0
      %8568 = vmatpush1.bf16.msra.mxu0 0
      %8569 = vmatprep.subr.bf16.mxu0 0
      %8570 = vmatpush1.bf16.msra.mxu0 0
      %8571 = vmatprep.subr.bf16.mxu0 0
      %8572 = vmatpush1.bf16.msra.mxu0 0
      %8573 = vmatprep.subr.bf16.mxu0 0
      %8574 = vmatpush1.bf16.msra.mxu0 0
      %8575 = vmatprep.mubr.bf16.mxu0 0
      %8576 = vmatmul.mubr.bf16.gmra.mrb[0].mxu0 %v8517
      %v8577 = vpop.f32.mrb[0].mxu0
      %v8578 = vadd.f32 %v8387, %v8577
      %v8579 = vpop.f32.mrb[0].mxu0
      %v8580 = vadd.f32 %v8389, %v8579
      %v8581 = vpop.f32.mrb[0].mxu0
      %v8582 = vpop.f32.mrb[0].mxu0
      %8583 = vdwg.mxu0
      %8584 = vmatprep.subr.bf16.mxu0 %v8529
      %8585 = vmatpush1.bf16.msra.mxu0 %v8526
      %8586 = vmatprep.subr.bf16.mxu0 0
      %8587 = vmatpush1.bf16.msra.mxu0 0
      %8588 = vmatprep.subr.bf16.mxu0 0
      %8589 = vmatpush1.bf16.msra.mxu0 0
      %8590 = vmatprep.subr.bf16.mxu0 0
      %8591 = vmatpush1.bf16.msra.mxu0 0
      %8592 = vmatprep.subr.bf16.mxu0 0
      %8593 = vmatpush1.bf16.msra.mxu0 0
      %8594 = vmatprep.subr.bf16.mxu0 0
      %8595 = vmatpush1.bf16.msra.mxu0 0
      %8596 = vmatprep.subr.bf16.mxu0 0
      %8597 = vmatpush1.bf16.msra.mxu0 0
      %8598 = vmatprep.subr.bf16.mxu0 0
      %8599 = vmatpush1.bf16.msra.mxu0 0
      %8600 = vmatprep.subr.bf16.mxu0 0
      %8601 = vmatpush1.bf16.msra.mxu0 0
      %8602 = vmatprep.subr.bf16.mxu0 0
      %8603 = vmatpush1.bf16.msra.mxu0 0
      %8604 = vmatprep.subr.bf16.mxu0 0
      %8605 = vmatpush1.bf16.msra.mxu0 0
      %8606 = vmatprep.subr.bf16.mxu0 0
      %8607 = vmatpush1.bf16.msra.mxu0 0
      %8608 = vmatprep.subr.bf16.mxu0 0
      %8609 = vmatpush1.bf16.msra.mxu0 0
      %8610 = vmatprep.subr.bf16.mxu0 0
      %8611 = vmatpush1.bf16.msra.mxu0 0
      %8612 = vmatprep.subr.bf16.mxu0 0
      %8613 = vmatpush1.bf16.msra.mxu0 0
      %8614 = vmatprep.subr.bf16.mxu0 0
      %8615 = vmatpush1.bf16.msra.mxu0 0
      %8616 = vmatprep.mubr.bf16.mxu0 0
      %8617 = vmatmul.mubr.bf16.gmra.mrb[0].mxu0 %v8517
      %v8618 = vpop.f32.mrb[0].mxu0
      %v8619 = vadd.f32 %v8428, %v8618
      %v8620 = vpop.f32.mrb[0].mxu0
      %v8621 = vadd.f32 %v8430, %v8620
      %v8622 = vpop.f32.mrb[0].mxu0
      %v8623 = vpop.f32.mrb[0].mxu0
      %8624 = vdwg.mxu0
      %8625 = vmatprep.subr.bf16.mxu0 %v8535
      %8626 = vmatpush1.bf16.msra.mxu0 %v8532
      %8627 = vmatprep.subr.bf16.mxu0 0
      %8628 = vmatpush1.bf16.msra.mxu0 0
      %8629 = vmatprep.subr.bf16.mxu0 0
      %8630 = vmatpush1.bf16.msra.mxu0 0
      %8631 = vmatprep.subr.bf16.mxu0 0
      %8632 = vmatpush1.bf16.msra.mxu0 0
      %8633 = vmatprep.subr.bf16.mxu0 0
      %8634 = vmatpush1.bf16.msra.mxu0 0
      %8635 = vmatprep.subr.bf16.mxu0 0
      %8636 = vmatpush1.bf16.msra.mxu0 0
      %8637 = vmatprep.subr.bf16.mxu0 0
      %8638 = vmatpush1.bf16.msra.mxu0 0
      %8639 = vmatprep.subr.bf16.mxu0 0
      %8640 = vmatpush1.bf16.msra.mxu0 0
      %8641 = vmatprep.subr.bf16.mxu0 0
      %8642 = vmatpush1.bf16.msra.mxu0 0
      %8643 = vmatprep.subr.bf16.mxu0 0
      %8644 = vmatpush1.bf16.msra.mxu0 0
      %8645 = vmatprep.subr.bf16.mxu0 0
      %8646 = vmatpush1.bf16.msra.mxu0 0
      %8647 = vmatprep.subr.bf16.mxu0 0
      %8648 = vmatpush1.bf16.msra.mxu0 0
      %8649 = vmatprep.subr.bf16.mxu0 0
      %8650 = vmatpush1.bf16.msra.mxu0 0
      %8651 = vmatprep.subr.bf16.mxu0 0
      %8652 = vmatpush1.bf16.msra.mxu0 0
      %8653 = vmatprep.subr.bf16.mxu0 0
      %8654 = vmatpush1.bf16.msra.mxu0 0
      %8655 = vmatprep.subr.bf16.mxu0 0
      %8656 = vmatpush1.bf16.msra.mxu0 0
      %8657 = vmatprep.mubr.bf16.mxu0 0
      %8658 = vmatmul.mubr.bf16.gmra.mrb[0].mxu0 %v8517
      %v8659 = vpop.f32.mrb[0].mxu0
      %v8660 = vadd.f32 %v8469, %v8659
      %v8661 = vpop.f32.mrb[0].mxu0
      %v8662 = vadd.f32 %v8471, %v8661
      %v8663 = vpop.f32.mrb[0].mxu0
      %v8664 = vpop.f32.mrb[0].mxu0
      %8665 = vdwg.mxu0
      %8666 = vmatprep.subr.bf16.mxu0 %v8541
      %8667 = vmatpush1.bf16.msra.mxu0 %v8538
      %8668 = vmatprep.subr.bf16.mxu0 0
      %8669 = vmatpush1.bf16.msra.mxu0 0
      %8670 = vmatprep.subr.bf16.mxu0 0
      %8671 = vmatpush1.bf16.msra.mxu0 0
      %8672 = vmatprep.subr.bf16.mxu0 0
      %8673 = vmatpush1.bf16.msra.mxu0 0
      %8674 = vmatprep.subr.bf16.mxu0 0
      %8675 = vmatpush1.bf16.msra.mxu0 0
      %8676 = vmatprep.subr.bf16.mxu0 0
      %8677 = vmatpush1.bf16.msra.mxu0 0
      %8678 = vmatprep.subr.bf16.mxu0 0
      %8679 = vmatpush1.bf16.msra.mxu0 0
      %8680 = vmatprep.subr.bf16.mxu0 0
      %8681 = vmatpush1.bf16.msra.mxu0 0
      %8682 = vmatprep.subr.bf16.mxu0 0
      %8683 = vmatpush1.bf16.msra.mxu0 0
      %8684 = vmatprep.subr.bf16.mxu0 0
      %8685 = vmatpush1.bf16.msra.mxu0 0
      %8686 = vmatprep.subr.bf16.mxu0 0
      %8687 = vmatpush1.bf16.msra.mxu0 0
      %8688 = vmatprep.subr.bf16.mxu0 0
      %8689 = vmatpush1.bf16.msra.mxu0 0
      %8690 = vmatprep.subr.bf16.mxu0 0
      %8691 = vmatpush1.bf16.msra.mxu0 0
      %8692 = vmatprep.subr.bf16.mxu0 0
      %8693 = vmatpush1.bf16.msra.mxu0 0
      %8694 = vmatprep.subr.bf16.mxu0 0
      %8695 = vmatpush1.bf16.msra.mxu0 0
      %8696 = vmatprep.subr.bf16.mxu0 0
      %8697 = vmatpush1.bf16.msra.mxu0 0
      %8698 = vmatprep.mubr.bf16.mxu0 0
      %8699 = vmatmul.mubr.bf16.gmra.mrb[0].mxu0 %v8517
      %v8700 = vpop.f32.mrb[0].mxu0
      %v8701 = vadd.f32 %v8510, %v8700
      %v8702 = vpop.f32.mrb[0].mxu0
      %v8703 = vadd.f32 %v8512, %v8702
      %v8704 = vpop.f32.mrb[0].mxu0
      %v8705 = vpop.f32.mrb[0].mxu0
      %8706 = vdwg.mxu0
      %8707 = vrot.lane.b32.xlu0 %v8234, 31
      %v8708 = vpop.permute.xlu0 %8707
      %8709 = vrot.lane.b32.xlu0 %v8235, 31
      %v8710 = vpop.permute.xlu0 %8709
      %8711 = vrot.lane.b32.xlu0 %v8236, 31
      %v8712 = vpop.permute.xlu0 %8711
      %8713 = vrot.lane.b32.xlu0 %v8237, 31
      %v8714 = vpop.permute.xlu0 %8713
      %8715 = vrot.lane.b32.xlu0 %v8238, 31
      %v8716 = vpop.permute.xlu0 %8715
      %8717 = vrot.lane.b32.xlu0 %v8239, 31
      %v8718 = vpop.permute.xlu0 %8717
      %8719 = vrot.lane.b32.xlu0 %v8240, 31
      %v8720 = vpop.permute.xlu0 %8719
      %8721 = vrot.lane.b32.xlu0 %v8241, 31
      %v8722 = vpop.permute.xlu0 %8721
      %v8723 = vsel %vm2023, %v8720, %v8722
      %v8724 = vsel %vm2023, %v8718, %v8720
      %v8725 = vsel %vm2023, %v8716, %v8718
      %v8726 = vsel %vm2023, %v8714, %v8716
      %v8727 = vsel %vm2023, %v8712, %v8714
      %v8728 = vsel %vm2023, %v8710, %v8712
      %v8729 = vsel %vm2023, %v8708, %v8710
      %v8730 = vsel %vm2023, %v8722, %v8708
      %v8731 = vmul.f32 %v8730, %v2035
      %v8732 = vmul.f32 %v8729, %v2039
      %v8733 = vmul.f32 %v8728, %v2043
      %v8734 = vmul.f32 %v8727, %v2047
      %v8735 = vmul.f32 %v8726, %v2051
      %v8736 = vmul.f32 %v8725, %v2055
      %v8737 = vmul.f32 %v8724, %v2059
      %v8738 = vmul.f32 %v8723, %v2063
      %s8739 = scalar_lea.vmem %s11, 8
      %v8740 = vld [vmem:[%s8739] sm:$0xf]
      %v8741 = vpack.c.bf16 %v8731, %v8731
      %v8742 = vpack.c.bf16 %v8732, %v8732
      %v8743 = vpack.c.bf16 %v8733, %v8733
      %v8744 = vpack.c.bf16 %v8734, %v8734
      %v8745 = vpack.c.bf16 %v8735, %v8735
      %v8746 = vpack.c.bf16 %v8736, %v8736
      %v8747 = vpack.c.bf16 %v8737, %v8737
      %v8748 = vpack.c.bf16 %v8738, %v8738
      %v8750 = vsel %vm1623, %v8740, 0
      %v8753 = vsel %vm1627, %v8741, 0
      %v8756 = vsel %vm1627, %v8742, 0
      %v8759 = vsel %vm1627, %v8743, 0
      %v8762 = vsel %vm1627, %v8744, 0
      %v8765 = vsel %vm1627, %v8745, 0
      %v8768 = vsel %vm1627, %v8746, 0
      %v8771 = vsel %vm1627, %v8747, 0
      %v8774 = vsel %vm1627, %v8748, 0
      %8776 = vmatprep.subr.bf16.mxu0 %v8756
      %8777 = vmatpush1.bf16.msra.mxu0 %v8753
      %8778 = vmatprep.subr.bf16.mxu0 0
      %8779 = vmatpush1.bf16.msra.mxu0 0
      %8780 = vmatprep.subr.bf16.mxu0 0
      %8781 = vmatpush1.bf16.msra.mxu0 0
      %8782 = vmatprep.subr.bf16.mxu0 0
      %8783 = vmatpush1.bf16.msra.mxu0 0
      %8784 = vmatprep.subr.bf16.mxu0 0
      %8785 = vmatpush1.bf16.msra.mxu0 0
      %8786 = vmatprep.subr.bf16.mxu0 0
      %8787 = vmatpush1.bf16.msra.mxu0 0
      %8788 = vmatprep.subr.bf16.mxu0 0
      %8789 = vmatpush1.bf16.msra.mxu0 0
      %8790 = vmatprep.subr.bf16.mxu0 0
      %8791 = vmatpush1.bf16.msra.mxu0 0
      %8792 = vmatprep.subr.bf16.mxu0 0
      %8793 = vmatpush1.bf16.msra.mxu0 0
      %8794 = vmatprep.subr.bf16.mxu0 0
      %8795 = vmatpush1.bf16.msra.mxu0 0
      %8796 = vmatprep.subr.bf16.mxu0 0
      %8797 = vmatpush1.bf16.msra.mxu0 0
      %8798 = vmatprep.subr.bf16.mxu0 0
      %8799 = vmatpush1.bf16.msra.mxu0 0
      %8800 = vmatprep.subr.bf16.mxu0 0
      %8801 = vmatpush1.bf16.msra.mxu0 0
      %8802 = vmatprep.subr.bf16.mxu0 0
      %8803 = vmatpush1.bf16.msra.mxu0 0
      %8804 = vmatprep.subr.bf16.mxu0 0
      %8805 = vmatpush1.bf16.msra.mxu0 0
      %8806 = vmatprep.subr.bf16.mxu0 0
      %8807 = vmatpush1.bf16.msra.mxu0 0
      %8808 = vmatprep.mubr.bf16.mxu0 0
      %8809 = vmatmul.mubr.bf16.gmra.mrb[0].mxu0 %v8750
      %v8810 = vpop.f32.mrb[0].mxu0
      %v8811 = vadd.f32 0.0, %v8810
      %v8812 = vpop.f32.mrb[0].mxu0
      %v8813 = vadd.f32 0.0, %v8812
      %v8814 = vpop.f32.mrb[0].mxu0
      %v8815 = vpop.f32.mrb[0].mxu0
      %8816 = vdwg.mxu0
      %8817 = vmatprep.subr.bf16.mxu0 %v8762
      %8818 = vmatpush1.bf16.msra.mxu0 %v8759
      %8819 = vmatprep.subr.bf16.mxu0 0
      %8820 = vmatpush1.bf16.msra.mxu0 0
      %8821 = vmatprep.subr.bf16.mxu0 0
      %8822 = vmatpush1.bf16.msra.mxu0 0
      %8823 = vmatprep.subr.bf16.mxu0 0
      %8824 = vmatpush1.bf16.msra.mxu0 0
      %8825 = vmatprep.subr.bf16.mxu0 0
      %8826 = vmatpush1.bf16.msra.mxu0 0
      %8827 = vmatprep.subr.bf16.mxu0 0
      %8828 = vmatpush1.bf16.msra.mxu0 0
      %8829 = vmatprep.subr.bf16.mxu0 0
      %8830 = vmatpush1.bf16.msra.mxu0 0
      %8831 = vmatprep.subr.bf16.mxu0 0
      %8832 = vmatpush1.bf16.msra.mxu0 0
      %8833 = vmatprep.subr.bf16.mxu0 0
      %8834 = vmatpush1.bf16.msra.mxu0 0
      %8835 = vmatprep.subr.bf16.mxu0 0
      %8836 = vmatpush1.bf16.msra.mxu0 0
      %8837 = vmatprep.subr.bf16.mxu0 0
      %8838 = vmatpush1.bf16.msra.mxu0 0
      %8839 = vmatprep.subr.bf16.mxu0 0
      %8840 = vmatpush1.bf16.msra.mxu0 0
      %8841 = vmatprep.subr.bf16.mxu0 0
      %8842 = vmatpush1.bf16.msra.mxu0 0
      %8843 = vmatprep.subr.bf16.mxu0 0
      %8844 = vmatpush1.bf16.msra.mxu0 0
      %8845 = vmatprep.subr.bf16.mxu0 0
      %8846 = vmatpush1.bf16.msra.mxu0 0
      %8847 = vmatprep.subr.bf16.mxu0 0
      %8848 = vmatpush1.bf16.msra.mxu0 0
      %8849 = vmatprep.mubr.bf16.mxu0 0
      %8850 = vmatmul.mubr.bf16.gmra.mrb[0].mxu0 %v8750
      %v8851 = vpop.f32.mrb[0].mxu0
      %v8852 = vadd.f32 0.0, %v8851
      %v8853 = vpop.f32.mrb[0].mxu0
      %v8854 = vadd.f32 0.0, %v8853
      %v8855 = vpop.f32.mrb[0].mxu0
      %v8856 = vpop.f32.mrb[0].mxu0
      %8857 = vdwg.mxu0
      %8858 = vmatprep.subr.bf16.mxu0 %v8768
      %8859 = vmatpush1.bf16.msra.mxu0 %v8765
      %8860 = vmatprep.subr.bf16.mxu0 0
      %8861 = vmatpush1.bf16.msra.mxu0 0
      %8862 = vmatprep.subr.bf16.mxu0 0
      %8863 = vmatpush1.bf16.msra.mxu0 0
      %8864 = vmatprep.subr.bf16.mxu0 0
      %8865 = vmatpush1.bf16.msra.mxu0 0
      %8866 = vmatprep.subr.bf16.mxu0 0
      %8867 = vmatpush1.bf16.msra.mxu0 0
      %8868 = vmatprep.subr.bf16.mxu0 0
      %8869 = vmatpush1.bf16.msra.mxu0 0
      %8870 = vmatprep.subr.bf16.mxu0 0
      %8871 = vmatpush1.bf16.msra.mxu0 0
      %8872 = vmatprep.subr.bf16.mxu0 0
      %8873 = vmatpush1.bf16.msra.mxu0 0
      %8874 = vmatprep.subr.bf16.mxu0 0
      %8875 = vmatpush1.bf16.msra.mxu0 0
      %8876 = vmatprep.subr.bf16.mxu0 0
      %8877 = vmatpush1.bf16.msra.mxu0 0
      %8878 = vmatprep.subr.bf16.mxu0 0
      %8879 = vmatpush1.bf16.msra.mxu0 0
      %8880 = vmatprep.subr.bf16.mxu0 0
      %8881 = vmatpush1.bf16.msra.mxu0 0
      %8882 = vmatprep.subr.bf16.mxu0 0
      %8883 = vmatpush1.bf16.msra.mxu0 0
      %8884 = vmatprep.subr.bf16.mxu0 0
      %8885 = vmatpush1.bf16.msra.mxu0 0
      %8886 = vmatprep.subr.bf16.mxu0 0
      %8887 = vmatpush1.bf16.msra.mxu0 0
      %8888 = vmatprep.subr.bf16.mxu0 0
      %8889 = vmatpush1.bf16.msra.mxu0 0
      %8890 = vmatprep.mubr.bf16.mxu0 0
      %8891 = vmatmul.mubr.bf16.gmra.mrb[0].mxu0 %v8750
      %v8892 = vpop.f32.mrb[0].mxu0
      %v8893 = vadd.f32 0.0, %v8892
      %v8894 = vpop.f32.mrb[0].mxu0
      %v8895 = vadd.f32 0.0, %v8894
      %v8896 = vpop.f32.mrb[0].mxu0
      %v8897 = vpop.f32.mrb[0].mxu0
      %8898 = vdwg.mxu0
      %8899 = vmatprep.subr.bf16.mxu0 %v8774
      %8900 = vmatpush1.bf16.msra.mxu0 %v8771
      %8901 = vmatprep.subr.bf16.mxu0 0
      %8902 = vmatpush1.bf16.msra.mxu0 0
      %8903 = vmatprep.subr.bf16.mxu0 0
      %8904 = vmatpush1.bf16.msra.mxu0 0
      %8905 = vmatprep.subr.bf16.mxu0 0
      %8906 = vmatpush1.bf16.msra.mxu0 0
      %8907 = vmatprep.subr.bf16.mxu0 0
      %8908 = vmatpush1.bf16.msra.mxu0 0
      %8909 = vmatprep.subr.bf16.mxu0 0
      %8910 = vmatpush1.bf16.msra.mxu0 0
      %8911 = vmatprep.subr.bf16.mxu0 0
      %8912 = vmatpush1.bf16.msra.mxu0 0
      %8913 = vmatprep.subr.bf16.mxu0 0
      %8914 = vmatpush1.bf16.msra.mxu0 0
      %8915 = vmatprep.subr.bf16.mxu0 0
      %8916 = vmatpush1.bf16.msra.mxu0 0
      %8917 = vmatprep.subr.bf16.mxu0 0
      %8918 = vmatpush1.bf16.msra.mxu0 0
      %8919 = vmatprep.subr.bf16.mxu0 0
      %8920 = vmatpush1.bf16.msra.mxu0 0
      %8921 = vmatprep.subr.bf16.mxu0 0
      %8922 = vmatpush1.bf16.msra.mxu0 0
      %8923 = vmatprep.subr.bf16.mxu0 0
      %8924 = vmatpush1.bf16.msra.mxu0 0
      %8925 = vmatprep.subr.bf16.mxu0 0
      %8926 = vmatpush1.bf16.msra.mxu0 0
      %8927 = vmatprep.subr.bf16.mxu0 0
      %8928 = vmatpush1.bf16.msra.mxu0 0
      %8929 = vmatprep.subr.bf16.mxu0 0
      %8930 = vmatpush1.bf16.msra.mxu0 0
      %8931 = vmatprep.mubr.bf16.mxu0 0
      %8932 = vmatmul.mubr.bf16.gmra.mrb[0].mxu0 %v8750
      %v8933 = vpop.f32.mrb[0].mxu0
      %v8934 = vadd.f32 0.0, %v8933
      %v8935 = vpop.f32.mrb[0].mxu0
      %v8936 = vadd.f32 0.0, %v8935
      %v8937 = vpop.f32.mrb[0].mxu0
      %v8938 = vpop.f32.mrb[0].mxu0
      %8939 = vdwg.mxu0
      %v8940 = vadd.f32 %v8578, %v8811
      %v8941 = vadd.f32 %v8580, %v8813
      %v8942 = vadd.f32 %v8619, %v8852
      %v8943 = vadd.f32 %v8621, %v8854
      %v8944 = vadd.f32 %v8660, %v8893
      %v8945 = vadd.f32 %v8662, %v8895
      %v8946 = vadd.f32 %v8701, %v8934
      %v8947 = vadd.f32 %v8703, %v8936
      %8948 = vrot.lane.b32.xlu0 %v8234, 1
      %v8949 = vpop.permute.xlu0 %8948
      %8950 = vrot.lane.b32.xlu0 %v8235, 1
      %v8951 = vpop.permute.xlu0 %8950
      %8952 = vrot.lane.b32.xlu0 %v8236, 1
      %v8953 = vpop.permute.xlu0 %8952
      %8954 = vrot.lane.b32.xlu0 %v8237, 1
      %v8955 = vpop.permute.xlu0 %8954
      %8956 = vrot.lane.b32.xlu0 %v8238, 1
      %v8957 = vpop.permute.xlu0 %8956
      %8958 = vrot.lane.b32.xlu0 %v8239, 1
      %v8959 = vpop.permute.xlu0 %8958
      %8960 = vrot.lane.b32.xlu0 %v8240, 1
      %v8961 = vpop.permute.xlu0 %8960
      %8962 = vrot.lane.b32.xlu0 %v8241, 1
      %v8963 = vpop.permute.xlu0 %8962
      %v8964 = vsel %vm2297, %v8961, %v8963
      %v8965 = vsel %vm2297, %v8959, %v8961
      %v8966 = vsel %vm2297, %v8957, %v8959
      %v8967 = vsel %vm2297, %v8955, %v8957
      %v8968 = vsel %vm2297, %v8953, %v8955
      %v8969 = vsel %vm2297, %v8951, %v8953
      %v8970 = vsel %vm2297, %v8949, %v8951
      %v8971 = vsel %vm2297, %v8963, %v8949
      %v8972 = vmul.f32 %v8971, %v2309
      %v8973 = vmul.f32 %v8970, %v2313
      %v8974 = vmul.f32 %v8969, %v2317
      %v8975 = vmul.f32 %v8968, %v2321
      %v8976 = vmul.f32 %v8967, %v2325
      %v8977 = vmul.f32 %v8966, %v2329
      %v8978 = vmul.f32 %v8965, %v2333
      %v8979 = vmul.f32 %v8964, %v2337
      %s8980 = scalar_lea.vmem %s11, 12
      %v8981 = vld [vmem:[%s8980] sm:$0xf]
      %v8982 = vpack.c.bf16 %v8972, %v8972
      %v8983 = vpack.c.bf16 %v8973, %v8973
      %v8984 = vpack.c.bf16 %v8974, %v8974
      %v8985 = vpack.c.bf16 %v8975, %v8975
      %v8986 = vpack.c.bf16 %v8976, %v8976
      %v8987 = vpack.c.bf16 %v8977, %v8977
      %v8988 = vpack.c.bf16 %v8978, %v8978
      %v8989 = vpack.c.bf16 %v8979, %v8979
      %v8991 = vsel %vm1623, %v8981, 0
      %v8994 = vsel %vm1627, %v8982, 0
      %v8997 = vsel %vm1627, %v8983, 0
      %v9000 = vsel %vm1627, %v8984, 0
      %v9003 = vsel %vm1627, %v8985, 0
      %v9006 = vsel %vm1627, %v8986, 0
      %v9009 = vsel %vm1627, %v8987, 0
      %v9012 = vsel %vm1627, %v8988, 0
      %v9015 = vsel %vm1627, %v8989, 0
      %9017 = vmatprep.subr.bf16.mxu0 %v8997
      %9018 = vmatpush1.bf16.msra.mxu0 %v8994
      %9019 = vmatprep.subr.bf16.mxu0 0
      %9020 = vmatpush1.bf16.msra.mxu0 0
      %9021 = vmatprep.subr.bf16.mxu0 0
      %9022 = vmatpush1.bf16.msra.mxu0 0
      %9023 = vmatprep.subr.bf16.mxu0 0
      %9024 = vmatpush1.bf16.msra.mxu0 0
      %9025 = vmatprep.subr.bf16.mxu0 0
      %9026 = vmatpush1.bf16.msra.mxu0 0
      %9027 = vmatprep.subr.bf16.mxu0 0
      %9028 = vmatpush1.bf16.msra.mxu0 0
      %9029 = vmatprep.subr.bf16.mxu0 0
      %9030 = vmatpush1.bf16.msra.mxu0 0
      %9031 = vmatprep.subr.bf16.mxu0 0
      %9032 = vmatpush1.bf16.msra.mxu0 0
      %9033 = vmatprep.subr.bf16.mxu0 0
      %9034 = vmatpush1.bf16.msra.mxu0 0
      %9035 = vmatprep.subr.bf16.mxu0 0
      %9036 = vmatpush1.bf16.msra.mxu0 0
      %9037 = vmatprep.subr.bf16.mxu0 0
      %9038 = vmatpush1.bf16.msra.mxu0 0
      %9039 = vmatprep.subr.bf16.mxu0 0
      %9040 = vmatpush1.bf16.msra.mxu0 0
      %9041 = vmatprep.subr.bf16.mxu0 0
      %9042 = vmatpush1.bf16.msra.mxu0 0
      %9043 = vmatprep.subr.bf16.mxu0 0
      %9044 = vmatpush1.bf16.msra.mxu0 0
      %9045 = vmatprep.subr.bf16.mxu0 0
      %9046 = vmatpush1.bf16.msra.mxu0 0
      %9047 = vmatprep.subr.bf16.mxu0 0
      %9048 = vmatpush1.bf16.msra.mxu0 0
      %9049 = vmatprep.mubr.bf16.mxu0 0
      %9050 = vmatmul.mubr.bf16.gmra.mrb[0].mxu0 %v8991
      %v9051 = vpop.f32.mrb[0].mxu0
      %v9052 = vadd.f32 0.0, %v9051
      %v9053 = vpop.f32.mrb[0].mxu0
      %v9054 = vadd.f32 0.0, %v9053
      %v9055 = vpop.f32.mrb[0].mxu0
      %v9056 = vpop.f32.mrb[0].mxu0
      %9057 = vdwg.mxu0
      %9058 = vmatprep.subr.bf16.mxu0 %v9003
      %9059 = vmatpush1.bf16.msra.mxu0 %v9000
      %9060 = vmatprep.subr.bf16.mxu0 0
      %9061 = vmatpush1.bf16.msra.mxu0 0
      %9062 = vmatprep.subr.bf16.mxu0 0
      %9063 = vmatpush1.bf16.msra.mxu0 0
      %9064 = vmatprep.subr.bf16.mxu0 0
      %9065 = vmatpush1.bf16.msra.mxu0 0
      %9066 = vmatprep.subr.bf16.mxu0 0
      %9067 = vmatpush1.bf16.msra.mxu0 0
      %9068 = vmatprep.subr.bf16.mxu0 0
      %9069 = vmatpush1.bf16.msra.mxu0 0
      %9070 = vmatprep.subr.bf16.mxu0 0
      %9071 = vmatpush1.bf16.msra.mxu0 0
      %9072 = vmatprep.subr.bf16.mxu0 0
      %9073 = vmatpush1.bf16.msra.mxu0 0
      %9074 = vmatprep.subr.bf16.mxu0 0
      %9075 = vmatpush1.bf16.msra.mxu0 0
      %9076 = vmatprep.subr.bf16.mxu0 0
      %9077 = vmatpush1.bf16.msra.mxu0 0
      %9078 = vmatprep.subr.bf16.mxu0 0
      %9079 = vmatpush1.bf16.msra.mxu0 0
      %9080 = vmatprep.subr.bf16.mxu0 0
      %9081 = vmatpush1.bf16.msra.mxu0 0
      %9082 = vmatprep.subr.bf16.mxu0 0
      %9083 = vmatpush1.bf16.msra.mxu0 0
      %9084 = vmatprep.subr.bf16.mxu0 0
      %9085 = vmatpush1.bf16.msra.mxu0 0
      %9086 = vmatprep.subr.bf16.mxu0 0
      %9087 = vmatpush1.bf16.msra.mxu0 0
      %9088 = vmatprep.subr.bf16.mxu0 0
      %9089 = vmatpush1.bf16.msra.mxu0 0
      %9090 = vmatprep.mubr.bf16.mxu0 0
      %9091 = vmatmul.mubr.bf16.gmra.mrb[0].mxu0 %v8991
      %v9092 = vpop.f32.mrb[0].mxu0
      %v9093 = vadd.f32 0.0, %v9092
      %v9094 = vpop.f32.mrb[0].mxu0
      %v9095 = vadd.f32 0.0, %v9094
      %v9096 = vpop.f32.mrb[0].mxu0
      %v9097 = vpop.f32.mrb[0].mxu0
      %9098 = vdwg.mxu0
      %9099 = vmatprep.subr.bf16.mxu0 %v9009
      %9100 = vmatpush1.bf16.msra.mxu0 %v9006
      %9101 = vmatprep.subr.bf16.mxu0 0
      %9102 = vmatpush1.bf16.msra.mxu0 0
      %9103 = vmatprep.subr.bf16.mxu0 0
      %9104 = vmatpush1.bf16.msra.mxu0 0
      %9105 = vmatprep.subr.bf16.mxu0 0
      %9106 = vmatpush1.bf16.msra.mxu0 0
      %9107 = vmatprep.subr.bf16.mxu0 0
      %9108 = vmatpush1.bf16.msra.mxu0 0
      %9109 = vmatprep.subr.bf16.mxu0 0
      %9110 = vmatpush1.bf16.msra.mxu0 0
      %9111 = vmatprep.subr.bf16.mxu0 0
      %9112 = vmatpush1.bf16.msra.mxu0 0
      %9113 = vmatprep.subr.bf16.mxu0 0
      %9114 = vmatpush1.bf16.msra.mxu0 0
      %9115 = vmatprep.subr.bf16.mxu0 0
      %9116 = vmatpush1.bf16.msra.mxu0 0
      %9117 = vmatprep.subr.bf16.mxu0 0
      %9118 = vmatpush1.bf16.msra.mxu0 0
      %9119 = vmatprep.subr.bf16.mxu0 0
      %9120 = vmatpush1.bf16.msra.mxu0 0
      %9121 = vmatprep.subr.bf16.mxu0 0
      %9122 = vmatpush1.bf16.msra.mxu0 0
      %9123 = vmatprep.subr.bf16.mxu0 0
      %9124 = vmatpush1.bf16.msra.mxu0 0
      %9125 = vmatprep.subr.bf16.mxu0 0
      %9126 = vmatpush1.bf16.msra.mxu0 0
      %9127 = vmatprep.subr.bf16.mxu0 0
      %9128 = vmatpush1.bf16.msra.mxu0 0
      %9129 = vmatprep.subr.bf16.mxu0 0
      %9130 = vmatpush1.bf16.msra.mxu0 0
      %9131 = vmatprep.mubr.bf16.mxu0 0
      %9132 = vmatmul.mubr.bf16.gmra.mrb[0].mxu0 %v8991
      %v9133 = vpop.f32.mrb[0].mxu0
      %v9134 = vadd.f32 0.0, %v9133
      %v9135 = vpop.f32.mrb[0].mxu0
      %v9136 = vadd.f32 0.0, %v9135
      %v9137 = vpop.f32.mrb[0].mxu0
      %v9138 = vpop.f32.mrb[0].mxu0
      %9139 = vdwg.mxu0
      %9140 = vmatprep.subr.bf16.mxu0 %v9015
      %9141 = vmatpush1.bf16.msra.mxu0 %v9012
      %9142 = vmatprep.subr.bf16.mxu0 0
      %9143 = vmatpush1.bf16.msra.mxu0 0
      %9144 = vmatprep.subr.bf16.mxu0 0
      %9145 = vmatpush1.bf16.msra.mxu0 0
      %9146 = vmatprep.subr.bf16.mxu0 0
      %9147 = vmatpush1.bf16.msra.mxu0 0
      %9148 = vmatprep.subr.bf16.mxu0 0
      %9149 = vmatpush1.bf16.msra.mxu0 0
      %9150 = vmatprep.subr.bf16.mxu0 0
      %9151 = vmatpush1.bf16.msra.mxu0 0
      %9152 = vmatprep.subr.bf16.mxu0 0
      %9153 = vmatpush1.bf16.msra.mxu0 0
      %9154 = vmatprep.subr.bf16.mxu0 0
      %9155 = vmatpush1.bf16.msra.mxu0 0
      %9156 = vmatprep.subr.bf16.mxu0 0
      %9157 = vmatpush1.bf16.msra.mxu0 0
      %9158 = vmatprep.subr.bf16.mxu0 0
      %9159 = vmatpush1.bf16.msra.mxu0 0
      %9160 = vmatprep.subr.bf16.mxu0 0
      %9161 = vmatpush1.bf16.msra.mxu0 0
      %9162 = vmatprep.subr.bf16.mxu0 0
      %9163 = vmatpush1.bf16.msra.mxu0 0
      %9164 = vmatprep.subr.bf16.mxu0 0
      %9165 = vmatpush1.bf16.msra.mxu0 0
      %9166 = vmatprep.subr.bf16.mxu0 0
      %9167 = vmatpush1.bf16.msra.mxu0 0
      %9168 = vmatprep.subr.bf16.mxu0 0
      %9169 = vmatpush1.bf16.msra.mxu0 0
      %9170 = vmatprep.subr.bf16.mxu0 0
      %9171 = vmatpush1.bf16.msra.mxu0 0
      %9172 = vmatprep.mubr.bf16.mxu0 0
      %9173 = vmatmul.mubr.bf16.gmra.mrb[0].mxu0 %v8991
      %v9174 = vpop.f32.mrb[0].mxu0
      %v9175 = vadd.f32 0.0, %v9174
      %v9176 = vpop.f32.mrb[0].mxu0
      %v9177 = vadd.f32 0.0, %v9176
      %v9178 = vpop.f32.mrb[0].mxu0
      %v9179 = vpop.f32.mrb[0].mxu0
      %9180 = vdwg.mxu0
      %v9181 = vadd.f32 %v8940, %v9052
      %v9182 = vadd.f32 %v8941, %v9054
      %v9183 = vadd.f32 %v8942, %v9093
      %v9184 = vadd.f32 %v8943, %v9095
      %v9185 = vadd.f32 %v8944, %v9134
      %v9186 = vadd.f32 %v8945, %v9136
      %v9187 = vadd.f32 %v8946, %v9175
      %v9188 = vadd.f32 %v8947, %v9177
      %s9189 = scalar_lea.vmem %s11, 16
      %v9190 = vld [vmem:[%s9189] sm:$0xf]
      %v9191 = vpack.c.bf16 %v8234, %v8234
      %v9192 = vpack.c.bf16 %v8235, %v8235
      %v9193 = vpack.c.bf16 %v8236, %v8236
      %v9194 = vpack.c.bf16 %v8237, %v8237
      %v9195 = vpack.c.bf16 %v8238, %v8238
      %v9196 = vpack.c.bf16 %v8239, %v8239
      %v9197 = vpack.c.bf16 %v8240, %v8240
      %v9198 = vpack.c.bf16 %v8241, %v8241
      %v9200 = vsel %vm1623, %v9190, 0
      %v9203 = vsel %vm1627, %v9191, 0
      %v9206 = vsel %vm1627, %v9192, 0
      %v9209 = vsel %vm1627, %v9193, 0
      %v9212 = vsel %vm1627, %v9194, 0
      %v9215 = vsel %vm1627, %v9195, 0
      %v9218 = vsel %vm1627, %v9196, 0
      %v9221 = vsel %vm1627, %v9197, 0
      %v9224 = vsel %vm1627, %v9198, 0
      %9226 = vmatprep.subr.bf16.mxu0 %v9206
      %9227 = vmatpush1.bf16.msra.mxu0 %v9203
      %9228 = vmatprep.subr.bf16.mxu0 0
      %9229 = vmatpush1.bf16.msra.mxu0 0
      %9230 = vmatprep.subr.bf16.mxu0 0
      %9231 = vmatpush1.bf16.msra.mxu0 0
      %9232 = vmatprep.subr.bf16.mxu0 0
      %9233 = vmatpush1.bf16.msra.mxu0 0
      %9234 = vmatprep.subr.bf16.mxu0 0
      %9235 = vmatpush1.bf16.msra.mxu0 0
      %9236 = vmatprep.subr.bf16.mxu0 0
      %9237 = vmatpush1.bf16.msra.mxu0 0
      %9238 = vmatprep.subr.bf16.mxu0 0
      %9239 = vmatpush1.bf16.msra.mxu0 0
      %9240 = vmatprep.subr.bf16.mxu0 0
      %9241 = vmatpush1.bf16.msra.mxu0 0
      %9242 = vmatprep.subr.bf16.mxu0 0
      %9243 = vmatpush1.bf16.msra.mxu0 0
      %9244 = vmatprep.subr.bf16.mxu0 0
      %9245 = vmatpush1.bf16.msra.mxu0 0
      %9246 = vmatprep.subr.bf16.mxu0 0
      %9247 = vmatpush1.bf16.msra.mxu0 0
      %9248 = vmatprep.subr.bf16.mxu0 0
      %9249 = vmatpush1.bf16.msra.mxu0 0
      %9250 = vmatprep.subr.bf16.mxu0 0
      %9251 = vmatpush1.bf16.msra.mxu0 0
      %9252 = vmatprep.subr.bf16.mxu0 0
      %9253 = vmatpush1.bf16.msra.mxu0 0
      %9254 = vmatprep.subr.bf16.mxu0 0
      %9255 = vmatpush1.bf16.msra.mxu0 0
      %9256 = vmatprep.subr.bf16.mxu0 0
      %9257 = vmatpush1.bf16.msra.mxu0 0
      %9258 = vmatprep.mubr.bf16.mxu0 0
      %9259 = vmatmul.mubr.bf16.gmra.mrb[0].mxu0 %v9200
      %v9260 = vpop.f32.mrb[0].mxu0
      %v9261 = vadd.f32 0.0, %v9260
      %v9262 = vpop.f32.mrb[0].mxu0
      %v9263 = vadd.f32 0.0, %v9262
      %v9264 = vpop.f32.mrb[0].mxu0
      %v9265 = vpop.f32.mrb[0].mxu0
      %9266 = vdwg.mxu0
      %9267 = vmatprep.subr.bf16.mxu0 %v9212
      %9268 = vmatpush1.bf16.msra.mxu0 %v9209
      %9269 = vmatprep.subr.bf16.mxu0 0
      %9270 = vmatpush1.bf16.msra.mxu0 0
      %9271 = vmatprep.subr.bf16.mxu0 0
      %9272 = vmatpush1.bf16.msra.mxu0 0
      %9273 = vmatprep.subr.bf16.mxu0 0
      %9274 = vmatpush1.bf16.msra.mxu0 0
      %9275 = vmatprep.subr.bf16.mxu0 0
      %9276 = vmatpush1.bf16.msra.mxu0 0
      %9277 = vmatprep.subr.bf16.mxu0 0
      %9278 = vmatpush1.bf16.msra.mxu0 0
      %9279 = vmatprep.subr.bf16.mxu0 0
      %9280 = vmatpush1.bf16.msra.mxu0 0
      %9281 = vmatprep.subr.bf16.mxu0 0
      %9282 = vmatpush1.bf16.msra.mxu0 0
      %9283 = vmatprep.subr.bf16.mxu0 0
      %9284 = vmatpush1.bf16.msra.mxu0 0
      %9285 = vmatprep.subr.bf16.mxu0 0
      %9286 = vmatpush1.bf16.msra.mxu0 0
      %9287 = vmatprep.subr.bf16.mxu0 0
      %9288 = vmatpush1.bf16.msra.mxu0 0
      %9289 = vmatprep.subr.bf16.mxu0 0
      %9290 = vmatpush1.bf16.msra.mxu0 0
      %9291 = vmatprep.subr.bf16.mxu0 0
      %9292 = vmatpush1.bf16.msra.mxu0 0
      %9293 = vmatprep.subr.bf16.mxu0 0
      %9294 = vmatpush1.bf16.msra.mxu0 0
      %9295 = vmatprep.subr.bf16.mxu0 0
      %9296 = vmatpush1.bf16.msra.mxu0 0
      %9297 = vmatprep.subr.bf16.mxu0 0
      %9298 = vmatpush1.bf16.msra.mxu0 0
      %9299 = vmatprep.mubr.bf16.mxu0 0
      %9300 = vmatmul.mubr.bf16.gmra.mrb[0].mxu0 %v9200
      %v9301 = vpop.f32.mrb[0].mxu0
      %v9302 = vadd.f32 0.0, %v9301
      %v9303 = vpop.f32.mrb[0].mxu0
      %v9304 = vadd.f32 0.0, %v9303
      %v9305 = vpop.f32.mrb[0].mxu0
      %v9306 = vpop.f32.mrb[0].mxu0
      %9307 = vdwg.mxu0
      %9308 = vmatprep.subr.bf16.mxu0 %v9218
      %9309 = vmatpush1.bf16.msra.mxu0 %v9215
      %9310 = vmatprep.subr.bf16.mxu0 0
      %9311 = vmatpush1.bf16.msra.mxu0 0
      %9312 = vmatprep.subr.bf16.mxu0 0
      %9313 = vmatpush1.bf16.msra.mxu0 0
      %9314 = vmatprep.subr.bf16.mxu0 0
      %9315 = vmatpush1.bf16.msra.mxu0 0
      %9316 = vmatprep.subr.bf16.mxu0 0
      %9317 = vmatpush1.bf16.msra.mxu0 0
      %9318 = vmatprep.subr.bf16.mxu0 0
      %9319 = vmatpush1.bf16.msra.mxu0 0
      %9320 = vmatprep.subr.bf16.mxu0 0
      %9321 = vmatpush1.bf16.msra.mxu0 0
      %9322 = vmatprep.subr.bf16.mxu0 0
      %9323 = vmatpush1.bf16.msra.mxu0 0
      %9324 = vmatprep.subr.bf16.mxu0 0
      %9325 = vmatpush1.bf16.msra.mxu0 0
      %9326 = vmatprep.subr.bf16.mxu0 0
      %9327 = vmatpush1.bf16.msra.mxu0 0
      %9328 = vmatprep.subr.bf16.mxu0 0
      %9329 = vmatpush1.bf16.msra.mxu0 0
      %9330 = vmatprep.subr.bf16.mxu0 0
      %9331 = vmatpush1.bf16.msra.mxu0 0
      %9332 = vmatprep.subr.bf16.mxu0 0
      %9333 = vmatpush1.bf16.msra.mxu0 0
      %9334 = vmatprep.subr.bf16.mxu0 0
      %9335 = vmatpush1.bf16.msra.mxu0 0
      %9336 = vmatprep.subr.bf16.mxu0 0
      %9337 = vmatpush1.bf16.msra.mxu0 0
      %9338 = vmatprep.subr.bf16.mxu0 0
      %9339 = vmatpush1.bf16.msra.mxu0 0
      %9340 = vmatprep.mubr.bf16.mxu0 0
      %9341 = vmatmul.mubr.bf16.gmra.mrb[0].mxu0 %v9200
      %v9342 = vpop.f32.mrb[0].mxu0
      %v9343 = vadd.f32 0.0, %v9342
      %v9344 = vpop.f32.mrb[0].mxu0
      %v9345 = vadd.f32 0.0, %v9344
      %v9346 = vpop.f32.mrb[0].mxu0
      %v9347 = vpop.f32.mrb[0].mxu0
      %9348 = vdwg.mxu0
      %9349 = vmatprep.subr.bf16.mxu0 %v9224
      %9350 = vmatpush1.bf16.msra.mxu0 %v9221
      %9351 = vmatprep.subr.bf16.mxu0 0
      %9352 = vmatpush1.bf16.msra.mxu0 0
      %9353 = vmatprep.subr.bf16.mxu0 0
      %9354 = vmatpush1.bf16.msra.mxu0 0
      %9355 = vmatprep.subr.bf16.mxu0 0
      %9356 = vmatpush1.bf16.msra.mxu0 0
      %9357 = vmatprep.subr.bf16.mxu0 0
      %9358 = vmatpush1.bf16.msra.mxu0 0
      %9359 = vmatprep.subr.bf16.mxu0 0
      %9360 = vmatpush1.bf16.msra.mxu0 0
      %9361 = vmatprep.subr.bf16.mxu0 0
      %9362 = vmatpush1.bf16.msra.mxu0 0
      %9363 = vmatprep.subr.bf16.mxu0 0
      %9364 = vmatpush1.bf16.msra.mxu0 0
      %9365 = vmatprep.subr.bf16.mxu0 0
      %9366 = vmatpush1.bf16.msra.mxu0 0
      %9367 = vmatprep.subr.bf16.mxu0 0
      %9368 = vmatpush1.bf16.msra.mxu0 0
      %9369 = vmatprep.subr.bf16.mxu0 0
      %9370 = vmatpush1.bf16.msra.mxu0 0
      %9371 = vmatprep.subr.bf16.mxu0 0
      %9372 = vmatpush1.bf16.msra.mxu0 0
      %9373 = vmatprep.subr.bf16.mxu0 0
      %9374 = vmatpush1.bf16.msra.mxu0 0
      %9375 = vmatprep.subr.bf16.mxu0 0
      %9376 = vmatpush1.bf16.msra.mxu0 0
      %9377 = vmatprep.subr.bf16.mxu0 0
      %9378 = vmatpush1.bf16.msra.mxu0 0
      %9379 = vmatprep.subr.bf16.mxu0 0
      %9380 = vmatpush1.bf16.msra.mxu0 0
      %9381 = vmatprep.mubr.bf16.mxu0 0
      %9382 = vmatmul.mubr.bf16.gmra.mrb[0].mxu0 %v9200
      %v9383 = vpop.f32.mrb[0].mxu0
      %v9384 = vadd.f32 0.0, %v9383
      %v9385 = vpop.f32.mrb[0].mxu0
      %v9386 = vadd.f32 0.0, %v9385
      %v9387 = vpop.f32.mrb[0].mxu0
      %v9388 = vpop.f32.mrb[0].mxu0
      %9389 = vdwg.mxu0
      %v9390 = vadd.f32 %v9181, %v9261
      %v9391 = vadd.f32 %v9182, %v9263
      %v9392 = vadd.f32 %v9183, %v9302
      %v9393 = vadd.f32 %v9184, %v9304
      %v9394 = vadd.f32 %v9185, %v9343
      %v9395 = vadd.f32 %v9186, %v9345
      %v9396 = vadd.f32 %v9187, %v9384
      %v9397 = vadd.f32 %v9188, %v9386
      %9398 = vrot.lane.b32.xlu0 %v8234, 127
      %v9399 = vpop.permute.xlu0 %9398
      %9400 = vrot.lane.b32.xlu0 %v8235, 127
      %v9401 = vpop.permute.xlu0 %9400
      %9402 = vrot.lane.b32.xlu0 %v8236, 127
      %v9403 = vpop.permute.xlu0 %9402
      %9404 = vrot.lane.b32.xlu0 %v8237, 127
      %v9405 = vpop.permute.xlu0 %9404
      %9406 = vrot.lane.b32.xlu0 %v8238, 127
      %v9407 = vpop.permute.xlu0 %9406
      %9408 = vrot.lane.b32.xlu0 %v8239, 127
      %v9409 = vpop.permute.xlu0 %9408
      %9410 = vrot.lane.b32.xlu0 %v8240, 127
      %v9411 = vpop.permute.xlu0 %9410
      %9412 = vrot.lane.b32.xlu0 %v8241, 127
      %v9413 = vpop.permute.xlu0 %9412
      %v9414 = vsel %vm2780, %v9411, %v9413
      %v9415 = vsel %vm2780, %v9409, %v9411
      %v9416 = vsel %vm2780, %v9407, %v9409
      %v9417 = vsel %vm2780, %v9405, %v9407
      %v9418 = vsel %vm2780, %v9403, %v9405
      %v9419 = vsel %vm2780, %v9401, %v9403
      %v9420 = vsel %vm2780, %v9399, %v9401
      %v9421 = vsel %vm2780, %v9413, %v9399
      %v9422 = vmul.f32 %v9420, %v2792
      %v9423 = vmul.f32 %v9419, %v2796
      %v9424 = vmul.f32 %v9418, %v2800
      %v9425 = vmul.f32 %v9417, %v2804
      %v9426 = vmul.f32 %v9416, %v2808
      %v9427 = vmul.f32 %v9415, %v2812
      %v9428 = vmul.f32 %v9414, %v2816
      %v9429 = vmul.f32 %v9421, %v2820
      %s9430 = scalar_lea.vmem %s11, 20
      %v9431 = vld [vmem:[%s9430] sm:$0xf]
      %v9432 = vpack.c.bf16 %v9422, %v9422
      %v9433 = vpack.c.bf16 %v9423, %v9423
      %v9434 = vpack.c.bf16 %v9424, %v9424
      %v9435 = vpack.c.bf16 %v9425, %v9425
      %v9436 = vpack.c.bf16 %v9426, %v9426
      %v9437 = vpack.c.bf16 %v9427, %v9427
      %v9438 = vpack.c.bf16 %v9428, %v9428
      %v9439 = vpack.c.bf16 %v9429, %v9429
      %v9441 = vsel %vm1623, %v9431, 0
      %v9444 = vsel %vm1627, %v9432, 0
      %v9447 = vsel %vm1627, %v9433, 0
      %v9450 = vsel %vm1627, %v9434, 0
      %v9453 = vsel %vm1627, %v9435, 0
      %v9456 = vsel %vm1627, %v9436, 0
      %v9459 = vsel %vm1627, %v9437, 0
      %v9462 = vsel %vm1627, %v9438, 0
      %v9465 = vsel %vm1627, %v9439, 0
      %9467 = vmatprep.subr.bf16.mxu0 %v9447
      %9468 = vmatpush1.bf16.msra.mxu0 %v9444
      %9469 = vmatprep.subr.bf16.mxu0 0
      %9470 = vmatpush1.bf16.msra.mxu0 0
      %9471 = vmatprep.subr.bf16.mxu0 0
      %9472 = vmatpush1.bf16.msra.mxu0 0
      %9473 = vmatprep.subr.bf16.mxu0 0
      %9474 = vmatpush1.bf16.msra.mxu0 0
      %9475 = vmatprep.subr.bf16.mxu0 0
      %9476 = vmatpush1.bf16.msra.mxu0 0
      %9477 = vmatprep.subr.bf16.mxu0 0
      %9478 = vmatpush1.bf16.msra.mxu0 0
      %9479 = vmatprep.subr.bf16.mxu0 0
      %9480 = vmatpush1.bf16.msra.mxu0 0
      %9481 = vmatprep.subr.bf16.mxu0 0
      %9482 = vmatpush1.bf16.msra.mxu0 0
      %9483 = vmatprep.subr.bf16.mxu0 0
      %9484 = vmatpush1.bf16.msra.mxu0 0
      %9485 = vmatprep.subr.bf16.mxu0 0
      %9486 = vmatpush1.bf16.msra.mxu0 0
      %9487 = vmatprep.subr.bf16.mxu0 0
      %9488 = vmatpush1.bf16.msra.mxu0 0
      %9489 = vmatprep.subr.bf16.mxu0 0
      %9490 = vmatpush1.bf16.msra.mxu0 0
      %9491 = vmatprep.subr.bf16.mxu0 0
      %9492 = vmatpush1.bf16.msra.mxu0 0
      %9493 = vmatprep.subr.bf16.mxu0 0
      %9494 = vmatpush1.bf16.msra.mxu0 0
      %9495 = vmatprep.subr.bf16.mxu0 0
      %9496 = vmatpush1.bf16.msra.mxu0 0
      %9497 = vmatprep.subr.bf16.mxu0 0
      %9498 = vmatpush1.bf16.msra.mxu0 0
      %9499 = vmatprep.mubr.bf16.mxu0 0
      %9500 = vmatmul.mubr.bf16.gmra.mrb[0].mxu0 %v9441
      %v9501 = vpop.f32.mrb[0].mxu0
      %v9502 = vadd.f32 0.0, %v9501
      %v9503 = vpop.f32.mrb[0].mxu0
      %v9504 = vadd.f32 0.0, %v9503
      %v9505 = vpop.f32.mrb[0].mxu0
      %v9506 = vpop.f32.mrb[0].mxu0
      %9507 = vdwg.mxu0
      %9508 = vmatprep.subr.bf16.mxu0 %v9453
      %9509 = vmatpush1.bf16.msra.mxu0 %v9450
      %9510 = vmatprep.subr.bf16.mxu0 0
      %9511 = vmatpush1.bf16.msra.mxu0 0
      %9512 = vmatprep.subr.bf16.mxu0 0
      %9513 = vmatpush1.bf16.msra.mxu0 0
      %9514 = vmatprep.subr.bf16.mxu0 0
      %9515 = vmatpush1.bf16.msra.mxu0 0
      %9516 = vmatprep.subr.bf16.mxu0 0
      %9517 = vmatpush1.bf16.msra.mxu0 0
      %9518 = vmatprep.subr.bf16.mxu0 0
      %9519 = vmatpush1.bf16.msra.mxu0 0
      %9520 = vmatprep.subr.bf16.mxu0 0
      %9521 = vmatpush1.bf16.msra.mxu0 0
      %9522 = vmatprep.subr.bf16.mxu0 0
      %9523 = vmatpush1.bf16.msra.mxu0 0
      %9524 = vmatprep.subr.bf16.mxu0 0
      %9525 = vmatpush1.bf16.msra.mxu0 0
      %9526 = vmatprep.subr.bf16.mxu0 0
      %9527 = vmatpush1.bf16.msra.mxu0 0
      %9528 = vmatprep.subr.bf16.mxu0 0
      %9529 = vmatpush1.bf16.msra.mxu0 0
      %9530 = vmatprep.subr.bf16.mxu0 0
      %9531 = vmatpush1.bf16.msra.mxu0 0
      %9532 = vmatprep.subr.bf16.mxu0 0
      %9533 = vmatpush1.bf16.msra.mxu0 0
      %9534 = vmatprep.subr.bf16.mxu0 0
      %9535 = vmatpush1.bf16.msra.mxu0 0
      %9536 = vmatprep.subr.bf16.mxu0 0
      %9537 = vmatpush1.bf16.msra.mxu0 0
      %9538 = vmatprep.subr.bf16.mxu0 0
      %9539 = vmatpush1.bf16.msra.mxu0 0
      %9540 = vmatprep.mubr.bf16.mxu0 0
      %9541 = vmatmul.mubr.bf16.gmra.mrb[0].mxu0 %v9441
      %v9542 = vpop.f32.mrb[0].mxu0
      %v9543 = vadd.f32 0.0, %v9542
      %v9544 = vpop.f32.mrb[0].mxu0
      %v9545 = vadd.f32 0.0, %v9544
      %v9546 = vpop.f32.mrb[0].mxu0
      %v9547 = vpop.f32.mrb[0].mxu0
      %9548 = vdwg.mxu0
      %9549 = vmatprep.subr.bf16.mxu0 %v9459
      %9550 = vmatpush1.bf16.msra.mxu0 %v9456
      %9551 = vmatprep.subr.bf16.mxu0 0
      %9552 = vmatpush1.bf16.msra.mxu0 0
      %9553 = vmatprep.subr.bf16.mxu0 0
      %9554 = vmatpush1.bf16.msra.mxu0 0
      %9555 = vmatprep.subr.bf16.mxu0 0
      %9556 = vmatpush1.bf16.msra.mxu0 0
      %9557 = vmatprep.subr.bf16.mxu0 0
      %9558 = vmatpush1.bf16.msra.mxu0 0
      %9559 = vmatprep.subr.bf16.mxu0 0
      %9560 = vmatpush1.bf16.msra.mxu0 0
      %9561 = vmatprep.subr.bf16.mxu0 0
      %9562 = vmatpush1.bf16.msra.mxu0 0
      %9563 = vmatprep.subr.bf16.mxu0 0
      %9564 = vmatpush1.bf16.msra.mxu0 0
      %9565 = vmatprep.subr.bf16.mxu0 0
      %9566 = vmatpush1.bf16.msra.mxu0 0
      %9567 = vmatprep.subr.bf16.mxu0 0
      %9568 = vmatpush1.bf16.msra.mxu0 0
      %9569 = vmatprep.subr.bf16.mxu0 0
      %9570 = vmatpush1.bf16.msra.mxu0 0
      %9571 = vmatprep.subr.bf16.mxu0 0
      %9572 = vmatpush1.bf16.msra.mxu0 0
      %9573 = vmatprep.subr.bf16.mxu0 0
      %9574 = vmatpush1.bf16.msra.mxu0 0
      %9575 = vmatprep.subr.bf16.mxu0 0
      %9576 = vmatpush1.bf16.msra.mxu0 0
      %9577 = vmatprep.subr.bf16.mxu0 0
      %9578 = vmatpush1.bf16.msra.mxu0 0
      %9579 = vmatprep.subr.bf16.mxu0 0
      %9580 = vmatpush1.bf16.msra.mxu0 0
      %9581 = vmatprep.mubr.bf16.mxu0 0
      %9582 = vmatmul.mubr.bf16.gmra.mrb[0].mxu0 %v9441
      %v9583 = vpop.f32.mrb[0].mxu0
      %v9584 = vadd.f32 0.0, %v9583
      %v9585 = vpop.f32.mrb[0].mxu0
      %v9586 = vadd.f32 0.0, %v9585
      %v9587 = vpop.f32.mrb[0].mxu0
      %v9588 = vpop.f32.mrb[0].mxu0
      %9589 = vdwg.mxu0
      %9590 = vmatprep.subr.bf16.mxu0 %v9465
      %9591 = vmatpush1.bf16.msra.mxu0 %v9462
      %9592 = vmatprep.subr.bf16.mxu0 0
      %9593 = vmatpush1.bf16.msra.mxu0 0
      %9594 = vmatprep.subr.bf16.mxu0 0
      %9595 = vmatpush1.bf16.msra.mxu0 0
      %9596 = vmatprep.subr.bf16.mxu0 0
      %9597 = vmatpush1.bf16.msra.mxu0 0
      %9598 = vmatprep.subr.bf16.mxu0 0
      %9599 = vmatpush1.bf16.msra.mxu0 0
      %9600 = vmatprep.subr.bf16.mxu0 0
      %9601 = vmatpush1.bf16.msra.mxu0 0
      %9602 = vmatprep.subr.bf16.mxu0 0
      %9603 = vmatpush1.bf16.msra.mxu0 0
      %9604 = vmatprep.subr.bf16.mxu0 0
      %9605 = vmatpush1.bf16.msra.mxu0 0
      %9606 = vmatprep.subr.bf16.mxu0 0
      %9607 = vmatpush1.bf16.msra.mxu0 0
      %9608 = vmatprep.subr.bf16.mxu0 0
      %9609 = vmatpush1.bf16.msra.mxu0 0
      %9610 = vmatprep.subr.bf16.mxu0 0
      %9611 = vmatpush1.bf16.msra.mxu0 0
      %9612 = vmatprep.subr.bf16.mxu0 0
      %9613 = vmatpush1.bf16.msra.mxu0 0
      %9614 = vmatprep.subr.bf16.mxu0 0
      %9615 = vmatpush1.bf16.msra.mxu0 0
      %9616 = vmatprep.subr.bf16.mxu0 0
      %9617 = vmatpush1.bf16.msra.mxu0 0
      %9618 = vmatprep.subr.bf16.mxu0 0
      %9619 = vmatpush1.bf16.msra.mxu0 0
      %9620 = vmatprep.subr.bf16.mxu0 0
      %9621 = vmatpush1.bf16.msra.mxu0 0
      %9622 = vmatprep.mubr.bf16.mxu0 0
      %9623 = vmatmul.mubr.bf16.gmra.mrb[0].mxu0 %v9441
      %v9624 = vpop.f32.mrb[0].mxu0
      %v9625 = vadd.f32 0.0, %v9624
      %v9626 = vpop.f32.mrb[0].mxu0
      %v9627 = vadd.f32 0.0, %v9626
      %v9628 = vpop.f32.mrb[0].mxu0
      %v9629 = vpop.f32.mrb[0].mxu0
      %9630 = vdwg.mxu0
      %v9631 = vadd.f32 %v9390, %v9502
      %v9632 = vadd.f32 %v9391, %v9504
      %v9633 = vadd.f32 %v9392, %v9543
      %v9634 = vadd.f32 %v9393, %v9545
      %v9635 = vadd.f32 %v9394, %v9584
      %v9636 = vadd.f32 %v9395, %v9586
      %v9637 = vadd.f32 %v9396, %v9625
      %v9638 = vadd.f32 %v9397, %v9627
      %9639 = vrot.lane.b32.xlu0 %v8234, 97
      %v9640 = vpop.permute.xlu0 %9639
      %9641 = vrot.lane.b32.xlu0 %v8235, 97
      %v9642 = vpop.permute.xlu0 %9641
      %9643 = vrot.lane.b32.xlu0 %v8236, 97
      %v9644 = vpop.permute.xlu0 %9643
      %9645 = vrot.lane.b32.xlu0 %v8237, 97
      %v9646 = vpop.permute.xlu0 %9645
      %9647 = vrot.lane.b32.xlu0 %v8238, 97
      %v9648 = vpop.permute.xlu0 %9647
      %9649 = vrot.lane.b32.xlu0 %v8239, 97
      %v9650 = vpop.permute.xlu0 %9649
      %9651 = vrot.lane.b32.xlu0 %v8240, 97
      %v9652 = vpop.permute.xlu0 %9651
      %9653 = vrot.lane.b32.xlu0 %v8241, 97
      %v9654 = vpop.permute.xlu0 %9653
      %v9655 = vsel %vm3054, %v9652, %v9654
      %v9656 = vsel %vm3054, %v9650, %v9652
      %v9657 = vsel %vm3054, %v9648, %v9650
      %v9658 = vsel %vm3054, %v9646, %v9648
      %v9659 = vsel %vm3054, %v9644, %v9646
      %v9660 = vsel %vm3054, %v9642, %v9644
      %v9661 = vsel %vm3054, %v9640, %v9642
      %v9662 = vsel %vm3054, %v9654, %v9640
      %v9663 = vmul.f32 %v9661, %v3066
      %v9664 = vmul.f32 %v9660, %v3070
      %v9665 = vmul.f32 %v9659, %v3074
      %v9666 = vmul.f32 %v9658, %v3078
      %v9667 = vmul.f32 %v9657, %v3082
      %v9668 = vmul.f32 %v9656, %v3086
      %v9669 = vmul.f32 %v9655, %v3090
      %v9670 = vmul.f32 %v9662, %v3094
      %s9671 = scalar_lea.vmem %s11, 24
      %v9672 = vld [vmem:[%s9671] sm:$0xf]
      %v9673 = vpack.c.bf16 %v9663, %v9663
      %v9674 = vpack.c.bf16 %v9664, %v9664
      %v9675 = vpack.c.bf16 %v9665, %v9665
      %v9676 = vpack.c.bf16 %v9666, %v9666
      %v9677 = vpack.c.bf16 %v9667, %v9667
      %v9678 = vpack.c.bf16 %v9668, %v9668
      %v9679 = vpack.c.bf16 %v9669, %v9669
      %v9680 = vpack.c.bf16 %v9670, %v9670
      %v9682 = vsel %vm1623, %v9672, 0
      %v9685 = vsel %vm1627, %v9673, 0
      %v9688 = vsel %vm1627, %v9674, 0
      %v9691 = vsel %vm1627, %v9675, 0
      %v9694 = vsel %vm1627, %v9676, 0
      %v9697 = vsel %vm1627, %v9677, 0
      %v9700 = vsel %vm1627, %v9678, 0
      %v9703 = vsel %vm1627, %v9679, 0
      %v9706 = vsel %vm1627, %v9680, 0
      %9708 = vmatprep.subr.bf16.mxu0 %v9688
      %9709 = vmatpush1.bf16.msra.mxu0 %v9685
      %9710 = vmatprep.subr.bf16.mxu0 0
      %9711 = vmatpush1.bf16.msra.mxu0 0
      %9712 = vmatprep.subr.bf16.mxu0 0
      %9713 = vmatpush1.bf16.msra.mxu0 0
      %9714 = vmatprep.subr.bf16.mxu0 0
      %9715 = vmatpush1.bf16.msra.mxu0 0
      %9716 = vmatprep.subr.bf16.mxu0 0
      %9717 = vmatpush1.bf16.msra.mxu0 0
      %9718 = vmatprep.subr.bf16.mxu0 0
      %9719 = vmatpush1.bf16.msra.mxu0 0
      %9720 = vmatprep.subr.bf16.mxu0 0
      %9721 = vmatpush1.bf16.msra.mxu0 0
      %9722 = vmatprep.subr.bf16.mxu0 0
      %9723 = vmatpush1.bf16.msra.mxu0 0
      %9724 = vmatprep.subr.bf16.mxu0 0
      %9725 = vmatpush1.bf16.msra.mxu0 0
      %9726 = vmatprep.subr.bf16.mxu0 0
      %9727 = vmatpush1.bf16.msra.mxu0 0
      %9728 = vmatprep.subr.bf16.mxu0 0
      %9729 = vmatpush1.bf16.msra.mxu0 0
      %9730 = vmatprep.subr.bf16.mxu0 0
      %9731 = vmatpush1.bf16.msra.mxu0 0
      %9732 = vmatprep.subr.bf16.mxu0 0
      %9733 = vmatpush1.bf16.msra.mxu0 0
      %9734 = vmatprep.subr.bf16.mxu0 0
      %9735 = vmatpush1.bf16.msra.mxu0 0
      %9736 = vmatprep.subr.bf16.mxu0 0
      %9737 = vmatpush1.bf16.msra.mxu0 0
      %9738 = vmatprep.subr.bf16.mxu0 0
      %9739 = vmatpush1.bf16.msra.mxu0 0
      %9740 = vmatprep.mubr.bf16.mxu0 0
      %9741 = vmatmul.mubr.bf16.gmra.mrb[0].mxu0 %v9682
      %v9742 = vpop.f32.mrb[0].mxu0
      %v9743 = vadd.f32 0.0, %v9742
      %v9744 = vpop.f32.mrb[0].mxu0
      %v9745 = vadd.f32 0.0, %v9744
      %v9746 = vpop.f32.mrb[0].mxu0
      %v9747 = vpop.f32.mrb[0].mxu0
      %9748 = vdwg.mxu0
      %9749 = vmatprep.subr.bf16.mxu0 %v9694
      %9750 = vmatpush1.bf16.msra.mxu0 %v9691
      %9751 = vmatprep.subr.bf16.mxu0 0
      %9752 = vmatpush1.bf16.msra.mxu0 0
      %9753 = vmatprep.subr.bf16.mxu0 0
      %9754 = vmatpush1.bf16.msra.mxu0 0
      %9755 = vmatprep.subr.bf16.mxu0 0
      %9756 = vmatpush1.bf16.msra.mxu0 0
      %9757 = vmatprep.subr.bf16.mxu0 0
      %9758 = vmatpush1.bf16.msra.mxu0 0
      %9759 = vmatprep.subr.bf16.mxu0 0
      %9760 = vmatpush1.bf16.msra.mxu0 0
      %9761 = vmatprep.subr.bf16.mxu0 0
      %9762 = vmatpush1.bf16.msra.mxu0 0
      %9763 = vmatprep.subr.bf16.mxu0 0
      %9764 = vmatpush1.bf16.msra.mxu0 0
      %9765 = vmatprep.subr.bf16.mxu0 0
      %9766 = vmatpush1.bf16.msra.mxu0 0
      %9767 = vmatprep.subr.bf16.mxu0 0
      %9768 = vmatpush1.bf16.msra.mxu0 0
      %9769 = vmatprep.subr.bf16.mxu0 0
      %9770 = vmatpush1.bf16.msra.mxu0 0
      %9771 = vmatprep.subr.bf16.mxu0 0
      %9772 = vmatpush1.bf16.msra.mxu0 0
      %9773 = vmatprep.subr.bf16.mxu0 0
      %9774 = vmatpush1.bf16.msra.mxu0 0
      %9775 = vmatprep.subr.bf16.mxu0 0
      %9776 = vmatpush1.bf16.msra.mxu0 0
      %9777 = vmatprep.subr.bf16.mxu0 0
      %9778 = vmatpush1.bf16.msra.mxu0 0
      %9779 = vmatprep.subr.bf16.mxu0 0
      %9780 = vmatpush1.bf16.msra.mxu0 0
      %9781 = vmatprep.mubr.bf16.mxu0 0
      %9782 = vmatmul.mubr.bf16.gmra.mrb[0].mxu0 %v9682
      %v9783 = vpop.f32.mrb[0].mxu0
      %v9784 = vadd.f32 0.0, %v9783
      %v9785 = vpop.f32.mrb[0].mxu0
      %v9786 = vadd.f32 0.0, %v9785
      %v9787 = vpop.f32.mrb[0].mxu0
      %v9788 = vpop.f32.mrb[0].mxu0
      %9789 = vdwg.mxu0
      %9790 = vmatprep.subr.bf16.mxu0 %v9700
      %9791 = vmatpush1.bf16.msra.mxu0 %v9697
      %9792 = vmatprep.subr.bf16.mxu0 0
      %9793 = vmatpush1.bf16.msra.mxu0 0
      %9794 = vmatprep.subr.bf16.mxu0 0
      %9795 = vmatpush1.bf16.msra.mxu0 0
      %9796 = vmatprep.subr.bf16.mxu0 0
      %9797 = vmatpush1.bf16.msra.mxu0 0
      %9798 = vmatprep.subr.bf16.mxu0 0
      %9799 = vmatpush1.bf16.msra.mxu0 0
      %9800 = vmatprep.subr.bf16.mxu0 0
      %9801 = vmatpush1.bf16.msra.mxu0 0
      %9802 = vmatprep.subr.bf16.mxu0 0
      %9803 = vmatpush1.bf16.msra.mxu0 0
      %9804 = vmatprep.subr.bf16.mxu0 0
      %9805 = vmatpush1.bf16.msra.mxu0 0
      %9806 = vmatprep.subr.bf16.mxu0 0
      %9807 = vmatpush1.bf16.msra.mxu0 0
      %9808 = vmatprep.subr.bf16.mxu0 0
      %9809 = vmatpush1.bf16.msra.mxu0 0
      %9810 = vmatprep.subr.bf16.mxu0 0
      %9811 = vmatpush1.bf16.msra.mxu0 0
      %9812 = vmatprep.subr.bf16.mxu0 0
      %9813 = vmatpush1.bf16.msra.mxu0 0
      %9814 = vmatprep.subr.bf16.mxu0 0
      %9815 = vmatpush1.bf16.msra.mxu0 0
      %9816 = vmatprep.subr.bf16.mxu0 0
      %9817 = vmatpush1.bf16.msra.mxu0 0
      %9818 = vmatprep.subr.bf16.mxu0 0
      %9819 = vmatpush1.bf16.msra.mxu0 0
      %9820 = vmatprep.subr.bf16.mxu0 0
      %9821 = vmatpush1.bf16.msra.mxu0 0
      %9822 = vmatprep.mubr.bf16.mxu0 0
      %9823 = vmatmul.mubr.bf16.gmra.mrb[0].mxu0 %v9682
      %v9824 = vpop.f32.mrb[0].mxu0
      %v9825 = vadd.f32 0.0, %v9824
      %v9826 = vpop.f32.mrb[0].mxu0
      %v9827 = vadd.f32 0.0, %v9826
      %v9828 = vpop.f32.mrb[0].mxu0
      %v9829 = vpop.f32.mrb[0].mxu0
      %9830 = vdwg.mxu0
      %9831 = vmatprep.subr.bf16.mxu0 %v9706
      %9832 = vmatpush1.bf16.msra.mxu0 %v9703
      %9833 = vmatprep.subr.bf16.mxu0 0
      %9834 = vmatpush1.bf16.msra.mxu0 0
      %9835 = vmatprep.subr.bf16.mxu0 0
      %9836 = vmatpush1.bf16.msra.mxu0 0
      %9837 = vmatprep.subr.bf16.mxu0 0
      %9838 = vmatpush1.bf16.msra.mxu0 0
      %9839 = vmatprep.subr.bf16.mxu0 0
      %9840 = vmatpush1.bf16.msra.mxu0 0
      %9841 = vmatprep.subr.bf16.mxu0 0
      %9842 = vmatpush1.bf16.msra.mxu0 0
      %9843 = vmatprep.subr.bf16.mxu0 0
      %9844 = vmatpush1.bf16.msra.mxu0 0
      %9845 = vmatprep.subr.bf16.mxu0 0
      %9846 = vmatpush1.bf16.msra.mxu0 0
      %9847 = vmatprep.subr.bf16.mxu0 0
      %9848 = vmatpush1.bf16.msra.mxu0 0
      %9849 = vmatprep.subr.bf16.mxu0 0
      %9850 = vmatpush1.bf16.msra.mxu0 0
      %9851 = vmatprep.subr.bf16.mxu0 0
      %9852 = vmatpush1.bf16.msra.mxu0 0
      %9853 = vmatprep.subr.bf16.mxu0 0
      %9854 = vmatpush1.bf16.msra.mxu0 0
      %9855 = vmatprep.subr.bf16.mxu0 0
      %9856 = vmatpush1.bf16.msra.mxu0 0
      %9857 = vmatprep.subr.bf16.mxu0 0
      %9858 = vmatpush1.bf16.msra.mxu0 0
      %9859 = vmatprep.subr.bf16.mxu0 0
      %9860 = vmatpush1.bf16.msra.mxu0 0
      %9861 = vmatprep.subr.bf16.mxu0 0
      %9862 = vmatpush1.bf16.msra.mxu0 0
      %9863 = vmatprep.mubr.bf16.mxu0 0
      %9864 = vmatmul.mubr.bf16.gmra.mrb[0].mxu0 %v9682
      %v9865 = vpop.f32.mrb[0].mxu0
      %v9866 = vadd.f32 0.0, %v9865
      %v9867 = vpop.f32.mrb[0].mxu0
      %v9868 = vadd.f32 0.0, %v9867
      %v9869 = vpop.f32.mrb[0].mxu0
      %v9870 = vpop.f32.mrb[0].mxu0
      %9871 = vdwg.mxu0
      %v9872 = vadd.f32 %v9631, %v9743
      %v9873 = vadd.f32 %v9632, %v9745
      %v9874 = vadd.f32 %v9633, %v9784
      %v9875 = vadd.f32 %v9634, %v9786
      %v9876 = vadd.f32 %v9635, %v9825
      %v9877 = vadd.f32 %v9636, %v9827
      %v9878 = vadd.f32 %v9637, %v9866
      %v9879 = vadd.f32 %v9638, %v9868
      %9880 = vrot.lane.b32.xlu0 %v8234, 96
      %v9881 = vpop.permute.xlu0 %9880
      %9882 = vrot.lane.b32.xlu0 %v8235, 96
      %v9883 = vpop.permute.xlu0 %9882
      %9884 = vrot.lane.b32.xlu0 %v8236, 96
      %v9885 = vpop.permute.xlu0 %9884
      %9886 = vrot.lane.b32.xlu0 %v8237, 96
      %v9887 = vpop.permute.xlu0 %9886
      %9888 = vrot.lane.b32.xlu0 %v8238, 96
      %v9889 = vpop.permute.xlu0 %9888
      %9890 = vrot.lane.b32.xlu0 %v8239, 96
      %v9891 = vpop.permute.xlu0 %9890
      %9892 = vrot.lane.b32.xlu0 %v8240, 96
      %v9893 = vpop.permute.xlu0 %9892
      %9894 = vrot.lane.b32.xlu0 %v8241, 96
      %v9895 = vpop.permute.xlu0 %9894
      %v9896 = vsel %vm3328, %v9893, %v9895
      %v9897 = vsel %vm3328, %v9891, %v9893
      %v9898 = vsel %vm3328, %v9889, %v9891
      %v9899 = vsel %vm3328, %v9887, %v9889
      %v9900 = vsel %vm3328, %v9885, %v9887
      %v9901 = vsel %vm3328, %v9883, %v9885
      %v9902 = vsel %vm3328, %v9881, %v9883
      %v9903 = vsel %vm3328, %v9895, %v9881
      %v9904 = vmul.f32 %v9902, %v3340
      %v9905 = vmul.f32 %v9901, %v3344
      %v9906 = vmul.f32 %v9900, %v3348
      %v9907 = vmul.f32 %v9899, %v3352
      %v9908 = vmul.f32 %v9898, %v3356
      %v9909 = vmul.f32 %v9897, %v3360
      %v9910 = vmul.f32 %v9896, %v3364
      %v9911 = vmul.f32 %v9903, %v3368
      %s9912 = scalar_lea.vmem %s11, 28
      %v9913 = vld [vmem:[%s9912] sm:$0xf]
      %v9914 = vpack.c.bf16 %v9904, %v9904
      %v9915 = vpack.c.bf16 %v9905, %v9905
      %v9916 = vpack.c.bf16 %v9906, %v9906
      %v9917 = vpack.c.bf16 %v9907, %v9907
      %v9918 = vpack.c.bf16 %v9908, %v9908
      %v9919 = vpack.c.bf16 %v9909, %v9909
      %v9920 = vpack.c.bf16 %v9910, %v9910
      %v9921 = vpack.c.bf16 %v9911, %v9911
      %v9923 = vsel %vm1623, %v9913, 0
      %v9926 = vsel %vm1627, %v9914, 0
      %v9929 = vsel %vm1627, %v9915, 0
      %v9932 = vsel %vm1627, %v9916, 0
      %v9935 = vsel %vm1627, %v9917, 0
      %v9938 = vsel %vm1627, %v9918, 0
      %v9941 = vsel %vm1627, %v9919, 0
      %v9944 = vsel %vm1627, %v9920, 0
      %v9947 = vsel %vm1627, %v9921, 0
      %9949 = vmatprep.subr.bf16.mxu0 %v9929
      %9950 = vmatpush1.bf16.msra.mxu0 %v9926
      %9951 = vmatprep.subr.bf16.mxu0 0
      %9952 = vmatpush1.bf16.msra.mxu0 0
      %9953 = vmatprep.subr.bf16.mxu0 0
      %9954 = vmatpush1.bf16.msra.mxu0 0
      %9955 = vmatprep.subr.bf16.mxu0 0
      %9956 = vmatpush1.bf16.msra.mxu0 0
      %9957 = vmatprep.subr.bf16.mxu0 0
      %9958 = vmatpush1.bf16.msra.mxu0 0
      %9959 = vmatprep.subr.bf16.mxu0 0
      %9960 = vmatpush1.bf16.msra.mxu0 0
      %9961 = vmatprep.subr.bf16.mxu0 0
      %9962 = vmatpush1.bf16.msra.mxu0 0
      %9963 = vmatprep.subr.bf16.mxu0 0
      %9964 = vmatpush1.bf16.msra.mxu0 0
      %9965 = vmatprep.subr.bf16.mxu0 0
      %9966 = vmatpush1.bf16.msra.mxu0 0
      %9967 = vmatprep.subr.bf16.mxu0 0
      %9968 = vmatpush1.bf16.msra.mxu0 0
      %9969 = vmatprep.subr.bf16.mxu0 0
      %9970 = vmatpush1.bf16.msra.mxu0 0
      %9971 = vmatprep.subr.bf16.mxu0 0
      %9972 = vmatpush1.bf16.msra.mxu0 0
      %9973 = vmatprep.subr.bf16.mxu0 0
      %9974 = vmatpush1.bf16.msra.mxu0 0
      %9975 = vmatprep.subr.bf16.mxu0 0
      %9976 = vmatpush1.bf16.msra.mxu0 0
      %9977 = vmatprep.subr.bf16.mxu0 0
      %9978 = vmatpush1.bf16.msra.mxu0 0
      %9979 = vmatprep.subr.bf16.mxu0 0
      %9980 = vmatpush1.bf16.msra.mxu0 0
      %9981 = vmatprep.mubr.bf16.mxu0 0
      %9982 = vmatmul.mubr.bf16.gmra.mrb[0].mxu0 %v9923
      %v9983 = vpop.f32.mrb[0].mxu0
      %v9984 = vadd.f32 0.0, %v9983
      %v9985 = vpop.f32.mrb[0].mxu0
      %v9986 = vadd.f32 0.0, %v9985
      %v9987 = vpop.f32.mrb[0].mxu0
      %v9988 = vpop.f32.mrb[0].mxu0
      %9989 = vdwg.mxu0
      %9990 = vmatprep.subr.bf16.mxu0 %v9935
      %9991 = vmatpush1.bf16.msra.mxu0 %v9932
      %9992 = vmatprep.subr.bf16.mxu0 0
      %9993 = vmatpush1.bf16.msra.mxu0 0
      %9994 = vmatprep.subr.bf16.mxu0 0
      %9995 = vmatpush1.bf16.msra.mxu0 0
      %9996 = vmatprep.subr.bf16.mxu0 0
      %9997 = vmatpush1.bf16.msra.mxu0 0
      %9998 = vmatprep.subr.bf16.mxu0 0
      %9999 = vmatpush1.bf16.msra.mxu0 0
      %10000 = vmatprep.subr.bf16.mxu0 0
      %10001 = vmatpush1.bf16.msra.mxu0 0
      %10002 = vmatprep.subr.bf16.mxu0 0
      %10003 = vmatpush1.bf16.msra.mxu0 0
      %10004 = vmatprep.subr.bf16.mxu0 0
      %10005 = vmatpush1.bf16.msra.mxu0 0
      %10006 = vmatprep.subr.bf16.mxu0 0
      %10007 = vmatpush1.bf16.msra.mxu0 0
      %10008 = vmatprep.subr.bf16.mxu0 0
      %10009 = vmatpush1.bf16.msra.mxu0 0
      %10010 = vmatprep.subr.bf16.mxu0 0
      %10011 = vmatpush1.bf16.msra.mxu0 0
      %10012 = vmatprep.subr.bf16.mxu0 0
      %10013 = vmatpush1.bf16.msra.mxu0 0
      %10014 = vmatprep.subr.bf16.mxu0 0
      %10015 = vmatpush1.bf16.msra.mxu0 0
      %10016 = vmatprep.subr.bf16.mxu0 0
      %10017 = vmatpush1.bf16.msra.mxu0 0
      %10018 = vmatprep.subr.bf16.mxu0 0
      %10019 = vmatpush1.bf16.msra.mxu0 0
      %10020 = vmatprep.subr.bf16.mxu0 0
      %10021 = vmatpush1.bf16.msra.mxu0 0
      %10022 = vmatprep.mubr.bf16.mxu0 0
      %10023 = vmatmul.mubr.bf16.gmra.mrb[0].mxu0 %v9923
      %v10024 = vpop.f32.mrb[0].mxu0
      %v10025 = vadd.f32 0.0, %v10024
      %v10026 = vpop.f32.mrb[0].mxu0
      %v10027 = vadd.f32 0.0, %v10026
      %v10028 = vpop.f32.mrb[0].mxu0
      %v10029 = vpop.f32.mrb[0].mxu0
      %10030 = vdwg.mxu0
      %10031 = vmatprep.subr.bf16.mxu0 %v9941
      %10032 = vmatpush1.bf16.msra.mxu0 %v9938
      %10033 = vmatprep.subr.bf16.mxu0 0
      %10034 = vmatpush1.bf16.msra.mxu0 0
      %10035 = vmatprep.subr.bf16.mxu0 0
      %10036 = vmatpush1.bf16.msra.mxu0 0
      %10037 = vmatprep.subr.bf16.mxu0 0
      %10038 = vmatpush1.bf16.msra.mxu0 0
      %10039 = vmatprep.subr.bf16.mxu0 0
      %10040 = vmatpush1.bf16.msra.mxu0 0
      %10041 = vmatprep.subr.bf16.mxu0 0
      %10042 = vmatpush1.bf16.msra.mxu0 0
      %10043 = vmatprep.subr.bf16.mxu0 0
      %10044 = vmatpush1.bf16.msra.mxu0 0
      %10045 = vmatprep.subr.bf16.mxu0 0
      %10046 = vmatpush1.bf16.msra.mxu0 0
      %10047 = vmatprep.subr.bf16.mxu0 0
      %10048 = vmatpush1.bf16.msra.mxu0 0
      %10049 = vmatprep.subr.bf16.mxu0 0
      %10050 = vmatpush1.bf16.msra.mxu0 0
      %10051 = vmatprep.subr.bf16.mxu0 0
      %10052 = vmatpush1.bf16.msra.mxu0 0
      %10053 = vmatprep.subr.bf16.mxu0 0
      %10054 = vmatpush1.bf16.msra.mxu0 0
      %10055 = vmatprep.subr.bf16.mxu0 0
      %10056 = vmatpush1.bf16.msra.mxu0 0
      %10057 = vmatprep.subr.bf16.mxu0 0
      %10058 = vmatpush1.bf16.msra.mxu0 0
      %10059 = vmatprep.subr.bf16.mxu0 0
      %10060 = vmatpush1.bf16.msra.mxu0 0
      %10061 = vmatprep.subr.bf16.mxu0 0
      %10062 = vmatpush1.bf16.msra.mxu0 0
      %10063 = vmatprep.mubr.bf16.mxu0 0
      %10064 = vmatmul.mubr.bf16.gmra.mrb[0].mxu0 %v9923
      %v10065 = vpop.f32.mrb[0].mxu0
      %v10066 = vadd.f32 0.0, %v10065
      %v10067 = vpop.f32.mrb[0].mxu0
      %v10068 = vadd.f32 0.0, %v10067
      %v10069 = vpop.f32.mrb[0].mxu0
      %v10070 = vpop.f32.mrb[0].mxu0
      %10071 = vdwg.mxu0
      %10072 = vmatprep.subr.bf16.mxu0 %v9947
      %10073 = vmatpush1.bf16.msra.mxu0 %v9944
      %10074 = vmatprep.subr.bf16.mxu0 0
      %10075 = vmatpush1.bf16.msra.mxu0 0
      %10076 = vmatprep.subr.bf16.mxu0 0
      %10077 = vmatpush1.bf16.msra.mxu0 0
      %10078 = vmatprep.subr.bf16.mxu0 0
      %10079 = vmatpush1.bf16.msra.mxu0 0
      %10080 = vmatprep.subr.bf16.mxu0 0
      %10081 = vmatpush1.bf16.msra.mxu0 0
      %10082 = vmatprep.subr.bf16.mxu0 0
      %10083 = vmatpush1.bf16.msra.mxu0 0
      %10084 = vmatprep.subr.bf16.mxu0 0
      %10085 = vmatpush1.bf16.msra.mxu0 0
      %10086 = vmatprep.subr.bf16.mxu0 0
      %10087 = vmatpush1.bf16.msra.mxu0 0
      %10088 = vmatprep.subr.bf16.mxu0 0
      %10089 = vmatpush1.bf16.msra.mxu0 0
      %10090 = vmatprep.subr.bf16.mxu0 0
      %10091 = vmatpush1.bf16.msra.mxu0 0
      %10092 = vmatprep.subr.bf16.mxu0 0
      %10093 = vmatpush1.bf16.msra.mxu0 0
      %10094 = vmatprep.subr.bf16.mxu0 0
      %10095 = vmatpush1.bf16.msra.mxu0 0
      %10096 = vmatprep.subr.bf16.mxu0 0
      %10097 = vmatpush1.bf16.msra.mxu0 0
      %10098 = vmatprep.subr.bf16.mxu0 0
      %10099 = vmatpush1.bf16.msra.mxu0 0
      %10100 = vmatprep.subr.bf16.mxu0 0
      %10101 = vmatpush1.bf16.msra.mxu0 0
      %10102 = vmatprep.subr.bf16.mxu0 0
      %10103 = vmatpush1.bf16.msra.mxu0 0
      %10104 = vmatprep.mubr.bf16.mxu0 0
      %10105 = vmatmul.mubr.bf16.gmra.mrb[0].mxu0 %v9923
      %v10106 = vpop.f32.mrb[0].mxu0
      %v10107 = vadd.f32 0.0, %v10106
      %v10108 = vpop.f32.mrb[0].mxu0
      %v10109 = vadd.f32 0.0, %v10108
      %v10110 = vpop.f32.mrb[0].mxu0
      %v10111 = vpop.f32.mrb[0].mxu0
      %10112 = vdwg.mxu0
      %v10113 = vadd.f32 %v9872, %v9984
      %v10114 = vadd.f32 %v9873, %v9986
      %v10115 = vadd.f32 %v9874, %v10025
      %v10116 = vadd.f32 %v9875, %v10027
      %v10117 = vadd.f32 %v9876, %v10066
      %v10118 = vadd.f32 %v9877, %v10068
      %v10119 = vadd.f32 %v9878, %v10107
      %v10120 = vadd.f32 %v9879, %v10109
      %10121 = vrot.lane.b32.xlu0 %v8234, 95
      %v10122 = vpop.permute.xlu0 %10121
      %10123 = vrot.lane.b32.xlu0 %v8235, 95
      %v10124 = vpop.permute.xlu0 %10123
      %10125 = vrot.lane.b32.xlu0 %v8236, 95
      %v10126 = vpop.permute.xlu0 %10125
      %10127 = vrot.lane.b32.xlu0 %v8237, 95
      %v10128 = vpop.permute.xlu0 %10127
      %10129 = vrot.lane.b32.xlu0 %v8238, 95
      %v10130 = vpop.permute.xlu0 %10129
      %10131 = vrot.lane.b32.xlu0 %v8239, 95
      %v10132 = vpop.permute.xlu0 %10131
      %10133 = vrot.lane.b32.xlu0 %v8240, 95
      %v10134 = vpop.permute.xlu0 %10133
      %10135 = vrot.lane.b32.xlu0 %v8241, 95
      %v10136 = vpop.permute.xlu0 %10135
      %v10137 = vsel %vm3602, %v10134, %v10136
      %v10138 = vsel %vm3602, %v10132, %v10134
      %v10139 = vsel %vm3602, %v10130, %v10132
      %v10140 = vsel %vm3602, %v10128, %v10130
      %v10141 = vsel %vm3602, %v10126, %v10128
      %v10142 = vsel %vm3602, %v10124, %v10126
      %v10143 = vsel %vm3602, %v10122, %v10124
      %v10144 = vsel %vm3602, %v10136, %v10122
      %v10145 = vmul.f32 %v10143, %v3614
      %v10146 = vmul.f32 %v10142, %v3618
      %v10147 = vmul.f32 %v10141, %v3622
      %v10148 = vmul.f32 %v10140, %v3626
      %v10149 = vmul.f32 %v10139, %v3630
      %v10150 = vmul.f32 %v10138, %v3634
      %v10151 = vmul.f32 %v10137, %v3638
      %v10152 = vmul.f32 %v10144, %v3642
      %s10153 = scalar_lea.vmem %s11, 32
      %v10154 = vld [vmem:[%s10153] sm:$0xf]
      %v10155 = vpack.c.bf16 %v10145, %v10145
      %v10156 = vpack.c.bf16 %v10146, %v10146
      %v10157 = vpack.c.bf16 %v10147, %v10147
      %v10158 = vpack.c.bf16 %v10148, %v10148
      %v10159 = vpack.c.bf16 %v10149, %v10149
      %v10160 = vpack.c.bf16 %v10150, %v10150
      %v10161 = vpack.c.bf16 %v10151, %v10151
      %v10162 = vpack.c.bf16 %v10152, %v10152
      %v10164 = vsel %vm1623, %v10154, 0
      %v10167 = vsel %vm1627, %v10155, 0
      %v10170 = vsel %vm1627, %v10156, 0
      %v10173 = vsel %vm1627, %v10157, 0
      %v10176 = vsel %vm1627, %v10158, 0
      %v10179 = vsel %vm1627, %v10159, 0
      %v10182 = vsel %vm1627, %v10160, 0
      %v10185 = vsel %vm1627, %v10161, 0
      %v10188 = vsel %vm1627, %v10162, 0
      %10190 = vmatprep.subr.bf16.mxu0 %v10170
      %10191 = vmatpush1.bf16.msra.mxu0 %v10167
      %10192 = vmatprep.subr.bf16.mxu0 0
      %10193 = vmatpush1.bf16.msra.mxu0 0
      %10194 = vmatprep.subr.bf16.mxu0 0
      %10195 = vmatpush1.bf16.msra.mxu0 0
      %10196 = vmatprep.subr.bf16.mxu0 0
      %10197 = vmatpush1.bf16.msra.mxu0 0
      %10198 = vmatprep.subr.bf16.mxu0 0
      %10199 = vmatpush1.bf16.msra.mxu0 0
      %10200 = vmatprep.subr.bf16.mxu0 0
      %10201 = vmatpush1.bf16.msra.mxu0 0
      %10202 = vmatprep.subr.bf16.mxu0 0
      %10203 = vmatpush1.bf16.msra.mxu0 0
      %10204 = vmatprep.subr.bf16.mxu0 0
      %10205 = vmatpush1.bf16.msra.mxu0 0
      %10206 = vmatprep.subr.bf16.mxu0 0
      %10207 = vmatpush1.bf16.msra.mxu0 0
      %10208 = vmatprep.subr.bf16.mxu0 0
      %10209 = vmatpush1.bf16.msra.mxu0 0
      %10210 = vmatprep.subr.bf16.mxu0 0
      %10211 = vmatpush1.bf16.msra.mxu0 0
      %10212 = vmatprep.subr.bf16.mxu0 0
      %10213 = vmatpush1.bf16.msra.mxu0 0
      %10214 = vmatprep.subr.bf16.mxu0 0
      %10215 = vmatpush1.bf16.msra.mxu0 0
      %10216 = vmatprep.subr.bf16.mxu0 0
      %10217 = vmatpush1.bf16.msra.mxu0 0
      %10218 = vmatprep.subr.bf16.mxu0 0
      %10219 = vmatpush1.bf16.msra.mxu0 0
      %10220 = vmatprep.subr.bf16.mxu0 0
      %10221 = vmatpush1.bf16.msra.mxu0 0
      %10222 = vmatprep.mubr.bf16.mxu0 0
      %10223 = vmatmul.mubr.bf16.gmra.mrb[0].mxu0 %v10164
      %v10224 = vpop.f32.mrb[0].mxu0
      %v10225 = vadd.f32 0.0, %v10224
      %v10226 = vpop.f32.mrb[0].mxu0
      %v10227 = vadd.f32 0.0, %v10226
      %v10228 = vpop.f32.mrb[0].mxu0
      %v10229 = vpop.f32.mrb[0].mxu0
      %10230 = vdwg.mxu0
      %10231 = vmatprep.subr.bf16.mxu0 %v10176
      %10232 = vmatpush1.bf16.msra.mxu0 %v10173
      %10233 = vmatprep.subr.bf16.mxu0 0
      %10234 = vmatpush1.bf16.msra.mxu0 0
      %10235 = vmatprep.subr.bf16.mxu0 0
      %10236 = vmatpush1.bf16.msra.mxu0 0
      %10237 = vmatprep.subr.bf16.mxu0 0
      %10238 = vmatpush1.bf16.msra.mxu0 0
      %10239 = vmatprep.subr.bf16.mxu0 0
      %10240 = vmatpush1.bf16.msra.mxu0 0
      %10241 = vmatprep.subr.bf16.mxu0 0
      %10242 = vmatpush1.bf16.msra.mxu0 0
      %10243 = vmatprep.subr.bf16.mxu0 0
      %10244 = vmatpush1.bf16.msra.mxu0 0
      %10245 = vmatprep.subr.bf16.mxu0 0
      %10246 = vmatpush1.bf16.msra.mxu0 0
      %10247 = vmatprep.subr.bf16.mxu0 0
      %10248 = vmatpush1.bf16.msra.mxu0 0
      %10249 = vmatprep.subr.bf16.mxu0 0
      %10250 = vmatpush1.bf16.msra.mxu0 0
      %10251 = vmatprep.subr.bf16.mxu0 0
      %10252 = vmatpush1.bf16.msra.mxu0 0
      %10253 = vmatprep.subr.bf16.mxu0 0
      %10254 = vmatpush1.bf16.msra.mxu0 0
      %10255 = vmatprep.subr.bf16.mxu0 0
      %10256 = vmatpush1.bf16.msra.mxu0 0
      %10257 = vmatprep.subr.bf16.mxu0 0
      %10258 = vmatpush1.bf16.msra.mxu0 0
      %10259 = vmatprep.subr.bf16.mxu0 0
      %10260 = vmatpush1.bf16.msra.mxu0 0
      %10261 = vmatprep.subr.bf16.mxu0 0
      %10262 = vmatpush1.bf16.msra.mxu0 0
      %10263 = vmatprep.mubr.bf16.mxu0 0
      %10264 = vmatmul.mubr.bf16.gmra.mrb[0].mxu0 %v10164
      %v10265 = vpop.f32.mrb[0].mxu0
      %v10266 = vadd.f32 0.0, %v10265
      %v10267 = vpop.f32.mrb[0].mxu0
      %v10268 = vadd.f32 0.0, %v10267
      %v10269 = vpop.f32.mrb[0].mxu0
      %v10270 = vpop.f32.mrb[0].mxu0
      %10271 = vdwg.mxu0
      %10272 = vmatprep.subr.bf16.mxu0 %v10182
      %10273 = vmatpush1.bf16.msra.mxu0 %v10179
      %10274 = vmatprep.subr.bf16.mxu0 0
      %10275 = vmatpush1.bf16.msra.mxu0 0
      %10276 = vmatprep.subr.bf16.mxu0 0
      %10277 = vmatpush1.bf16.msra.mxu0 0
      %10278 = vmatprep.subr.bf16.mxu0 0
      %10279 = vmatpush1.bf16.msra.mxu0 0
      %10280 = vmatprep.subr.bf16.mxu0 0
      %10281 = vmatpush1.bf16.msra.mxu0 0
      %10282 = vmatprep.subr.bf16.mxu0 0
      %10283 = vmatpush1.bf16.msra.mxu0 0
      %10284 = vmatprep.subr.bf16.mxu0 0
      %10285 = vmatpush1.bf16.msra.mxu0 0
      %10286 = vmatprep.subr.bf16.mxu0 0
      %10287 = vmatpush1.bf16.msra.mxu0 0
      %10288 = vmatprep.subr.bf16.mxu0 0
      %10289 = vmatpush1.bf16.msra.mxu0 0
      %10290 = vmatprep.subr.bf16.mxu0 0
      %10291 = vmatpush1.bf16.msra.mxu0 0
      %10292 = vmatprep.subr.bf16.mxu0 0
      %10293 = vmatpush1.bf16.msra.mxu0 0
      %10294 = vmatprep.subr.bf16.mxu0 0
      %10295 = vmatpush1.bf16.msra.mxu0 0
      %10296 = vmatprep.subr.bf16.mxu0 0
      %10297 = vmatpush1.bf16.msra.mxu0 0
      %10298 = vmatprep.subr.bf16.mxu0 0
      %10299 = vmatpush1.bf16.msra.mxu0 0
      %10300 = vmatprep.subr.bf16.mxu0 0
      %10301 = vmatpush1.bf16.msra.mxu0 0
      %10302 = vmatprep.subr.bf16.mxu0 0
      %10303 = vmatpush1.bf16.msra.mxu0 0
      %10304 = vmatprep.mubr.bf16.mxu0 0
      %10305 = vmatmul.mubr.bf16.gmra.mrb[0].mxu0 %v10164
      %v10306 = vpop.f32.mrb[0].mxu0
      %v10307 = vadd.f32 0.0, %v10306
      %v10308 = vpop.f32.mrb[0].mxu0
      %v10309 = vadd.f32 0.0, %v10308
      %v10310 = vpop.f32.mrb[0].mxu0
      %v10311 = vpop.f32.mrb[0].mxu0
      %10312 = vdwg.mxu0
      %10313 = vmatprep.subr.bf16.mxu0 %v10188
      %10314 = vmatpush1.bf16.msra.mxu0 %v10185
      %10315 = vmatprep.subr.bf16.mxu0 0
      %10316 = vmatpush1.bf16.msra.mxu0 0
      %10317 = vmatprep.subr.bf16.mxu0 0
      %10318 = vmatpush1.bf16.msra.mxu0 0
      %10319 = vmatprep.subr.bf16.mxu0 0
      %10320 = vmatpush1.bf16.msra.mxu0 0
      %10321 = vmatprep.subr.bf16.mxu0 0
      %10322 = vmatpush1.bf16.msra.mxu0 0
      %10323 = vmatprep.subr.bf16.mxu0 0
      %10324 = vmatpush1.bf16.msra.mxu0 0
      %10325 = vmatprep.subr.bf16.mxu0 0
      %10326 = vmatpush1.bf16.msra.mxu0 0
      %10327 = vmatprep.subr.bf16.mxu0 0
      %10328 = vmatpush1.bf16.msra.mxu0 0
      %10329 = vmatprep.subr.bf16.mxu0 0
      %10330 = vmatpush1.bf16.msra.mxu0 0
      %10331 = vmatprep.subr.bf16.mxu0 0
      %10332 = vmatpush1.bf16.msra.mxu0 0
      %10333 = vmatprep.subr.bf16.mxu0 0
      %10334 = vmatpush1.bf16.msra.mxu0 0
      %10335 = vmatprep.subr.bf16.mxu0 0
      %10336 = vmatpush1.bf16.msra.mxu0 0
      %10337 = vmatprep.subr.bf16.mxu0 0
      %10338 = vmatpush1.bf16.msra.mxu0 0
      %10339 = vmatprep.subr.bf16.mxu0 0
      %10340 = vmatpush1.bf16.msra.mxu0 0
      %10341 = vmatprep.subr.bf16.mxu0 0
      %10342 = vmatpush1.bf16.msra.mxu0 0
      %10343 = vmatprep.subr.bf16.mxu0 0
      %10344 = vmatpush1.bf16.msra.mxu0 0
      %10345 = vmatprep.mubr.bf16.mxu0 0
      %10346 = vmatmul.mubr.bf16.gmra.mrb[0].mxu0 %v10164
      %v10347 = vpop.f32.mrb[0].mxu0
      %v10348 = vadd.f32 0.0, %v10347
      %v10349 = vpop.f32.mrb[0].mxu0
      %v10350 = vadd.f32 0.0, %v10349
      %v10351 = vpop.f32.mrb[0].mxu0
      %v10352 = vpop.f32.mrb[0].mxu0
      %10353 = vdwg.mxu0
      %v10354 = vadd.f32 %v10113, %v10225
      %v10355 = vadd.f32 %v10114, %v10227
      %v10356 = vadd.f32 %v10115, %v10266
      %v10357 = vadd.f32 %v10116, %v10268
      %v10358 = vadd.f32 %v10117, %v10307
      %v10359 = vadd.f32 %v10118, %v10309
      %v10360 = vadd.f32 %v10119, %v10348
      %v10361 = vadd.f32 %v10120, %v10350
      %v10362 = vld [vmem:[%s12] sm:$0xff]
      %10364 = vset.pattern.permute.xlu0 0
      %10365 = vperm.xlu0 %10364, %v10362
      %v10366 = vpop.permute.xlu0 %10365
      %v10368 = vadd.f32 %v10354, %v10366
      %v10369 = vadd.f32 %v10355, %v10366
      %v10370 = vadd.f32 %v10356, %v10366
      %v10371 = vadd.f32 %v10357, %v10366
      %v10372 = vadd.f32 %v10358, %v10366
      %v10373 = vadd.f32 %v10359, %v10366
      %v10374 = vadd.f32 %v10360, %v10366
      %v10375 = vadd.f32 %v10361, %v10366
      %vm10376 = vcmp.ge.f32.partialorder %v10368, 0.0
      %vm10377 = vcmp.ge.f32.partialorder %v10369, 0.0
      %vm10378 = vcmp.ge.f32.partialorder %v10370, 0.0
      %vm10379 = vcmp.ge.f32.partialorder %v10371, 0.0
      %vm10380 = vcmp.ge.f32.partialorder %v10372, 0.0
      %vm10381 = vcmp.ge.f32.partialorder %v10373, 0.0
      %vm10382 = vcmp.ge.f32.partialorder %v10374, 0.0
      %vm10383 = vcmp.ge.f32.partialorder %v10375, 0.0
      %v10384 = vld [vmem:[%s13] sm:$0xff]
      %10386 = vset.pattern.permute.xlu0 0
      %10387 = vperm.xlu0 %10386, %v10384
      %v10388 = vpop.permute.xlu0 %10387
      %v10390 = vmul.f32 %v10368, %v10388
      %v10391 = vmul.f32 %v10369, %v10388
      %v10392 = vmul.f32 %v10370, %v10388
      %v10393 = vmul.f32 %v10371, %v10388
      %v10394 = vmul.f32 %v10372, %v10388
      %v10395 = vmul.f32 %v10373, %v10388
      %v10396 = vmul.f32 %v10374, %v10388
      %v10397 = vmul.f32 %v10375, %v10388
      %v10398 = vsel %vm10376, %v10368, %v10390
      %v10399 = vsel %vm10377, %v10369, %v10391
      %v10400 = vsel %vm10378, %v10370, %v10392
      %v10401 = vsel %vm10379, %v10371, %v10393
      %v10402 = vsel %vm10380, %v10372, %v10394
      %v10403 = vsel %vm10381, %v10373, %v10395
      %v10404 = vsel %vm10382, %v10374, %v10396
      %v10405 = vsel %vm10383, %v10375, %v10397
      %10406 = vst [vmem:[%s514] sm:$0xff] %v10398
      %10407 = vst [vmem:[%s514 + $0x8] sm:$0xff] %v10399
      %10408 = vst [vmem:[%s514 + $0x10] sm:$0xff] %v10400
      %10409 = vst [vmem:[%s514 + $0x18] sm:$0xff] %v10401
      %10410 = vst [vmem:[%s514 + $0x20] sm:$0xff] %v10402
      %10411 = vst [vmem:[%s514 + $0x28] sm:$0xff] %v10403
      %10412 = vst [vmem:[%s514 + $0x30] sm:$0xff] %v10404
      %10413 = vst [vmem:[%s514 + $0x38] sm:$0xff] %v10405
      %p10414 = scmp.lt.s32.totalorder %s26, 1
      %s10415 = scalar_select %p10414, %s26, 1
      %s10416 = smul.addr %s10415, 8
      %s10417 = smul.addr %s10416, 8
      %s10418 = scalar_lea.vmem %s15, %s10417
      // Predicated region
      $region81: #{up_forward.1} parent=79 // pred_check
        %p10419 = pneg %p369
      $region82: #{up_forward.1} parent=79 // pred_check_branch
        %10421 = sbr.rel (%p10419) target = $region84
      $region83: #{up_forward.1} parent=79 // pred_region
        _
      $region84: #{up_forward.1} parent=79 // pred_fallthru
        _
    $region80: #{up_forward.1} parent=5 // pred_fallthru
      _
    %p10422 = scmp.le.s32.totalorder 2, %s21
    // Predicated region
    $region85: #{up_forward.1} parent=5 // pred_check
      %p10423 = pneg %p10422
    $region86: #{up_forward.1} parent=5 // pred_check_branch
      %10425 = sbr.rel (%p10423) target = $region88
    $region87: #{up_forward.1} parent=5 // pred_region
      %s10426 = ssub.s32 %s21, 2
      // Predicated region
      $region89: #{up_forward.1} parent=87 // pred_check
        %p10427 = pneg %p375
      $region90: #{up_forward.1} parent=87 // pred_check_branch
        %10429 = sbr.rel (%p10427) target = $region92
      $region91: #{up_forward.1} parent=87 // pred_region
        %p10430 = scmp.lt.s32.totalorder %s27, 1
        %s10431 = scalar_select %p10430, %s27, 1
        %s10432 = smul.addr %s10431, 8
        %s10433 = smul.addr %s10432, 8
        %s10434 = scalar_lea.vmem %s15, %s10433
      $region92: #{up_forward.1} parent=87 // pred_fallthru
        _
    $region88: #{up_forward.1} parent=5 // pred_fallthru
      _
  $region6: #{up_forward.1} parent=0 // loop_footer
    %s25 = sadd.s32 1, %s21
  $region7: #{up_forward.1} parent=0 // loop_footer_branch
    %20 = sbr.rel target = $region3
  $region8: #{up_forward.1} parent=0 // loop_exit
    _

</llo_original>
